<compile_context>
chip_gen: v7x
topology: tpu7x:2x2x1
jax: 0.10.0
libtpu: 0.0.40
codegen_flags: <defaults>
</compile_context>

<pallas_src>
import functools
import math

import jax
import jax.numpy as jnp
from jax.experimental import pallas as pl
from jax.experimental.pallas import tpu as pltpu

LANE = 128


def _round_up(x, m):
    return (x + m - 1) // m * m


def _cdiv(a, b):
    return (a + b - 1) // b


def _pad_to(a, axis, size):
    pad = size - a.shape[axis]
    if pad <= 0:
        return a
    widths = [(0, 0)] * a.ndim
    widths[axis] = (0, pad)
    return jnp.pad(a, widths)


def _vmem_capacity_bytes():
    """Physical VMEM of the attached TPU (conservative 64 MiB fallback = v7x)."""
    try:
        info = pltpu.get_tpu_info()
        for name in ("vmem_capacity_bytes", "vmem_bytes"):
            cap = getattr(info, name, None)
            if cap:
                return int(cap)
    except Exception:
        pass
    try:
        kind = jax.devices()[0].device_kind.lower()
        if "v5" in kind or "v6" in kind:
            return 128 << 20
    except Exception:
        pass
    return 64 << 20


def _head_kernel(x1_ref, x2_ref, wf_ref, bf_ref, w1a_ref, w1b_ref, w1c_ref,
                 b1_ref, w2_ref, b2_ref, o_ref, acc_ref, *, inv_s, tb):
    j = pl.program_id(1)

    @pl.when(j == 0)
    def _init():
        acc_ref[...] = jnp.zeros_like(acc_ref)

    # Streaming global-average-pool: f32 accumulation of this S-chunk (XLU reduce
    # over the lane axis).  No full-tile f32 upcast temporary is materialised.
    acc_ref[0] += jnp.sum(x1_ref[...], axis=-1, dtype=jnp.float32)
    acc_ref[1] += jnp.sum(x2_ref[...], axis=-1, dtype=jnp.float32)

    @pl.when(j == pl.num_programs(1) - 1)
    def _finalize():
        f32 = jnp.float32
        # Both streams share self.f -> one stacked MXU matmul.
        p = jnp.concatenate([acc_ref[0], acc_ref[1]], axis=0) * inv_s  # (2*tb, C)
        z = jnp.dot(p, wf_ref[...], preferred_element_type=f32) + bf_ref[...]
        z1 = z[:tb]
        z2 = z[tb:]
        # Pairwise comparison features (padded lanes stay exactly zero).
        c1 = z1 * z1 - z2 * z2
        c2 = (z1 - z2) * (z1 - z2)
        c3 = z1 * z2
        # fc[0] without the concat: three accumulated dots against W1 row-slices.
        h = (jnp.dot(c1, w1a_ref[...], preferred_element_type=f32)
             + jnp.dot(c2, w1b_ref[...], preferred_element_type=f32)
             + jnp.dot(c3, w1c_ref[...], preferred_element_type=f32)
             + b1_ref[...])
        h = jnp.maximum(h, 0.0)
        out = jnp.dot(h, w2_ref[...], preferred_element_type=f32) + b2_ref[...]
        o_ref[0] = out.astype(o_ref.dtype)


@functools.partial(jax.jit, static_argnames=("s_tile_cap",))
def swin_identification_head(fea1, fea2, wf, bf_, w1, b1, w2, b2, *,
                             s_tile_cap=None):
    """Fused post-backbone head of `video_swin_identification`.

    fea1, fea2 : [B, C, D, H, W] frozen swin_base feature maps (C = 384 or 768),
                 consumed in their native channels-first layout.
    wf, bf_    : self.f     = Linear(C, 64)    stored as [C, 64], [64]
    w1, b1     : self.fc[0] = Linear(192, 64)  stored as [192, 64], [64]
    w2, b2     : self.fc[2] = Linear(64, 5)    stored as [64, 5],  [5]
    returns    : [B, 5] float32 logits (f32 math, matching the PyTorch module).
    """
    B, C, D, H, W = fea1.shape
    S = D * H * W
    proj = wf.shape[1]
    hid = w1.shape[1]
    n_cls = w2.shape[1]
    assert w1.shape[0] == 3 * proj and w2.shape[0] == hid

    proj_p = _round_up(proj, LANE)
    hid_p = _round_up(hid, LANE)
    out_p = _round_up(n_cls, LANE)

    # Native [B, C, S] view: free (contiguous) reshape, no HBM re-materialisation.
    x1 = fea1.reshape(B, C, S)
    x2 = fea2.reshape(B, C, S)

    # Lane-dense f32 weights (< 0.5 MiB total); fc[0] pre-split into the three
    # 64-row slices multiplying c1 / c2 / c3 so the kernel needs no concat.
    wf_p = _pad_to(wf, 1, proj_p).astype(jnp.float32)
    bf_p = _pad_to(bf_.reshape(1, proj), 1, proj_p).astype(jnp.float32)
    w1s = [_pad_to(_pad_to(w1[k * proj:(k + 1) * proj], 0, proj_p), 1, hid_p)
           .astype(jnp.float32) for k in range(3)]
    b1_p = _pad_to(b1.reshape(1, hid), 1, hid_p).astype(jnp.float32)
    w2_p = _pad_to(_pad_to(w2, 0, hid_p), 1, out_p).astype(jnp.float32)
    b2_p = _pad_to(b2.reshape(1, n_cls), 1, out_p).astype(jnp.float32)

    # ---- per-generation VMEM budget and tile plan --------------------------------
    vmem_cap = _vmem_capacity_bytes()
    w_elems = (C * proj_p + 3 * proj_p * hid_p + hid_p * out_p
               + proj_p + hid_p + out_p)
    resident_w_bytes = 2 * 4 * w_elems                    # double-buffered f32
    act_budget = max(2 << 20, int(vmem_cap * 0.6) - resident_w_bytes - (2 << 20))

    itemsize = jnp.dtype(fea1.dtype).itemsize             # f32 (or bf16 backbone out)
    row_bytes = 4 * C * itemsize                          # 2 streams x 2 buffers

    # S axis: reduction grid axis with a 128-multiple tile that divides S; if S is
    # not 128-aligned and fits, a single full-extent block avoids any pad / mask.
    if S % LANE == 0 or S * row_bytes > act_budget:
        s_p = _round_up(S, LANE)
        if s_p != S:
            # TODO(synk): rare fallback (huge non-128-aligned S) pays one extra
            # activation copy for the host-side pad.
            x1 = _pad_to(x1, 2, s_p)
            x2 = _pad_to(x2, 2, s_p)
        cap = max(LANE, s_tile_cap) if s_tile_cap else s_p
        ts = LANE
        d = LANE
        while d <= s_p:
            if s_p % d == 0 and d <= cap and 8 * d * row_bytes <= act_budget:
                ts = d
            d += LANE
    else:
        s_p, ts = S, S
    ns = s_p // ts

    # Batch axis: as many rows per tile as fits (capped at 64 to bound padding),
    # always >= 2 tiles (v7x megacore), split chosen to minimise padded rows.
    tb_max = max(1, min(64, act_budget // (ts * row_bytes)))
    tb_max = min(tb_max, B)
    nb_min = max(_cdiv(B, tb_max), 2 if B >= 2 else 1)
    best = None
    for nb_try in range(nb_min, nb_min + 9):
        tb_try = _cdiv(B, nb_try)
        waste = nb_try * tb_try - B
        if best is None or waste < best[0]:
            best = (waste, nb_try, tb_try)
        if waste == 0:
            break
    _, nb, tb = best
    b_p = nb * tb
    if b_p != B:
        x1 = _pad_to(x1, 0, b_p)
        x2 = _pad_to(x2, 0, b_p)

    # ---- explicit VMEM limit + cost hint ------------------------------------------
    x_block = tb * C * ts * itemsize
    needed = (2 * 2 * x_block                  # 2 streams x 2 pipeline buffers
              + resident_w_bytes
              + 2 * tb * out_p * 4             # output tile (double-buffered)
              + 2 * tb * C * 4)                # f32 pooling accumulator scratch
    vmem_limit = int(min(max(needed + (4 << 20), 24 << 20), int(vmem_cap * 0.8)))

    flops = int(2 * b_p * C * s_p                        # pooling adds (both streams)
                + 2 * (2 * b_p) * C * proj_p             # shared projection
                + 2 * b_p * 3 * proj_p * hid_p           # fc[0]
                + 2 * b_p * hid_p * out_p)               # fc[2]
    bytes_accessed = int(2 * b_p * C * s_p * itemsize + 4 * w_elems + b_p * out_p * 4)

    out = pl.pallas_call(
        functools.partial(_head_kernel, inv_s=1.0 / S, tb=tb),
        out_shape=jax.ShapeDtypeStruct((nb, tb, out_p), jnp.float32),
        grid_spec=pltpu.PrefetchScalarGridSpec(
            num_scalar_prefetch=0,
            grid=(nb, ns),
            in_specs=[
                pl.BlockSpec((tb, C, ts), lambda i, j: (i, 0, j)),     # x1 chunk
                pl.BlockSpec((tb, C, ts), lambda i, j: (i, 0, j)),     # x2 chunk
                pl.BlockSpec((C, proj_p), lambda i, j: (0, 0)),        # Wf (resident)
                pl.BlockSpec((1, proj_p), lambda i, j: (0, 0)),        # bf
                pl.BlockSpec((proj_p, hid_p), lambda i, j: (0, 0)),    # W1[c1 rows]
                pl.BlockSpec((proj_p, hid_p), lambda i, j: (0, 0)),    # W1[c2 rows]
                pl.BlockSpec((proj_p, hid_p), lambda i, j: (0, 0)),    # W1[c3 rows]
                pl.BlockSpec((1, hid_p), lambda i, j: (0, 0)),         # b1
                pl.BlockSpec((hid_p, out_p), lambda i, j: (0, 0)),     # W2 (resident)
                pl.BlockSpec((1, out_p), lambda i, j: (0, 0)),         # b2
            ],
            out_specs=pl.BlockSpec((1, tb, out_p), lambda i, j: (i, 0, 0)),
            scratch_shapes=[pltpu.VMEM((2, tb, C), jnp.float32)],
        ),
        compiler_params=pltpu.CompilerParams(
            dimension_semantics=("parallel", "arbitrary"),
            vmem_limit_bytes=vmem_limit,
        ),
        cost_estimate=pl.CostEstimate(
            flops=flops, transcendentals=0, bytes_accessed=bytes_accessed),
    )(x1, x2, wf_p, bf_p, w1s[0], w1s[1], w1s[2], b1_p, w2_p, b2_p)

    return out.reshape(b_p, out_p)[:B, :n_cls]


if __name__ == "__main__":
    key = jax.random.PRNGKey(0)
    kf1, kf2, kwf, kbf, kw1, kb1, kw2, kb2 = jax.random.split(key, 8)

    # Small shapes consistent with the module (self.f = Linear(384, 64) => C = 384).
    # S = D*H*W = 256; s_tile_cap=128 forces two S-reduction grid steps.
    B, C, D, H, W = 2, 384, 4, 8, 8
    fea1 = jax.random.normal(kf1, (B, C, D, H, W), jnp.float32)
    fea2 = jax.random.normal(kf2, (B, C, D, H, W), jnp.float32)

    def linear_init(kw, kb, fan_in, fan_out):
        # mimics nn.Linear's uniform(-1/sqrt(fan_in), ...); stored [in, out]
        lim = 1.0 / math.sqrt(fan_in)
        w = jax.random.uniform(kw, (fan_in, fan_out), jnp.float32, -lim, lim)
        b = jax.random.uniform(kb, (fan_out,), jnp.float32, -lim, lim)
        return w, b

    wf, bf_ = linear_init(kwf, kbf, C, 64)         # self.f      = Linear(384, 64)
    w1, b1 = linear_init(kw1, kb1, 3 * 64, 64)     # self.fc[0]  = Linear(192, 64)
    w2, b2 = linear_init(kw2, kb2, 64, 5)          # self.fc[2]  = Linear(64, 5)

    pred = swin_identification_head(fea1, fea2, wf, bf_, w1, b1, w2, b2,
                                    s_tile_cap=128)
    jax.block_until_ready(pred)

    # Full-precision f32 reference of the PyTorch module's post-backbone math.
    def reference(f1, f2):
        hp = jax.lax.Precision.HIGHEST
        p1 = jnp.mean(f1.reshape(B, C, -1), axis=-1)
        p2 = jnp.mean(f2.reshape(B, C, -1), axis=-1)
        z1 = jnp.dot(p1, wf, precision=hp) + bf_
        z2 = jnp.dot(p2, wf, precision=hp) + bf_
        fea = jnp.concatenate([z1 ** 2 - z2 ** 2, (z1 - z2) ** 2, z1 * z2], axis=1)
        h = jnp.maximum(jnp.dot(fea, w1, precision=hp) + b1, 0.0)
        return jnp.dot(h, w2, precision=hp) + b2

    ref = reference(fea1, fea2)
    assert pred.shape == (B, 5)
    assert jnp.allclose(pred, ref, atol=5e-3, rtol=5e-3), "mismatch vs f32 reference"

    print("KERNEL_OK")
</pallas_src>

<mosaic_0001>
module attributes {stable_mosaic.version = 11 : i64} {
  func.func @_head_kernel(%arg0: i32, %arg1: i32, %arg2: memref<1x384x128xf32, #tpu.memory_space<vmem>>, %arg3: memref<1x384x128xf32, #tpu.memory_space<vmem>>, %arg4: memref<384x128xf32, #tpu.memory_space<vmem>>, %arg5: memref<1x128xf32, #tpu.memory_space<vmem>>, %arg6: memref<128x128xf32, #tpu.memory_space<vmem>>, %arg7: memref<128x128xf32, #tpu.memory_space<vmem>>, %arg8: memref<128x128xf32, #tpu.memory_space<vmem>>, %arg9: memref<1x128xf32, #tpu.memory_space<vmem>>, %arg10: memref<128x128xf32, #tpu.memory_space<vmem>>, %arg11: memref<1x128xf32, #tpu.memory_space<vmem>>, %arg12: memref<1x1x128xf32, #tpu.memory_space<vmem>>, %arg13: memref<2x1x384xf32, #tpu.memory_space<vmem>>) attributes {dimension_semantics = [#tpu.dimension_semantics<parallel>, #tpu.dimension_semantics<arbitrary>], iteration_bounds = array<i64: 2, 2>, scalar_prefetch = 0 : i64, scratch_operands = 1 : i64, tpu.core_type = #tpu.core_type<tc>, window_params = [{transform_indices = @transform_0, window_bounds = array<i64: 1, 384, 128>}, {transform_indices = @transform_1, window_bounds = array<i64: 1, 384, 128>}, {pipeline_mode = #tpu.pipeline_mode<synchronous>, transform_indices = @transform_2, window_bounds = array<i64: 384, 128>}, {pipeline_mode = #tpu.pipeline_mode<synchronous>, transform_indices = @transform_3, window_bounds = array<i64: 1, 128>}, {pipeline_mode = #tpu.pipeline_mode<synchronous>, transform_indices = @transform_4, window_bounds = array<i64: 128, 128>}, {pipeline_mode = #tpu.pipeline_mode<synchronous>, transform_indices = @transform_5, window_bounds = array<i64: 128, 128>}, {pipeline_mode = #tpu.pipeline_mode<synchronous>, transform_indices = @transform_6, window_bounds = array<i64: 128, 128>}, {pipeline_mode = #tpu.pipeline_mode<synchronous>, transform_indices = @transform_7, window_bounds = array<i64: 1, 128>}, {pipeline_mode = #tpu.pipeline_mode<synchronous>, transform_indices = @transform_8, window_bounds = array<i64: 128, 128>}, {pipeline_mode = #tpu.pipeline_mode<synchronous>, transform_indices = @transform_9, window_bounds = array<i64: 1, 128>}, {transform_indices = @transform_10, window_bounds = array<i64: 1, 1, 128>}]} {
    %c0_i32 = arith.constant 0 : i32
    %0 = arith.cmpi eq, %arg1, %c0_i32 : i32
    %1 = arith.extui %0 : i1 to i32
    %c0_i32_0 = arith.constant 0 : i32
    %2 = arith.cmpi ne, %1, %c0_i32_0 : i32
    scf.if %2 {
      %cst_19 = arith.constant 0.000000e+00 : f32
      %22 = vector.broadcast %cst_19 : f32 to vector<2x1x384xf32>
      %c0_20 = arith.constant 0 : index
      %c0_21 = arith.constant 0 : index
      %c0_22 = arith.constant 0 : index
      %23 = vector.load %arg13[%c0_20, %c0_21, %c0_22] : memref<2x1x384xf32, #tpu.memory_space<vmem>>, vector<2x1x384xf32>
      tpu.vector_store %arg13[%c0_20, %c0_21, %c0_22], %22 {strides = array<i32>} : memref<2x1x384xf32, #tpu.memory_space<vmem>>, vector<2x1x384xf32>,
    } else {
    }
    %c0 = arith.constant 0 : index
    %c0_1 = arith.constant 0 : index
    %c0_2 = arith.constant 0 : index
    %3 = vector.load %arg13[%c0, %c0_1, %c0_2] : memref<2x1x384xf32, #tpu.memory_space<vmem>>, vector<1x1x384xf32>
    %4 = vector.shape_cast %3 : vector<1x1x384xf32> to vector<1x384xf32>
    %c0_3 = arith.constant 0 : index
    %c0_4 = arith.constant 0 : index
    %c0_5 = arith.constant 0 : index
    %5 = vector.load %arg2[%c0_3, %c0_4, %c0_5] : memref<1x384x128xf32, #tpu.memory_space<vmem>>, vector<1x384x128xf32>
    %cst = arith.constant dense<0.000000e+00> : vector<1x384xf32>
    %6 = vector.multi_reduction <add>, %5, %cst [2] : vector<1x384x128xf32> to vector<1x384xf32>
    %7 = arith.addf %4, %6 : vector<1x384xf32>
    %c0_6 = arith.constant 0 : index
    %c0_7 = arith.constant 0 : index
    %c0_8 = arith.constant 0 : index
    %8 = vector.load %arg13[%c0_6, %c0_7, %c0_8] : memref<2x1x384xf32, #tpu.memory_space<vmem>>, vector<1x1x384xf32>
    %9 = vector.shape_cast %8 : vector<1x1x384xf32> to vector<1x384xf32>
    %10 = vector.shape_cast %7 : vector<1x384xf32> to vector<1x1x384xf32>
    tpu.vector_store %arg13[%c0_6, %c0_7, %c0_8], %10 {strides = array<i32>} : memref<2x1x384xf32, #tpu.memory_space<vmem>>, vector<1x1x384xf32>,
    %c1 = arith.constant 1 : index
    %c0_9 = arith.constant 0 : index
    %c0_10 = arith.constant 0 : index
    %11 = vector.load %arg13[%c1, %c0_9, %c0_10] : memref<2x1x384xf32, #tpu.memory_space<vmem>>, vector<1x1x384xf32>
    %12 = vector.shape_cast %11 : vector<1x1x384xf32> to vector<1x384xf32>
    %c0_11 = arith.constant 0 : index
    %c0_12 = arith.constant 0 : index
    %c0_13 = arith.constant 0 : index
    %13 = vector.load %arg3[%c0_11, %c0_12, %c0_13] : memref<1x384x128xf32, #tpu.memory_space<vmem>>, vector<1x384x128xf32>
    %cst_14 = arith.constant dense<0.000000e+00> : vector<1x384xf32>
    %14 = vector.multi_reduction <add>, %13, %cst_14 [2] : vector<1x384x128xf32> to vector<1x384xf32>
    %15 = arith.addf %12, %14 : vector<1x384xf32>
    %c1_15 = arith.constant 1 : index
    %c0_16 = arith.constant 0 : index
    %c0_17 = arith.constant 0 : index
    %16 = vector.load %arg13[%c1_15, %c0_16, %c0_17] : memref<2x1x384xf32, #tpu.memory_space<vmem>>, vector<1x1x384xf32>
    %17 = vector.shape_cast %16 : vector<1x1x384xf32> to vector<1x384xf32>
    %18 = vector.shape_cast %15 : vector<1x384xf32> to vector<1x1x384xf32>
    tpu.vector_store %arg13[%c1_15, %c0_16, %c0_17], %18 {strides = array<i32>} : memref<2x1x384xf32, #tpu.memory_space<vmem>>, vector<1x1x384xf32>,
    %c1_i32 = arith.constant 1 : i32
    %19 = arith.cmpi eq, %arg1, %c1_i32 : i32
    %20 = arith.extui %19 : i1 to i32
    %c0_i32_18 = arith.constant 0 : i32
    %21 = arith.cmpi ne, %20, %c0_i32_18 : i32
    scf.if %21 {
      %c0_19 = arith.constant 0 : index
      %c0_20 = arith.constant 0 : index
      %c0_21 = arith.constant 0 : index
      %22 = vector.load %arg13[%c0_19, %c0_20, %c0_21] : memref<2x1x384xf32, #tpu.memory_space<vmem>>, vector<1x1x384xf32>
      %23 = vector.shape_cast %22 : vector<1x1x384xf32> to vector<1x384xf32>
      %c1_22 = arith.constant 1 : index
      %c0_23 = arith.constant 0 : index
      %c0_24 = arith.constant 0 : index
      %24 = vector.load %arg13[%c1_22, %c0_23, %c0_24] : memref<2x1x384xf32, #tpu.memory_space<vmem>>, vector<1x1x384xf32>
      %25 = vector.shape_cast %24 : vector<1x1x384xf32> to vector<1x384xf32>
      %26 = tpu.concatenate %23, %25 in 0 : vector<1x384xf32>, vector<1x384xf32> -> vector<2x384xf32>
      %cst_25 = arith.constant 3.906250e-03 : f32
      %27 = vector.broadcast %cst_25 : f32 to vector<2x384xf32>
      %28 = arith.mulf %26, %27 : vector<2x384xf32>
      %c0_26 = arith.constant 0 : index
      %c0_27 = arith.constant 0 : index
      %29 = vector.load %arg4[%c0_26, %c0_27] : memref<384x128xf32, #tpu.memory_space<vmem>>, vector<384x128xf32>
      %cst_28 = arith.constant dense<0.000000e+00> : vector<2x128xf32>
      %30 = tpu.matmul %28, %29, %cst_28 {dimension_numbers = #tpu.dot_dimension_numbers<[1], [0], [0], [1], [0, 0, 1, 1], [], []>} : vector<2x384xf32>, vector<384x128xf32>, vector<2x128xf32> -> vector<2x128xf32>
      %c0_29 = arith.constant 0 : index
      %c0_30 = arith.constant 0 : index
      %31 = vector.load %arg5[%c0_29, %c0_30] : memref<1x128xf32, #tpu.memory_space<vmem>>, vector<1x128xf32>
      %32 = vector.broadcast %31 : vector<1x128xf32> to vector<2x128xf32>
      %33 = arith.addf %30, %32 : vector<2x128xf32>
      %34 = vector.extract_strided_slice %33 {offsets = [0, 0], sizes = [1, 128], strides = [1, 1]} : vector<2x128xf32> to vector<1x128xf32>
      %35 = vector.extract_strided_slice %33 {offsets = [1, 0], sizes = [1, 128], strides = [1, 1]} : vector<2x128xf32> to vector<1x128xf32>
      %36 = arith.mulf %34, %34 : vector<1x128xf32>
      %37 = arith.mulf %35, %35 : vector<1x128xf32>
      %38 = arith.subf %36, %37 : vector<1x128xf32>
      %39 = arith.subf %34, %35 : vector<1x128xf32>
      %40 = arith.subf %34, %35 : vector<1x128xf32>
      %41 = arith.mulf %39, %40 : vector<1x128xf32>
      %42 = arith.mulf %34, %35 : vector<1x128xf32>
      %c0_31 = arith.constant 0 : index
      %c0_32 = arith.constant 0 : index
      %43 = vector.load %arg6[%c0_31, %c0_32] : memref<128x128xf32, #tpu.memory_space<vmem>>, vector<128x128xf32>
      %cst_33 = arith.constant dense<0.000000e+00> : vector<1x128xf32>
      %44 = tpu.matmul %38, %43, %cst_33 {dimension_numbers = #tpu.dot_dimension_numbers<[1], [0], [0], [1], [0, 0, 1, 1], [], []>} : vector<1x128xf32>, vector<128x128xf32>, vector<1x128xf32> -> vector<1x128xf32>
      %c0_34 = arith.constant 0 : index
      %c0_35 = arith.constant 0 : index
      %45 = vector.load %arg7[%c0_34, %c0_35] : memref<128x128xf32, #tpu.memory_space<vmem>>, vector<128x128xf32>
      %cst_36 = arith.constant dense<0.000000e+00> : vector<1x128xf32>
      %46 = tpu.matmul %41, %45, %cst_36 {dimension_numbers = #tpu.dot_dimension_numbers<[1], [0], [0], [1], [0, 0, 1, 1], [], []>} : vector<1x128xf32>, vector<128x128xf32>, vector<1x128xf32> -> vector<1x128xf32>
      %47 = arith.addf %44, %46 : vector<1x128xf32>
      %c0_37 = arith.constant 0 : index
      %c0_38 = arith.constant 0 : index
      %48 = vector.load %arg8[%c0_37, %c0_38] : memref<128x128xf32, #tpu.memory_space<vmem>>, vector<128x128xf32>
      %cst_39 = arith.constant dense<0.000000e+00> : vector<1x128xf32>
      %49 = tpu.matmul %42, %48, %cst_39 {dimension_numbers = #tpu.dot_dimension_numbers<[1], [0], [0], [1], [0, 0, 1, 1], [], []>} : vector<1x128xf32>, vector<128x128xf32>, vector<1x128xf32> -> vector<1x128xf32>
      %50 = arith.addf %47, %49 : vector<1x128xf32>
      %c0_40 = arith.constant 0 : index
      %c0_41 = arith.constant 0 : index
      %51 = vector.load %arg9[%c0_40, %c0_41] : memref<1x128xf32, #tpu.memory_space<vmem>>, vector<1x128xf32>
      %52 = arith.addf %50, %51 : vector<1x128xf32>
      %cst_42 = arith.constant 0.000000e+00 : f32
      %53 = vector.broadcast %cst_42 : f32 to vector<1x128xf32>
      %54 = arith.maximumf %52, %53 : vector<1x128xf32>
      %c0_43 = arith.constant 0 : index
      %c0_44 = arith.constant 0 : index
      %55 = vector.load %arg10[%c0_43, %c0_44] : memref<128x128xf32, #tpu.memory_space<vmem>>, vector<128x128xf32>
      %cst_45 = arith.constant dense<0.000000e+00> : vector<1x128xf32>
      %56 = tpu.matmul %54, %55, %cst_45 {dimension_numbers = #tpu.dot_dimension_numbers<[1], [0], [0], [1], [0, 0, 1, 1], [], []>} : vector<1x128xf32>, vector<128x128xf32>, vector<1x128xf32> -> vector<1x128xf32>
      %c0_46 = arith.constant 0 : index
      %c0_47 = arith.constant 0 : index
      %57 = vector.load %arg11[%c0_46, %c0_47] : memref<1x128xf32, #tpu.memory_space<vmem>>, vector<1x128xf32>
      %58 = arith.addf %56, %57 : vector<1x128xf32>
      %c0_48 = arith.constant 0 : index
      %c0_49 = arith.constant 0 : index
      %c0_50 = arith.constant 0 : index
      %59 = vector.load %arg12[%c0_48, %c0_49, %c0_50] : memref<1x1x128xf32, #tpu.memory_space<vmem>>, vector<1x1x128xf32>
      %60 = vector.shape_cast %59 : vector<1x1x128xf32> to vector<1x128xf32>
      %61 = vector.shape_cast %58 : vector<1x128xf32> to vector<1x1x128xf32>
      tpu.vector_store %arg12[%c0_48, %c0_49, %c0_50], %61 {strides = array<i32>} : memref<1x1x128xf32, #tpu.memory_space<vmem>>, vector<1x1x128xf32>,
    } else {
    }
    return
  }
  func.func @transform_0(%arg0: i32, %arg1: i32) -> (i32, i32, i32) {
    %c0_i32 = arith.constant 0 : i32
    %c0_i32_0 = arith.constant 0 : i32
    return %arg0, %c0_i32, %arg1 : i32, i32, i32
  }
  func.func @transform_1(%arg0: i32, %arg1: i32) -> (i32, i32, i32) {
    %c0_i32 = arith.constant 0 : i32
    %c0_i32_0 = arith.constant 0 : i32
    return %arg0, %c0_i32, %arg1 : i32, i32, i32
  }
  func.func @transform_2(%arg0: i32, %arg1: i32) -> (i32, i32) {
    %c0_i32 = arith.constant 0 : i32
    %c0_i32_0 = arith.constant 0 : i32
    %c0_i32_1 = arith.constant 0 : i32
    return %c0_i32, %c0_i32_0 : i32, i32
  }
  func.func @transform_3(%arg0: i32, %arg1: i32) -> (i32, i32) {
    %c0_i32 = arith.constant 0 : i32
    %c0_i32_0 = arith.constant 0 : i32
    %c0_i32_1 = arith.constant 0 : i32
    return %c0_i32, %c0_i32_0 : i32, i32
  }
  func.func @transform_4(%arg0: i32, %arg1: i32) -> (i32, i32) {
    %c0_i32 = arith.constant 0 : i32
    %c0_i32_0 = arith.constant 0 : i32
    %c0_i32_1 = arith.constant 0 : i32
    return %c0_i32, %c0_i32_0 : i32, i32
  }
  func.func @transform_5(%arg0: i32, %arg1: i32) -> (i32, i32) {
    %c0_i32 = arith.constant 0 : i32
    %c0_i32_0 = arith.constant 0 : i32
    %c0_i32_1 = arith.constant 0 : i32
    return %c0_i32, %c0_i32_0 : i32, i32
  }
  func.func @transform_6(%arg0: i32, %arg1: i32) -> (i32, i32) {
    %c0_i32 = arith.constant 0 : i32
    %c0_i32_0 = arith.constant 0 : i32
    %c0_i32_1 = arith.constant 0 : i32
    return %c0_i32, %c0_i32_0 : i32, i32
  }
  func.func @transform_7(%arg0: i32, %arg1: i32) -> (i32, i32) {
    %c0_i32 = arith.constant 0 : i32
    %c0_i32_0 = arith.constant 0 : i32
    %c0_i32_1 = arith.constant 0 : i32
    return %c0_i32, %c0_i32_0 : i32, i32
  }
  func.func @transform_8(%arg0: i32, %arg1: i32) -> (i32, i32) {
    %c0_i32 = arith.constant 0 : i32
    %c0_i32_0 = arith.constant 0 : i32
    %c0_i32_1 = arith.constant 0 : i32
    return %c0_i32, %c0_i32_0 : i32, i32
  }
  func.func @transform_9(%arg0: i32, %arg1: i32) -> (i32, i32) {
    %c0_i32 = arith.constant 0 : i32
    %c0_i32_0 = arith.constant 0 : i32
    %c0_i32_1 = arith.constant 0 : i32
    return %c0_i32, %c0_i32_0 : i32, i32
  }
  func.func @transform_10(%arg0: i32, %arg1: i32) -> (i32, i32, i32) {
    %c0_i32 = arith.constant 0 : i32
    %c0_i32_0 = arith.constant 0 : i32
    %c0_i32_1 = arith.constant 0 : i32
    return %arg0, %c0_i32, %c0_i32_0 : i32, i32, i32
  }
}

</mosaic_0001>

<llo_original>
// kernel: swin_identification_head.1
$region0: #{swin_identification_head.1}
  #allocation0 [shape = 'u32[]', space=smem, size = 0x4, offset = 0x4, fixed_abs, tag = 'smem constant byte address 0x4 - core index']
  #allocation1 [shape = 'u32[144,128]{1,0:T(1,128)}', space=vmem, size = 0x12000, scoped, tag = 'internal scratch']
  #allocation2 [shape = 'f32[2,1,384]{2,1,0:T(1,128)}', space=vmem, size = 0xc00, scoped, tag = 'scratch operand']
  %s0 = inlined_call_operand.vmem [shape: f32[2,384,256], index: 0, kind: input, shape index: {}]
  %s1 = inlined_call_operand.vmem [shape: f32[2,384,256], index: 1, kind: input, shape index: {}]
  %s2 = inlined_call_operand.vmem [shape: f32[384,128], index: 2, kind: input, shape index: {}]
  %s3 = inlined_call_operand.vmem [shape: f32[1,128], index: 3, kind: input, shape index: {}]
  %s4 = inlined_call_operand.vmem [shape: f32[128,128], index: 4, kind: input, shape index: {}]
  %s5 = inlined_call_operand.vmem [shape: f32[128,128], index: 5, kind: input, shape index: {}]
  %s6 = inlined_call_operand.vmem [shape: f32[128,128], index: 6, kind: input, shape index: {}]
  %s7 = inlined_call_operand.vmem [shape: f32[1,128], index: 7, kind: input, shape index: {}]
  %s8 = inlined_call_operand.vmem [shape: f32[128,128], index: 8, kind: input, shape index: {}]
  %s9 = inlined_call_operand.vmem [shape: f32[1,128], index: 9, kind: input, shape index: {}]
  %s10 = inlined_call_operand.hbm [shape: f32[2,1,128], index: 10, kind: output, shape index: {}]
  %s11 = sld [smem:[#allocation0]]
  $region157: #{swin_identification_head.1} parent=0
    _
  %s13 = ssub.s32 1, %s11
  %s14 = scalar_select 0, %s13, %s11
  $region1: #{swin_identification_head.1} parent=0
    #allocation3 [shape = 'u8[393216]{0}', space=vmem, size = 0x60000, scoped, tag = 'input window, operand 0']
    #allocation4 [shape = 'u8[393216]{0}', space=vmem, size = 0x60000, scoped, tag = 'input window, operand 1']
    #allocation5 [shape = 'u8[1024]{0}', space=vmem, size = 0x400, scoped, tag = 'output window, operand 0']
    #allocation6 [shape = 's32[2]{0}', space=sflag, size = 0x8, scoped, tag = 'scoped memory for swin_identification_head.1']
    %15 = vsyncpa [#allocation6], 0
    %s16 = scalar_lea.sflag [#allocation6], 1
    %17 = vsyncpa %s16, 0
    loop: start=0, step=1, limit=6
    $region2: #{swin_identification_head.1} parent=1 // loop_pre_header
      _
    $region3: #{swin_identification_head.1} parent=1 // loop_header
      %s19 = sphi 0, %s23
      %p20 = scmp.ge.s32.totalorder %s19, 6
      %s26 = sphi 0, %s38
      %s27 = sphi 0, %s34
      %s28 = sphi 0, %s26
      %s29 = sphi 0, %s27
      %s30 = sphi 0, %s28
      %s31 = sphi 0, %s29
      %s43 = sphi 0, %s45
      %s46 = sphi 0, %s43
      %s47 = sphi 0, %s46
      %s63 = sphi 0, %s47
      %s71 = sphi 0, %s73
      %s74 = sphi 0, %s71
      %s75 = sphi 0, %s74
      %s91 = sphi 0, %s75
      %s95 = sphi 0, %s95
      %s97 = sphi 0, %s95
      %s98 = sphi 0, %s97
      %s112 = sphi 0, %s98
      %s116 = sphi 0, %s116
      %s118 = sphi 0, %s116
      %s119 = sphi 0, %s118
      %s133 = sphi 0, %s119
      %s137 = sphi 0, %s137
      %s139 = sphi 0, %s137
      %s140 = sphi 0, %s139
      %s154 = sphi 0, %s140
      %s158 = sphi 0, %s158
      %s160 = sphi 0, %s158
      %s161 = sphi 0, %s160
      %s175 = sphi 0, %s161
      %s179 = sphi 0, %s179
      %s181 = sphi 0, %s179
      %s182 = sphi 0, %s181
      %s196 = sphi 0, %s182
      %s200 = sphi 0, %s200
      %s202 = sphi 0, %s200
      %s203 = sphi 0, %s202
      %s217 = sphi 0, %s203
      %s221 = sphi 0, %s221
      %s223 = sphi 0, %s221
      %s224 = sphi 0, %s223
      %s238 = sphi 0, %s224
      %s242 = sphi 0, %s242
      %s244 = sphi 0, %s242
      %s245 = sphi 0, %s244
      %s259 = sphi 0, %s245
      %s265 = sphi 0, %s267
      %s268 = sphi 0, %s265
      %s269 = sphi 0, %s268
      %s285 = sphi 0, %s269
    $region4: #{swin_identification_head.1} parent=1 // loop_header_branch
      %22 = sbr.rel (%p20) target = $region8
    $region5: #{swin_identification_head.1} parent=1 // loop_body
      %s24 = ssub.s32 %s19, 1
      %s25 = ssub.s32 %s19, 2
      %s32 = sadd.s32 1, %s27
      %p33 = scmp.ge.s32.totalorder %s32, 2
      %s34 = scalar_select %p33, 0, %s32
      %s35 = sadd.s32 1, %s26
      %s36 = scalar_select %p33, %s35, %s26
      %p37 = scmp.ge.s32.totalorder %s36, 2
      %s38 = scalar_select %p37, 0, %s36
      %s39 = ssub.s32 %s26, %s38
      %s40 = ssub.s32 %s27, %s34
      %s41 = sor.u32 %s39, %s40
      %p42 = scmp.eq.s32.totalorder %s41, 0
      %s44 = sadd.s32 %s43, 1
      %s45 = scalar_select %p42, %s43, %s44
      %p48 = pneg %p42
      %p49 = scmp.eq.s32.totalorder %s19, 3
      %p50 = por %p48, %p49
      %p51 = scmp.ne.s32.totalorder %s43, %s46
      %p52 = scmp.eq.s32.totalorder %s19, 0
      %p53 = por %p51, %p52
      %p54 = scmp.ne.s32.totalorder %s43, %s46
      %p55 = scmp.eq.s32.totalorder %s24, 3
      %p56 = por %p54, %p55
      %p57 = scmp.ne.s32.totalorder %s46, %s47
      %p58 = scmp.eq.s32.totalorder %s24, 0
      %p59 = por %p57, %p58
      %p60 = scmp.ne.s32.totalorder %s46, %s47
      %p61 = scmp.eq.s32.totalorder %s25, 3
      %p62 = por %p60, %p61
      %p64 = scmp.ne.s32.totalorder %s47, %s63
      %p65 = scmp.eq.s32.totalorder %s25, 0
      %p66 = por %p64, %p65
      %s67 = ssub.s32 %s26, %s38
      %s68 = ssub.s32 %s27, %s34
      %s69 = sor.u32 %s67, %s68
      %p70 = scmp.eq.s32.totalorder %s69, 0
      %s72 = sadd.s32 %s71, 1
      %s73 = scalar_select %p70, %s71, %s72
      %p76 = pneg %p70
      %p77 = scmp.eq.s32.totalorder %s19, 3
      %p78 = por %p76, %p77
      %p79 = scmp.ne.s32.totalorder %s71, %s74
      %p80 = scmp.eq.s32.totalorder %s19, 0
      %p81 = por %p79, %p80
      %p82 = scmp.ne.s32.totalorder %s71, %s74
      %p83 = scmp.eq.s32.totalorder %s24, 3
      %p84 = por %p82, %p83
      %p85 = scmp.ne.s32.totalorder %s74, %s75
      %p86 = scmp.eq.s32.totalorder %s24, 0
      %p87 = por %p85, %p86
      %p88 = scmp.ne.s32.totalorder %s74, %s75
      %p89 = scmp.eq.s32.totalorder %s25, 3
      %p90 = por %p88, %p89
      %p92 = scmp.ne.s32.totalorder %s75, %s91
      %p93 = scmp.eq.s32.totalorder %s25, 0
      %p94 = por %p92, %p93
      %s96 = sadd.s32 %s95, 1
      %p99 = scmp.eq.s32.totalorder %s19, 3
      %p100 = scmp.ne.s32.totalorder %s95, %s97
      %p101 = scmp.eq.s32.totalorder %s19, 0
      %p102 = por %p100, %p101
      %p103 = scmp.ne.s32.totalorder %s95, %s97
      %p104 = scmp.eq.s32.totalorder %s24, 3
      %p105 = por %p103, %p104
      %p106 = scmp.ne.s32.totalorder %s97, %s98
      %p107 = scmp.eq.s32.totalorder %s24, 0
      %p108 = por %p106, %p107
      %p109 = scmp.ne.s32.totalorder %s97, %s98
      %p110 = scmp.eq.s32.totalorder %s25, 3
      %p111 = por %p109, %p110
      %p113 = scmp.ne.s32.totalorder %s98, %s112
      %p114 = scmp.eq.s32.totalorder %s25, 0
      %p115 = por %p113, %p114
      %s117 = sadd.s32 %s116, 1
      %p120 = scmp.eq.s32.totalorder %s19, 3
      %p121 = scmp.ne.s32.totalorder %s116, %s118
      %p122 = scmp.eq.s32.totalorder %s19, 0
      %p123 = por %p121, %p122
      %p124 = scmp.ne.s32.totalorder %s116, %s118
      %p125 = scmp.eq.s32.totalorder %s24, 3
      %p126 = por %p124, %p125
      %p127 = scmp.ne.s32.totalorder %s118, %s119
      %p128 = scmp.eq.s32.totalorder %s24, 0
      %p129 = por %p127, %p128
      %p130 = scmp.ne.s32.totalorder %s118, %s119
      %p131 = scmp.eq.s32.totalorder %s25, 3
      %p132 = por %p130, %p131
      %p134 = scmp.ne.s32.totalorder %s119, %s133
      %p135 = scmp.eq.s32.totalorder %s25, 0
      %p136 = por %p134, %p135
      %s138 = sadd.s32 %s137, 1
      %p141 = scmp.eq.s32.totalorder %s19, 3
      %p142 = scmp.ne.s32.totalorder %s137, %s139
      %p143 = scmp.eq.s32.totalorder %s19, 0
      %p144 = por %p142, %p143
      %p145 = scmp.ne.s32.totalorder %s137, %s139
      %p146 = scmp.eq.s32.totalorder %s24, 3
      %p147 = por %p145, %p146
      %p148 = scmp.ne.s32.totalorder %s139, %s140
      %p149 = scmp.eq.s32.totalorder %s24, 0
      %p150 = por %p148, %p149
      %p151 = scmp.ne.s32.totalorder %s139, %s140
      %p152 = scmp.eq.s32.totalorder %s25, 3
      %p153 = por %p151, %p152
      %p155 = scmp.ne.s32.totalorder %s140, %s154
      %p156 = scmp.eq.s32.totalorder %s25, 0
      %p157 = por %p155, %p156
      %s159 = sadd.s32 %s158, 1
      %p162 = scmp.eq.s32.totalorder %s19, 3
      %p163 = scmp.ne.s32.totalorder %s158, %s160
      %p164 = scmp.eq.s32.totalorder %s19, 0
      %p165 = por %p163, %p164
      %p166 = scmp.ne.s32.totalorder %s158, %s160
      %p167 = scmp.eq.s32.totalorder %s24, 3
      %p168 = por %p166, %p167
      %p169 = scmp.ne.s32.totalorder %s160, %s161
      %p170 = scmp.eq.s32.totalorder %s24, 0
      %p171 = por %p169, %p170
      %p172 = scmp.ne.s32.totalorder %s160, %s161
      %p173 = scmp.eq.s32.totalorder %s25, 3
      %p174 = por %p172, %p173
      %p176 = scmp.ne.s32.totalorder %s161, %s175
      %p177 = scmp.eq.s32.totalorder %s25, 0
      %p178 = por %p176, %p177
      %s180 = sadd.s32 %s179, 1
      %p183 = scmp.eq.s32.totalorder %s19, 3
      %p184 = scmp.ne.s32.totalorder %s179, %s181
      %p185 = scmp.eq.s32.totalorder %s19, 0
      %p186 = por %p184, %p185
      %p187 = scmp.ne.s32.totalorder %s179, %s181
      %p188 = scmp.eq.s32.totalorder %s24, 3
      %p189 = por %p187, %p188
      %p190 = scmp.ne.s32.totalorder %s181, %s182
      %p191 = scmp.eq.s32.totalorder %s24, 0
      %p192 = por %p190, %p191
      %p193 = scmp.ne.s32.totalorder %s181, %s182
      %p194 = scmp.eq.s32.totalorder %s25, 3
      %p195 = por %p193, %p194
      %p197 = scmp.ne.s32.totalorder %s182, %s196
      %p198 = scmp.eq.s32.totalorder %s25, 0
      %p199 = por %p197, %p198
      %s201 = sadd.s32 %s200, 1
      %p204 = scmp.eq.s32.totalorder %s19, 3
      %p205 = scmp.ne.s32.totalorder %s200, %s202
      %p206 = scmp.eq.s32.totalorder %s19, 0
      %p207 = por %p205, %p206
      %p208 = scmp.ne.s32.totalorder %s200, %s202
      %p209 = scmp.eq.s32.totalorder %s24, 3
      %p210 = por %p208, %p209
      %p211 = scmp.ne.s32.totalorder %s202, %s203
      %p212 = scmp.eq.s32.totalorder %s24, 0
      %p213 = por %p211, %p212
      %p214 = scmp.ne.s32.totalorder %s202, %s203
      %p215 = scmp.eq.s32.totalorder %s25, 3
      %p216 = por %p214, %p215
      %p218 = scmp.ne.s32.totalorder %s203, %s217
      %p219 = scmp.eq.s32.totalorder %s25, 0
      %p220 = por %p218, %p219
      %s222 = sadd.s32 %s221, 1
      %p225 = scmp.eq.s32.totalorder %s19, 3
      %p226 = scmp.ne.s32.totalorder %s221, %s223
      %p227 = scmp.eq.s32.totalorder %s19, 0
      %p228 = por %p226, %p227
      %p229 = scmp.ne.s32.totalorder %s221, %s223
      %p230 = scmp.eq.s32.totalorder %s24, 3
      %p231 = por %p229, %p230
      %p232 = scmp.ne.s32.totalorder %s223, %s224
      %p233 = scmp.eq.s32.totalorder %s24, 0
      %p234 = por %p232, %p233
      %p235 = scmp.ne.s32.totalorder %s223, %s224
      %p236 = scmp.eq.s32.totalorder %s25, 3
      %p237 = por %p235, %p236
      %p239 = scmp.ne.s32.totalorder %s224, %s238
      %p240 = scmp.eq.s32.totalorder %s25, 0
      %p241 = por %p239, %p240
      %s243 = sadd.s32 %s242, 1
      %p246 = scmp.eq.s32.totalorder %s19, 3
      %p247 = scmp.ne.s32.totalorder %s242, %s244
      %p248 = scmp.eq.s32.totalorder %s19, 0
      %p249 = por %p247, %p248
      %p250 = scmp.ne.s32.totalorder %s242, %s244
      %p251 = scmp.eq.s32.totalorder %s24, 3
      %p252 = por %p250, %p251
      %p253 = scmp.ne.s32.totalorder %s244, %s245
      %p254 = scmp.eq.s32.totalorder %s24, 0
      %p255 = por %p253, %p254
      %p256 = scmp.ne.s32.totalorder %s244, %s245
      %p257 = scmp.eq.s32.totalorder %s25, 3
      %p258 = por %p256, %p257
      %p260 = scmp.ne.s32.totalorder %s245, %s259
      %p261 = scmp.eq.s32.totalorder %s25, 0
      %p262 = por %p260, %p261
      %s263 = ssub.s32 %s26, %s38
      %p264 = scmp.eq.s32.totalorder %s263, 0
      %s266 = sadd.s32 %s265, 1
      %s267 = scalar_select %p264, %s265, %s266
      %p270 = pneg %p264
      %p271 = scmp.eq.s32.totalorder %s19, 3
      %p272 = por %p270, %p271
      %p273 = scmp.ne.s32.totalorder %s265, %s268
      %p274 = scmp.eq.s32.totalorder %s19, 0
      %p275 = por %p273, %p274
      %p276 = scmp.ne.s32.totalorder %s265, %s268
      %p277 = scmp.eq.s32.totalorder %s24, 3
      %p278 = por %p276, %p277
      %p279 = scmp.ne.s32.totalorder %s268, %s269
      %p280 = scmp.eq.s32.totalorder %s24, 0
      %p281 = por %p279, %p280
      %p282 = scmp.ne.s32.totalorder %s268, %s269
      %p283 = scmp.eq.s32.totalorder %s25, 3
      %p284 = por %p282, %p283
      %p286 = scmp.ne.s32.totalorder %s269, %s285
      %p287 = scmp.eq.s32.totalorder %s25, 0
      %p288 = por %p286, %p287
      %p289 = scmp.le.s32.totalorder 1, %s19
      %p290 = scmp.lt.s32.totalorder %s19, 5
      %p291 = pnand %p289, %p290
      %p292 = pneg %p291
      // Predicated region
      $region9: #{swin_identification_head.1} parent=5 // pred_check
        _
      $region10: #{swin_identification_head.1} parent=5 // pred_check_branch
        %294 = sbr.rel (%p291) target = $region12
      $region11: #{swin_identification_head.1} parent=5 // pred_region
        %s295 = ssub.s32 %s19, 1
        // Predicated region
        $region13: #{swin_identification_head.1} parent=11 // pred_check
          %p296 = pneg %p108
        $region14: #{swin_identification_head.1} parent=11 // pred_check_branch
          %298 = sbr.rel (%p296) target = $region16
        $region15: #{swin_identification_head.1} parent=11 // pred_region
          _
        $region16: #{swin_identification_head.1} parent=11 // pred_fallthru
          _
        // Predicated region
        $region17: #{swin_identification_head.1} parent=11 // pred_check
          %p299 = pneg %p129
        $region18: #{swin_identification_head.1} parent=11 // pred_check_branch
          %301 = sbr.rel (%p299) target = $region20
        $region19: #{swin_identification_head.1} parent=11 // pred_region
          _
        $region20: #{swin_identification_head.1} parent=11 // pred_fallthru
          _
        // Predicated region
        $region21: #{swin_identification_head.1} parent=11 // pred_check
          %p302 = pneg %p150
        $region22: #{swin_identification_head.1} parent=11 // pred_check_branch
          %304 = sbr.rel (%p302) target = $region24
        $region23: #{swin_identification_head.1} parent=11 // pred_region
          _
        $region24: #{swin_identification_head.1} parent=11 // pred_fallthru
          _
        // Predicated region
        $region25: #{swin_identification_head.1} parent=11 // pred_check
          %p305 = pneg %p171
        $region26: #{swin_identification_head.1} parent=11 // pred_check_branch
          %307 = sbr.rel (%p305) target = $region28
        $region27: #{swin_identification_head.1} parent=11 // pred_region
          _
        $region28: #{swin_identification_head.1} parent=11 // pred_fallthru
          _
        // Predicated region
        $region29: #{swin_identification_head.1} parent=11 // pred_check
          %p308 = pneg %p192
        $region30: #{swin_identification_head.1} parent=11 // pred_check_branch
          %310 = sbr.rel (%p308) target = $region32
        $region31: #{swin_identification_head.1} parent=11 // pred_region
          _
        $region32: #{swin_identification_head.1} parent=11 // pred_fallthru
          _
        // Predicated region
        $region33: #{swin_identification_head.1} parent=11 // pred_check
          %p311 = pneg %p213
        $region34: #{swin_identification_head.1} parent=11 // pred_check_branch
          %313 = sbr.rel (%p311) target = $region36
        $region35: #{swin_identification_head.1} parent=11 // pred_region
          _
        $region36: #{swin_identification_head.1} parent=11 // pred_fallthru
          _
        // Predicated region
        $region37: #{swin_identification_head.1} parent=11 // pred_check
          %p314 = pneg %p234
        $region38: #{swin_identification_head.1} parent=11 // pred_check_branch
          %316 = sbr.rel (%p314) target = $region40
        $region39: #{swin_identification_head.1} parent=11 // pred_region
          _
        $region40: #{swin_identification_head.1} parent=11 // pred_fallthru
          _
        // Predicated region
        $region41: #{swin_identification_head.1} parent=11 // pred_check
          %p317 = pneg %p255
        $region42: #{swin_identification_head.1} parent=11 // pred_check_branch
          %319 = sbr.rel (%p317) target = $region44
        $region43: #{swin_identification_head.1} parent=11 // pred_region
          _
        $region44: #{swin_identification_head.1} parent=11 // pred_fallthru
          _
      $region12: #{swin_identification_head.1} parent=5 // pred_fallthru
        _
      %p320 = scmp.lt.s32.totalorder %s19, 4
      // Predicated region
      $region45: #{swin_identification_head.1} parent=5 // pred_check
        %p321 = pneg %p320
      $region46: #{swin_identification_head.1} parent=5 // pred_check_branch
        %323 = sbr.rel (%p321) target = $region48
      $region47: #{swin_identification_head.1} parent=5 // pred_region
        // Predicated region
        $region49: #{swin_identification_head.1} parent=47 // pred_check
          %p324 = pneg %p53
        $region50: #{swin_identification_head.1} parent=47 // pred_check_branch
          %326 = sbr.rel (%p324) target = $region52
        $region51: #{swin_identification_head.1} parent=47 // pred_region
          %s327 = sand.u32 %s43, 1
          %s328 = sand.u32 %s43, 1
          %s329 = smul.addr %s328, 384
          %s330 = scalar_lea.vmem [#allocation3], %s329
          %s331 = smul.addr %s26, 96
          %s332 = sadd.s32 %s27, %s331
          %s333 = smul.addr %s332, 8
          %s334 = scalar_lea.vmem %s0, %s333
          // Predicated region
          $region53: #{swin_identification_head.1} parent=51 // pred_check
            _
          $region54: #{swin_identification_head.1} parent=51 // pred_check_branch
            %336 = sbr.rel (0) target = $region56
          $region55: #{swin_identification_head.1} parent=51 // pred_region
            // Predicated region
            $region57: #{swin_identification_head.1} parent=55 // pred_check
              _
            $region58: #{swin_identification_head.1} parent=55 // pred_check_branch
              %338 = sbr.rel (0) target = $region60
            $region59: #{swin_identification_head.1} parent=55 // pred_region
              // Predicated region
              $region72: #{swin_identification_head.1} parent=59 // pred_check
                _
              $region73: #{swin_identification_head.1} parent=59 // pred_check_branch
                %447 = sbr.rel (0) target = $region75
              $region74: #{swin_identification_head.1} parent=59 // pred_region
                loop: start=0, step=1, limit=1
                $region76: #{swin_identification_head.1} parent=74 // loop_pre_header
                  _
                $region77: #{swin_identification_head.1} parent=74 // loop_header
                  %s449 = sphi 0, %s453
                  %p450 = scmp.ge.s32.totalorder %s449, 1
                  %s454 = sphi %s334, %s334
                  %s455 = sphi %s330, %s330
                $region78: #{swin_identification_head.1} parent=74 // loop_header_branch
                  %452 = sbr.rel (%p450) target = $region82
                $region79: #{swin_identification_head.1} parent=74 // loop_body
                  %v456 = vld [vmem:[%s454] sm:$0xff]
                  %457 = vst [vmem:[%s455] sm:$0xff] %v456
                  %v458 = vld [vmem:[%s454 + $0x10] sm:$0xff]
                  %459 = vst [vmem:[%s455 + $0x8] sm:$0xff] %v458
                  %v460 = vld [vmem:[%s454 + $0x20] sm:$0xff]
                  %461 = vst [vmem:[%s455 + $0x10] sm:$0xff] %v460
                  %v462 = vld [vmem:[%s454 + $0x30] sm:$0xff]
                  %463 = vst [vmem:[%s455 + $0x18] sm:$0xff] %v462
                  %v464 = vld [vmem:[%s454 + $0x40] sm:$0xff]
                  %465 = vst [vmem:[%s455 + $0x20] sm:$0xff] %v464
                  %v466 = vld [vmem:[%s454 + $0x50] sm:$0xff]
                  %467 = vst [vmem:[%s455 + $0x28] sm:$0xff] %v466
                  %v468 = vld [vmem:[%s454 + $0x60] sm:$0xff]
                  %469 = vst [vmem:[%s455 + $0x30] sm:$0xff] %v468
                  %v470 = vld [vmem:[%s454 + $0x70] sm:$0xff]
                  %471 = vst [vmem:[%s455 + $0x38] sm:$0xff] %v470
                  %v472 = vld [vmem:[%s454 + $0x80] sm:$0xff]
                  %473 = vst [vmem:[%s455 + $0x40] sm:$0xff] %v472
                  %v474 = vld [vmem:[%s454 + $0x90] sm:$0xff]
                  %475 = vst [vmem:[%s455 + $0x48] sm:$0xff] %v474
                  %v476 = vld [vmem:[%s454 + $0xa0] sm:$0xff]
                  %477 = vst [vmem:[%s455 + $0x50] sm:$0xff] %v476
                  %v478 = vld [vmem:[%s454 + $0xb0] sm:$0xff]
                  %479 = vst [vmem:[%s455 + $0x58] sm:$0xff] %v478
                  %v480 = vld [vmem:[%s454 + $0xc0] sm:$0xff]
                  %481 = vst [vmem:[%s455 + $0x60] sm:$0xff] %v480
                  %v482 = vld [vmem:[%s454 + $0xd0] sm:$0xff]
                  %483 = vst [vmem:[%s455 + $0x68] sm:$0xff] %v482
                  %v484 = vld [vmem:[%s454 + $0xe0] sm:$0xff]
                  %485 = vst [vmem:[%s455 + $0x70] sm:$0xff] %v484
                  %v486 = vld [vmem:[%s454 + $0xf0] sm:$0xff]
                  %487 = vst [vmem:[%s455 + $0x78] sm:$0xff] %v486
                  %v488 = vld [vmem:[%s454 + $0x100] sm:$0xff]
                  %489 = vst [vmem:[%s455 + $0x80] sm:$0xff] %v488
                  %v490 = vld [vmem:[%s454 + $0x110] sm:$0xff]
                  %491 = vst [vmem:[%s455 + $0x88] sm:$0xff] %v490
                  %v492 = vld [vmem:[%s454 + $0x120] sm:$0xff]
                  %493 = vst [vmem:[%s455 + $0x90] sm:$0xff] %v492
                  %v494 = vld [vmem:[%s454 + $0x130] sm:$0xff]
                  %495 = vst [vmem:[%s455 + $0x98] sm:$0xff] %v494
                  %v496 = vld [vmem:[%s454 + $0x140] sm:$0xff]
                  %497 = vst [vmem:[%s455 + $0xa0] sm:$0xff] %v496
                  %v498 = vld [vmem:[%s454 + $0x150] sm:$0xff]
                  %499 = vst [vmem:[%s455 + $0xa8] sm:$0xff] %v498
                  %v500 = vld [vmem:[%s454 + $0x160] sm:$0xff]
                  %501 = vst [vmem:[%s455 + $0xb0] sm:$0xff] %v500
                  %v502 = vld [vmem:[%s454 + $0x170] sm:$0xff]
                  %503 = vst [vmem:[%s455 + $0xb8] sm:$0xff] %v502
                  %v504 = vld [vmem:[%s454 + $0x180] sm:$0xff]
                  %505 = vst [vmem:[%s455 + $0xc0] sm:$0xff] %v504
                  %v506 = vld [vmem:[%s454 + $0x190] sm:$0xff]
                  %507 = vst [vmem:[%s455 + $0xc8] sm:$0xff] %v506
                  %v508 = vld [vmem:[%s454 + $0x1a0] sm:$0xff]
                  %509 = vst [vmem:[%s455 + $0xd0] sm:$0xff] %v508
                  %v510 = vld [vmem:[%s454 + $0x1b0] sm:$0xff]
                  %511 = vst [vmem:[%s455 + $0xd8] sm:$0xff] %v510
                  %v512 = vld [vmem:[%s454 + $0x1c0] sm:$0xff]
                  %513 = vst [vmem:[%s455 + $0xe0] sm:$0xff] %v512
                  %v514 = vld [vmem:[%s454 + $0x1d0] sm:$0xff]
                  %515 = vst [vmem:[%s455 + $0xe8] sm:$0xff] %v514
                  %v516 = vld [vmem:[%s454 + $0x1e0] sm:$0xff]
                  %517 = vst [vmem:[%s455 + $0xf0] sm:$0xff] %v516
                  %v518 = vld [vmem:[%s454 + $0x1f0] sm:$0xff]
                  %519 = vst [vmem:[%s455 + $0xf8] sm:$0xff] %v518
                  %v520 = vld [vmem:[%s454 + $0x200] sm:$0xff]
                  %521 = vst [vmem:[%s455 + $0x100] sm:$0xff] %v520
                  %v522 = vld [vmem:[%s454 + $0x210] sm:$0xff]
                  %523 = vst [vmem:[%s455 + $0x108] sm:$0xff] %v522
                  %v524 = vld [vmem:[%s454 + $0x220] sm:$0xff]
                  %525 = vst [vmem:[%s455 + $0x110] sm:$0xff] %v524
                  %v526 = vld [vmem:[%s454 + $0x230] sm:$0xff]
                  %527 = vst [vmem:[%s455 + $0x118] sm:$0xff] %v526
                  %v528 = vld [vmem:[%s454 + $0x240] sm:$0xff]
                  %529 = vst [vmem:[%s455 + $0x120] sm:$0xff] %v528
                  %v530 = vld [vmem:[%s454 + $0x250] sm:$0xff]
                  %531 = vst [vmem:[%s455 + $0x128] sm:$0xff] %v530
                  %v532 = vld [vmem:[%s454 + $0x260] sm:$0xff]
                  %533 = vst [vmem:[%s455 + $0x130] sm:$0xff] %v532
                  %v534 = vld [vmem:[%s454 + $0x270] sm:$0xff]
                  %535 = vst [vmem:[%s455 + $0x138] sm:$0xff] %v534
                  %v536 = vld [vmem:[%s454 + $0x280] sm:$0xff]
                  %537 = vst [vmem:[%s455 + $0x140] sm:$0xff] %v536
                  %v538 = vld [vmem:[%s454 + $0x290] sm:$0xff]
                  %539 = vst [vmem:[%s455 + $0x148] sm:$0xff] %v538
                  %v540 = vld [vmem:[%s454 + $0x2a0] sm:$0xff]
                  %541 = vst [vmem:[%s455 + $0x150] sm:$0xff] %v540
                  %v542 = vld [vmem:[%s454 + $0x2b0] sm:$0xff]
                  %543 = vst [vmem:[%s455 + $0x158] sm:$0xff] %v542
                  %v544 = vld [vmem:[%s454 + $0x2c0] sm:$0xff]
                  %545 = vst [vmem:[%s455 + $0x160] sm:$0xff] %v544
                  %v546 = vld [vmem:[%s454 + $0x2d0] sm:$0xff]
                  %547 = vst [vmem:[%s455 + $0x168] sm:$0xff] %v546
                  %v548 = vld [vmem:[%s454 + $0x2e0] sm:$0xff]
                  %549 = vst [vmem:[%s455 + $0x170] sm:$0xff] %v548
                  %v550 = vld [vmem:[%s454 + $0x2f0] sm:$0xff]
                  %551 = vst [vmem:[%s455 + $0x178] sm:$0xff] %v550
                $region80: #{swin_identification_head.1} parent=74 // loop_footer
                  %s453 = sadd.s32 1, %s449
                $region81: #{swin_identification_head.1} parent=74 // loop_footer_branch
                  %448 = sbr.rel target = $region77
                $region82: #{swin_identification_head.1} parent=74 // loop_exit
                  _
              $region75: #{swin_identification_head.1} parent=59 // pred_fallthru
                _
              // Predicated region
              $region83: #{swin_identification_head.1} parent=59 // pred_check
                _
              $region84: #{swin_identification_head.1} parent=59 // pred_check_branch
                %553 = sbr.rel target = $region86
              $region85: #{swin_identification_head.1} parent=59 // pred_region
                _
              $region86: #{swin_identification_head.1} parent=59 // pred_fallthru
                _
            $region60: #{swin_identification_head.1} parent=55 // pred_fallthru
              _
            // Predicated region
            $region61: #{swin_identification_head.1} parent=55 // pred_check
              _
            $region62: #{swin_identification_head.1} parent=55 // pred_check_branch
              %340 = sbr.rel target = $region64
            $region63: #{swin_identification_head.1} parent=55 // pred_region
              loop: start=0, step=1, limit=1
              $region65: #{swin_identification_head.1} parent=63 // loop_pre_header
                _
              $region66: #{swin_identification_head.1} parent=63 // loop_header
                %s343 = sphi 0, %s347
                %p344 = scmp.ge.s32.totalorder %s343, 1
                %s348 = sphi %s334, %s334
                %s349 = sphi %s330, %s330
              $region67: #{swin_identification_head.1} parent=63 // loop_header_branch
                %346 = sbr.rel (%p344) target = $region71
              $region68: #{swin_identification_head.1} parent=63 // loop_body
                %v350 = vld [vmem:[%s348] sm:$0xff]
                %351 = vst [vmem:[%s349] sm:$0xff] %v350
                %v352 = vld [vmem:[%s348 + $0x10] sm:$0xff]
                %353 = vst [vmem:[%s349 + $0x8] sm:$0xff] %v352
                %v354 = vld [vmem:[%s348 + $0x20] sm:$0xff]
                %355 = vst [vmem:[%s349 + $0x10] sm:$0xff] %v354
                %v356 = vld [vmem:[%s348 + $0x30] sm:$0xff]
                %357 = vst [vmem:[%s349 + $0x18] sm:$0xff] %v356
                %v358 = vld [vmem:[%s348 + $0x40] sm:$0xff]
                %359 = vst [vmem:[%s349 + $0x20] sm:$0xff] %v358
                %v360 = vld [vmem:[%s348 + $0x50] sm:$0xff]
                %361 = vst [vmem:[%s349 + $0x28] sm:$0xff] %v360
                %v362 = vld [vmem:[%s348 + $0x60] sm:$0xff]
                %363 = vst [vmem:[%s349 + $0x30] sm:$0xff] %v362
                %v364 = vld [vmem:[%s348 + $0x70] sm:$0xff]
                %365 = vst [vmem:[%s349 + $0x38] sm:$0xff] %v364
                %v366 = vld [vmem:[%s348 + $0x80] sm:$0xff]
                %367 = vst [vmem:[%s349 + $0x40] sm:$0xff] %v366
                %v368 = vld [vmem:[%s348 + $0x90] sm:$0xff]
                %369 = vst [vmem:[%s349 + $0x48] sm:$0xff] %v368
                %v370 = vld [vmem:[%s348 + $0xa0] sm:$0xff]
                %371 = vst [vmem:[%s349 + $0x50] sm:$0xff] %v370
                %v372 = vld [vmem:[%s348 + $0xb0] sm:$0xff]
                %373 = vst [vmem:[%s349 + $0x58] sm:$0xff] %v372
                %v374 = vld [vmem:[%s348 + $0xc0] sm:$0xff]
                %375 = vst [vmem:[%s349 + $0x60] sm:$0xff] %v374
                %v376 = vld [vmem:[%s348 + $0xd0] sm:$0xff]
                %377 = vst [vmem:[%s349 + $0x68] sm:$0xff] %v376
                %v378 = vld [vmem:[%s348 + $0xe0] sm:$0xff]
                %379 = vst [vmem:[%s349 + $0x70] sm:$0xff] %v378
                %v380 = vld [vmem:[%s348 + $0xf0] sm:$0xff]
                %381 = vst [vmem:[%s349 + $0x78] sm:$0xff] %v380
                %v382 = vld [vmem:[%s348 + $0x100] sm:$0xff]
                %383 = vst [vmem:[%s349 + $0x80] sm:$0xff] %v382
                %v384 = vld [vmem:[%s348 + $0x110] sm:$0xff]
                %385 = vst [vmem:[%s349 + $0x88] sm:$0xff] %v384
                %v386 = vld [vmem:[%s348 + $0x120] sm:$0xff]
                %387 = vst [vmem:[%s349 + $0x90] sm:$0xff] %v386
                %v388 = vld [vmem:[%s348 + $0x130] sm:$0xff]
                %389 = vst [vmem:[%s349 + $0x98] sm:$0xff] %v388
                %v390 = vld [vmem:[%s348 + $0x140] sm:$0xff]
                %391 = vst [vmem:[%s349 + $0xa0] sm:$0xff] %v390
                %v392 = vld [vmem:[%s348 + $0x150] sm:$0xff]
                %393 = vst [vmem:[%s349 + $0xa8] sm:$0xff] %v392
                %v394 = vld [vmem:[%s348 + $0x160] sm:$0xff]
                %395 = vst [vmem:[%s349 + $0xb0] sm:$0xff] %v394
                %v396 = vld [vmem:[%s348 + $0x170] sm:$0xff]
                %397 = vst [vmem:[%s349 + $0xb8] sm:$0xff] %v396
                %v398 = vld [vmem:[%s348 + $0x180] sm:$0xff]
                %399 = vst [vmem:[%s349 + $0xc0] sm:$0xff] %v398
                %v400 = vld [vmem:[%s348 + $0x190] sm:$0xff]
                %401 = vst [vmem:[%s349 + $0xc8] sm:$0xff] %v400
                %v402 = vld [vmem:[%s348 + $0x1a0] sm:$0xff]
                %403 = vst [vmem:[%s349 + $0xd0] sm:$0xff] %v402
                %v404 = vld [vmem:[%s348 + $0x1b0] sm:$0xff]
                %405 = vst [vmem:[%s349 + $0xd8] sm:$0xff] %v404
                %v406 = vld [vmem:[%s348 + $0x1c0] sm:$0xff]
                %407 = vst [vmem:[%s349 + $0xe0] sm:$0xff] %v406
                %v408 = vld [vmem:[%s348 + $0x1d0] sm:$0xff]
                %409 = vst [vmem:[%s349 + $0xe8] sm:$0xff] %v408
                %v410 = vld [vmem:[%s348 + $0x1e0] sm:$0xff]
                %411 = vst [vmem:[%s349 + $0xf0] sm:$0xff] %v410
                %v412 = vld [vmem:[%s348 + $0x1f0] sm:$0xff]
                %413 = vst [vmem:[%s349 + $0xf8] sm:$0xff] %v412
                %v414 = vld [vmem:[%s348 + $0x200] sm:$0xff]
                %415 = vst [vmem:[%s349 + $0x100] sm:$0xff] %v414
                %v416 = vld [vmem:[%s348 + $0x210] sm:$0xff]
                %417 = vst [vmem:[%s349 + $0x108] sm:$0xff] %v416
                %v418 = vld [vmem:[%s348 + $0x220] sm:$0xff]
                %419 = vst [vmem:[%s349 + $0x110] sm:$0xff] %v418
                %v420 = vld [vmem:[%s348 + $0x230] sm:$0xff]
                %421 = vst [vmem:[%s349 + $0x118] sm:$0xff] %v420
                %v422 = vld [vmem:[%s348 + $0x240] sm:$0xff]
                %423 = vst [vmem:[%s349 + $0x120] sm:$0xff] %v422
                %v424 = vld [vmem:[%s348 + $0x250] sm:$0xff]
                %425 = vst [vmem:[%s349 + $0x128] sm:$0xff] %v424
                %v426 = vld [vmem:[%s348 + $0x260] sm:$0xff]
                %427 = vst [vmem:[%s349 + $0x130] sm:$0xff] %v426
                %v428 = vld [vmem:[%s348 + $0x270] sm:$0xff]
                %429 = vst [vmem:[%s349 + $0x138] sm:$0xff] %v428
                %v430 = vld [vmem:[%s348 + $0x280] sm:$0xff]
                %431 = vst [vmem:[%s349 + $0x140] sm:$0xff] %v430
                %v432 = vld [vmem:[%s348 + $0x290] sm:$0xff]
                %433 = vst [vmem:[%s349 + $0x148] sm:$0xff] %v432
                %v434 = vld [vmem:[%s348 + $0x2a0] sm:$0xff]
                %435 = vst [vmem:[%s349 + $0x150] sm:$0xff] %v434
                %v436 = vld [vmem:[%s348 + $0x2b0] sm:$0xff]
                %437 = vst [vmem:[%s349 + $0x158] sm:$0xff] %v436
                %v438 = vld [vmem:[%s348 + $0x2c0] sm:$0xff]
                %439 = vst [vmem:[%s349 + $0x160] sm:$0xff] %v438
                %v440 = vld [vmem:[%s348 + $0x2d0] sm:$0xff]
                %441 = vst [vmem:[%s349 + $0x168] sm:$0xff] %v440
                %v442 = vld [vmem:[%s348 + $0x2e0] sm:$0xff]
                %443 = vst [vmem:[%s349 + $0x170] sm:$0xff] %v442
                %v444 = vld [vmem:[%s348 + $0x2f0] sm:$0xff]
                %445 = vst [vmem:[%s349 + $0x178] sm:$0xff] %v444
              $region69: #{swin_identification_head.1} parent=63 // loop_footer
                %s347 = sadd.s32 1, %s343
              $region70: #{swin_identification_head.1} parent=63 // loop_footer_branch
                %342 = sbr.rel target = $region66
              $region71: #{swin_identification_head.1} parent=63 // loop_exit
                _
            $region64: #{swin_identification_head.1} parent=55 // pred_fallthru
              _
          $region56: #{swin_identification_head.1} parent=51 // pred_fallthru
            _
          %554 = vnop
        $region52: #{swin_identification_head.1} parent=47 // pred_fallthru
          _
        // Predicated region
        $region87: #{swin_identification_head.1} parent=47 // pred_check
          %p555 = pneg %p81
        $region88: #{swin_identification_head.1} parent=47 // pred_check_branch
          %557 = sbr.rel (%p555) target = $region90
        $region89: #{swin_identification_head.1} parent=47 // pred_region
          %s558 = sand.u32 %s71, 1
          %s559 = sand.u32 %s71, 1
          %s560 = smul.addr %s559, 384
          %s561 = scalar_lea.vmem [#allocation4], %s560
          %s562 = smul.addr %s26, 96
          %s563 = sadd.s32 %s27, %s562
          %s564 = smul.addr %s563, 8
          %s565 = scalar_lea.vmem %s1, %s564
          // Predicated region
          $region91: #{swin_identification_head.1} parent=89 // pred_check
            _
          $region92: #{swin_identification_head.1} parent=89 // pred_check_branch
            %567 = sbr.rel (0) target = $region94
          $region93: #{swin_identification_head.1} parent=89 // pred_region
            // Predicated region
            $region95: #{swin_identification_head.1} parent=93 // pred_check
              _
            $region96: #{swin_identification_head.1} parent=93 // pred_check_branch
              %569 = sbr.rel (0) target = $region98
            $region97: #{swin_identification_head.1} parent=93 // pred_region
              // Predicated region
              $region110: #{swin_identification_head.1} parent=97 // pred_check
                _
              $region111: #{swin_identification_head.1} parent=97 // pred_check_branch
                %678 = sbr.rel (0) target = $region113
              $region112: #{swin_identification_head.1} parent=97 // pred_region
                loop: start=0, step=1, limit=1
                $region114: #{swin_identification_head.1} parent=112 // loop_pre_header
                  _
                $region115: #{swin_identification_head.1} parent=112 // loop_header
                  %s680 = sphi 0, %s684
                  %p681 = scmp.ge.s32.totalorder %s680, 1
                  %s685 = sphi %s565, %s565
                  %s686 = sphi %s561, %s561
                $region116: #{swin_identification_head.1} parent=112 // loop_header_branch
                  %683 = sbr.rel (%p681) target = $region120
                $region117: #{swin_identification_head.1} parent=112 // loop_body
                  %v687 = vld [vmem:[%s685] sm:$0xff]
                  %688 = vst [vmem:[%s686] sm:$0xff] %v687
                  %v689 = vld [vmem:[%s685 + $0x10] sm:$0xff]
                  %690 = vst [vmem:[%s686 + $0x8] sm:$0xff] %v689
                  %v691 = vld [vmem:[%s685 + $0x20] sm:$0xff]
                  %692 = vst [vmem:[%s686 + $0x10] sm:$0xff] %v691
                  %v693 = vld [vmem:[%s685 + $0x30] sm:$0xff]
                  %694 = vst [vmem:[%s686 + $0x18] sm:$0xff] %v693
                  %v695 = vld [vmem:[%s685 + $0x40] sm:$0xff]
                  %696 = vst [vmem:[%s686 + $0x20] sm:$0xff] %v695
                  %v697 = vld [vmem:[%s685 + $0x50] sm:$0xff]
                  %698 = vst [vmem:[%s686 + $0x28] sm:$0xff] %v697
                  %v699 = vld [vmem:[%s685 + $0x60] sm:$0xff]
                  %700 = vst [vmem:[%s686 + $0x30] sm:$0xff] %v699
                  %v701 = vld [vmem:[%s685 + $0x70] sm:$0xff]
                  %702 = vst [vmem:[%s686 + $0x38] sm:$0xff] %v701
                  %v703 = vld [vmem:[%s685 + $0x80] sm:$0xff]
                  %704 = vst [vmem:[%s686 + $0x40] sm:$0xff] %v703
                  %v705 = vld [vmem:[%s685 + $0x90] sm:$0xff]
                  %706 = vst [vmem:[%s686 + $0x48] sm:$0xff] %v705
                  %v707 = vld [vmem:[%s685 + $0xa0] sm:$0xff]
                  %708 = vst [vmem:[%s686 + $0x50] sm:$0xff] %v707
                  %v709 = vld [vmem:[%s685 + $0xb0] sm:$0xff]
                  %710 = vst [vmem:[%s686 + $0x58] sm:$0xff] %v709
                  %v711 = vld [vmem:[%s685 + $0xc0] sm:$0xff]
                  %712 = vst [vmem:[%s686 + $0x60] sm:$0xff] %v711
                  %v713 = vld [vmem:[%s685 + $0xd0] sm:$0xff]
                  %714 = vst [vmem:[%s686 + $0x68] sm:$0xff] %v713
                  %v715 = vld [vmem:[%s685 + $0xe0] sm:$0xff]
                  %716 = vst [vmem:[%s686 + $0x70] sm:$0xff] %v715
                  %v717 = vld [vmem:[%s685 + $0xf0] sm:$0xff]
                  %718 = vst [vmem:[%s686 + $0x78] sm:$0xff] %v717
                  %v719 = vld [vmem:[%s685 + $0x100] sm:$0xff]
                  %720 = vst [vmem:[%s686 + $0x80] sm:$0xff] %v719
                  %v721 = vld [vmem:[%s685 + $0x110] sm:$0xff]
                  %722 = vst [vmem:[%s686 + $0x88] sm:$0xff] %v721
                  %v723 = vld [vmem:[%s685 + $0x120] sm:$0xff]
                  %724 = vst [vmem:[%s686 + $0x90] sm:$0xff] %v723
                  %v725 = vld [vmem:[%s685 + $0x130] sm:$0xff]
                  %726 = vst [vmem:[%s686 + $0x98] sm:$0xff] %v725
                  %v727 = vld [vmem:[%s685 + $0x140] sm:$0xff]
                  %728 = vst [vmem:[%s686 + $0xa0] sm:$0xff] %v727
                  %v729 = vld [vmem:[%s685 + $0x150] sm:$0xff]
                  %730 = vst [vmem:[%s686 + $0xa8] sm:$0xff] %v729
                  %v731 = vld [vmem:[%s685 + $0x160] sm:$0xff]
                  %732 = vst [vmem:[%s686 + $0xb0] sm:$0xff] %v731
                  %v733 = vld [vmem:[%s685 + $0x170] sm:$0xff]
                  %734 = vst [vmem:[%s686 + $0xb8] sm:$0xff] %v733
                  %v735 = vld [vmem:[%s685 + $0x180] sm:$0xff]
                  %736 = vst [vmem:[%s686 + $0xc0] sm:$0xff] %v735
                  %v737 = vld [vmem:[%s685 + $0x190] sm:$0xff]
                  %738 = vst [vmem:[%s686 + $0xc8] sm:$0xff] %v737
                  %v739 = vld [vmem:[%s685 + $0x1a0] sm:$0xff]
                  %740 = vst [vmem:[%s686 + $0xd0] sm:$0xff] %v739
                  %v741 = vld [vmem:[%s685 + $0x1b0] sm:$0xff]
                  %742 = vst [vmem:[%s686 + $0xd8] sm:$0xff] %v741
                  %v743 = vld [vmem:[%s685 + $0x1c0] sm:$0xff]
                  %744 = vst [vmem:[%s686 + $0xe0] sm:$0xff] %v743
                  %v745 = vld [vmem:[%s685 + $0x1d0] sm:$0xff]
                  %746 = vst [vmem:[%s686 + $0xe8] sm:$0xff] %v745
                  %v747 = vld [vmem:[%s685 + $0x1e0] sm:$0xff]
                  %748 = vst [vmem:[%s686 + $0xf0] sm:$0xff] %v747
                  %v749 = vld [vmem:[%s685 + $0x1f0] sm:$0xff]
                  %750 = vst [vmem:[%s686 + $0xf8] sm:$0xff] %v749
                  %v751 = vld [vmem:[%s685 + $0x200] sm:$0xff]
                  %752 = vst [vmem:[%s686 + $0x100] sm:$0xff] %v751
                  %v753 = vld [vmem:[%s685 + $0x210] sm:$0xff]
                  %754 = vst [vmem:[%s686 + $0x108] sm:$0xff] %v753
                  %v755 = vld [vmem:[%s685 + $0x220] sm:$0xff]
                  %756 = vst [vmem:[%s686 + $0x110] sm:$0xff] %v755
                  %v757 = vld [vmem:[%s685 + $0x230] sm:$0xff]
                  %758 = vst [vmem:[%s686 + $0x118] sm:$0xff] %v757
                  %v759 = vld [vmem:[%s685 + $0x240] sm:$0xff]
                  %760 = vst [vmem:[%s686 + $0x120] sm:$0xff] %v759
                  %v761 = vld [vmem:[%s685 + $0x250] sm:$0xff]
                  %762 = vst [vmem:[%s686 + $0x128] sm:$0xff] %v761
                  %v763 = vld [vmem:[%s685 + $0x260] sm:$0xff]
                  %764 = vst [vmem:[%s686 + $0x130] sm:$0xff] %v763
                  %v765 = vld [vmem:[%s685 + $0x270] sm:$0xff]
                  %766 = vst [vmem:[%s686 + $0x138] sm:$0xff] %v765
                  %v767 = vld [vmem:[%s685 + $0x280] sm:$0xff]
                  %768 = vst [vmem:[%s686 + $0x140] sm:$0xff] %v767
                  %v769 = vld [vmem:[%s685 + $0x290] sm:$0xff]
                  %770 = vst [vmem:[%s686 + $0x148] sm:$0xff] %v769
                  %v771 = vld [vmem:[%s685 + $0x2a0] sm:$0xff]
                  %772 = vst [vmem:[%s686 + $0x150] sm:$0xff] %v771
                  %v773 = vld [vmem:[%s685 + $0x2b0] sm:$0xff]
                  %774 = vst [vmem:[%s686 + $0x158] sm:$0xff] %v773
                  %v775 = vld [vmem:[%s685 + $0x2c0] sm:$0xff]
                  %776 = vst [vmem:[%s686 + $0x160] sm:$0xff] %v775
                  %v777 = vld [vmem:[%s685 + $0x2d0] sm:$0xff]
                  %778 = vst [vmem:[%s686 + $0x168] sm:$0xff] %v777
                  %v779 = vld [vmem:[%s685 + $0x2e0] sm:$0xff]
                  %780 = vst [vmem:[%s686 + $0x170] sm:$0xff] %v779
                  %v781 = vld [vmem:[%s685 + $0x2f0] sm:$0xff]
                  %782 = vst [vmem:[%s686 + $0x178] sm:$0xff] %v781
                $region118: #{swin_identification_head.1} parent=112 // loop_footer
                  %s684 = sadd.s32 1, %s680
                $region119: #{swin_identification_head.1} parent=112 // loop_footer_branch
                  %679 = sbr.rel target = $region115
                $region120: #{swin_identification_head.1} parent=112 // loop_exit
                  _
              $region113: #{swin_identification_head.1} parent=97 // pred_fallthru
                _
              // Predicated region
              $region121: #{swin_identification_head.1} parent=97 // pred_check
                _
              $region122: #{swin_identification_head.1} parent=97 // pred_check_branch
                %784 = sbr.rel target = $region124
              $region123: #{swin_identification_head.1} parent=97 // pred_region
                _
              $region124: #{swin_identification_head.1} parent=97 // pred_fallthru
                _
            $region98: #{swin_identification_head.1} parent=93 // pred_fallthru
              _
            // Predicated region
            $region99: #{swin_identification_head.1} parent=93 // pred_check
              _
            $region100: #{swin_identification_head.1} parent=93 // pred_check_branch
              %571 = sbr.rel target = $region102
            $region101: #{swin_identification_head.1} parent=93 // pred_region
              loop: start=0, step=1, limit=1
              $region103: #{swin_identification_head.1} parent=101 // loop_pre_header
                _
              $region104: #{swin_identification_head.1} parent=101 // loop_header
                %s574 = sphi 0, %s578
                %p575 = scmp.ge.s32.totalorder %s574, 1
                %s579 = sphi %s565, %s565
                %s580 = sphi %s561, %s561
              $region105: #{swin_identification_head.1} parent=101 // loop_header_branch
                %577 = sbr.rel (%p575) target = $region109
              $region106: #{swin_identification_head.1} parent=101 // loop_body
                %v581 = vld [vmem:[%s579] sm:$0xff]
                %582 = vst [vmem:[%s580] sm:$0xff] %v581
                %v583 = vld [vmem:[%s579 + $0x10] sm:$0xff]
                %584 = vst [vmem:[%s580 + $0x8] sm:$0xff] %v583
                %v585 = vld [vmem:[%s579 + $0x20] sm:$0xff]
                %586 = vst [vmem:[%s580 + $0x10] sm:$0xff] %v585
                %v587 = vld [vmem:[%s579 + $0x30] sm:$0xff]
                %588 = vst [vmem:[%s580 + $0x18] sm:$0xff] %v587
                %v589 = vld [vmem:[%s579 + $0x40] sm:$0xff]
                %590 = vst [vmem:[%s580 + $0x20] sm:$0xff] %v589
                %v591 = vld [vmem:[%s579 + $0x50] sm:$0xff]
                %592 = vst [vmem:[%s580 + $0x28] sm:$0xff] %v591
                %v593 = vld [vmem:[%s579 + $0x60] sm:$0xff]
                %594 = vst [vmem:[%s580 + $0x30] sm:$0xff] %v593
                %v595 = vld [vmem:[%s579 + $0x70] sm:$0xff]
                %596 = vst [vmem:[%s580 + $0x38] sm:$0xff] %v595
                %v597 = vld [vmem:[%s579 + $0x80] sm:$0xff]
                %598 = vst [vmem:[%s580 + $0x40] sm:$0xff] %v597
                %v599 = vld [vmem:[%s579 + $0x90] sm:$0xff]
                %600 = vst [vmem:[%s580 + $0x48] sm:$0xff] %v599
                %v601 = vld [vmem:[%s579 + $0xa0] sm:$0xff]
                %602 = vst [vmem:[%s580 + $0x50] sm:$0xff] %v601
                %v603 = vld [vmem:[%s579 + $0xb0] sm:$0xff]
                %604 = vst [vmem:[%s580 + $0x58] sm:$0xff] %v603
                %v605 = vld [vmem:[%s579 + $0xc0] sm:$0xff]
                %606 = vst [vmem:[%s580 + $0x60] sm:$0xff] %v605
                %v607 = vld [vmem:[%s579 + $0xd0] sm:$0xff]
                %608 = vst [vmem:[%s580 + $0x68] sm:$0xff] %v607
                %v609 = vld [vmem:[%s579 + $0xe0] sm:$0xff]
                %610 = vst [vmem:[%s580 + $0x70] sm:$0xff] %v609
                %v611 = vld [vmem:[%s579 + $0xf0] sm:$0xff]
                %612 = vst [vmem:[%s580 + $0x78] sm:$0xff] %v611
                %v613 = vld [vmem:[%s579 + $0x100] sm:$0xff]
                %614 = vst [vmem:[%s580 + $0x80] sm:$0xff] %v613
                %v615 = vld [vmem:[%s579 + $0x110] sm:$0xff]
                %616 = vst [vmem:[%s580 + $0x88] sm:$0xff] %v615
                %v617 = vld [vmem:[%s579 + $0x120] sm:$0xff]
                %618 = vst [vmem:[%s580 + $0x90] sm:$0xff] %v617
                %v619 = vld [vmem:[%s579 + $0x130] sm:$0xff]
                %620 = vst [vmem:[%s580 + $0x98] sm:$0xff] %v619
                %v621 = vld [vmem:[%s579 + $0x140] sm:$0xff]
                %622 = vst [vmem:[%s580 + $0xa0] sm:$0xff] %v621
                %v623 = vld [vmem:[%s579 + $0x150] sm:$0xff]
                %624 = vst [vmem:[%s580 + $0xa8] sm:$0xff] %v623
                %v625 = vld [vmem:[%s579 + $0x160] sm:$0xff]
                %626 = vst [vmem:[%s580 + $0xb0] sm:$0xff] %v625
                %v627 = vld [vmem:[%s579 + $0x170] sm:$0xff]
                %628 = vst [vmem:[%s580 + $0xb8] sm:$0xff] %v627
                %v629 = vld [vmem:[%s579 + $0x180] sm:$0xff]
                %630 = vst [vmem:[%s580 + $0xc0] sm:$0xff] %v629
                %v631 = vld [vmem:[%s579 + $0x190] sm:$0xff]
                %632 = vst [vmem:[%s580 + $0xc8] sm:$0xff] %v631
                %v633 = vld [vmem:[%s579 + $0x1a0] sm:$0xff]
                %634 = vst [vmem:[%s580 + $0xd0] sm:$0xff] %v633
                %v635 = vld [vmem:[%s579 + $0x1b0] sm:$0xff]
                %636 = vst [vmem:[%s580 + $0xd8] sm:$0xff] %v635
                %v637 = vld [vmem:[%s579 + $0x1c0] sm:$0xff]
                %638 = vst [vmem:[%s580 + $0xe0] sm:$0xff] %v637
                %v639 = vld [vmem:[%s579 + $0x1d0] sm:$0xff]
                %640 = vst [vmem:[%s580 + $0xe8] sm:$0xff] %v639
                %v641 = vld [vmem:[%s579 + $0x1e0] sm:$0xff]
                %642 = vst [vmem:[%s580 + $0xf0] sm:$0xff] %v641
                %v643 = vld [vmem:[%s579 + $0x1f0] sm:$0xff]
                %644 = vst [vmem:[%s580 + $0xf8] sm:$0xff] %v643
                %v645 = vld [vmem:[%s579 + $0x200] sm:$0xff]
                %646 = vst [vmem:[%s580 + $0x100] sm:$0xff] %v645
                %v647 = vld [vmem:[%s579 + $0x210] sm:$0xff]
                %648 = vst [vmem:[%s580 + $0x108] sm:$0xff] %v647
                %v649 = vld [vmem:[%s579 + $0x220] sm:$0xff]
                %650 = vst [vmem:[%s580 + $0x110] sm:$0xff] %v649
                %v651 = vld [vmem:[%s579 + $0x230] sm:$0xff]
                %652 = vst [vmem:[%s580 + $0x118] sm:$0xff] %v651
                %v653 = vld [vmem:[%s579 + $0x240] sm:$0xff]
                %654 = vst [vmem:[%s580 + $0x120] sm:$0xff] %v653
                %v655 = vld [vmem:[%s579 + $0x250] sm:$0xff]
                %656 = vst [vmem:[%s580 + $0x128] sm:$0xff] %v655
                %v657 = vld [vmem:[%s579 + $0x260] sm:$0xff]
                %658 = vst [vmem:[%s580 + $0x130] sm:$0xff] %v657
                %v659 = vld [vmem:[%s579 + $0x270] sm:$0xff]
                %660 = vst [vmem:[%s580 + $0x138] sm:$0xff] %v659
                %v661 = vld [vmem:[%s579 + $0x280] sm:$0xff]
                %662 = vst [vmem:[%s580 + $0x140] sm:$0xff] %v661
                %v663 = vld [vmem:[%s579 + $0x290] sm:$0xff]
                %664 = vst [vmem:[%s580 + $0x148] sm:$0xff] %v663
                %v665 = vld [vmem:[%s579 + $0x2a0] sm:$0xff]
                %666 = vst [vmem:[%s580 + $0x150] sm:$0xff] %v665
                %v667 = vld [vmem:[%s579 + $0x2b0] sm:$0xff]
                %668 = vst [vmem:[%s580 + $0x158] sm:$0xff] %v667
                %v669 = vld [vmem:[%s579 + $0x2c0] sm:$0xff]
                %670 = vst [vmem:[%s580 + $0x160] sm:$0xff] %v669
                %v671 = vld [vmem:[%s579 + $0x2d0] sm:$0xff]
                %672 = vst [vmem:[%s580 + $0x168] sm:$0xff] %v671
                %v673 = vld [vmem:[%s579 + $0x2e0] sm:$0xff]
                %674 = vst [vmem:[%s580 + $0x170] sm:$0xff] %v673
                %v675 = vld [vmem:[%s579 + $0x2f0] sm:$0xff]
                %676 = vst [vmem:[%s580 + $0x178] sm:$0xff] %v675
              $region107: #{swin_identification_head.1} parent=101 // loop_footer
                %s578 = sadd.s32 1, %s574
              $region108: #{swin_identification_head.1} parent=101 // loop_footer_branch
                %573 = sbr.rel target = $region104
              $region109: #{swin_identification_head.1} parent=101 // loop_exit
                _
            $region102: #{swin_identification_head.1} parent=93 // pred_fallthru
              _
          $region94: #{swin_identification_head.1} parent=89 // pred_fallthru
            _
          %785 = vnop
        $region90: #{swin_identification_head.1} parent=47 // pred_fallthru
          _
      $region48: #{swin_identification_head.1} parent=5 // pred_fallthru
        _
      %p786 = scmp.le.s32.totalorder 1, %s19
      %p787 = scmp.lt.s32.totalorder %s19, 5
      %p788 = pnand %p786, %p787
      %p789 = pneg %p788
      // Predicated region
      $region125: #{swin_identification_head.1} parent=5 // pred_check
        _
      $region126: #{swin_identification_head.1} parent=5 // pred_check_branch
        %791 = sbr.rel (%p788) target = $region128
      $region127: #{swin_identification_head.1} parent=5 // pred_region
        %s792 = ssub.s32 %s19, 1
        %s793 = sand.u32 %s46, 1
        %s794 = sand.u32 %s46, 1
        %s795 = smul.addr %s794, 384
        %s796 = scalar_lea.vmem [#allocation3], %s795
        // Predicated region
        $region129: #{swin_identification_head.1} parent=127 // pred_check
          %p797 = pneg %p59
        $region130: #{swin_identification_head.1} parent=127 // pred_check_branch
          %799 = sbr.rel (%p797) target = $region132
        $region131: #{swin_identification_head.1} parent=127 // pred_region
          _
        $region132: #{swin_identification_head.1} parent=127 // pred_fallthru
          _
        %s800 = sand.u32 %s74, 1
        %s801 = sand.u32 %s74, 1
        %s802 = smul.addr %s801, 384
        %s803 = scalar_lea.vmem [#allocation4], %s802
        // Predicated region
        $region133: #{swin_identification_head.1} parent=127 // pred_check
          %p804 = pneg %p87
        $region134: #{swin_identification_head.1} parent=127 // pred_check_branch
          %806 = sbr.rel (%p804) target = $region136
        $region135: #{swin_identification_head.1} parent=127 // pred_region
          _
        $region136: #{swin_identification_head.1} parent=127 // pred_fallthru
          _
        %s807 = sand.u32 %s46, 1
        %s808 = sand.u32 %s46, 1
        %s809 = smul.addr %s808, 384
        %s810 = scalar_lea.vmem [#allocation3], %s809
        %p811 = pneg %p59
        %p812 = pneg %p56
        %s813 = sand.u32 %s74, 1
        %s814 = sand.u32 %s74, 1
        %s815 = smul.addr %s814, 384
        %s816 = scalar_lea.vmem [#allocation4], %s815
        %p817 = pneg %p87
        %p818 = pneg %p84
        %p819 = pneg %p108
        %p820 = pneg %p105
        %p821 = pneg %p129
        %p822 = pneg %p126
        %p823 = pneg %p150
        %p824 = pneg %p147
        %p825 = pneg %p171
        %p826 = pneg %p168
        %p827 = pneg %p192
        %p828 = pneg %p189
        %p829 = pneg %p213
        %p830 = pneg %p210
        %p831 = pneg %p234
        %p832 = pneg %p231
        %p833 = pneg %p255
        %p834 = pneg %p252
        %p835 = pneg %p281
        %p836 = pneg %p278
        %s837 = sand.u32 %s268, 1
        %s838 = scalar_lea.sflag [#allocation6], %s837
        %s839 = sand.u32 %s268, 1
        %s840 = scalar_lea.vmem [#allocation5], %s839
        %p841 = scmp.eq.s32.totalorder %s29, 0
        // Predicated region
        $region137: #{swin_identification_head.1} parent=127 // pred_check
          %p842 = pneg %p841
        $region138: #{swin_identification_head.1} parent=127 // pred_check_branch
          %844 = sbr.rel (%p842) target = $region140
        $region139: #{swin_identification_head.1} parent=127 // pred_region
          %v845 = vlaneseq
          %vm846 = vcmp.ge.s32.totalorder %v845, 0
          %vm847 = vcmp.lt.s32.totalorder %v845, 384
          %vm848 = vmand %vm846, %vm847
          %849 = vst.msk [vmem:[#allocation2] sm:$0x7] %vm848, 0.0
          %850 = vst.msk [vmem:[#allocation2 + $0x3] sm:$0x7] %vm848, 0.0
        $region140: #{swin_identification_head.1} parent=127 // pred_fallthru
          _
        %v851 = vld [vmem:[#allocation2] sm:$0x7]
        %v852 = vld [vmem:[%s796] sm:$0xff]
        %v853 = vld [vmem:[%s796 + $0x8] sm:$0xff]
        %v854 = vld [vmem:[%s796 + $0x10] sm:$0xff]
        %v855 = vld [vmem:[%s796 + $0x18] sm:$0xff]
        %v856 = vld [vmem:[%s796 + $0x20] sm:$0xff]
        %v857 = vld [vmem:[%s796 + $0x28] sm:$0xff]
        %v858 = vld [vmem:[%s796 + $0x30] sm:$0xff]
        %v859 = vld [vmem:[%s796 + $0x38] sm:$0xff]
        %v860 = vld [vmem:[%s796 + $0x40] sm:$0xff]
        %v861 = vld [vmem:[%s796 + $0x48] sm:$0xff]
        %v862 = vld [vmem:[%s796 + $0x50] sm:$0xff]
        %v863 = vld [vmem:[%s796 + $0x58] sm:$0xff]
        %v864 = vld [vmem:[%s796 + $0x60] sm:$0xff]
        %v865 = vld [vmem:[%s796 + $0x68] sm:$0xff]
        %v866 = vld [vmem:[%s796 + $0x70] sm:$0xff]
        %v867 = vld [vmem:[%s796 + $0x78] sm:$0xff]
        %v868 = vld [vmem:[%s796 + $0x80] sm:$0xff]
        %v869 = vld [vmem:[%s796 + $0x88] sm:$0xff]
        %v870 = vld [vmem:[%s796 + $0x90] sm:$0xff]
        %v871 = vld [vmem:[%s796 + $0x98] sm:$0xff]
        %v872 = vld [vmem:[%s796 + $0xa0] sm:$0xff]
        %v873 = vld [vmem:[%s796 + $0xa8] sm:$0xff]
        %v874 = vld [vmem:[%s796 + $0xb0] sm:$0xff]
        %v875 = vld [vmem:[%s796 + $0xb8] sm:$0xff]
        %v876 = vld [vmem:[%s796 + $0xc0] sm:$0xff]
        %v877 = vld [vmem:[%s796 + $0xc8] sm:$0xff]
        %v878 = vld [vmem:[%s796 + $0xd0] sm:$0xff]
        %v879 = vld [vmem:[%s796 + $0xd8] sm:$0xff]
        %v880 = vld [vmem:[%s796 + $0xe0] sm:$0xff]
        %v881 = vld [vmem:[%s796 + $0xe8] sm:$0xff]
        %v882 = vld [vmem:[%s796 + $0xf0] sm:$0xff]
        %v883 = vld [vmem:[%s796 + $0xf8] sm:$0xff]
        %v884 = vld [vmem:[%s796 + $0x100] sm:$0xff]
        %v885 = vld [vmem:[%s796 + $0x108] sm:$0xff]
        %v886 = vld [vmem:[%s796 + $0x110] sm:$0xff]
        %v887 = vld [vmem:[%s796 + $0x118] sm:$0xff]
        %v888 = vld [vmem:[%s796 + $0x120] sm:$0xff]
        %v889 = vld [vmem:[%s796 + $0x128] sm:$0xff]
        %v890 = vld [vmem:[%s796 + $0x130] sm:$0xff]
        %v891 = vld [vmem:[%s796 + $0x138] sm:$0xff]
        %v892 = vld [vmem:[%s796 + $0x140] sm:$0xff]
        %v893 = vld [vmem:[%s796 + $0x148] sm:$0xff]
        %v894 = vld [vmem:[%s796 + $0x150] sm:$0xff]
        %v895 = vld [vmem:[%s796 + $0x158] sm:$0xff]
        %v896 = vld [vmem:[%s796 + $0x160] sm:$0xff]
        %v897 = vld [vmem:[%s796 + $0x168] sm:$0xff]
        %v898 = vld [vmem:[%s796 + $0x170] sm:$0xff]
        %v899 = vld [vmem:[%s796 + $0x178] sm:$0xff]
        %900 = vadd.xlane.f32.xlu0 %v852
        %v901 = vpop.xlane.xlu0 %900
        %902 = vadd.xlane.f32.xlu0 %v853
        %v903 = vpop.xlane.xlu0 %902
        %904 = vadd.xlane.f32.xlu0 %v854
        %v905 = vpop.xlane.xlu0 %904
        %906 = vadd.xlane.f32.xlu0 %v855
        %v907 = vpop.xlane.xlu0 %906
        %908 = vadd.xlane.f32.xlu0 %v856
        %v909 = vpop.xlane.xlu0 %908
        %910 = vadd.xlane.f32.xlu0 %v857
        %v911 = vpop.xlane.xlu0 %910
        %912 = vadd.xlane.f32.xlu0 %v858
        %v913 = vpop.xlane.xlu0 %912
        %914 = vadd.xlane.f32.xlu0 %v859
        %v915 = vpop.xlane.xlu0 %914
        %916 = vadd.xlane.f32.xlu0 %v860
        %v917 = vpop.xlane.xlu0 %916
        %918 = vadd.xlane.f32.xlu0 %v861
        %v919 = vpop.xlane.xlu0 %918
        %920 = vadd.xlane.f32.xlu0 %v862
        %v921 = vpop.xlane.xlu0 %920
        %922 = vadd.xlane.f32.xlu0 %v863
        %v923 = vpop.xlane.xlu0 %922
        %924 = vadd.xlane.f32.xlu0 %v864
        %v925 = vpop.xlane.xlu0 %924
        %926 = vadd.xlane.f32.xlu0 %v865
        %v927 = vpop.xlane.xlu0 %926
        %928 = vadd.xlane.f32.xlu0 %v866
        %v929 = vpop.xlane.xlu0 %928
        %930 = vadd.xlane.f32.xlu0 %v867
        %v931 = vpop.xlane.xlu0 %930
        %932 = vadd.xlane.f32.xlu0 %v868
        %v933 = vpop.xlane.xlu0 %932
        %934 = vadd.xlane.f32.xlu0 %v869
        %v935 = vpop.xlane.xlu0 %934
        %936 = vadd.xlane.f32.xlu0 %v870
        %v937 = vpop.xlane.xlu0 %936
        %938 = vadd.xlane.f32.xlu0 %v871
        %v939 = vpop.xlane.xlu0 %938
        %940 = vadd.xlane.f32.xlu0 %v872
        %v941 = vpop.xlane.xlu0 %940
        %942 = vadd.xlane.f32.xlu0 %v873
        %v943 = vpop.xlane.xlu0 %942
        %944 = vadd.xlane.f32.xlu0 %v874
        %v945 = vpop.xlane.xlu0 %944
        %946 = vadd.xlane.f32.xlu0 %v875
        %v947 = vpop.xlane.xlu0 %946
        %948 = vadd.xlane.f32.xlu0 %v876
        %v949 = vpop.xlane.xlu0 %948
        %950 = vadd.xlane.f32.xlu0 %v877
        %v951 = vpop.xlane.xlu0 %950
        %952 = vadd.xlane.f32.xlu0 %v878
        %v953 = vpop.xlane.xlu0 %952
        %954 = vadd.xlane.f32.xlu0 %v879
        %v955 = vpop.xlane.xlu0 %954
        %956 = vadd.xlane.f32.xlu0 %v880
        %v957 = vpop.xlane.xlu0 %956
        %958 = vadd.xlane.f32.xlu0 %v881
        %v959 = vpop.xlane.xlu0 %958
        %960 = vadd.xlane.f32.xlu0 %v882
        %v961 = vpop.xlane.xlu0 %960
        %962 = vadd.xlane.f32.xlu0 %v883
        %v963 = vpop.xlane.xlu0 %962
        %964 = vadd.xlane.f32.xlu0 %v884
        %v965 = vpop.xlane.xlu0 %964
        %966 = vadd.xlane.f32.xlu0 %v885
        %v967 = vpop.xlane.xlu0 %966
        %968 = vadd.xlane.f32.xlu0 %v886
        %v969 = vpop.xlane.xlu0 %968
        %970 = vadd.xlane.f32.xlu0 %v887
        %v971 = vpop.xlane.xlu0 %970
        %972 = vadd.xlane.f32.xlu0 %v888
        %v973 = vpop.xlane.xlu0 %972
        %974 = vadd.xlane.f32.xlu0 %v889
        %v975 = vpop.xlane.xlu0 %974
        %976 = vadd.xlane.f32.xlu0 %v890
        %v977 = vpop.xlane.xlu0 %976
        %978 = vadd.xlane.f32.xlu0 %v891
        %v979 = vpop.xlane.xlu0 %978
        %980 = vadd.xlane.f32.xlu0 %v892
        %v981 = vpop.xlane.xlu0 %980
        %982 = vadd.xlane.f32.xlu0 %v893
        %v983 = vpop.xlane.xlu0 %982
        %984 = vadd.xlane.f32.xlu0 %v894
        %v985 = vpop.xlane.xlu0 %984
        %986 = vadd.xlane.f32.xlu0 %v895
        %v987 = vpop.xlane.xlu0 %986
        %988 = vadd.xlane.f32.xlu0 %v896
        %v989 = vpop.xlane.xlu0 %988
        %990 = vadd.xlane.f32.xlu0 %v897
        %v991 = vpop.xlane.xlu0 %990
        %992 = vadd.xlane.f32.xlu0 %v898
        %v993 = vpop.xlane.xlu0 %992
        %994 = vadd.xlane.f32.xlu0 %v899
        %v995 = vpop.xlane.xlu0 %994
        %v1044 = vlaneseq
        %v1045 = vshrl.u32 %v1044, 7
        %v1046 = vsub.s32 0, %v1045
        %v1047 = vrot.slane %v901, %v1046
        %v1048 = vlaneseq
        %v1049 = vshrl.u32 %v1048, 7
        %v1050 = vsub.s32 1, %v1049
        %v1051 = vrot.slane %v901, %v1050
        %v1052 = vlaneseq
        %v1053 = vshrl.u32 %v1052, 7
        %v1054 = vsub.s32 2, %v1053
        %v1055 = vrot.slane %v901, %v1054
        %v1056 = vlaneseq
        %v1057 = vshrl.u32 %v1056, 7
        %v1058 = vsub.s32 3, %v1057
        %v1059 = vrot.slane %v901, %v1058
        %v1060 = vlaneseq
        %v1061 = vshrl.u32 %v1060, 7
        %v1062 = vsub.s32 4, %v1061
        %v1063 = vrot.slane %v901, %v1062
        %v1064 = vlaneseq
        %v1065 = vshrl.u32 %v1064, 7
        %v1066 = vsub.s32 5, %v1065
        %v1067 = vrot.slane %v901, %v1066
        %v1068 = vlaneseq
        %v1069 = vshrl.u32 %v1068, 7
        %v1070 = vsub.s32 6, %v1069
        %v1071 = vrot.slane %v901, %v1070
        %v1072 = vlaneseq
        %v1073 = vshrl.u32 %v1072, 7
        %v1074 = vsub.s32 7, %v1073
        %v1075 = vrot.slane %v901, %v1074
        %v1076 = vlaneseq
        %v1077 = vshrl.u32 %v1076, 7
        %v1078 = vsub.s32 0, %v1077
        %v1079 = vrot.slane %v903, %v1078
        %v1080 = vlaneseq
        %v1081 = vshrl.u32 %v1080, 7
        %v1082 = vsub.s32 1, %v1081
        %v1083 = vrot.slane %v903, %v1082
        %v1084 = vlaneseq
        %v1085 = vshrl.u32 %v1084, 7
        %v1086 = vsub.s32 2, %v1085
        %v1087 = vrot.slane %v903, %v1086
        %v1088 = vlaneseq
        %v1089 = vshrl.u32 %v1088, 7
        %v1090 = vsub.s32 3, %v1089
        %v1091 = vrot.slane %v903, %v1090
        %v1092 = vlaneseq
        %v1093 = vshrl.u32 %v1092, 7
        %v1094 = vsub.s32 4, %v1093
        %v1095 = vrot.slane %v903, %v1094
        %v1096 = vlaneseq
        %v1097 = vshrl.u32 %v1096, 7
        %v1098 = vsub.s32 5, %v1097
        %v1099 = vrot.slane %v903, %v1098
        %v1100 = vlaneseq
        %v1101 = vshrl.u32 %v1100, 7
        %v1102 = vsub.s32 6, %v1101
        %v1103 = vrot.slane %v903, %v1102
        %v1104 = vlaneseq
        %v1105 = vshrl.u32 %v1104, 7
        %v1106 = vsub.s32 7, %v1105
        %v1107 = vrot.slane %v903, %v1106
        %v1108 = vlaneseq
        %v1109 = vshrl.u32 %v1108, 7
        %v1110 = vsub.s32 0, %v1109
        %v1111 = vrot.slane %v905, %v1110
        %v1112 = vlaneseq
        %v1113 = vshrl.u32 %v1112, 7
        %v1114 = vsub.s32 1, %v1113
        %v1115 = vrot.slane %v905, %v1114
        %v1116 = vlaneseq
        %v1117 = vshrl.u32 %v1116, 7
        %v1118 = vsub.s32 2, %v1117
        %v1119 = vrot.slane %v905, %v1118
        %v1120 = vlaneseq
        %v1121 = vshrl.u32 %v1120, 7
        %v1122 = vsub.s32 3, %v1121
        %v1123 = vrot.slane %v905, %v1122
        %v1124 = vlaneseq
        %v1125 = vshrl.u32 %v1124, 7
        %v1126 = vsub.s32 4, %v1125
        %v1127 = vrot.slane %v905, %v1126
        %v1128 = vlaneseq
        %v1129 = vshrl.u32 %v1128, 7
        %v1130 = vsub.s32 5, %v1129
        %v1131 = vrot.slane %v905, %v1130
        %v1132 = vlaneseq
        %v1133 = vshrl.u32 %v1132, 7
        %v1134 = vsub.s32 6, %v1133
        %v1135 = vrot.slane %v905, %v1134
        %v1136 = vlaneseq
        %v1137 = vshrl.u32 %v1136, 7
        %v1138 = vsub.s32 7, %v1137
        %v1139 = vrot.slane %v905, %v1138
        %v1140 = vlaneseq
        %v1141 = vshrl.u32 %v1140, 7
        %v1142 = vsub.s32 0, %v1141
        %v1143 = vrot.slane %v907, %v1142
        %v1144 = vlaneseq
        %v1145 = vshrl.u32 %v1144, 7
        %v1146 = vsub.s32 1, %v1145
        %v1147 = vrot.slane %v907, %v1146
        %v1148 = vlaneseq
        %v1149 = vshrl.u32 %v1148, 7
        %v1150 = vsub.s32 2, %v1149
        %v1151 = vrot.slane %v907, %v1150
        %v1152 = vlaneseq
        %v1153 = vshrl.u32 %v1152, 7
        %v1154 = vsub.s32 3, %v1153
        %v1155 = vrot.slane %v907, %v1154
        %v1156 = vlaneseq
        %v1157 = vshrl.u32 %v1156, 7
        %v1158 = vsub.s32 4, %v1157
        %v1159 = vrot.slane %v907, %v1158
        %v1160 = vlaneseq
        %v1161 = vshrl.u32 %v1160, 7
        %v1162 = vsub.s32 5, %v1161
        %v1163 = vrot.slane %v907, %v1162
        %v1164 = vlaneseq
        %v1165 = vshrl.u32 %v1164, 7
        %v1166 = vsub.s32 6, %v1165
        %v1167 = vrot.slane %v907, %v1166
        %v1168 = vlaneseq
        %v1169 = vshrl.u32 %v1168, 7
        %v1170 = vsub.s32 7, %v1169
        %v1171 = vrot.slane %v907, %v1170
        %v1172 = vlaneseq
        %v1173 = vshrl.u32 %v1172, 7
        %v1174 = vsub.s32 0, %v1173
        %v1175 = vrot.slane %v909, %v1174
        %v1176 = vlaneseq
        %v1177 = vshrl.u32 %v1176, 7
        %v1178 = vsub.s32 1, %v1177
        %v1179 = vrot.slane %v909, %v1178
        %v1180 = vlaneseq
        %v1181 = vshrl.u32 %v1180, 7
        %v1182 = vsub.s32 2, %v1181
        %v1183 = vrot.slane %v909, %v1182
        %v1184 = vlaneseq
        %v1185 = vshrl.u32 %v1184, 7
        %v1186 = vsub.s32 3, %v1185
        %v1187 = vrot.slane %v909, %v1186
        %v1188 = vlaneseq
        %v1189 = vshrl.u32 %v1188, 7
        %v1190 = vsub.s32 4, %v1189
        %v1191 = vrot.slane %v909, %v1190
        %v1192 = vlaneseq
        %v1193 = vshrl.u32 %v1192, 7
        %v1194 = vsub.s32 5, %v1193
        %v1195 = vrot.slane %v909, %v1194
        %v1196 = vlaneseq
        %v1197 = vshrl.u32 %v1196, 7
        %v1198 = vsub.s32 6, %v1197
        %v1199 = vrot.slane %v909, %v1198
        %v1200 = vlaneseq
        %v1201 = vshrl.u32 %v1200, 7
        %v1202 = vsub.s32 7, %v1201
        %v1203 = vrot.slane %v909, %v1202
        %v1204 = vlaneseq
        %v1205 = vshrl.u32 %v1204, 7
        %v1206 = vsub.s32 0, %v1205
        %v1207 = vrot.slane %v911, %v1206
        %v1208 = vlaneseq
        %v1209 = vshrl.u32 %v1208, 7
        %v1210 = vsub.s32 1, %v1209
        %v1211 = vrot.slane %v911, %v1210
        %v1212 = vlaneseq
        %v1213 = vshrl.u32 %v1212, 7
        %v1214 = vsub.s32 2, %v1213
        %v1215 = vrot.slane %v911, %v1214
        %v1216 = vlaneseq
        %v1217 = vshrl.u32 %v1216, 7
        %v1218 = vsub.s32 3, %v1217
        %v1219 = vrot.slane %v911, %v1218
        %v1220 = vlaneseq
        %v1221 = vshrl.u32 %v1220, 7
        %v1222 = vsub.s32 4, %v1221
        %v1223 = vrot.slane %v911, %v1222
        %v1224 = vlaneseq
        %v1225 = vshrl.u32 %v1224, 7
        %v1226 = vsub.s32 5, %v1225
        %v1227 = vrot.slane %v911, %v1226
        %v1228 = vlaneseq
        %v1229 = vshrl.u32 %v1228, 7
        %v1230 = vsub.s32 6, %v1229
        %v1231 = vrot.slane %v911, %v1230
        %v1232 = vlaneseq
        %v1233 = vshrl.u32 %v1232, 7
        %v1234 = vsub.s32 7, %v1233
        %v1235 = vrot.slane %v911, %v1234
        %v1236 = vlaneseq
        %v1237 = vshrl.u32 %v1236, 7
        %v1238 = vsub.s32 0, %v1237
        %v1239 = vrot.slane %v913, %v1238
        %v1240 = vlaneseq
        %v1241 = vshrl.u32 %v1240, 7
        %v1242 = vsub.s32 1, %v1241
        %v1243 = vrot.slane %v913, %v1242
        %v1244 = vlaneseq
        %v1245 = vshrl.u32 %v1244, 7
        %v1246 = vsub.s32 2, %v1245
        %v1247 = vrot.slane %v913, %v1246
        %v1248 = vlaneseq
        %v1249 = vshrl.u32 %v1248, 7
        %v1250 = vsub.s32 3, %v1249
        %v1251 = vrot.slane %v913, %v1250
        %v1252 = vlaneseq
        %v1253 = vshrl.u32 %v1252, 7
        %v1254 = vsub.s32 4, %v1253
        %v1255 = vrot.slane %v913, %v1254
        %v1256 = vlaneseq
        %v1257 = vshrl.u32 %v1256, 7
        %v1258 = vsub.s32 5, %v1257
        %v1259 = vrot.slane %v913, %v1258
        %v1260 = vlaneseq
        %v1261 = vshrl.u32 %v1260, 7
        %v1262 = vsub.s32 6, %v1261
        %v1263 = vrot.slane %v913, %v1262
        %v1264 = vlaneseq
        %v1265 = vshrl.u32 %v1264, 7
        %v1266 = vsub.s32 7, %v1265
        %v1267 = vrot.slane %v913, %v1266
        %v1268 = vlaneseq
        %v1269 = vshrl.u32 %v1268, 7
        %v1270 = vsub.s32 0, %v1269
        %v1271 = vrot.slane %v915, %v1270
        %v1272 = vlaneseq
        %v1273 = vshrl.u32 %v1272, 7
        %v1274 = vsub.s32 1, %v1273
        %v1275 = vrot.slane %v915, %v1274
        %v1276 = vlaneseq
        %v1277 = vshrl.u32 %v1276, 7
        %v1278 = vsub.s32 2, %v1277
        %v1279 = vrot.slane %v915, %v1278
        %v1280 = vlaneseq
        %v1281 = vshrl.u32 %v1280, 7
        %v1282 = vsub.s32 3, %v1281
        %v1283 = vrot.slane %v915, %v1282
        %v1284 = vlaneseq
        %v1285 = vshrl.u32 %v1284, 7
        %v1286 = vsub.s32 4, %v1285
        %v1287 = vrot.slane %v915, %v1286
        %v1288 = vlaneseq
        %v1289 = vshrl.u32 %v1288, 7
        %v1290 = vsub.s32 5, %v1289
        %v1291 = vrot.slane %v915, %v1290
        %v1292 = vlaneseq
        %v1293 = vshrl.u32 %v1292, 7
        %v1294 = vsub.s32 6, %v1293
        %v1295 = vrot.slane %v915, %v1294
        %v1296 = vlaneseq
        %v1297 = vshrl.u32 %v1296, 7
        %v1298 = vsub.s32 7, %v1297
        %v1299 = vrot.slane %v915, %v1298
        %v1300 = vlaneseq
        %v1301 = vshrl.u32 %v1300, 7
        %v1302 = vsub.s32 0, %v1301
        %v1303 = vrot.slane %v917, %v1302
        %v1304 = vlaneseq
        %v1305 = vshrl.u32 %v1304, 7
        %v1306 = vsub.s32 1, %v1305
        %v1307 = vrot.slane %v917, %v1306
        %v1308 = vlaneseq
        %v1309 = vshrl.u32 %v1308, 7
        %v1310 = vsub.s32 2, %v1309
        %v1311 = vrot.slane %v917, %v1310
        %v1312 = vlaneseq
        %v1313 = vshrl.u32 %v1312, 7
        %v1314 = vsub.s32 3, %v1313
        %v1315 = vrot.slane %v917, %v1314
        %v1316 = vlaneseq
        %v1317 = vshrl.u32 %v1316, 7
        %v1318 = vsub.s32 4, %v1317
        %v1319 = vrot.slane %v917, %v1318
        %v1320 = vlaneseq
        %v1321 = vshrl.u32 %v1320, 7
        %v1322 = vsub.s32 5, %v1321
        %v1323 = vrot.slane %v917, %v1322
        %v1324 = vlaneseq
        %v1325 = vshrl.u32 %v1324, 7
        %v1326 = vsub.s32 6, %v1325
        %v1327 = vrot.slane %v917, %v1326
        %v1328 = vlaneseq
        %v1329 = vshrl.u32 %v1328, 7
        %v1330 = vsub.s32 7, %v1329
        %v1331 = vrot.slane %v917, %v1330
        %v1332 = vlaneseq
        %v1333 = vshrl.u32 %v1332, 7
        %v1334 = vsub.s32 0, %v1333
        %v1335 = vrot.slane %v919, %v1334
        %v1336 = vlaneseq
        %v1337 = vshrl.u32 %v1336, 7
        %v1338 = vsub.s32 1, %v1337
        %v1339 = vrot.slane %v919, %v1338
        %v1340 = vlaneseq
        %v1341 = vshrl.u32 %v1340, 7
        %v1342 = vsub.s32 2, %v1341
        %v1343 = vrot.slane %v919, %v1342
        %v1344 = vlaneseq
        %v1345 = vshrl.u32 %v1344, 7
        %v1346 = vsub.s32 3, %v1345
        %v1347 = vrot.slane %v919, %v1346
        %v1348 = vlaneseq
        %v1349 = vshrl.u32 %v1348, 7
        %v1350 = vsub.s32 4, %v1349
        %v1351 = vrot.slane %v919, %v1350
        %v1352 = vlaneseq
        %v1353 = vshrl.u32 %v1352, 7
        %v1354 = vsub.s32 5, %v1353
        %v1355 = vrot.slane %v919, %v1354
        %v1356 = vlaneseq
        %v1357 = vshrl.u32 %v1356, 7
        %v1358 = vsub.s32 6, %v1357
        %v1359 = vrot.slane %v919, %v1358
        %v1360 = vlaneseq
        %v1361 = vshrl.u32 %v1360, 7
        %v1362 = vsub.s32 7, %v1361
        %v1363 = vrot.slane %v919, %v1362
        %v1364 = vlaneseq
        %v1365 = vshrl.u32 %v1364, 7
        %v1366 = vsub.s32 0, %v1365
        %v1367 = vrot.slane %v921, %v1366
        %v1368 = vlaneseq
        %v1369 = vshrl.u32 %v1368, 7
        %v1370 = vsub.s32 1, %v1369
        %v1371 = vrot.slane %v921, %v1370
        %v1372 = vlaneseq
        %v1373 = vshrl.u32 %v1372, 7
        %v1374 = vsub.s32 2, %v1373
        %v1375 = vrot.slane %v921, %v1374
        %v1376 = vlaneseq
        %v1377 = vshrl.u32 %v1376, 7
        %v1378 = vsub.s32 3, %v1377
        %v1379 = vrot.slane %v921, %v1378
        %v1380 = vlaneseq
        %v1381 = vshrl.u32 %v1380, 7
        %v1382 = vsub.s32 4, %v1381
        %v1383 = vrot.slane %v921, %v1382
        %v1384 = vlaneseq
        %v1385 = vshrl.u32 %v1384, 7
        %v1386 = vsub.s32 5, %v1385
        %v1387 = vrot.slane %v921, %v1386
        %v1388 = vlaneseq
        %v1389 = vshrl.u32 %v1388, 7
        %v1390 = vsub.s32 6, %v1389
        %v1391 = vrot.slane %v921, %v1390
        %v1392 = vlaneseq
        %v1393 = vshrl.u32 %v1392, 7
        %v1394 = vsub.s32 7, %v1393
        %v1395 = vrot.slane %v921, %v1394
        %v1396 = vlaneseq
        %v1397 = vshrl.u32 %v1396, 7
        %v1398 = vsub.s32 0, %v1397
        %v1399 = vrot.slane %v923, %v1398
        %v1400 = vlaneseq
        %v1401 = vshrl.u32 %v1400, 7
        %v1402 = vsub.s32 1, %v1401
        %v1403 = vrot.slane %v923, %v1402
        %v1404 = vlaneseq
        %v1405 = vshrl.u32 %v1404, 7
        %v1406 = vsub.s32 2, %v1405
        %v1407 = vrot.slane %v923, %v1406
        %v1408 = vlaneseq
        %v1409 = vshrl.u32 %v1408, 7
        %v1410 = vsub.s32 3, %v1409
        %v1411 = vrot.slane %v923, %v1410
        %v1412 = vlaneseq
        %v1413 = vshrl.u32 %v1412, 7
        %v1414 = vsub.s32 4, %v1413
        %v1415 = vrot.slane %v923, %v1414
        %v1416 = vlaneseq
        %v1417 = vshrl.u32 %v1416, 7
        %v1418 = vsub.s32 5, %v1417
        %v1419 = vrot.slane %v923, %v1418
        %v1420 = vlaneseq
        %v1421 = vshrl.u32 %v1420, 7
        %v1422 = vsub.s32 6, %v1421
        %v1423 = vrot.slane %v923, %v1422
        %v1424 = vlaneseq
        %v1425 = vshrl.u32 %v1424, 7
        %v1426 = vsub.s32 7, %v1425
        %v1427 = vrot.slane %v923, %v1426
        %v1428 = vlaneseq
        %v1429 = vshrl.u32 %v1428, 7
        %v1430 = vsub.s32 0, %v1429
        %v1431 = vrot.slane %v925, %v1430
        %v1432 = vlaneseq
        %v1433 = vshrl.u32 %v1432, 7
        %v1434 = vsub.s32 1, %v1433
        %v1435 = vrot.slane %v925, %v1434
        %v1436 = vlaneseq
        %v1437 = vshrl.u32 %v1436, 7
        %v1438 = vsub.s32 2, %v1437
        %v1439 = vrot.slane %v925, %v1438
        %v1440 = vlaneseq
        %v1441 = vshrl.u32 %v1440, 7
        %v1442 = vsub.s32 3, %v1441
        %v1443 = vrot.slane %v925, %v1442
        %v1444 = vlaneseq
        %v1445 = vshrl.u32 %v1444, 7
        %v1446 = vsub.s32 4, %v1445
        %v1447 = vrot.slane %v925, %v1446
        %v1448 = vlaneseq
        %v1449 = vshrl.u32 %v1448, 7
        %v1450 = vsub.s32 5, %v1449
        %v1451 = vrot.slane %v925, %v1450
        %v1452 = vlaneseq
        %v1453 = vshrl.u32 %v1452, 7
        %v1454 = vsub.s32 6, %v1453
        %v1455 = vrot.slane %v925, %v1454
        %v1456 = vlaneseq
        %v1457 = vshrl.u32 %v1456, 7
        %v1458 = vsub.s32 7, %v1457
        %v1459 = vrot.slane %v925, %v1458
        %v1460 = vlaneseq
        %v1461 = vshrl.u32 %v1460, 7
        %v1462 = vsub.s32 0, %v1461
        %v1463 = vrot.slane %v927, %v1462
        %v1464 = vlaneseq
        %v1465 = vshrl.u32 %v1464, 7
        %v1466 = vsub.s32 1, %v1465
        %v1467 = vrot.slane %v927, %v1466
        %v1468 = vlaneseq
        %v1469 = vshrl.u32 %v1468, 7
        %v1470 = vsub.s32 2, %v1469
        %v1471 = vrot.slane %v927, %v1470
        %v1472 = vlaneseq
        %v1473 = vshrl.u32 %v1472, 7
        %v1474 = vsub.s32 3, %v1473
        %v1475 = vrot.slane %v927, %v1474
        %v1476 = vlaneseq
        %v1477 = vshrl.u32 %v1476, 7
        %v1478 = vsub.s32 4, %v1477
        %v1479 = vrot.slane %v927, %v1478
        %v1480 = vlaneseq
        %v1481 = vshrl.u32 %v1480, 7
        %v1482 = vsub.s32 5, %v1481
        %v1483 = vrot.slane %v927, %v1482
        %v1484 = vlaneseq
        %v1485 = vshrl.u32 %v1484, 7
        %v1486 = vsub.s32 6, %v1485
        %v1487 = vrot.slane %v927, %v1486
        %v1488 = vlaneseq
        %v1489 = vshrl.u32 %v1488, 7
        %v1490 = vsub.s32 7, %v1489
        %v1491 = vrot.slane %v927, %v1490
        %v1492 = vlaneseq
        %v1493 = vshrl.u32 %v1492, 7
        %v1494 = vsub.s32 0, %v1493
        %v1495 = vrot.slane %v929, %v1494
        %v1496 = vlaneseq
        %v1497 = vshrl.u32 %v1496, 7
        %v1498 = vsub.s32 1, %v1497
        %v1499 = vrot.slane %v929, %v1498
        %v1500 = vlaneseq
        %v1501 = vshrl.u32 %v1500, 7
        %v1502 = vsub.s32 2, %v1501
        %v1503 = vrot.slane %v929, %v1502
        %v1504 = vlaneseq
        %v1505 = vshrl.u32 %v1504, 7
        %v1506 = vsub.s32 3, %v1505
        %v1507 = vrot.slane %v929, %v1506
        %v1508 = vlaneseq
        %v1509 = vshrl.u32 %v1508, 7
        %v1510 = vsub.s32 4, %v1509
        %v1511 = vrot.slane %v929, %v1510
        %v1512 = vlaneseq
        %v1513 = vshrl.u32 %v1512, 7
        %v1514 = vsub.s32 5, %v1513
        %v1515 = vrot.slane %v929, %v1514
        %v1516 = vlaneseq
        %v1517 = vshrl.u32 %v1516, 7
        %v1518 = vsub.s32 6, %v1517
        %v1519 = vrot.slane %v929, %v1518
        %v1520 = vlaneseq
        %v1521 = vshrl.u32 %v1520, 7
        %v1522 = vsub.s32 7, %v1521
        %v1523 = vrot.slane %v929, %v1522
        %v1524 = vlaneseq
        %v1525 = vshrl.u32 %v1524, 7
        %v1526 = vsub.s32 0, %v1525
        %v1527 = vrot.slane %v931, %v1526
        %v1528 = vlaneseq
        %v1529 = vshrl.u32 %v1528, 7
        %v1530 = vsub.s32 1, %v1529
        %v1531 = vrot.slane %v931, %v1530
        %v1532 = vlaneseq
        %v1533 = vshrl.u32 %v1532, 7
        %v1534 = vsub.s32 2, %v1533
        %v1535 = vrot.slane %v931, %v1534
        %v1536 = vlaneseq
        %v1537 = vshrl.u32 %v1536, 7
        %v1538 = vsub.s32 3, %v1537
        %v1539 = vrot.slane %v931, %v1538
        %v1540 = vlaneseq
        %v1541 = vshrl.u32 %v1540, 7
        %v1542 = vsub.s32 4, %v1541
        %v1543 = vrot.slane %v931, %v1542
        %v1544 = vlaneseq
        %v1545 = vshrl.u32 %v1544, 7
        %v1546 = vsub.s32 5, %v1545
        %v1547 = vrot.slane %v931, %v1546
        %v1548 = vlaneseq
        %v1549 = vshrl.u32 %v1548, 7
        %v1550 = vsub.s32 6, %v1549
        %v1551 = vrot.slane %v931, %v1550
        %v1552 = vlaneseq
        %v1553 = vshrl.u32 %v1552, 7
        %v1554 = vsub.s32 7, %v1553
        %v1555 = vrot.slane %v931, %v1554
        %v1556 = vlaneseq
        %v1557 = vshrl.u32 %v1556, 7
        %v1558 = vsub.s32 0, %v1557
        %v1559 = vrot.slane %v933, %v1558
        %v1560 = vlaneseq
        %v1561 = vshrl.u32 %v1560, 7
        %v1562 = vsub.s32 1, %v1561
        %v1563 = vrot.slane %v933, %v1562
        %v1564 = vlaneseq
        %v1565 = vshrl.u32 %v1564, 7
        %v1566 = vsub.s32 2, %v1565
        %v1567 = vrot.slane %v933, %v1566
        %v1568 = vlaneseq
        %v1569 = vshrl.u32 %v1568, 7
        %v1570 = vsub.s32 3, %v1569
        %v1571 = vrot.slane %v933, %v1570
        %v1572 = vlaneseq
        %v1573 = vshrl.u32 %v1572, 7
        %v1574 = vsub.s32 4, %v1573
        %v1575 = vrot.slane %v933, %v1574
        %v1576 = vlaneseq
        %v1577 = vshrl.u32 %v1576, 7
        %v1578 = vsub.s32 5, %v1577
        %v1579 = vrot.slane %v933, %v1578
        %v1580 = vlaneseq
        %v1581 = vshrl.u32 %v1580, 7
        %v1582 = vsub.s32 6, %v1581
        %v1583 = vrot.slane %v933, %v1582
        %v1584 = vlaneseq
        %v1585 = vshrl.u32 %v1584, 7
        %v1586 = vsub.s32 7, %v1585
        %v1587 = vrot.slane %v933, %v1586
        %v1588 = vlaneseq
        %v1589 = vshrl.u32 %v1588, 7
        %v1590 = vsub.s32 0, %v1589
        %v1591 = vrot.slane %v935, %v1590
        %v1592 = vlaneseq
        %v1593 = vshrl.u32 %v1592, 7
        %v1594 = vsub.s32 1, %v1593
        %v1595 = vrot.slane %v935, %v1594
        %v1596 = vlaneseq
        %v1597 = vshrl.u32 %v1596, 7
        %v1598 = vsub.s32 2, %v1597
        %v1599 = vrot.slane %v935, %v1598
        %v1600 = vlaneseq
        %v1601 = vshrl.u32 %v1600, 7
        %v1602 = vsub.s32 3, %v1601
        %v1603 = vrot.slane %v935, %v1602
        %v1604 = vlaneseq
        %v1605 = vshrl.u32 %v1604, 7
        %v1606 = vsub.s32 4, %v1605
        %v1607 = vrot.slane %v935, %v1606
        %v1608 = vlaneseq
        %v1609 = vshrl.u32 %v1608, 7
        %v1610 = vsub.s32 5, %v1609
        %v1611 = vrot.slane %v935, %v1610
        %v1612 = vlaneseq
        %v1613 = vshrl.u32 %v1612, 7
        %v1614 = vsub.s32 6, %v1613
        %v1615 = vrot.slane %v935, %v1614
        %v1616 = vlaneseq
        %v1617 = vshrl.u32 %v1616, 7
        %v1618 = vsub.s32 7, %v1617
        %v1619 = vrot.slane %v935, %v1618
        %v1620 = vlaneseq
        %v1621 = vshrl.u32 %v1620, 7
        %v1622 = vsub.s32 0, %v1621
        %v1623 = vrot.slane %v937, %v1622
        %v1624 = vlaneseq
        %v1625 = vshrl.u32 %v1624, 7
        %v1626 = vsub.s32 1, %v1625
        %v1627 = vrot.slane %v937, %v1626
        %v1628 = vlaneseq
        %v1629 = vshrl.u32 %v1628, 7
        %v1630 = vsub.s32 2, %v1629
        %v1631 = vrot.slane %v937, %v1630
        %v1632 = vlaneseq
        %v1633 = vshrl.u32 %v1632, 7
        %v1634 = vsub.s32 3, %v1633
        %v1635 = vrot.slane %v937, %v1634
        %v1636 = vlaneseq
        %v1637 = vshrl.u32 %v1636, 7
        %v1638 = vsub.s32 4, %v1637
        %v1639 = vrot.slane %v937, %v1638
        %v1640 = vlaneseq
        %v1641 = vshrl.u32 %v1640, 7
        %v1642 = vsub.s32 5, %v1641
        %v1643 = vrot.slane %v937, %v1642
        %v1644 = vlaneseq
        %v1645 = vshrl.u32 %v1644, 7
        %v1646 = vsub.s32 6, %v1645
        %v1647 = vrot.slane %v937, %v1646
        %v1648 = vlaneseq
        %v1649 = vshrl.u32 %v1648, 7
        %v1650 = vsub.s32 7, %v1649
        %v1651 = vrot.slane %v937, %v1650
        %v1652 = vlaneseq
        %v1653 = vshrl.u32 %v1652, 7
        %v1654 = vsub.s32 0, %v1653
        %v1655 = vrot.slane %v939, %v1654
        %v1656 = vlaneseq
        %v1657 = vshrl.u32 %v1656, 7
        %v1658 = vsub.s32 1, %v1657
        %v1659 = vrot.slane %v939, %v1658
        %v1660 = vlaneseq
        %v1661 = vshrl.u32 %v1660, 7
        %v1662 = vsub.s32 2, %v1661
        %v1663 = vrot.slane %v939, %v1662
        %v1664 = vlaneseq
        %v1665 = vshrl.u32 %v1664, 7
        %v1666 = vsub.s32 3, %v1665
        %v1667 = vrot.slane %v939, %v1666
        %v1668 = vlaneseq
        %v1669 = vshrl.u32 %v1668, 7
        %v1670 = vsub.s32 4, %v1669
        %v1671 = vrot.slane %v939, %v1670
        %v1672 = vlaneseq
        %v1673 = vshrl.u32 %v1672, 7
        %v1674 = vsub.s32 5, %v1673
        %v1675 = vrot.slane %v939, %v1674
        %v1676 = vlaneseq
        %v1677 = vshrl.u32 %v1676, 7
        %v1678 = vsub.s32 6, %v1677
        %v1679 = vrot.slane %v939, %v1678
        %v1680 = vlaneseq
        %v1681 = vshrl.u32 %v1680, 7
        %v1682 = vsub.s32 7, %v1681
        %v1683 = vrot.slane %v939, %v1682
        %v1684 = vlaneseq
        %v1685 = vshrl.u32 %v1684, 7
        %v1686 = vsub.s32 0, %v1685
        %v1687 = vrot.slane %v941, %v1686
        %v1688 = vlaneseq
        %v1689 = vshrl.u32 %v1688, 7
        %v1690 = vsub.s32 1, %v1689
        %v1691 = vrot.slane %v941, %v1690
        %v1692 = vlaneseq
        %v1693 = vshrl.u32 %v1692, 7
        %v1694 = vsub.s32 2, %v1693
        %v1695 = vrot.slane %v941, %v1694
        %v1696 = vlaneseq
        %v1697 = vshrl.u32 %v1696, 7
        %v1698 = vsub.s32 3, %v1697
        %v1699 = vrot.slane %v941, %v1698
        %v1700 = vlaneseq
        %v1701 = vshrl.u32 %v1700, 7
        %v1702 = vsub.s32 4, %v1701
        %v1703 = vrot.slane %v941, %v1702
        %v1704 = vlaneseq
        %v1705 = vshrl.u32 %v1704, 7
        %v1706 = vsub.s32 5, %v1705
        %v1707 = vrot.slane %v941, %v1706
        %v1708 = vlaneseq
        %v1709 = vshrl.u32 %v1708, 7
        %v1710 = vsub.s32 6, %v1709
        %v1711 = vrot.slane %v941, %v1710
        %v1712 = vlaneseq
        %v1713 = vshrl.u32 %v1712, 7
        %v1714 = vsub.s32 7, %v1713
        %v1715 = vrot.slane %v941, %v1714
        %v1716 = vlaneseq
        %v1717 = vshrl.u32 %v1716, 7
        %v1718 = vsub.s32 0, %v1717
        %v1719 = vrot.slane %v943, %v1718
        %v1720 = vlaneseq
        %v1721 = vshrl.u32 %v1720, 7
        %v1722 = vsub.s32 1, %v1721
        %v1723 = vrot.slane %v943, %v1722
        %v1724 = vlaneseq
        %v1725 = vshrl.u32 %v1724, 7
        %v1726 = vsub.s32 2, %v1725
        %v1727 = vrot.slane %v943, %v1726
        %v1728 = vlaneseq
        %v1729 = vshrl.u32 %v1728, 7
        %v1730 = vsub.s32 3, %v1729
        %v1731 = vrot.slane %v943, %v1730
        %v1732 = vlaneseq
        %v1733 = vshrl.u32 %v1732, 7
        %v1734 = vsub.s32 4, %v1733
        %v1735 = vrot.slane %v943, %v1734
        %v1736 = vlaneseq
        %v1737 = vshrl.u32 %v1736, 7
        %v1738 = vsub.s32 5, %v1737
        %v1739 = vrot.slane %v943, %v1738
        %v1740 = vlaneseq
        %v1741 = vshrl.u32 %v1740, 7
        %v1742 = vsub.s32 6, %v1741
        %v1743 = vrot.slane %v943, %v1742
        %v1744 = vlaneseq
        %v1745 = vshrl.u32 %v1744, 7
        %v1746 = vsub.s32 7, %v1745
        %v1747 = vrot.slane %v943, %v1746
        %v1748 = vlaneseq
        %v1749 = vshrl.u32 %v1748, 7
        %v1750 = vsub.s32 0, %v1749
        %v1751 = vrot.slane %v945, %v1750
        %v1752 = vlaneseq
        %v1753 = vshrl.u32 %v1752, 7
        %v1754 = vsub.s32 1, %v1753
        %v1755 = vrot.slane %v945, %v1754
        %v1756 = vlaneseq
        %v1757 = vshrl.u32 %v1756, 7
        %v1758 = vsub.s32 2, %v1757
        %v1759 = vrot.slane %v945, %v1758
        %v1760 = vlaneseq
        %v1761 = vshrl.u32 %v1760, 7
        %v1762 = vsub.s32 3, %v1761
        %v1763 = vrot.slane %v945, %v1762
        %v1764 = vlaneseq
        %v1765 = vshrl.u32 %v1764, 7
        %v1766 = vsub.s32 4, %v1765
        %v1767 = vrot.slane %v945, %v1766
        %v1768 = vlaneseq
        %v1769 = vshrl.u32 %v1768, 7
        %v1770 = vsub.s32 5, %v1769
        %v1771 = vrot.slane %v945, %v1770
        %v1772 = vlaneseq
        %v1773 = vshrl.u32 %v1772, 7
        %v1774 = vsub.s32 6, %v1773
        %v1775 = vrot.slane %v945, %v1774
        %v1776 = vlaneseq
        %v1777 = vshrl.u32 %v1776, 7
        %v1778 = vsub.s32 7, %v1777
        %v1779 = vrot.slane %v945, %v1778
        %v1780 = vlaneseq
        %v1781 = vshrl.u32 %v1780, 7
        %v1782 = vsub.s32 0, %v1781
        %v1783 = vrot.slane %v947, %v1782
        %v1784 = vlaneseq
        %v1785 = vshrl.u32 %v1784, 7
        %v1786 = vsub.s32 1, %v1785
        %v1787 = vrot.slane %v947, %v1786
        %v1788 = vlaneseq
        %v1789 = vshrl.u32 %v1788, 7
        %v1790 = vsub.s32 2, %v1789
        %v1791 = vrot.slane %v947, %v1790
        %v1792 = vlaneseq
        %v1793 = vshrl.u32 %v1792, 7
        %v1794 = vsub.s32 3, %v1793
        %v1795 = vrot.slane %v947, %v1794
        %v1796 = vlaneseq
        %v1797 = vshrl.u32 %v1796, 7
        %v1798 = vsub.s32 4, %v1797
        %v1799 = vrot.slane %v947, %v1798
        %v1800 = vlaneseq
        %v1801 = vshrl.u32 %v1800, 7
        %v1802 = vsub.s32 5, %v1801
        %v1803 = vrot.slane %v947, %v1802
        %v1804 = vlaneseq
        %v1805 = vshrl.u32 %v1804, 7
        %v1806 = vsub.s32 6, %v1805
        %v1807 = vrot.slane %v947, %v1806
        %v1808 = vlaneseq
        %v1809 = vshrl.u32 %v1808, 7
        %v1810 = vsub.s32 7, %v1809
        %v1811 = vrot.slane %v947, %v1810
        %v1812 = vlaneseq
        %v1813 = vshrl.u32 %v1812, 7
        %v1814 = vsub.s32 0, %v1813
        %v1815 = vrot.slane %v949, %v1814
        %v1816 = vlaneseq
        %v1817 = vshrl.u32 %v1816, 7
        %v1818 = vsub.s32 1, %v1817
        %v1819 = vrot.slane %v949, %v1818
        %v1820 = vlaneseq
        %v1821 = vshrl.u32 %v1820, 7
        %v1822 = vsub.s32 2, %v1821
        %v1823 = vrot.slane %v949, %v1822
        %v1824 = vlaneseq
        %v1825 = vshrl.u32 %v1824, 7
        %v1826 = vsub.s32 3, %v1825
        %v1827 = vrot.slane %v949, %v1826
        %v1828 = vlaneseq
        %v1829 = vshrl.u32 %v1828, 7
        %v1830 = vsub.s32 4, %v1829
        %v1831 = vrot.slane %v949, %v1830
        %v1832 = vlaneseq
        %v1833 = vshrl.u32 %v1832, 7
        %v1834 = vsub.s32 5, %v1833
        %v1835 = vrot.slane %v949, %v1834
        %v1836 = vlaneseq
        %v1837 = vshrl.u32 %v1836, 7
        %v1838 = vsub.s32 6, %v1837
        %v1839 = vrot.slane %v949, %v1838
        %v1840 = vlaneseq
        %v1841 = vshrl.u32 %v1840, 7
        %v1842 = vsub.s32 7, %v1841
        %v1843 = vrot.slane %v949, %v1842
        %v1844 = vlaneseq
        %v1845 = vshrl.u32 %v1844, 7
        %v1846 = vsub.s32 0, %v1845
        %v1847 = vrot.slane %v951, %v1846
        %v1848 = vlaneseq
        %v1849 = vshrl.u32 %v1848, 7
        %v1850 = vsub.s32 1, %v1849
        %v1851 = vrot.slane %v951, %v1850
        %v1852 = vlaneseq
        %v1853 = vshrl.u32 %v1852, 7
        %v1854 = vsub.s32 2, %v1853
        %v1855 = vrot.slane %v951, %v1854
        %v1856 = vlaneseq
        %v1857 = vshrl.u32 %v1856, 7
        %v1858 = vsub.s32 3, %v1857
        %v1859 = vrot.slane %v951, %v1858
        %v1860 = vlaneseq
        %v1861 = vshrl.u32 %v1860, 7
        %v1862 = vsub.s32 4, %v1861
        %v1863 = vrot.slane %v951, %v1862
        %v1864 = vlaneseq
        %v1865 = vshrl.u32 %v1864, 7
        %v1866 = vsub.s32 5, %v1865
        %v1867 = vrot.slane %v951, %v1866
        %v1868 = vlaneseq
        %v1869 = vshrl.u32 %v1868, 7
        %v1870 = vsub.s32 6, %v1869
        %v1871 = vrot.slane %v951, %v1870
        %v1872 = vlaneseq
        %v1873 = vshrl.u32 %v1872, 7
        %v1874 = vsub.s32 7, %v1873
        %v1875 = vrot.slane %v951, %v1874
        %v1876 = vlaneseq
        %v1877 = vshrl.u32 %v1876, 7
        %v1878 = vsub.s32 0, %v1877
        %v1879 = vrot.slane %v953, %v1878
        %v1880 = vlaneseq
        %v1881 = vshrl.u32 %v1880, 7
        %v1882 = vsub.s32 1, %v1881
        %v1883 = vrot.slane %v953, %v1882
        %v1884 = vlaneseq
        %v1885 = vshrl.u32 %v1884, 7
        %v1886 = vsub.s32 2, %v1885
        %v1887 = vrot.slane %v953, %v1886
        %v1888 = vlaneseq
        %v1889 = vshrl.u32 %v1888, 7
        %v1890 = vsub.s32 3, %v1889
        %v1891 = vrot.slane %v953, %v1890
        %v1892 = vlaneseq
        %v1893 = vshrl.u32 %v1892, 7
        %v1894 = vsub.s32 4, %v1893
        %v1895 = vrot.slane %v953, %v1894
        %v1896 = vlaneseq
        %v1897 = vshrl.u32 %v1896, 7
        %v1898 = vsub.s32 5, %v1897
        %v1899 = vrot.slane %v953, %v1898
        %v1900 = vlaneseq
        %v1901 = vshrl.u32 %v1900, 7
        %v1902 = vsub.s32 6, %v1901
        %v1903 = vrot.slane %v953, %v1902
        %v1904 = vlaneseq
        %v1905 = vshrl.u32 %v1904, 7
        %v1906 = vsub.s32 7, %v1905
        %v1907 = vrot.slane %v953, %v1906
        %v1908 = vlaneseq
        %v1909 = vshrl.u32 %v1908, 7
        %v1910 = vsub.s32 0, %v1909
        %v1911 = vrot.slane %v955, %v1910
        %v1912 = vlaneseq
        %v1913 = vshrl.u32 %v1912, 7
        %v1914 = vsub.s32 1, %v1913
        %v1915 = vrot.slane %v955, %v1914
        %v1916 = vlaneseq
        %v1917 = vshrl.u32 %v1916, 7
        %v1918 = vsub.s32 2, %v1917
        %v1919 = vrot.slane %v955, %v1918
        %v1920 = vlaneseq
        %v1921 = vshrl.u32 %v1920, 7
        %v1922 = vsub.s32 3, %v1921
        %v1923 = vrot.slane %v955, %v1922
        %v1924 = vlaneseq
        %v1925 = vshrl.u32 %v1924, 7
        %v1926 = vsub.s32 4, %v1925
        %v1927 = vrot.slane %v955, %v1926
        %v1928 = vlaneseq
        %v1929 = vshrl.u32 %v1928, 7
        %v1930 = vsub.s32 5, %v1929
        %v1931 = vrot.slane %v955, %v1930
        %v1932 = vlaneseq
        %v1933 = vshrl.u32 %v1932, 7
        %v1934 = vsub.s32 6, %v1933
        %v1935 = vrot.slane %v955, %v1934
        %v1936 = vlaneseq
        %v1937 = vshrl.u32 %v1936, 7
        %v1938 = vsub.s32 7, %v1937
        %v1939 = vrot.slane %v955, %v1938
        %v1940 = vlaneseq
        %v1941 = vshrl.u32 %v1940, 7
        %v1942 = vsub.s32 0, %v1941
        %v1943 = vrot.slane %v957, %v1942
        %v1944 = vlaneseq
        %v1945 = vshrl.u32 %v1944, 7
        %v1946 = vsub.s32 1, %v1945
        %v1947 = vrot.slane %v957, %v1946
        %v1948 = vlaneseq
        %v1949 = vshrl.u32 %v1948, 7
        %v1950 = vsub.s32 2, %v1949
        %v1951 = vrot.slane %v957, %v1950
        %v1952 = vlaneseq
        %v1953 = vshrl.u32 %v1952, 7
        %v1954 = vsub.s32 3, %v1953
        %v1955 = vrot.slane %v957, %v1954
        %v1956 = vlaneseq
        %v1957 = vshrl.u32 %v1956, 7
        %v1958 = vsub.s32 4, %v1957
        %v1959 = vrot.slane %v957, %v1958
        %v1960 = vlaneseq
        %v1961 = vshrl.u32 %v1960, 7
        %v1962 = vsub.s32 5, %v1961
        %v1963 = vrot.slane %v957, %v1962
        %v1964 = vlaneseq
        %v1965 = vshrl.u32 %v1964, 7
        %v1966 = vsub.s32 6, %v1965
        %v1967 = vrot.slane %v957, %v1966
        %v1968 = vlaneseq
        %v1969 = vshrl.u32 %v1968, 7
        %v1970 = vsub.s32 7, %v1969
        %v1971 = vrot.slane %v957, %v1970
        %v1972 = vlaneseq
        %v1973 = vshrl.u32 %v1972, 7
        %v1974 = vsub.s32 0, %v1973
        %v1975 = vrot.slane %v959, %v1974
        %v1976 = vlaneseq
        %v1977 = vshrl.u32 %v1976, 7
        %v1978 = vsub.s32 1, %v1977
        %v1979 = vrot.slane %v959, %v1978
        %v1980 = vlaneseq
        %v1981 = vshrl.u32 %v1980, 7
        %v1982 = vsub.s32 2, %v1981
        %v1983 = vrot.slane %v959, %v1982
        %v1984 = vlaneseq
        %v1985 = vshrl.u32 %v1984, 7
        %v1986 = vsub.s32 3, %v1985
        %v1987 = vrot.slane %v959, %v1986
        %v1988 = vlaneseq
        %v1989 = vshrl.u32 %v1988, 7
        %v1990 = vsub.s32 4, %v1989
        %v1991 = vrot.slane %v959, %v1990
        %v1992 = vlaneseq
        %v1993 = vshrl.u32 %v1992, 7
        %v1994 = vsub.s32 5, %v1993
        %v1995 = vrot.slane %v959, %v1994
        %v1996 = vlaneseq
        %v1997 = vshrl.u32 %v1996, 7
        %v1998 = vsub.s32 6, %v1997
        %v1999 = vrot.slane %v959, %v1998
        %v2000 = vlaneseq
        %v2001 = vshrl.u32 %v2000, 7
        %v2002 = vsub.s32 7, %v2001
        %v2003 = vrot.slane %v959, %v2002
        %v2004 = vlaneseq
        %v2005 = vshrl.u32 %v2004, 7
        %v2006 = vsub.s32 0, %v2005
        %v2007 = vrot.slane %v961, %v2006
        %v2008 = vlaneseq
        %v2009 = vshrl.u32 %v2008, 7
        %v2010 = vsub.s32 1, %v2009
        %v2011 = vrot.slane %v961, %v2010
        %v2012 = vlaneseq
        %v2013 = vshrl.u32 %v2012, 7
        %v2014 = vsub.s32 2, %v2013
        %v2015 = vrot.slane %v961, %v2014
        %v2016 = vlaneseq
        %v2017 = vshrl.u32 %v2016, 7
        %v2018 = vsub.s32 3, %v2017
        %v2019 = vrot.slane %v961, %v2018
        %v2020 = vlaneseq
        %v2021 = vshrl.u32 %v2020, 7
        %v2022 = vsub.s32 4, %v2021
        %v2023 = vrot.slane %v961, %v2022
        %v2024 = vlaneseq
        %v2025 = vshrl.u32 %v2024, 7
        %v2026 = vsub.s32 5, %v2025
        %v2027 = vrot.slane %v961, %v2026
        %v2028 = vlaneseq
        %v2029 = vshrl.u32 %v2028, 7
        %v2030 = vsub.s32 6, %v2029
        %v2031 = vrot.slane %v961, %v2030
        %v2032 = vlaneseq
        %v2033 = vshrl.u32 %v2032, 7
        %v2034 = vsub.s32 7, %v2033
        %v2035 = vrot.slane %v961, %v2034
        %v2036 = vlaneseq
        %v2037 = vshrl.u32 %v2036, 7
        %v2038 = vsub.s32 0, %v2037
        %v2039 = vrot.slane %v963, %v2038
        %v2040 = vlaneseq
        %v2041 = vshrl.u32 %v2040, 7
        %v2042 = vsub.s32 1, %v2041
        %v2043 = vrot.slane %v963, %v2042
        %v2044 = vlaneseq
        %v2045 = vshrl.u32 %v2044, 7
        %v2046 = vsub.s32 2, %v2045
        %v2047 = vrot.slane %v963, %v2046
        %v2048 = vlaneseq
        %v2049 = vshrl.u32 %v2048, 7
        %v2050 = vsub.s32 3, %v2049
        %v2051 = vrot.slane %v963, %v2050
        %v2052 = vlaneseq
        %v2053 = vshrl.u32 %v2052, 7
        %v2054 = vsub.s32 4, %v2053
        %v2055 = vrot.slane %v963, %v2054
        %v2056 = vlaneseq
        %v2057 = vshrl.u32 %v2056, 7
        %v2058 = vsub.s32 5, %v2057
        %v2059 = vrot.slane %v963, %v2058
        %v2060 = vlaneseq
        %v2061 = vshrl.u32 %v2060, 7
        %v2062 = vsub.s32 6, %v2061
        %v2063 = vrot.slane %v963, %v2062
        %v2064 = vlaneseq
        %v2065 = vshrl.u32 %v2064, 7
        %v2066 = vsub.s32 7, %v2065
        %v2067 = vrot.slane %v963, %v2066
        %v2068 = vlaneseq
        %v2069 = vshrl.u32 %v2068, 7
        %v2070 = vsub.s32 0, %v2069
        %v2071 = vrot.slane %v965, %v2070
        %v2072 = vlaneseq
        %v2073 = vshrl.u32 %v2072, 7
        %v2074 = vsub.s32 1, %v2073
        %v2075 = vrot.slane %v965, %v2074
        %v2076 = vlaneseq
        %v2077 = vshrl.u32 %v2076, 7
        %v2078 = vsub.s32 2, %v2077
        %v2079 = vrot.slane %v965, %v2078
        %v2080 = vlaneseq
        %v2081 = vshrl.u32 %v2080, 7
        %v2082 = vsub.s32 3, %v2081
        %v2083 = vrot.slane %v965, %v2082
        %v2084 = vlaneseq
        %v2085 = vshrl.u32 %v2084, 7
        %v2086 = vsub.s32 4, %v2085
        %v2087 = vrot.slane %v965, %v2086
        %v2088 = vlaneseq
        %v2089 = vshrl.u32 %v2088, 7
        %v2090 = vsub.s32 5, %v2089
        %v2091 = vrot.slane %v965, %v2090
        %v2092 = vlaneseq
        %v2093 = vshrl.u32 %v2092, 7
        %v2094 = vsub.s32 6, %v2093
        %v2095 = vrot.slane %v965, %v2094
        %v2096 = vlaneseq
        %v2097 = vshrl.u32 %v2096, 7
        %v2098 = vsub.s32 7, %v2097
        %v2099 = vrot.slane %v965, %v2098
        %v2100 = vlaneseq
        %v2101 = vshrl.u32 %v2100, 7
        %v2102 = vsub.s32 0, %v2101
        %v2103 = vrot.slane %v967, %v2102
        %v2104 = vlaneseq
        %v2105 = vshrl.u32 %v2104, 7
        %v2106 = vsub.s32 1, %v2105
        %v2107 = vrot.slane %v967, %v2106
        %v2108 = vlaneseq
        %v2109 = vshrl.u32 %v2108, 7
        %v2110 = vsub.s32 2, %v2109
        %v2111 = vrot.slane %v967, %v2110
        %v2112 = vlaneseq
        %v2113 = vshrl.u32 %v2112, 7
        %v2114 = vsub.s32 3, %v2113
        %v2115 = vrot.slane %v967, %v2114
        %v2116 = vlaneseq
        %v2117 = vshrl.u32 %v2116, 7
        %v2118 = vsub.s32 4, %v2117
        %v2119 = vrot.slane %v967, %v2118
        %v2120 = vlaneseq
        %v2121 = vshrl.u32 %v2120, 7
        %v2122 = vsub.s32 5, %v2121
        %v2123 = vrot.slane %v967, %v2122
        %v2124 = vlaneseq
        %v2125 = vshrl.u32 %v2124, 7
        %v2126 = vsub.s32 6, %v2125
        %v2127 = vrot.slane %v967, %v2126
        %v2128 = vlaneseq
        %v2129 = vshrl.u32 %v2128, 7
        %v2130 = vsub.s32 7, %v2129
        %v2131 = vrot.slane %v967, %v2130
        %v2132 = vlaneseq
        %v2133 = vshrl.u32 %v2132, 7
        %v2134 = vsub.s32 0, %v2133
        %v2135 = vrot.slane %v969, %v2134
        %v2136 = vlaneseq
        %v2137 = vshrl.u32 %v2136, 7
        %v2138 = vsub.s32 1, %v2137
        %v2139 = vrot.slane %v969, %v2138
        %v2140 = vlaneseq
        %v2141 = vshrl.u32 %v2140, 7
        %v2142 = vsub.s32 2, %v2141
        %v2143 = vrot.slane %v969, %v2142
        %v2144 = vlaneseq
        %v2145 = vshrl.u32 %v2144, 7
        %v2146 = vsub.s32 3, %v2145
        %v2147 = vrot.slane %v969, %v2146
        %v2148 = vlaneseq
        %v2149 = vshrl.u32 %v2148, 7
        %v2150 = vsub.s32 4, %v2149
        %v2151 = vrot.slane %v969, %v2150
        %v2152 = vlaneseq
        %v2153 = vshrl.u32 %v2152, 7
        %v2154 = vsub.s32 5, %v2153
        %v2155 = vrot.slane %v969, %v2154
        %v2156 = vlaneseq
        %v2157 = vshrl.u32 %v2156, 7
        %v2158 = vsub.s32 6, %v2157
        %v2159 = vrot.slane %v969, %v2158
        %v2160 = vlaneseq
        %v2161 = vshrl.u32 %v2160, 7
        %v2162 = vsub.s32 7, %v2161
        %v2163 = vrot.slane %v969, %v2162
        %v2164 = vlaneseq
        %v2165 = vshrl.u32 %v2164, 7
        %v2166 = vsub.s32 0, %v2165
        %v2167 = vrot.slane %v971, %v2166
        %v2168 = vlaneseq
        %v2169 = vshrl.u32 %v2168, 7
        %v2170 = vsub.s32 1, %v2169
        %v2171 = vrot.slane %v971, %v2170
        %v2172 = vlaneseq
        %v2173 = vshrl.u32 %v2172, 7
        %v2174 = vsub.s32 2, %v2173
        %v2175 = vrot.slane %v971, %v2174
        %v2176 = vlaneseq
        %v2177 = vshrl.u32 %v2176, 7
        %v2178 = vsub.s32 3, %v2177
        %v2179 = vrot.slane %v971, %v2178
        %v2180 = vlaneseq
        %v2181 = vshrl.u32 %v2180, 7
        %v2182 = vsub.s32 4, %v2181
        %v2183 = vrot.slane %v971, %v2182
        %v2184 = vlaneseq
        %v2185 = vshrl.u32 %v2184, 7
        %v2186 = vsub.s32 5, %v2185
        %v2187 = vrot.slane %v971, %v2186
        %v2188 = vlaneseq
        %v2189 = vshrl.u32 %v2188, 7
        %v2190 = vsub.s32 6, %v2189
        %v2191 = vrot.slane %v971, %v2190
        %v2192 = vlaneseq
        %v2193 = vshrl.u32 %v2192, 7
        %v2194 = vsub.s32 7, %v2193
        %v2195 = vrot.slane %v971, %v2194
        %v2196 = vlaneseq
        %v2197 = vshrl.u32 %v2196, 7
        %v2198 = vsub.s32 0, %v2197
        %v2199 = vrot.slane %v973, %v2198
        %v2200 = vlaneseq
        %v2201 = vshrl.u32 %v2200, 7
        %v2202 = vsub.s32 1, %v2201
        %v2203 = vrot.slane %v973, %v2202
        %v2204 = vlaneseq
        %v2205 = vshrl.u32 %v2204, 7
        %v2206 = vsub.s32 2, %v2205
        %v2207 = vrot.slane %v973, %v2206
        %v2208 = vlaneseq
        %v2209 = vshrl.u32 %v2208, 7
        %v2210 = vsub.s32 3, %v2209
        %v2211 = vrot.slane %v973, %v2210
        %v2212 = vlaneseq
        %v2213 = vshrl.u32 %v2212, 7
        %v2214 = vsub.s32 4, %v2213
        %v2215 = vrot.slane %v973, %v2214
        %v2216 = vlaneseq
        %v2217 = vshrl.u32 %v2216, 7
        %v2218 = vsub.s32 5, %v2217
        %v2219 = vrot.slane %v973, %v2218
        %v2220 = vlaneseq
        %v2221 = vshrl.u32 %v2220, 7
        %v2222 = vsub.s32 6, %v2221
        %v2223 = vrot.slane %v973, %v2222
        %v2224 = vlaneseq
        %v2225 = vshrl.u32 %v2224, 7
        %v2226 = vsub.s32 7, %v2225
        %v2227 = vrot.slane %v973, %v2226
        %v2228 = vlaneseq
        %v2229 = vshrl.u32 %v2228, 7
        %v2230 = vsub.s32 0, %v2229
        %v2231 = vrot.slane %v975, %v2230
        %v2232 = vlaneseq
        %v2233 = vshrl.u32 %v2232, 7
        %v2234 = vsub.s32 1, %v2233
        %v2235 = vrot.slane %v975, %v2234
        %v2236 = vlaneseq
        %v2237 = vshrl.u32 %v2236, 7
        %v2238 = vsub.s32 2, %v2237
        %v2239 = vrot.slane %v975, %v2238
        %v2240 = vlaneseq
        %v2241 = vshrl.u32 %v2240, 7
        %v2242 = vsub.s32 3, %v2241
        %v2243 = vrot.slane %v975, %v2242
        %v2244 = vlaneseq
        %v2245 = vshrl.u32 %v2244, 7
        %v2246 = vsub.s32 4, %v2245
        %v2247 = vrot.slane %v975, %v2246
        %v2248 = vlaneseq
        %v2249 = vshrl.u32 %v2248, 7
        %v2250 = vsub.s32 5, %v2249
        %v2251 = vrot.slane %v975, %v2250
        %v2252 = vlaneseq
        %v2253 = vshrl.u32 %v2252, 7
        %v2254 = vsub.s32 6, %v2253
        %v2255 = vrot.slane %v975, %v2254
        %v2256 = vlaneseq
        %v2257 = vshrl.u32 %v2256, 7
        %v2258 = vsub.s32 7, %v2257
        %v2259 = vrot.slane %v975, %v2258
        %v2260 = vlaneseq
        %v2261 = vshrl.u32 %v2260, 7
        %v2262 = vsub.s32 0, %v2261
        %v2263 = vrot.slane %v977, %v2262
        %v2264 = vlaneseq
        %v2265 = vshrl.u32 %v2264, 7
        %v2266 = vsub.s32 1, %v2265
        %v2267 = vrot.slane %v977, %v2266
        %v2268 = vlaneseq
        %v2269 = vshrl.u32 %v2268, 7
        %v2270 = vsub.s32 2, %v2269
        %v2271 = vrot.slane %v977, %v2270
        %v2272 = vlaneseq
        %v2273 = vshrl.u32 %v2272, 7
        %v2274 = vsub.s32 3, %v2273
        %v2275 = vrot.slane %v977, %v2274
        %v2276 = vlaneseq
        %v2277 = vshrl.u32 %v2276, 7
        %v2278 = vsub.s32 4, %v2277
        %v2279 = vrot.slane %v977, %v2278
        %v2280 = vlaneseq
        %v2281 = vshrl.u32 %v2280, 7
        %v2282 = vsub.s32 5, %v2281
        %v2283 = vrot.slane %v977, %v2282
        %v2284 = vlaneseq
        %v2285 = vshrl.u32 %v2284, 7
        %v2286 = vsub.s32 6, %v2285
        %v2287 = vrot.slane %v977, %v2286
        %v2288 = vlaneseq
        %v2289 = vshrl.u32 %v2288, 7
        %v2290 = vsub.s32 7, %v2289
        %v2291 = vrot.slane %v977, %v2290
        %v2292 = vlaneseq
        %v2293 = vshrl.u32 %v2292, 7
        %v2294 = vsub.s32 0, %v2293
        %v2295 = vrot.slane %v979, %v2294
        %v2296 = vlaneseq
        %v2297 = vshrl.u32 %v2296, 7
        %v2298 = vsub.s32 1, %v2297
        %v2299 = vrot.slane %v979, %v2298
        %v2300 = vlaneseq
        %v2301 = vshrl.u32 %v2300, 7
        %v2302 = vsub.s32 2, %v2301
        %v2303 = vrot.slane %v979, %v2302
        %v2304 = vlaneseq
        %v2305 = vshrl.u32 %v2304, 7
        %v2306 = vsub.s32 3, %v2305
        %v2307 = vrot.slane %v979, %v2306
        %v2308 = vlaneseq
        %v2309 = vshrl.u32 %v2308, 7
        %v2310 = vsub.s32 4, %v2309
        %v2311 = vrot.slane %v979, %v2310
        %v2312 = vlaneseq
        %v2313 = vshrl.u32 %v2312, 7
        %v2314 = vsub.s32 5, %v2313
        %v2315 = vrot.slane %v979, %v2314
        %v2316 = vlaneseq
        %v2317 = vshrl.u32 %v2316, 7
        %v2318 = vsub.s32 6, %v2317
        %v2319 = vrot.slane %v979, %v2318
        %v2320 = vlaneseq
        %v2321 = vshrl.u32 %v2320, 7
        %v2322 = vsub.s32 7, %v2321
        %v2323 = vrot.slane %v979, %v2322
        %v2324 = vlaneseq
        %v2325 = vshrl.u32 %v2324, 7
        %v2326 = vsub.s32 0, %v2325
        %v2327 = vrot.slane %v981, %v2326
        %v2328 = vlaneseq
        %v2329 = vshrl.u32 %v2328, 7
        %v2330 = vsub.s32 1, %v2329
        %v2331 = vrot.slane %v981, %v2330
        %v2332 = vlaneseq
        %v2333 = vshrl.u32 %v2332, 7
        %v2334 = vsub.s32 2, %v2333
        %v2335 = vrot.slane %v981, %v2334
        %v2336 = vlaneseq
        %v2337 = vshrl.u32 %v2336, 7
        %v2338 = vsub.s32 3, %v2337
        %v2339 = vrot.slane %v981, %v2338
        %v2340 = vlaneseq
        %v2341 = vshrl.u32 %v2340, 7
        %v2342 = vsub.s32 4, %v2341
        %v2343 = vrot.slane %v981, %v2342
        %v2344 = vlaneseq
        %v2345 = vshrl.u32 %v2344, 7
        %v2346 = vsub.s32 5, %v2345
        %v2347 = vrot.slane %v981, %v2346
        %v2348 = vlaneseq
        %v2349 = vshrl.u32 %v2348, 7
        %v2350 = vsub.s32 6, %v2349
        %v2351 = vrot.slane %v981, %v2350
        %v2352 = vlaneseq
        %v2353 = vshrl.u32 %v2352, 7
        %v2354 = vsub.s32 7, %v2353
        %v2355 = vrot.slane %v981, %v2354
        %v2356 = vlaneseq
        %v2357 = vshrl.u32 %v2356, 7
        %v2358 = vsub.s32 0, %v2357
        %v2359 = vrot.slane %v983, %v2358
        %v2360 = vlaneseq
        %v2361 = vshrl.u32 %v2360, 7
        %v2362 = vsub.s32 1, %v2361
        %v2363 = vrot.slane %v983, %v2362
        %v2364 = vlaneseq
        %v2365 = vshrl.u32 %v2364, 7
        %v2366 = vsub.s32 2, %v2365
        %v2367 = vrot.slane %v983, %v2366
        %v2368 = vlaneseq
        %v2369 = vshrl.u32 %v2368, 7
        %v2370 = vsub.s32 3, %v2369
        %v2371 = vrot.slane %v983, %v2370
        %v2372 = vlaneseq
        %v2373 = vshrl.u32 %v2372, 7
        %v2374 = vsub.s32 4, %v2373
        %v2375 = vrot.slane %v983, %v2374
        %v2376 = vlaneseq
        %v2377 = vshrl.u32 %v2376, 7
        %v2378 = vsub.s32 5, %v2377
        %v2379 = vrot.slane %v983, %v2378
        %v2380 = vlaneseq
        %v2381 = vshrl.u32 %v2380, 7
        %v2382 = vsub.s32 6, %v2381
        %v2383 = vrot.slane %v983, %v2382
        %v2384 = vlaneseq
        %v2385 = vshrl.u32 %v2384, 7
        %v2386 = vsub.s32 7, %v2385
        %v2387 = vrot.slane %v983, %v2386
        %v2388 = vlaneseq
        %v2389 = vshrl.u32 %v2388, 7
        %v2390 = vsub.s32 0, %v2389
        %v2391 = vrot.slane %v985, %v2390
        %v2392 = vlaneseq
        %v2393 = vshrl.u32 %v2392, 7
        %v2394 = vsub.s32 1, %v2393
        %v2395 = vrot.slane %v985, %v2394
        %v2396 = vlaneseq
        %v2397 = vshrl.u32 %v2396, 7
        %v2398 = vsub.s32 2, %v2397
        %v2399 = vrot.slane %v985, %v2398
        %v2400 = vlaneseq
        %v2401 = vshrl.u32 %v2400, 7
        %v2402 = vsub.s32 3, %v2401
        %v2403 = vrot.slane %v985, %v2402
        %v2404 = vlaneseq
        %v2405 = vshrl.u32 %v2404, 7
        %v2406 = vsub.s32 4, %v2405
        %v2407 = vrot.slane %v985, %v2406
        %v2408 = vlaneseq
        %v2409 = vshrl.u32 %v2408, 7
        %v2410 = vsub.s32 5, %v2409
        %v2411 = vrot.slane %v985, %v2410
        %v2412 = vlaneseq
        %v2413 = vshrl.u32 %v2412, 7
        %v2414 = vsub.s32 6, %v2413
        %v2415 = vrot.slane %v985, %v2414
        %v2416 = vlaneseq
        %v2417 = vshrl.u32 %v2416, 7
        %v2418 = vsub.s32 7, %v2417
        %v2419 = vrot.slane %v985, %v2418
        %v2420 = vlaneseq
        %v2421 = vshrl.u32 %v2420, 7
        %v2422 = vsub.s32 0, %v2421
        %v2423 = vrot.slane %v987, %v2422
        %v2424 = vlaneseq
        %v2425 = vshrl.u32 %v2424, 7
        %v2426 = vsub.s32 1, %v2425
        %v2427 = vrot.slane %v987, %v2426
        %v2428 = vlaneseq
        %v2429 = vshrl.u32 %v2428, 7
        %v2430 = vsub.s32 2, %v2429
        %v2431 = vrot.slane %v987, %v2430
        %v2432 = vlaneseq
        %v2433 = vshrl.u32 %v2432, 7
        %v2434 = vsub.s32 3, %v2433
        %v2435 = vrot.slane %v987, %v2434
        %v2436 = vlaneseq
        %v2437 = vshrl.u32 %v2436, 7
        %v2438 = vsub.s32 4, %v2437
        %v2439 = vrot.slane %v987, %v2438
        %v2440 = vlaneseq
        %v2441 = vshrl.u32 %v2440, 7
        %v2442 = vsub.s32 5, %v2441
        %v2443 = vrot.slane %v987, %v2442
        %v2444 = vlaneseq
        %v2445 = vshrl.u32 %v2444, 7
        %v2446 = vsub.s32 6, %v2445
        %v2447 = vrot.slane %v987, %v2446
        %v2448 = vlaneseq
        %v2449 = vshrl.u32 %v2448, 7
        %v2450 = vsub.s32 7, %v2449
        %v2451 = vrot.slane %v987, %v2450
        %v2452 = vlaneseq
        %v2453 = vshrl.u32 %v2452, 7
        %v2454 = vsub.s32 0, %v2453
        %v2455 = vrot.slane %v989, %v2454
        %v2456 = vlaneseq
        %v2457 = vshrl.u32 %v2456, 7
        %v2458 = vsub.s32 1, %v2457
        %v2459 = vrot.slane %v989, %v2458
        %v2460 = vlaneseq
        %v2461 = vshrl.u32 %v2460, 7
        %v2462 = vsub.s32 2, %v2461
        %v2463 = vrot.slane %v989, %v2462
        %v2464 = vlaneseq
        %v2465 = vshrl.u32 %v2464, 7
        %v2466 = vsub.s32 3, %v2465
        %v2467 = vrot.slane %v989, %v2466
        %v2468 = vlaneseq
        %v2469 = vshrl.u32 %v2468, 7
        %v2470 = vsub.s32 4, %v2469
        %v2471 = vrot.slane %v989, %v2470
        %v2472 = vlaneseq
        %v2473 = vshrl.u32 %v2472, 7
        %v2474 = vsub.s32 5, %v2473
        %v2475 = vrot.slane %v989, %v2474
        %v2476 = vlaneseq
        %v2477 = vshrl.u32 %v2476, 7
        %v2478 = vsub.s32 6, %v2477
        %v2479 = vrot.slane %v989, %v2478
        %v2480 = vlaneseq
        %v2481 = vshrl.u32 %v2480, 7
        %v2482 = vsub.s32 7, %v2481
        %v2483 = vrot.slane %v989, %v2482
        %v2484 = vlaneseq
        %v2485 = vshrl.u32 %v2484, 7
        %v2486 = vsub.s32 0, %v2485
        %v2487 = vrot.slane %v991, %v2486
        %v2488 = vlaneseq
        %v2489 = vshrl.u32 %v2488, 7
        %v2490 = vsub.s32 1, %v2489
        %v2491 = vrot.slane %v991, %v2490
        %v2492 = vlaneseq
        %v2493 = vshrl.u32 %v2492, 7
        %v2494 = vsub.s32 2, %v2493
        %v2495 = vrot.slane %v991, %v2494
        %v2496 = vlaneseq
        %v2497 = vshrl.u32 %v2496, 7
        %v2498 = vsub.s32 3, %v2497
        %v2499 = vrot.slane %v991, %v2498
        %v2500 = vlaneseq
        %v2501 = vshrl.u32 %v2500, 7
        %v2502 = vsub.s32 4, %v2501
        %v2503 = vrot.slane %v991, %v2502
        %v2504 = vlaneseq
        %v2505 = vshrl.u32 %v2504, 7
        %v2506 = vsub.s32 5, %v2505
        %v2507 = vrot.slane %v991, %v2506
        %v2508 = vlaneseq
        %v2509 = vshrl.u32 %v2508, 7
        %v2510 = vsub.s32 6, %v2509
        %v2511 = vrot.slane %v991, %v2510
        %v2512 = vlaneseq
        %v2513 = vshrl.u32 %v2512, 7
        %v2514 = vsub.s32 7, %v2513
        %v2515 = vrot.slane %v991, %v2514
        %v2516 = vlaneseq
        %v2517 = vshrl.u32 %v2516, 7
        %v2518 = vsub.s32 0, %v2517
        %v2519 = vrot.slane %v993, %v2518
        %v2520 = vlaneseq
        %v2521 = vshrl.u32 %v2520, 7
        %v2522 = vsub.s32 1, %v2521
        %v2523 = vrot.slane %v993, %v2522
        %v2524 = vlaneseq
        %v2525 = vshrl.u32 %v2524, 7
        %v2526 = vsub.s32 2, %v2525
        %v2527 = vrot.slane %v993, %v2526
        %v2528 = vlaneseq
        %v2529 = vshrl.u32 %v2528, 7
        %v2530 = vsub.s32 3, %v2529
        %v2531 = vrot.slane %v993, %v2530
        %v2532 = vlaneseq
        %v2533 = vshrl.u32 %v2532, 7
        %v2534 = vsub.s32 4, %v2533
        %v2535 = vrot.slane %v993, %v2534
        %v2536 = vlaneseq
        %v2537 = vshrl.u32 %v2536, 7
        %v2538 = vsub.s32 5, %v2537
        %v2539 = vrot.slane %v993, %v2538
        %v2540 = vlaneseq
        %v2541 = vshrl.u32 %v2540, 7
        %v2542 = vsub.s32 6, %v2541
        %v2543 = vrot.slane %v993, %v2542
        %v2544 = vlaneseq
        %v2545 = vshrl.u32 %v2544, 7
        %v2546 = vsub.s32 7, %v2545
        %v2547 = vrot.slane %v993, %v2546
        %v2548 = vlaneseq
        %v2549 = vshrl.u32 %v2548, 7
        %v2550 = vsub.s32 0, %v2549
        %v2551 = vrot.slane %v995, %v2550
        %v2552 = vlaneseq
        %v2553 = vshrl.u32 %v2552, 7
        %v2554 = vsub.s32 1, %v2553
        %v2555 = vrot.slane %v995, %v2554
        %v2556 = vlaneseq
        %v2557 = vshrl.u32 %v2556, 7
        %v2558 = vsub.s32 2, %v2557
        %v2559 = vrot.slane %v995, %v2558
        %v2560 = vlaneseq
        %v2561 = vshrl.u32 %v2560, 7
        %v2562 = vsub.s32 3, %v2561
        %v2563 = vrot.slane %v995, %v2562
        %v2564 = vlaneseq
        %v2565 = vshrl.u32 %v2564, 7
        %v2566 = vsub.s32 4, %v2565
        %v2567 = vrot.slane %v995, %v2566
        %v2568 = vlaneseq
        %v2569 = vshrl.u32 %v2568, 7
        %v2570 = vsub.s32 5, %v2569
        %v2571 = vrot.slane %v995, %v2570
        %v2572 = vlaneseq
        %v2573 = vshrl.u32 %v2572, 7
        %v2574 = vsub.s32 6, %v2573
        %v2575 = vrot.slane %v995, %v2574
        %v2576 = vlaneseq
        %v2577 = vshrl.u32 %v2576, 7
        %v2578 = vsub.s32 7, %v2577
        %v2579 = vrot.slane %v995, %v2578
        %v2580 = vcombine.low %v1047, %v1051
        %v2581 = vcombine.low %v1055, %v1059
        %v2582 = vcombine.low %v1063, %v1067
        %v2583 = vcombine.low %v1071, %v1075
        %v2585 = vunpack.c.l.s4 1966171168
        %v2586 = vunpack.c.0.s8 %v2585
        %v2587 = vlaneseq
        %v2588 = vshrl.u32 %v2587, 7
        %v2589 = vsub.s32 %v2586, %v2588
        %v2590 = vrot.slane %v2580, %v2589
        %v2592 = vunpack.c.l.s4 1966171168
        %v2593 = vunpack.c.0.s8 %v2592
        %v2594 = vlaneseq
        %v2595 = vshrl.u32 %v2594, 7
        %v2596 = vsub.s32 %v2593, %v2595
        %v2597 = vrot.slane %v2581, %v2596
        %v2599 = vunpack.c.l.s4 1966171168
        %v2600 = vunpack.c.0.s8 %v2599
        %v2601 = vlaneseq
        %v2602 = vshrl.u32 %v2601, 7
        %v2603 = vsub.s32 %v2600, %v2602
        %v2604 = vrot.slane %v2582, %v2603
        %v2606 = vunpack.c.l.s4 1966171168
        %v2607 = vunpack.c.0.s8 %v2606
        %v2608 = vlaneseq
        %v2609 = vshrl.u32 %v2608, 7
        %v2610 = vsub.s32 %v2607, %v2609
        %v2611 = vrot.slane %v2583, %v2610
        %v2612 = vcombine.low %v2590, %v2597
        %v2613 = vcombine.low %v2604, %v2611
        %v2615 = vunpack.c.l.s4 1966171168
        %v2616 = vunpack.c.0.s8 %v2615
        %v2617 = vlaneseq
        %v2618 = vshrl.u32 %v2617, 7
        %v2619 = vsub.s32 %v2616, %v2618
        %v2620 = vrot.slane %v2612, %v2619
        %v2622 = vunpack.c.l.s4 1966171168
        %v2623 = vunpack.c.0.s8 %v2622
        %v2624 = vlaneseq
        %v2625 = vshrl.u32 %v2624, 7
        %v2626 = vsub.s32 %v2623, %v2625
        %v2627 = vrot.slane %v2613, %v2626
        %v2628 = vcombine.low %v2620, %v2627
        %v2629 = vcombine.low %v1079, %v1083
        %v2630 = vcombine.low %v1087, %v1091
        %v2631 = vcombine.low %v1095, %v1099
        %v2632 = vcombine.low %v1103, %v1107
        %v2634 = vunpack.c.l.s4 1966171168
        %v2635 = vunpack.c.0.s8 %v2634
        %v2636 = vlaneseq
        %v2637 = vshrl.u32 %v2636, 7
        %v2638 = vsub.s32 %v2635, %v2637
        %v2639 = vrot.slane %v2629, %v2638
        %v2641 = vunpack.c.l.s4 1966171168
        %v2642 = vunpack.c.0.s8 %v2641
        %v2643 = vlaneseq
        %v2644 = vshrl.u32 %v2643, 7
        %v2645 = vsub.s32 %v2642, %v2644
        %v2646 = vrot.slane %v2630, %v2645
        %v2648 = vunpack.c.l.s4 1966171168
        %v2649 = vunpack.c.0.s8 %v2648
        %v2650 = vlaneseq
        %v2651 = vshrl.u32 %v2650, 7
        %v2652 = vsub.s32 %v2649, %v2651
        %v2653 = vrot.slane %v2631, %v2652
        %v2655 = vunpack.c.l.s4 1966171168
        %v2656 = vunpack.c.0.s8 %v2655
        %v2657 = vlaneseq
        %v2658 = vshrl.u32 %v2657, 7
        %v2659 = vsub.s32 %v2656, %v2658
        %v2660 = vrot.slane %v2632, %v2659
        %v2661 = vcombine.low %v2639, %v2646
        %v2662 = vcombine.low %v2653, %v2660
        %v2664 = vunpack.c.l.s4 1966171168
        %v2665 = vunpack.c.0.s8 %v2664
        %v2666 = vlaneseq
        %v2667 = vshrl.u32 %v2666, 7
        %v2668 = vsub.s32 %v2665, %v2667
        %v2669 = vrot.slane %v2661, %v2668
        %v2671 = vunpack.c.l.s4 1966171168
        %v2672 = vunpack.c.0.s8 %v2671
        %v2673 = vlaneseq
        %v2674 = vshrl.u32 %v2673, 7
        %v2675 = vsub.s32 %v2672, %v2674
        %v2676 = vrot.slane %v2662, %v2675
        %v2677 = vcombine.low %v2669, %v2676
        %v2678 = vcombine.low %v1111, %v1115
        %v2679 = vcombine.low %v1119, %v1123
        %v2680 = vcombine.low %v1127, %v1131
        %v2681 = vcombine.low %v1135, %v1139
        %v2683 = vunpack.c.l.s4 1966171168
        %v2684 = vunpack.c.0.s8 %v2683
        %v2685 = vlaneseq
        %v2686 = vshrl.u32 %v2685, 7
        %v2687 = vsub.s32 %v2684, %v2686
        %v2688 = vrot.slane %v2678, %v2687
        %v2690 = vunpack.c.l.s4 1966171168
        %v2691 = vunpack.c.0.s8 %v2690
        %v2692 = vlaneseq
        %v2693 = vshrl.u32 %v2692, 7
        %v2694 = vsub.s32 %v2691, %v2693
        %v2695 = vrot.slane %v2679, %v2694
        %v2697 = vunpack.c.l.s4 1966171168
        %v2698 = vunpack.c.0.s8 %v2697
        %v2699 = vlaneseq
        %v2700 = vshrl.u32 %v2699, 7
        %v2701 = vsub.s32 %v2698, %v2700
        %v2702 = vrot.slane %v2680, %v2701
        %v2704 = vunpack.c.l.s4 1966171168
        %v2705 = vunpack.c.0.s8 %v2704
        %v2706 = vlaneseq
        %v2707 = vshrl.u32 %v2706, 7
        %v2708 = vsub.s32 %v2705, %v2707
        %v2709 = vrot.slane %v2681, %v2708
        %v2710 = vcombine.low %v2688, %v2695
        %v2711 = vcombine.low %v2702, %v2709
        %v2713 = vunpack.c.l.s4 1966171168
        %v2714 = vunpack.c.0.s8 %v2713
        %v2715 = vlaneseq
        %v2716 = vshrl.u32 %v2715, 7
        %v2717 = vsub.s32 %v2714, %v2716
        %v2718 = vrot.slane %v2710, %v2717
        %v2720 = vunpack.c.l.s4 1966171168
        %v2721 = vunpack.c.0.s8 %v2720
        %v2722 = vlaneseq
        %v2723 = vshrl.u32 %v2722, 7
        %v2724 = vsub.s32 %v2721, %v2723
        %v2725 = vrot.slane %v2711, %v2724
        %v2726 = vcombine.low %v2718, %v2725
        %v2727 = vcombine.low %v1143, %v1147
        %v2728 = vcombine.low %v1151, %v1155
        %v2729 = vcombine.low %v1159, %v1163
        %v2730 = vcombine.low %v1167, %v1171
        %v2732 = vunpack.c.l.s4 1966171168
        %v2733 = vunpack.c.0.s8 %v2732
        %v2734 = vlaneseq
        %v2735 = vshrl.u32 %v2734, 7
        %v2736 = vsub.s32 %v2733, %v2735
        %v2737 = vrot.slane %v2727, %v2736
        %v2739 = vunpack.c.l.s4 1966171168
        %v2740 = vunpack.c.0.s8 %v2739
        %v2741 = vlaneseq
        %v2742 = vshrl.u32 %v2741, 7
        %v2743 = vsub.s32 %v2740, %v2742
        %v2744 = vrot.slane %v2728, %v2743
        %v2746 = vunpack.c.l.s4 1966171168
        %v2747 = vunpack.c.0.s8 %v2746
        %v2748 = vlaneseq
        %v2749 = vshrl.u32 %v2748, 7
        %v2750 = vsub.s32 %v2747, %v2749
        %v2751 = vrot.slane %v2729, %v2750
        %v2753 = vunpack.c.l.s4 1966171168
        %v2754 = vunpack.c.0.s8 %v2753
        %v2755 = vlaneseq
        %v2756 = vshrl.u32 %v2755, 7
        %v2757 = vsub.s32 %v2754, %v2756
        %v2758 = vrot.slane %v2730, %v2757
        %v2759 = vcombine.low %v2737, %v2744
        %v2760 = vcombine.low %v2751, %v2758
        %v2762 = vunpack.c.l.s4 1966171168
        %v2763 = vunpack.c.0.s8 %v2762
        %v2764 = vlaneseq
        %v2765 = vshrl.u32 %v2764, 7
        %v2766 = vsub.s32 %v2763, %v2765
        %v2767 = vrot.slane %v2759, %v2766
        %v2769 = vunpack.c.l.s4 1966171168
        %v2770 = vunpack.c.0.s8 %v2769
        %v2771 = vlaneseq
        %v2772 = vshrl.u32 %v2771, 7
        %v2773 = vsub.s32 %v2770, %v2772
        %v2774 = vrot.slane %v2760, %v2773
        %v2775 = vcombine.low %v2767, %v2774
        %v2776 = vcombine.low %v1175, %v1179
        %v2777 = vcombine.low %v1183, %v1187
        %v2778 = vcombine.low %v1191, %v1195
        %v2779 = vcombine.low %v1199, %v1203
        %v2781 = vunpack.c.l.s4 1966171168
        %v2782 = vunpack.c.0.s8 %v2781
        %v2783 = vlaneseq
        %v2784 = vshrl.u32 %v2783, 7
        %v2785 = vsub.s32 %v2782, %v2784
        %v2786 = vrot.slane %v2776, %v2785
        %v2788 = vunpack.c.l.s4 1966171168
        %v2789 = vunpack.c.0.s8 %v2788
        %v2790 = vlaneseq
        %v2791 = vshrl.u32 %v2790, 7
        %v2792 = vsub.s32 %v2789, %v2791
        %v2793 = vrot.slane %v2777, %v2792
        %v2795 = vunpack.c.l.s4 1966171168
        %v2796 = vunpack.c.0.s8 %v2795
        %v2797 = vlaneseq
        %v2798 = vshrl.u32 %v2797, 7
        %v2799 = vsub.s32 %v2796, %v2798
        %v2800 = vrot.slane %v2778, %v2799
        %v2802 = vunpack.c.l.s4 1966171168
        %v2803 = vunpack.c.0.s8 %v2802
        %v2804 = vlaneseq
        %v2805 = vshrl.u32 %v2804, 7
        %v2806 = vsub.s32 %v2803, %v2805
        %v2807 = vrot.slane %v2779, %v2806
        %v2808 = vcombine.low %v2786, %v2793
        %v2809 = vcombine.low %v2800, %v2807
        %v2811 = vunpack.c.l.s4 1966171168
        %v2812 = vunpack.c.0.s8 %v2811
        %v2813 = vlaneseq
        %v2814 = vshrl.u32 %v2813, 7
        %v2815 = vsub.s32 %v2812, %v2814
        %v2816 = vrot.slane %v2808, %v2815
        %v2818 = vunpack.c.l.s4 1966171168
        %v2819 = vunpack.c.0.s8 %v2818
        %v2820 = vlaneseq
        %v2821 = vshrl.u32 %v2820, 7
        %v2822 = vsub.s32 %v2819, %v2821
        %v2823 = vrot.slane %v2809, %v2822
        %v2824 = vcombine.low %v2816, %v2823
        %v2825 = vcombine.low %v1207, %v1211
        %v2826 = vcombine.low %v1215, %v1219
        %v2827 = vcombine.low %v1223, %v1227
        %v2828 = vcombine.low %v1231, %v1235
        %v2830 = vunpack.c.l.s4 1966171168
        %v2831 = vunpack.c.0.s8 %v2830
        %v2832 = vlaneseq
        %v2833 = vshrl.u32 %v2832, 7
        %v2834 = vsub.s32 %v2831, %v2833
        %v2835 = vrot.slane %v2825, %v2834
        %v2837 = vunpack.c.l.s4 1966171168
        %v2838 = vunpack.c.0.s8 %v2837
        %v2839 = vlaneseq
        %v2840 = vshrl.u32 %v2839, 7
        %v2841 = vsub.s32 %v2838, %v2840
        %v2842 = vrot.slane %v2826, %v2841
        %v2844 = vunpack.c.l.s4 1966171168
        %v2845 = vunpack.c.0.s8 %v2844
        %v2846 = vlaneseq
        %v2847 = vshrl.u32 %v2846, 7
        %v2848 = vsub.s32 %v2845, %v2847
        %v2849 = vrot.slane %v2827, %v2848
        %v2851 = vunpack.c.l.s4 1966171168
        %v2852 = vunpack.c.0.s8 %v2851
        %v2853 = vlaneseq
        %v2854 = vshrl.u32 %v2853, 7
        %v2855 = vsub.s32 %v2852, %v2854
        %v2856 = vrot.slane %v2828, %v2855
        %v2857 = vcombine.low %v2835, %v2842
        %v2858 = vcombine.low %v2849, %v2856
        %v2860 = vunpack.c.l.s4 1966171168
        %v2861 = vunpack.c.0.s8 %v2860
        %v2862 = vlaneseq
        %v2863 = vshrl.u32 %v2862, 7
        %v2864 = vsub.s32 %v2861, %v2863
        %v2865 = vrot.slane %v2857, %v2864
        %v2867 = vunpack.c.l.s4 1966171168
        %v2868 = vunpack.c.0.s8 %v2867
        %v2869 = vlaneseq
        %v2870 = vshrl.u32 %v2869, 7
        %v2871 = vsub.s32 %v2868, %v2870
        %v2872 = vrot.slane %v2858, %v2871
        %v2873 = vcombine.low %v2865, %v2872
        %v2874 = vcombine.low %v1239, %v1243
        %v2875 = vcombine.low %v1247, %v1251
        %v2876 = vcombine.low %v1255, %v1259
        %v2877 = vcombine.low %v1263, %v1267
        %v2879 = vunpack.c.l.s4 1966171168
        %v2880 = vunpack.c.0.s8 %v2879
        %v2881 = vlaneseq
        %v2882 = vshrl.u32 %v2881, 7
        %v2883 = vsub.s32 %v2880, %v2882
        %v2884 = vrot.slane %v2874, %v2883
        %v2886 = vunpack.c.l.s4 1966171168
        %v2887 = vunpack.c.0.s8 %v2886
        %v2888 = vlaneseq
        %v2889 = vshrl.u32 %v2888, 7
        %v2890 = vsub.s32 %v2887, %v2889
        %v2891 = vrot.slane %v2875, %v2890
        %v2893 = vunpack.c.l.s4 1966171168
        %v2894 = vunpack.c.0.s8 %v2893
        %v2895 = vlaneseq
        %v2896 = vshrl.u32 %v2895, 7
        %v2897 = vsub.s32 %v2894, %v2896
        %v2898 = vrot.slane %v2876, %v2897
        %v2900 = vunpack.c.l.s4 1966171168
        %v2901 = vunpack.c.0.s8 %v2900
        %v2902 = vlaneseq
        %v2903 = vshrl.u32 %v2902, 7
        %v2904 = vsub.s32 %v2901, %v2903
        %v2905 = vrot.slane %v2877, %v2904
        %v2906 = vcombine.low %v2884, %v2891
        %v2907 = vcombine.low %v2898, %v2905
        %v2909 = vunpack.c.l.s4 1966171168
        %v2910 = vunpack.c.0.s8 %v2909
        %v2911 = vlaneseq
        %v2912 = vshrl.u32 %v2911, 7
        %v2913 = vsub.s32 %v2910, %v2912
        %v2914 = vrot.slane %v2906, %v2913
        %v2916 = vunpack.c.l.s4 1966171168
        %v2917 = vunpack.c.0.s8 %v2916
        %v2918 = vlaneseq
        %v2919 = vshrl.u32 %v2918, 7
        %v2920 = vsub.s32 %v2917, %v2919
        %v2921 = vrot.slane %v2907, %v2920
        %v2922 = vcombine.low %v2914, %v2921
        %v2923 = vcombine.low %v1271, %v1275
        %v2924 = vcombine.low %v1279, %v1283
        %v2925 = vcombine.low %v1287, %v1291
        %v2926 = vcombine.low %v1295, %v1299
        %v2928 = vunpack.c.l.s4 1966171168
        %v2929 = vunpack.c.0.s8 %v2928
        %v2930 = vlaneseq
        %v2931 = vshrl.u32 %v2930, 7
        %v2932 = vsub.s32 %v2929, %v2931
        %v2933 = vrot.slane %v2923, %v2932
        %v2935 = vunpack.c.l.s4 1966171168
        %v2936 = vunpack.c.0.s8 %v2935
        %v2937 = vlaneseq
        %v2938 = vshrl.u32 %v2937, 7
        %v2939 = vsub.s32 %v2936, %v2938
        %v2940 = vrot.slane %v2924, %v2939
        %v2942 = vunpack.c.l.s4 1966171168
        %v2943 = vunpack.c.0.s8 %v2942
        %v2944 = vlaneseq
        %v2945 = vshrl.u32 %v2944, 7
        %v2946 = vsub.s32 %v2943, %v2945
        %v2947 = vrot.slane %v2925, %v2946
        %v2949 = vunpack.c.l.s4 1966171168
        %v2950 = vunpack.c.0.s8 %v2949
        %v2951 = vlaneseq
        %v2952 = vshrl.u32 %v2951, 7
        %v2953 = vsub.s32 %v2950, %v2952
        %v2954 = vrot.slane %v2926, %v2953
        %v2955 = vcombine.low %v2933, %v2940
        %v2956 = vcombine.low %v2947, %v2954
        %v2958 = vunpack.c.l.s4 1966171168
        %v2959 = vunpack.c.0.s8 %v2958
        %v2960 = vlaneseq
        %v2961 = vshrl.u32 %v2960, 7
        %v2962 = vsub.s32 %v2959, %v2961
        %v2963 = vrot.slane %v2955, %v2962
        %v2965 = vunpack.c.l.s4 1966171168
        %v2966 = vunpack.c.0.s8 %v2965
        %v2967 = vlaneseq
        %v2968 = vshrl.u32 %v2967, 7
        %v2969 = vsub.s32 %v2966, %v2968
        %v2970 = vrot.slane %v2956, %v2969
        %v2971 = vcombine.low %v2963, %v2970
        %v2972 = vcombine.low %v1303, %v1307
        %v2973 = vcombine.low %v1311, %v1315
        %v2974 = vcombine.low %v1319, %v1323
        %v2975 = vcombine.low %v1327, %v1331
        %v2977 = vunpack.c.l.s4 1966171168
        %v2978 = vunpack.c.0.s8 %v2977
        %v2979 = vlaneseq
        %v2980 = vshrl.u32 %v2979, 7
        %v2981 = vsub.s32 %v2978, %v2980
        %v2982 = vrot.slane %v2972, %v2981
        %v2984 = vunpack.c.l.s4 1966171168
        %v2985 = vunpack.c.0.s8 %v2984
        %v2986 = vlaneseq
        %v2987 = vshrl.u32 %v2986, 7
        %v2988 = vsub.s32 %v2985, %v2987
        %v2989 = vrot.slane %v2973, %v2988
        %v2991 = vunpack.c.l.s4 1966171168
        %v2992 = vunpack.c.0.s8 %v2991
        %v2993 = vlaneseq
        %v2994 = vshrl.u32 %v2993, 7
        %v2995 = vsub.s32 %v2992, %v2994
        %v2996 = vrot.slane %v2974, %v2995
        %v2998 = vunpack.c.l.s4 1966171168
        %v2999 = vunpack.c.0.s8 %v2998
        %v3000 = vlaneseq
        %v3001 = vshrl.u32 %v3000, 7
        %v3002 = vsub.s32 %v2999, %v3001
        %v3003 = vrot.slane %v2975, %v3002
        %v3004 = vcombine.low %v2982, %v2989
        %v3005 = vcombine.low %v2996, %v3003
        %v3007 = vunpack.c.l.s4 1966171168
        %v3008 = vunpack.c.0.s8 %v3007
        %v3009 = vlaneseq
        %v3010 = vshrl.u32 %v3009, 7
        %v3011 = vsub.s32 %v3008, %v3010
        %v3012 = vrot.slane %v3004, %v3011
        %v3014 = vunpack.c.l.s4 1966171168
        %v3015 = vunpack.c.0.s8 %v3014
        %v3016 = vlaneseq
        %v3017 = vshrl.u32 %v3016, 7
        %v3018 = vsub.s32 %v3015, %v3017
        %v3019 = vrot.slane %v3005, %v3018
        %v3020 = vcombine.low %v3012, %v3019
        %v3021 = vcombine.low %v1335, %v1339
        %v3022 = vcombine.low %v1343, %v1347
        %v3023 = vcombine.low %v1351, %v1355
        %v3024 = vcombine.low %v1359, %v1363
        %v3026 = vunpack.c.l.s4 1966171168
        %v3027 = vunpack.c.0.s8 %v3026
        %v3028 = vlaneseq
        %v3029 = vshrl.u32 %v3028, 7
        %v3030 = vsub.s32 %v3027, %v3029
        %v3031 = vrot.slane %v3021, %v3030
        %v3033 = vunpack.c.l.s4 1966171168
        %v3034 = vunpack.c.0.s8 %v3033
        %v3035 = vlaneseq
        %v3036 = vshrl.u32 %v3035, 7
        %v3037 = vsub.s32 %v3034, %v3036
        %v3038 = vrot.slane %v3022, %v3037
        %v3040 = vunpack.c.l.s4 1966171168
        %v3041 = vunpack.c.0.s8 %v3040
        %v3042 = vlaneseq
        %v3043 = vshrl.u32 %v3042, 7
        %v3044 = vsub.s32 %v3041, %v3043
        %v3045 = vrot.slane %v3023, %v3044
        %v3047 = vunpack.c.l.s4 1966171168
        %v3048 = vunpack.c.0.s8 %v3047
        %v3049 = vlaneseq
        %v3050 = vshrl.u32 %v3049, 7
        %v3051 = vsub.s32 %v3048, %v3050
        %v3052 = vrot.slane %v3024, %v3051
        %v3053 = vcombine.low %v3031, %v3038
        %v3054 = vcombine.low %v3045, %v3052
        %v3056 = vunpack.c.l.s4 1966171168
        %v3057 = vunpack.c.0.s8 %v3056
        %v3058 = vlaneseq
        %v3059 = vshrl.u32 %v3058, 7
        %v3060 = vsub.s32 %v3057, %v3059
        %v3061 = vrot.slane %v3053, %v3060
        %v3063 = vunpack.c.l.s4 1966171168
        %v3064 = vunpack.c.0.s8 %v3063
        %v3065 = vlaneseq
        %v3066 = vshrl.u32 %v3065, 7
        %v3067 = vsub.s32 %v3064, %v3066
        %v3068 = vrot.slane %v3054, %v3067
        %v3069 = vcombine.low %v3061, %v3068
        %v3070 = vcombine.low %v1367, %v1371
        %v3071 = vcombine.low %v1375, %v1379
        %v3072 = vcombine.low %v1383, %v1387
        %v3073 = vcombine.low %v1391, %v1395
        %v3075 = vunpack.c.l.s4 1966171168
        %v3076 = vunpack.c.0.s8 %v3075
        %v3077 = vlaneseq
        %v3078 = vshrl.u32 %v3077, 7
        %v3079 = vsub.s32 %v3076, %v3078
        %v3080 = vrot.slane %v3070, %v3079
        %v3082 = vunpack.c.l.s4 1966171168
        %v3083 = vunpack.c.0.s8 %v3082
        %v3084 = vlaneseq
        %v3085 = vshrl.u32 %v3084, 7
        %v3086 = vsub.s32 %v3083, %v3085
        %v3087 = vrot.slane %v3071, %v3086
        %v3089 = vunpack.c.l.s4 1966171168
        %v3090 = vunpack.c.0.s8 %v3089
        %v3091 = vlaneseq
        %v3092 = vshrl.u32 %v3091, 7
        %v3093 = vsub.s32 %v3090, %v3092
        %v3094 = vrot.slane %v3072, %v3093
        %v3096 = vunpack.c.l.s4 1966171168
        %v3097 = vunpack.c.0.s8 %v3096
        %v3098 = vlaneseq
        %v3099 = vshrl.u32 %v3098, 7
        %v3100 = vsub.s32 %v3097, %v3099
        %v3101 = vrot.slane %v3073, %v3100
        %v3102 = vcombine.low %v3080, %v3087
        %v3103 = vcombine.low %v3094, %v3101
        %v3105 = vunpack.c.l.s4 1966171168
        %v3106 = vunpack.c.0.s8 %v3105
        %v3107 = vlaneseq
        %v3108 = vshrl.u32 %v3107, 7
        %v3109 = vsub.s32 %v3106, %v3108
        %v3110 = vrot.slane %v3102, %v3109
        %v3112 = vunpack.c.l.s4 1966171168
        %v3113 = vunpack.c.0.s8 %v3112
        %v3114 = vlaneseq
        %v3115 = vshrl.u32 %v3114, 7
        %v3116 = vsub.s32 %v3113, %v3115
        %v3117 = vrot.slane %v3103, %v3116
        %v3118 = vcombine.low %v3110, %v3117
        %v3119 = vcombine.low %v1399, %v1403
        %v3120 = vcombine.low %v1407, %v1411
        %v3121 = vcombine.low %v1415, %v1419
        %v3122 = vcombine.low %v1423, %v1427
        %v3124 = vunpack.c.l.s4 1966171168
        %v3125 = vunpack.c.0.s8 %v3124
        %v3126 = vlaneseq
        %v3127 = vshrl.u32 %v3126, 7
        %v3128 = vsub.s32 %v3125, %v3127
        %v3129 = vrot.slane %v3119, %v3128
        %v3131 = vunpack.c.l.s4 1966171168
        %v3132 = vunpack.c.0.s8 %v3131
        %v3133 = vlaneseq
        %v3134 = vshrl.u32 %v3133, 7
        %v3135 = vsub.s32 %v3132, %v3134
        %v3136 = vrot.slane %v3120, %v3135
        %v3138 = vunpack.c.l.s4 1966171168
        %v3139 = vunpack.c.0.s8 %v3138
        %v3140 = vlaneseq
        %v3141 = vshrl.u32 %v3140, 7
        %v3142 = vsub.s32 %v3139, %v3141
        %v3143 = vrot.slane %v3121, %v3142
        %v3145 = vunpack.c.l.s4 1966171168
        %v3146 = vunpack.c.0.s8 %v3145
        %v3147 = vlaneseq
        %v3148 = vshrl.u32 %v3147, 7
        %v3149 = vsub.s32 %v3146, %v3148
        %v3150 = vrot.slane %v3122, %v3149
        %v3151 = vcombine.low %v3129, %v3136
        %v3152 = vcombine.low %v3143, %v3150
        %v3154 = vunpack.c.l.s4 1966171168
        %v3155 = vunpack.c.0.s8 %v3154
        %v3156 = vlaneseq
        %v3157 = vshrl.u32 %v3156, 7
        %v3158 = vsub.s32 %v3155, %v3157
        %v3159 = vrot.slane %v3151, %v3158
        %v3161 = vunpack.c.l.s4 1966171168
        %v3162 = vunpack.c.0.s8 %v3161
        %v3163 = vlaneseq
        %v3164 = vshrl.u32 %v3163, 7
        %v3165 = vsub.s32 %v3162, %v3164
        %v3166 = vrot.slane %v3152, %v3165
        %v3167 = vcombine.low %v3159, %v3166
        %v3168 = vcombine.low %v1431, %v1435
        %v3169 = vcombine.low %v1439, %v1443
        %v3170 = vcombine.low %v1447, %v1451
        %v3171 = vcombine.low %v1455, %v1459
        %v3173 = vunpack.c.l.s4 1966171168
        %v3174 = vunpack.c.0.s8 %v3173
        %v3175 = vlaneseq
        %v3176 = vshrl.u32 %v3175, 7
        %v3177 = vsub.s32 %v3174, %v3176
        %v3178 = vrot.slane %v3168, %v3177
        %v3180 = vunpack.c.l.s4 1966171168
        %v3181 = vunpack.c.0.s8 %v3180
        %v3182 = vlaneseq
        %v3183 = vshrl.u32 %v3182, 7
        %v3184 = vsub.s32 %v3181, %v3183
        %v3185 = vrot.slane %v3169, %v3184
        %v3187 = vunpack.c.l.s4 1966171168
        %v3188 = vunpack.c.0.s8 %v3187
        %v3189 = vlaneseq
        %v3190 = vshrl.u32 %v3189, 7
        %v3191 = vsub.s32 %v3188, %v3190
        %v3192 = vrot.slane %v3170, %v3191
        %v3194 = vunpack.c.l.s4 1966171168
        %v3195 = vunpack.c.0.s8 %v3194
        %v3196 = vlaneseq
        %v3197 = vshrl.u32 %v3196, 7
        %v3198 = vsub.s32 %v3195, %v3197
        %v3199 = vrot.slane %v3171, %v3198
        %v3200 = vcombine.low %v3178, %v3185
        %v3201 = vcombine.low %v3192, %v3199
        %v3203 = vunpack.c.l.s4 1966171168
        %v3204 = vunpack.c.0.s8 %v3203
        %v3205 = vlaneseq
        %v3206 = vshrl.u32 %v3205, 7
        %v3207 = vsub.s32 %v3204, %v3206
        %v3208 = vrot.slane %v3200, %v3207
        %v3210 = vunpack.c.l.s4 1966171168
        %v3211 = vunpack.c.0.s8 %v3210
        %v3212 = vlaneseq
        %v3213 = vshrl.u32 %v3212, 7
        %v3214 = vsub.s32 %v3211, %v3213
        %v3215 = vrot.slane %v3201, %v3214
        %v3216 = vcombine.low %v3208, %v3215
        %v3217 = vcombine.low %v1463, %v1467
        %v3218 = vcombine.low %v1471, %v1475
        %v3219 = vcombine.low %v1479, %v1483
        %v3220 = vcombine.low %v1487, %v1491
        %v3222 = vunpack.c.l.s4 1966171168
        %v3223 = vunpack.c.0.s8 %v3222
        %v3224 = vlaneseq
        %v3225 = vshrl.u32 %v3224, 7
        %v3226 = vsub.s32 %v3223, %v3225
        %v3227 = vrot.slane %v3217, %v3226
        %v3229 = vunpack.c.l.s4 1966171168
        %v3230 = vunpack.c.0.s8 %v3229
        %v3231 = vlaneseq
        %v3232 = vshrl.u32 %v3231, 7
        %v3233 = vsub.s32 %v3230, %v3232
        %v3234 = vrot.slane %v3218, %v3233
        %v3236 = vunpack.c.l.s4 1966171168
        %v3237 = vunpack.c.0.s8 %v3236
        %v3238 = vlaneseq
        %v3239 = vshrl.u32 %v3238, 7
        %v3240 = vsub.s32 %v3237, %v3239
        %v3241 = vrot.slane %v3219, %v3240
        %v3243 = vunpack.c.l.s4 1966171168
        %v3244 = vunpack.c.0.s8 %v3243
        %v3245 = vlaneseq
        %v3246 = vshrl.u32 %v3245, 7
        %v3247 = vsub.s32 %v3244, %v3246
        %v3248 = vrot.slane %v3220, %v3247
        %v3249 = vcombine.low %v3227, %v3234
        %v3250 = vcombine.low %v3241, %v3248
        %v3252 = vunpack.c.l.s4 1966171168
        %v3253 = vunpack.c.0.s8 %v3252
        %v3254 = vlaneseq
        %v3255 = vshrl.u32 %v3254, 7
        %v3256 = vsub.s32 %v3253, %v3255
        %v3257 = vrot.slane %v3249, %v3256
        %v3259 = vunpack.c.l.s4 1966171168
        %v3260 = vunpack.c.0.s8 %v3259
        %v3261 = vlaneseq
        %v3262 = vshrl.u32 %v3261, 7
        %v3263 = vsub.s32 %v3260, %v3262
        %v3264 = vrot.slane %v3250, %v3263
        %v3265 = vcombine.low %v3257, %v3264
        %v3266 = vcombine.low %v1495, %v1499
        %v3267 = vcombine.low %v1503, %v1507
        %v3268 = vcombine.low %v1511, %v1515
        %v3269 = vcombine.low %v1519, %v1523
        %v3271 = vunpack.c.l.s4 1966171168
        %v3272 = vunpack.c.0.s8 %v3271
        %v3273 = vlaneseq
        %v3274 = vshrl.u32 %v3273, 7
        %v3275 = vsub.s32 %v3272, %v3274
        %v3276 = vrot.slane %v3266, %v3275
        %v3278 = vunpack.c.l.s4 1966171168
        %v3279 = vunpack.c.0.s8 %v3278
        %v3280 = vlaneseq
        %v3281 = vshrl.u32 %v3280, 7
        %v3282 = vsub.s32 %v3279, %v3281
        %v3283 = vrot.slane %v3267, %v3282
        %v3285 = vunpack.c.l.s4 1966171168
        %v3286 = vunpack.c.0.s8 %v3285
        %v3287 = vlaneseq
        %v3288 = vshrl.u32 %v3287, 7
        %v3289 = vsub.s32 %v3286, %v3288
        %v3290 = vrot.slane %v3268, %v3289
        %v3292 = vunpack.c.l.s4 1966171168
        %v3293 = vunpack.c.0.s8 %v3292
        %v3294 = vlaneseq
        %v3295 = vshrl.u32 %v3294, 7
        %v3296 = vsub.s32 %v3293, %v3295
        %v3297 = vrot.slane %v3269, %v3296
        %v3298 = vcombine.low %v3276, %v3283
        %v3299 = vcombine.low %v3290, %v3297
        %v3301 = vunpack.c.l.s4 1966171168
        %v3302 = vunpack.c.0.s8 %v3301
        %v3303 = vlaneseq
        %v3304 = vshrl.u32 %v3303, 7
        %v3305 = vsub.s32 %v3302, %v3304
        %v3306 = vrot.slane %v3298, %v3305
        %v3308 = vunpack.c.l.s4 1966171168
        %v3309 = vunpack.c.0.s8 %v3308
        %v3310 = vlaneseq
        %v3311 = vshrl.u32 %v3310, 7
        %v3312 = vsub.s32 %v3309, %v3311
        %v3313 = vrot.slane %v3299, %v3312
        %v3314 = vcombine.low %v3306, %v3313
        %v3315 = vcombine.low %v1527, %v1531
        %v3316 = vcombine.low %v1535, %v1539
        %v3317 = vcombine.low %v1543, %v1547
        %v3318 = vcombine.low %v1551, %v1555
        %v3320 = vunpack.c.l.s4 1966171168
        %v3321 = vunpack.c.0.s8 %v3320
        %v3322 = vlaneseq
        %v3323 = vshrl.u32 %v3322, 7
        %v3324 = vsub.s32 %v3321, %v3323
        %v3325 = vrot.slane %v3315, %v3324
        %v3327 = vunpack.c.l.s4 1966171168
        %v3328 = vunpack.c.0.s8 %v3327
        %v3329 = vlaneseq
        %v3330 = vshrl.u32 %v3329, 7
        %v3331 = vsub.s32 %v3328, %v3330
        %v3332 = vrot.slane %v3316, %v3331
        %v3334 = vunpack.c.l.s4 1966171168
        %v3335 = vunpack.c.0.s8 %v3334
        %v3336 = vlaneseq
        %v3337 = vshrl.u32 %v3336, 7
        %v3338 = vsub.s32 %v3335, %v3337
        %v3339 = vrot.slane %v3317, %v3338
        %v3341 = vunpack.c.l.s4 1966171168
        %v3342 = vunpack.c.0.s8 %v3341
        %v3343 = vlaneseq
        %v3344 = vshrl.u32 %v3343, 7
        %v3345 = vsub.s32 %v3342, %v3344
        %v3346 = vrot.slane %v3318, %v3345
        %v3347 = vcombine.low %v3325, %v3332
        %v3348 = vcombine.low %v3339, %v3346
        %v3350 = vunpack.c.l.s4 1966171168
        %v3351 = vunpack.c.0.s8 %v3350
        %v3352 = vlaneseq
        %v3353 = vshrl.u32 %v3352, 7
        %v3354 = vsub.s32 %v3351, %v3353
        %v3355 = vrot.slane %v3347, %v3354
        %v3357 = vunpack.c.l.s4 1966171168
        %v3358 = vunpack.c.0.s8 %v3357
        %v3359 = vlaneseq
        %v3360 = vshrl.u32 %v3359, 7
        %v3361 = vsub.s32 %v3358, %v3360
        %v3362 = vrot.slane %v3348, %v3361
        %v3363 = vcombine.low %v3355, %v3362
        %v3364 = vcombine.low %v1559, %v1563
        %v3365 = vcombine.low %v1567, %v1571
        %v3366 = vcombine.low %v1575, %v1579
        %v3367 = vcombine.low %v1583, %v1587
        %v3369 = vunpack.c.l.s4 1966171168
        %v3370 = vunpack.c.0.s8 %v3369
        %v3371 = vlaneseq
        %v3372 = vshrl.u32 %v3371, 7
        %v3373 = vsub.s32 %v3370, %v3372
        %v3374 = vrot.slane %v3364, %v3373
        %v3376 = vunpack.c.l.s4 1966171168
        %v3377 = vunpack.c.0.s8 %v3376
        %v3378 = vlaneseq
        %v3379 = vshrl.u32 %v3378, 7
        %v3380 = vsub.s32 %v3377, %v3379
        %v3381 = vrot.slane %v3365, %v3380
        %v3383 = vunpack.c.l.s4 1966171168
        %v3384 = vunpack.c.0.s8 %v3383
        %v3385 = vlaneseq
        %v3386 = vshrl.u32 %v3385, 7
        %v3387 = vsub.s32 %v3384, %v3386
        %v3388 = vrot.slane %v3366, %v3387
        %v3390 = vunpack.c.l.s4 1966171168
        %v3391 = vunpack.c.0.s8 %v3390
        %v3392 = vlaneseq
        %v3393 = vshrl.u32 %v3392, 7
        %v3394 = vsub.s32 %v3391, %v3393
        %v3395 = vrot.slane %v3367, %v3394
        %v3396 = vcombine.low %v3374, %v3381
        %v3397 = vcombine.low %v3388, %v3395
        %v3399 = vunpack.c.l.s4 1966171168
        %v3400 = vunpack.c.0.s8 %v3399
        %v3401 = vlaneseq
        %v3402 = vshrl.u32 %v3401, 7
        %v3403 = vsub.s32 %v3400, %v3402
        %v3404 = vrot.slane %v3396, %v3403
        %v3406 = vunpack.c.l.s4 1966171168
        %v3407 = vunpack.c.0.s8 %v3406
        %v3408 = vlaneseq
        %v3409 = vshrl.u32 %v3408, 7
        %v3410 = vsub.s32 %v3407, %v3409
        %v3411 = vrot.slane %v3397, %v3410
        %v3412 = vcombine.low %v3404, %v3411
        %v3413 = vcombine.low %v1591, %v1595
        %v3414 = vcombine.low %v1599, %v1603
        %v3415 = vcombine.low %v1607, %v1611
        %v3416 = vcombine.low %v1615, %v1619
        %v3418 = vunpack.c.l.s4 1966171168
        %v3419 = vunpack.c.0.s8 %v3418
        %v3420 = vlaneseq
        %v3421 = vshrl.u32 %v3420, 7
        %v3422 = vsub.s32 %v3419, %v3421
        %v3423 = vrot.slane %v3413, %v3422
        %v3425 = vunpack.c.l.s4 1966171168
        %v3426 = vunpack.c.0.s8 %v3425
        %v3427 = vlaneseq
        %v3428 = vshrl.u32 %v3427, 7
        %v3429 = vsub.s32 %v3426, %v3428
        %v3430 = vrot.slane %v3414, %v3429
        %v3432 = vunpack.c.l.s4 1966171168
        %v3433 = vunpack.c.0.s8 %v3432
        %v3434 = vlaneseq
        %v3435 = vshrl.u32 %v3434, 7
        %v3436 = vsub.s32 %v3433, %v3435
        %v3437 = vrot.slane %v3415, %v3436
        %v3439 = vunpack.c.l.s4 1966171168
        %v3440 = vunpack.c.0.s8 %v3439
        %v3441 = vlaneseq
        %v3442 = vshrl.u32 %v3441, 7
        %v3443 = vsub.s32 %v3440, %v3442
        %v3444 = vrot.slane %v3416, %v3443
        %v3445 = vcombine.low %v3423, %v3430
        %v3446 = vcombine.low %v3437, %v3444
        %v3448 = vunpack.c.l.s4 1966171168
        %v3449 = vunpack.c.0.s8 %v3448
        %v3450 = vlaneseq
        %v3451 = vshrl.u32 %v3450, 7
        %v3452 = vsub.s32 %v3449, %v3451
        %v3453 = vrot.slane %v3445, %v3452
        %v3455 = vunpack.c.l.s4 1966171168
        %v3456 = vunpack.c.0.s8 %v3455
        %v3457 = vlaneseq
        %v3458 = vshrl.u32 %v3457, 7
        %v3459 = vsub.s32 %v3456, %v3458
        %v3460 = vrot.slane %v3446, %v3459
        %v3461 = vcombine.low %v3453, %v3460
        %v3462 = vcombine.low %v1623, %v1627
        %v3463 = vcombine.low %v1631, %v1635
        %v3464 = vcombine.low %v1639, %v1643
        %v3465 = vcombine.low %v1647, %v1651
        %v3467 = vunpack.c.l.s4 1966171168
        %v3468 = vunpack.c.0.s8 %v3467
        %v3469 = vlaneseq
        %v3470 = vshrl.u32 %v3469, 7
        %v3471 = vsub.s32 %v3468, %v3470
        %v3472 = vrot.slane %v3462, %v3471
        %v3474 = vunpack.c.l.s4 1966171168
        %v3475 = vunpack.c.0.s8 %v3474
        %v3476 = vlaneseq
        %v3477 = vshrl.u32 %v3476, 7
        %v3478 = vsub.s32 %v3475, %v3477
        %v3479 = vrot.slane %v3463, %v3478
        %v3481 = vunpack.c.l.s4 1966171168
        %v3482 = vunpack.c.0.s8 %v3481
        %v3483 = vlaneseq
        %v3484 = vshrl.u32 %v3483, 7
        %v3485 = vsub.s32 %v3482, %v3484
        %v3486 = vrot.slane %v3464, %v3485
        %v3488 = vunpack.c.l.s4 1966171168
        %v3489 = vunpack.c.0.s8 %v3488
        %v3490 = vlaneseq
        %v3491 = vshrl.u32 %v3490, 7
        %v3492 = vsub.s32 %v3489, %v3491
        %v3493 = vrot.slane %v3465, %v3492
        %v3494 = vcombine.low %v3472, %v3479
        %v3495 = vcombine.low %v3486, %v3493
        %v3497 = vunpack.c.l.s4 1966171168
        %v3498 = vunpack.c.0.s8 %v3497
        %v3499 = vlaneseq
        %v3500 = vshrl.u32 %v3499, 7
        %v3501 = vsub.s32 %v3498, %v3500
        %v3502 = vrot.slane %v3494, %v3501
        %v3504 = vunpack.c.l.s4 1966171168
        %v3505 = vunpack.c.0.s8 %v3504
        %v3506 = vlaneseq
        %v3507 = vshrl.u32 %v3506, 7
        %v3508 = vsub.s32 %v3505, %v3507
        %v3509 = vrot.slane %v3495, %v3508
        %v3510 = vcombine.low %v3502, %v3509
        %v3511 = vcombine.low %v1655, %v1659
        %v3512 = vcombine.low %v1663, %v1667
        %v3513 = vcombine.low %v1671, %v1675
        %v3514 = vcombine.low %v1679, %v1683
        %v3516 = vunpack.c.l.s4 1966171168
        %v3517 = vunpack.c.0.s8 %v3516
        %v3518 = vlaneseq
        %v3519 = vshrl.u32 %v3518, 7
        %v3520 = vsub.s32 %v3517, %v3519
        %v3521 = vrot.slane %v3511, %v3520
        %v3523 = vunpack.c.l.s4 1966171168
        %v3524 = vunpack.c.0.s8 %v3523
        %v3525 = vlaneseq
        %v3526 = vshrl.u32 %v3525, 7
        %v3527 = vsub.s32 %v3524, %v3526
        %v3528 = vrot.slane %v3512, %v3527
        %v3530 = vunpack.c.l.s4 1966171168
        %v3531 = vunpack.c.0.s8 %v3530
        %v3532 = vlaneseq
        %v3533 = vshrl.u32 %v3532, 7
        %v3534 = vsub.s32 %v3531, %v3533
        %v3535 = vrot.slane %v3513, %v3534
        %v3537 = vunpack.c.l.s4 1966171168
        %v3538 = vunpack.c.0.s8 %v3537
        %v3539 = vlaneseq
        %v3540 = vshrl.u32 %v3539, 7
        %v3541 = vsub.s32 %v3538, %v3540
        %v3542 = vrot.slane %v3514, %v3541
        %v3543 = vcombine.low %v3521, %v3528
        %v3544 = vcombine.low %v3535, %v3542
        %v3546 = vunpack.c.l.s4 1966171168
        %v3547 = vunpack.c.0.s8 %v3546
        %v3548 = vlaneseq
        %v3549 = vshrl.u32 %v3548, 7
        %v3550 = vsub.s32 %v3547, %v3549
        %v3551 = vrot.slane %v3543, %v3550
        %v3553 = vunpack.c.l.s4 1966171168
        %v3554 = vunpack.c.0.s8 %v3553
        %v3555 = vlaneseq
        %v3556 = vshrl.u32 %v3555, 7
        %v3557 = vsub.s32 %v3554, %v3556
        %v3558 = vrot.slane %v3544, %v3557
        %v3559 = vcombine.low %v3551, %v3558
        %v3560 = vcombine.low %v1687, %v1691
        %v3561 = vcombine.low %v1695, %v1699
        %v3562 = vcombine.low %v1703, %v1707
        %v3563 = vcombine.low %v1711, %v1715
        %v3565 = vunpack.c.l.s4 1966171168
        %v3566 = vunpack.c.0.s8 %v3565
        %v3567 = vlaneseq
        %v3568 = vshrl.u32 %v3567, 7
        %v3569 = vsub.s32 %v3566, %v3568
        %v3570 = vrot.slane %v3560, %v3569
        %v3572 = vunpack.c.l.s4 1966171168
        %v3573 = vunpack.c.0.s8 %v3572
        %v3574 = vlaneseq
        %v3575 = vshrl.u32 %v3574, 7
        %v3576 = vsub.s32 %v3573, %v3575
        %v3577 = vrot.slane %v3561, %v3576
        %v3579 = vunpack.c.l.s4 1966171168
        %v3580 = vunpack.c.0.s8 %v3579
        %v3581 = vlaneseq
        %v3582 = vshrl.u32 %v3581, 7
        %v3583 = vsub.s32 %v3580, %v3582
        %v3584 = vrot.slane %v3562, %v3583
        %v3586 = vunpack.c.l.s4 1966171168
        %v3587 = vunpack.c.0.s8 %v3586
        %v3588 = vlaneseq
        %v3589 = vshrl.u32 %v3588, 7
        %v3590 = vsub.s32 %v3587, %v3589
        %v3591 = vrot.slane %v3563, %v3590
        %v3592 = vcombine.low %v3570, %v3577
        %v3593 = vcombine.low %v3584, %v3591
        %v3595 = vunpack.c.l.s4 1966171168
        %v3596 = vunpack.c.0.s8 %v3595
        %v3597 = vlaneseq
        %v3598 = vshrl.u32 %v3597, 7
        %v3599 = vsub.s32 %v3596, %v3598
        %v3600 = vrot.slane %v3592, %v3599
        %v3602 = vunpack.c.l.s4 1966171168
        %v3603 = vunpack.c.0.s8 %v3602
        %v3604 = vlaneseq
        %v3605 = vshrl.u32 %v3604, 7
        %v3606 = vsub.s32 %v3603, %v3605
        %v3607 = vrot.slane %v3593, %v3606
        %v3608 = vcombine.low %v3600, %v3607
        %v3609 = vcombine.low %v1719, %v1723
        %v3610 = vcombine.low %v1727, %v1731
        %v3611 = vcombine.low %v1735, %v1739
        %v3612 = vcombine.low %v1743, %v1747
        %v3614 = vunpack.c.l.s4 1966171168
        %v3615 = vunpack.c.0.s8 %v3614
        %v3616 = vlaneseq
        %v3617 = vshrl.u32 %v3616, 7
        %v3618 = vsub.s32 %v3615, %v3617
        %v3619 = vrot.slane %v3609, %v3618
        %v3621 = vunpack.c.l.s4 1966171168
        %v3622 = vunpack.c.0.s8 %v3621
        %v3623 = vlaneseq
        %v3624 = vshrl.u32 %v3623, 7
        %v3625 = vsub.s32 %v3622, %v3624
        %v3626 = vrot.slane %v3610, %v3625
        %v3628 = vunpack.c.l.s4 1966171168
        %v3629 = vunpack.c.0.s8 %v3628
        %v3630 = vlaneseq
        %v3631 = vshrl.u32 %v3630, 7
        %v3632 = vsub.s32 %v3629, %v3631
        %v3633 = vrot.slane %v3611, %v3632
        %v3635 = vunpack.c.l.s4 1966171168
        %v3636 = vunpack.c.0.s8 %v3635
        %v3637 = vlaneseq
        %v3638 = vshrl.u32 %v3637, 7
        %v3639 = vsub.s32 %v3636, %v3638
        %v3640 = vrot.slane %v3612, %v3639
        %v3641 = vcombine.low %v3619, %v3626
        %v3642 = vcombine.low %v3633, %v3640
        %v3644 = vunpack.c.l.s4 1966171168
        %v3645 = vunpack.c.0.s8 %v3644
        %v3646 = vlaneseq
        %v3647 = vshrl.u32 %v3646, 7
        %v3648 = vsub.s32 %v3645, %v3647
        %v3649 = vrot.slane %v3641, %v3648
        %v3651 = vunpack.c.l.s4 1966171168
        %v3652 = vunpack.c.0.s8 %v3651
        %v3653 = vlaneseq
        %v3654 = vshrl.u32 %v3653, 7
        %v3655 = vsub.s32 %v3652, %v3654
        %v3656 = vrot.slane %v3642, %v3655
        %v3657 = vcombine.low %v3649, %v3656
        %v3658 = vcombine.low %v1751, %v1755
        %v3659 = vcombine.low %v1759, %v1763
        %v3660 = vcombine.low %v1767, %v1771
        %v3661 = vcombine.low %v1775, %v1779
        %v3663 = vunpack.c.l.s4 1966171168
        %v3664 = vunpack.c.0.s8 %v3663
        %v3665 = vlaneseq
        %v3666 = vshrl.u32 %v3665, 7
        %v3667 = vsub.s32 %v3664, %v3666
        %v3668 = vrot.slane %v3658, %v3667
        %v3670 = vunpack.c.l.s4 1966171168
        %v3671 = vunpack.c.0.s8 %v3670
        %v3672 = vlaneseq
        %v3673 = vshrl.u32 %v3672, 7
        %v3674 = vsub.s32 %v3671, %v3673
        %v3675 = vrot.slane %v3659, %v3674
        %v3677 = vunpack.c.l.s4 1966171168
        %v3678 = vunpack.c.0.s8 %v3677
        %v3679 = vlaneseq
        %v3680 = vshrl.u32 %v3679, 7
        %v3681 = vsub.s32 %v3678, %v3680
        %v3682 = vrot.slane %v3660, %v3681
        %v3684 = vunpack.c.l.s4 1966171168
        %v3685 = vunpack.c.0.s8 %v3684
        %v3686 = vlaneseq
        %v3687 = vshrl.u32 %v3686, 7
        %v3688 = vsub.s32 %v3685, %v3687
        %v3689 = vrot.slane %v3661, %v3688
        %v3690 = vcombine.low %v3668, %v3675
        %v3691 = vcombine.low %v3682, %v3689
        %v3693 = vunpack.c.l.s4 1966171168
        %v3694 = vunpack.c.0.s8 %v3693
        %v3695 = vlaneseq
        %v3696 = vshrl.u32 %v3695, 7
        %v3697 = vsub.s32 %v3694, %v3696
        %v3698 = vrot.slane %v3690, %v3697
        %v3700 = vunpack.c.l.s4 1966171168
        %v3701 = vunpack.c.0.s8 %v3700
        %v3702 = vlaneseq
        %v3703 = vshrl.u32 %v3702, 7
        %v3704 = vsub.s32 %v3701, %v3703
        %v3705 = vrot.slane %v3691, %v3704
        %v3706 = vcombine.low %v3698, %v3705
        %v3707 = vcombine.low %v1783, %v1787
        %v3708 = vcombine.low %v1791, %v1795
        %v3709 = vcombine.low %v1799, %v1803
        %v3710 = vcombine.low %v1807, %v1811
        %v3712 = vunpack.c.l.s4 1966171168
        %v3713 = vunpack.c.0.s8 %v3712
        %v3714 = vlaneseq
        %v3715 = vshrl.u32 %v3714, 7
        %v3716 = vsub.s32 %v3713, %v3715
        %v3717 = vrot.slane %v3707, %v3716
        %v3719 = vunpack.c.l.s4 1966171168
        %v3720 = vunpack.c.0.s8 %v3719
        %v3721 = vlaneseq
        %v3722 = vshrl.u32 %v3721, 7
        %v3723 = vsub.s32 %v3720, %v3722
        %v3724 = vrot.slane %v3708, %v3723
        %v3726 = vunpack.c.l.s4 1966171168
        %v3727 = vunpack.c.0.s8 %v3726
        %v3728 = vlaneseq
        %v3729 = vshrl.u32 %v3728, 7
        %v3730 = vsub.s32 %v3727, %v3729
        %v3731 = vrot.slane %v3709, %v3730
        %v3733 = vunpack.c.l.s4 1966171168
        %v3734 = vunpack.c.0.s8 %v3733
        %v3735 = vlaneseq
        %v3736 = vshrl.u32 %v3735, 7
        %v3737 = vsub.s32 %v3734, %v3736
        %v3738 = vrot.slane %v3710, %v3737
        %v3739 = vcombine.low %v3717, %v3724
        %v3740 = vcombine.low %v3731, %v3738
        %v3742 = vunpack.c.l.s4 1966171168
        %v3743 = vunpack.c.0.s8 %v3742
        %v3744 = vlaneseq
        %v3745 = vshrl.u32 %v3744, 7
        %v3746 = vsub.s32 %v3743, %v3745
        %v3747 = vrot.slane %v3739, %v3746
        %v3749 = vunpack.c.l.s4 1966171168
        %v3750 = vunpack.c.0.s8 %v3749
        %v3751 = vlaneseq
        %v3752 = vshrl.u32 %v3751, 7
        %v3753 = vsub.s32 %v3750, %v3752
        %v3754 = vrot.slane %v3740, %v3753
        %v3755 = vcombine.low %v3747, %v3754
        %v3756 = vcombine.low %v1815, %v1819
        %v3757 = vcombine.low %v1823, %v1827
        %v3758 = vcombine.low %v1831, %v1835
        %v3759 = vcombine.low %v1839, %v1843
        %v3761 = vunpack.c.l.s4 1966171168
        %v3762 = vunpack.c.0.s8 %v3761
        %v3763 = vlaneseq
        %v3764 = vshrl.u32 %v3763, 7
        %v3765 = vsub.s32 %v3762, %v3764
        %v3766 = vrot.slane %v3756, %v3765
        %v3768 = vunpack.c.l.s4 1966171168
        %v3769 = vunpack.c.0.s8 %v3768
        %v3770 = vlaneseq
        %v3771 = vshrl.u32 %v3770, 7
        %v3772 = vsub.s32 %v3769, %v3771
        %v3773 = vrot.slane %v3757, %v3772
        %v3775 = vunpack.c.l.s4 1966171168
        %v3776 = vunpack.c.0.s8 %v3775
        %v3777 = vlaneseq
        %v3778 = vshrl.u32 %v3777, 7
        %v3779 = vsub.s32 %v3776, %v3778
        %v3780 = vrot.slane %v3758, %v3779
        %v3782 = vunpack.c.l.s4 1966171168
        %v3783 = vunpack.c.0.s8 %v3782
        %v3784 = vlaneseq
        %v3785 = vshrl.u32 %v3784, 7
        %v3786 = vsub.s32 %v3783, %v3785
        %v3787 = vrot.slane %v3759, %v3786
        %v3788 = vcombine.low %v3766, %v3773
        %v3789 = vcombine.low %v3780, %v3787
        %v3791 = vunpack.c.l.s4 1966171168
        %v3792 = vunpack.c.0.s8 %v3791
        %v3793 = vlaneseq
        %v3794 = vshrl.u32 %v3793, 7
        %v3795 = vsub.s32 %v3792, %v3794
        %v3796 = vrot.slane %v3788, %v3795
        %v3798 = vunpack.c.l.s4 1966171168
        %v3799 = vunpack.c.0.s8 %v3798
        %v3800 = vlaneseq
        %v3801 = vshrl.u32 %v3800, 7
        %v3802 = vsub.s32 %v3799, %v3801
        %v3803 = vrot.slane %v3789, %v3802
        %v3804 = vcombine.low %v3796, %v3803
        %v3805 = vcombine.low %v1847, %v1851
        %v3806 = vcombine.low %v1855, %v1859
        %v3807 = vcombine.low %v1863, %v1867
        %v3808 = vcombine.low %v1871, %v1875
        %v3810 = vunpack.c.l.s4 1966171168
        %v3811 = vunpack.c.0.s8 %v3810
        %v3812 = vlaneseq
        %v3813 = vshrl.u32 %v3812, 7
        %v3814 = vsub.s32 %v3811, %v3813
        %v3815 = vrot.slane %v3805, %v3814
        %v3817 = vunpack.c.l.s4 1966171168
        %v3818 = vunpack.c.0.s8 %v3817
        %v3819 = vlaneseq
        %v3820 = vshrl.u32 %v3819, 7
        %v3821 = vsub.s32 %v3818, %v3820
        %v3822 = vrot.slane %v3806, %v3821
        %v3824 = vunpack.c.l.s4 1966171168
        %v3825 = vunpack.c.0.s8 %v3824
        %v3826 = vlaneseq
        %v3827 = vshrl.u32 %v3826, 7
        %v3828 = vsub.s32 %v3825, %v3827
        %v3829 = vrot.slane %v3807, %v3828
        %v3831 = vunpack.c.l.s4 1966171168
        %v3832 = vunpack.c.0.s8 %v3831
        %v3833 = vlaneseq
        %v3834 = vshrl.u32 %v3833, 7
        %v3835 = vsub.s32 %v3832, %v3834
        %v3836 = vrot.slane %v3808, %v3835
        %v3837 = vcombine.low %v3815, %v3822
        %v3838 = vcombine.low %v3829, %v3836
        %v3840 = vunpack.c.l.s4 1966171168
        %v3841 = vunpack.c.0.s8 %v3840
        %v3842 = vlaneseq
        %v3843 = vshrl.u32 %v3842, 7
        %v3844 = vsub.s32 %v3841, %v3843
        %v3845 = vrot.slane %v3837, %v3844
        %v3847 = vunpack.c.l.s4 1966171168
        %v3848 = vunpack.c.0.s8 %v3847
        %v3849 = vlaneseq
        %v3850 = vshrl.u32 %v3849, 7
        %v3851 = vsub.s32 %v3848, %v3850
        %v3852 = vrot.slane %v3838, %v3851
        %v3853 = vcombine.low %v3845, %v3852
        %v3854 = vcombine.low %v1879, %v1883
        %v3855 = vcombine.low %v1887, %v1891
        %v3856 = vcombine.low %v1895, %v1899
        %v3857 = vcombine.low %v1903, %v1907
        %v3859 = vunpack.c.l.s4 1966171168
        %v3860 = vunpack.c.0.s8 %v3859
        %v3861 = vlaneseq
        %v3862 = vshrl.u32 %v3861, 7
        %v3863 = vsub.s32 %v3860, %v3862
        %v3864 = vrot.slane %v3854, %v3863
        %v3866 = vunpack.c.l.s4 1966171168
        %v3867 = vunpack.c.0.s8 %v3866
        %v3868 = vlaneseq
        %v3869 = vshrl.u32 %v3868, 7
        %v3870 = vsub.s32 %v3867, %v3869
        %v3871 = vrot.slane %v3855, %v3870
        %v3873 = vunpack.c.l.s4 1966171168
        %v3874 = vunpack.c.0.s8 %v3873
        %v3875 = vlaneseq
        %v3876 = vshrl.u32 %v3875, 7
        %v3877 = vsub.s32 %v3874, %v3876
        %v3878 = vrot.slane %v3856, %v3877
        %v3880 = vunpack.c.l.s4 1966171168
        %v3881 = vunpack.c.0.s8 %v3880
        %v3882 = vlaneseq
        %v3883 = vshrl.u32 %v3882, 7
        %v3884 = vsub.s32 %v3881, %v3883
        %v3885 = vrot.slane %v3857, %v3884
        %v3886 = vcombine.low %v3864, %v3871
        %v3887 = vcombine.low %v3878, %v3885
        %v3889 = vunpack.c.l.s4 1966171168
        %v3890 = vunpack.c.0.s8 %v3889
        %v3891 = vlaneseq
        %v3892 = vshrl.u32 %v3891, 7
        %v3893 = vsub.s32 %v3890, %v3892
        %v3894 = vrot.slane %v3886, %v3893
        %v3896 = vunpack.c.l.s4 1966171168
        %v3897 = vunpack.c.0.s8 %v3896
        %v3898 = vlaneseq
        %v3899 = vshrl.u32 %v3898, 7
        %v3900 = vsub.s32 %v3897, %v3899
        %v3901 = vrot.slane %v3887, %v3900
        %v3902 = vcombine.low %v3894, %v3901
        %v3903 = vcombine.low %v1911, %v1915
        %v3904 = vcombine.low %v1919, %v1923
        %v3905 = vcombine.low %v1927, %v1931
        %v3906 = vcombine.low %v1935, %v1939
        %v3908 = vunpack.c.l.s4 1966171168
        %v3909 = vunpack.c.0.s8 %v3908
        %v3910 = vlaneseq
        %v3911 = vshrl.u32 %v3910, 7
        %v3912 = vsub.s32 %v3909, %v3911
        %v3913 = vrot.slane %v3903, %v3912
        %v3915 = vunpack.c.l.s4 1966171168
        %v3916 = vunpack.c.0.s8 %v3915
        %v3917 = vlaneseq
        %v3918 = vshrl.u32 %v3917, 7
        %v3919 = vsub.s32 %v3916, %v3918
        %v3920 = vrot.slane %v3904, %v3919
        %v3922 = vunpack.c.l.s4 1966171168
        %v3923 = vunpack.c.0.s8 %v3922
        %v3924 = vlaneseq
        %v3925 = vshrl.u32 %v3924, 7
        %v3926 = vsub.s32 %v3923, %v3925
        %v3927 = vrot.slane %v3905, %v3926
        %v3929 = vunpack.c.l.s4 1966171168
        %v3930 = vunpack.c.0.s8 %v3929
        %v3931 = vlaneseq
        %v3932 = vshrl.u32 %v3931, 7
        %v3933 = vsub.s32 %v3930, %v3932
        %v3934 = vrot.slane %v3906, %v3933
        %v3935 = vcombine.low %v3913, %v3920
        %v3936 = vcombine.low %v3927, %v3934
        %v3938 = vunpack.c.l.s4 1966171168
        %v3939 = vunpack.c.0.s8 %v3938
        %v3940 = vlaneseq
        %v3941 = vshrl.u32 %v3940, 7
        %v3942 = vsub.s32 %v3939, %v3941
        %v3943 = vrot.slane %v3935, %v3942
        %v3945 = vunpack.c.l.s4 1966171168
        %v3946 = vunpack.c.0.s8 %v3945
        %v3947 = vlaneseq
        %v3948 = vshrl.u32 %v3947, 7
        %v3949 = vsub.s32 %v3946, %v3948
        %v3950 = vrot.slane %v3936, %v3949
        %v3951 = vcombine.low %v3943, %v3950
        %v3952 = vcombine.low %v1943, %v1947
        %v3953 = vcombine.low %v1951, %v1955
        %v3954 = vcombine.low %v1959, %v1963
        %v3955 = vcombine.low %v1967, %v1971
        %v3957 = vunpack.c.l.s4 1966171168
        %v3958 = vunpack.c.0.s8 %v3957
        %v3959 = vlaneseq
        %v3960 = vshrl.u32 %v3959, 7
        %v3961 = vsub.s32 %v3958, %v3960
        %v3962 = vrot.slane %v3952, %v3961
        %v3964 = vunpack.c.l.s4 1966171168
        %v3965 = vunpack.c.0.s8 %v3964
        %v3966 = vlaneseq
        %v3967 = vshrl.u32 %v3966, 7
        %v3968 = vsub.s32 %v3965, %v3967
        %v3969 = vrot.slane %v3953, %v3968
        %v3971 = vunpack.c.l.s4 1966171168
        %v3972 = vunpack.c.0.s8 %v3971
        %v3973 = vlaneseq
        %v3974 = vshrl.u32 %v3973, 7
        %v3975 = vsub.s32 %v3972, %v3974
        %v3976 = vrot.slane %v3954, %v3975
        %v3978 = vunpack.c.l.s4 1966171168
        %v3979 = vunpack.c.0.s8 %v3978
        %v3980 = vlaneseq
        %v3981 = vshrl.u32 %v3980, 7
        %v3982 = vsub.s32 %v3979, %v3981
        %v3983 = vrot.slane %v3955, %v3982
        %v3984 = vcombine.low %v3962, %v3969
        %v3985 = vcombine.low %v3976, %v3983
        %v3987 = vunpack.c.l.s4 1966171168
        %v3988 = vunpack.c.0.s8 %v3987
        %v3989 = vlaneseq
        %v3990 = vshrl.u32 %v3989, 7
        %v3991 = vsub.s32 %v3988, %v3990
        %v3992 = vrot.slane %v3984, %v3991
        %v3994 = vunpack.c.l.s4 1966171168
        %v3995 = vunpack.c.0.s8 %v3994
        %v3996 = vlaneseq
        %v3997 = vshrl.u32 %v3996, 7
        %v3998 = vsub.s32 %v3995, %v3997
        %v3999 = vrot.slane %v3985, %v3998
        %v4000 = vcombine.low %v3992, %v3999
        %v4001 = vcombine.low %v1975, %v1979
        %v4002 = vcombine.low %v1983, %v1987
        %v4003 = vcombine.low %v1991, %v1995
        %v4004 = vcombine.low %v1999, %v2003
        %v4006 = vunpack.c.l.s4 1966171168
        %v4007 = vunpack.c.0.s8 %v4006
        %v4008 = vlaneseq
        %v4009 = vshrl.u32 %v4008, 7
        %v4010 = vsub.s32 %v4007, %v4009
        %v4011 = vrot.slane %v4001, %v4010
        %v4013 = vunpack.c.l.s4 1966171168
        %v4014 = vunpack.c.0.s8 %v4013
        %v4015 = vlaneseq
        %v4016 = vshrl.u32 %v4015, 7
        %v4017 = vsub.s32 %v4014, %v4016
        %v4018 = vrot.slane %v4002, %v4017
        %v4020 = vunpack.c.l.s4 1966171168
        %v4021 = vunpack.c.0.s8 %v4020
        %v4022 = vlaneseq
        %v4023 = vshrl.u32 %v4022, 7
        %v4024 = vsub.s32 %v4021, %v4023
        %v4025 = vrot.slane %v4003, %v4024
        %v4027 = vunpack.c.l.s4 1966171168
        %v4028 = vunpack.c.0.s8 %v4027
        %v4029 = vlaneseq
        %v4030 = vshrl.u32 %v4029, 7
        %v4031 = vsub.s32 %v4028, %v4030
        %v4032 = vrot.slane %v4004, %v4031
        %v4033 = vcombine.low %v4011, %v4018
        %v4034 = vcombine.low %v4025, %v4032
        %v4036 = vunpack.c.l.s4 1966171168
        %v4037 = vunpack.c.0.s8 %v4036
        %v4038 = vlaneseq
        %v4039 = vshrl.u32 %v4038, 7
        %v4040 = vsub.s32 %v4037, %v4039
        %v4041 = vrot.slane %v4033, %v4040
        %v4043 = vunpack.c.l.s4 1966171168
        %v4044 = vunpack.c.0.s8 %v4043
        %v4045 = vlaneseq
        %v4046 = vshrl.u32 %v4045, 7
        %v4047 = vsub.s32 %v4044, %v4046
        %v4048 = vrot.slane %v4034, %v4047
        %v4049 = vcombine.low %v4041, %v4048
        %v4050 = vcombine.low %v2007, %v2011
        %v4051 = vcombine.low %v2015, %v2019
        %v4052 = vcombine.low %v2023, %v2027
        %v4053 = vcombine.low %v2031, %v2035
        %v4055 = vunpack.c.l.s4 1966171168
        %v4056 = vunpack.c.0.s8 %v4055
        %v4057 = vlaneseq
        %v4058 = vshrl.u32 %v4057, 7
        %v4059 = vsub.s32 %v4056, %v4058
        %v4060 = vrot.slane %v4050, %v4059
        %v4062 = vunpack.c.l.s4 1966171168
        %v4063 = vunpack.c.0.s8 %v4062
        %v4064 = vlaneseq
        %v4065 = vshrl.u32 %v4064, 7
        %v4066 = vsub.s32 %v4063, %v4065
        %v4067 = vrot.slane %v4051, %v4066
        %v4069 = vunpack.c.l.s4 1966171168
        %v4070 = vunpack.c.0.s8 %v4069
        %v4071 = vlaneseq
        %v4072 = vshrl.u32 %v4071, 7
        %v4073 = vsub.s32 %v4070, %v4072
        %v4074 = vrot.slane %v4052, %v4073
        %v4076 = vunpack.c.l.s4 1966171168
        %v4077 = vunpack.c.0.s8 %v4076
        %v4078 = vlaneseq
        %v4079 = vshrl.u32 %v4078, 7
        %v4080 = vsub.s32 %v4077, %v4079
        %v4081 = vrot.slane %v4053, %v4080
        %v4082 = vcombine.low %v4060, %v4067
        %v4083 = vcombine.low %v4074, %v4081
        %v4085 = vunpack.c.l.s4 1966171168
        %v4086 = vunpack.c.0.s8 %v4085
        %v4087 = vlaneseq
        %v4088 = vshrl.u32 %v4087, 7
        %v4089 = vsub.s32 %v4086, %v4088
        %v4090 = vrot.slane %v4082, %v4089
        %v4092 = vunpack.c.l.s4 1966171168
        %v4093 = vunpack.c.0.s8 %v4092
        %v4094 = vlaneseq
        %v4095 = vshrl.u32 %v4094, 7
        %v4096 = vsub.s32 %v4093, %v4095
        %v4097 = vrot.slane %v4083, %v4096
        %v4098 = vcombine.low %v4090, %v4097
        %v4099 = vcombine.low %v2039, %v2043
        %v4100 = vcombine.low %v2047, %v2051
        %v4101 = vcombine.low %v2055, %v2059
        %v4102 = vcombine.low %v2063, %v2067
        %v4104 = vunpack.c.l.s4 1966171168
        %v4105 = vunpack.c.0.s8 %v4104
        %v4106 = vlaneseq
        %v4107 = vshrl.u32 %v4106, 7
        %v4108 = vsub.s32 %v4105, %v4107
        %v4109 = vrot.slane %v4099, %v4108
        %v4111 = vunpack.c.l.s4 1966171168
        %v4112 = vunpack.c.0.s8 %v4111
        %v4113 = vlaneseq
        %v4114 = vshrl.u32 %v4113, 7
        %v4115 = vsub.s32 %v4112, %v4114
        %v4116 = vrot.slane %v4100, %v4115
        %v4118 = vunpack.c.l.s4 1966171168
        %v4119 = vunpack.c.0.s8 %v4118
        %v4120 = vlaneseq
        %v4121 = vshrl.u32 %v4120, 7
        %v4122 = vsub.s32 %v4119, %v4121
        %v4123 = vrot.slane %v4101, %v4122
        %v4125 = vunpack.c.l.s4 1966171168
        %v4126 = vunpack.c.0.s8 %v4125
        %v4127 = vlaneseq
        %v4128 = vshrl.u32 %v4127, 7
        %v4129 = vsub.s32 %v4126, %v4128
        %v4130 = vrot.slane %v4102, %v4129
        %v4131 = vcombine.low %v4109, %v4116
        %v4132 = vcombine.low %v4123, %v4130
        %v4134 = vunpack.c.l.s4 1966171168
        %v4135 = vunpack.c.0.s8 %v4134
        %v4136 = vlaneseq
        %v4137 = vshrl.u32 %v4136, 7
        %v4138 = vsub.s32 %v4135, %v4137
        %v4139 = vrot.slane %v4131, %v4138
        %v4141 = vunpack.c.l.s4 1966171168
        %v4142 = vunpack.c.0.s8 %v4141
        %v4143 = vlaneseq
        %v4144 = vshrl.u32 %v4143, 7
        %v4145 = vsub.s32 %v4142, %v4144
        %v4146 = vrot.slane %v4132, %v4145
        %v4147 = vcombine.low %v4139, %v4146
        %v4148 = vcombine.low %v2071, %v2075
        %v4149 = vcombine.low %v2079, %v2083
        %v4150 = vcombine.low %v2087, %v2091
        %v4151 = vcombine.low %v2095, %v2099
        %v4153 = vunpack.c.l.s4 1966171168
        %v4154 = vunpack.c.0.s8 %v4153
        %v4155 = vlaneseq
        %v4156 = vshrl.u32 %v4155, 7
        %v4157 = vsub.s32 %v4154, %v4156
        %v4158 = vrot.slane %v4148, %v4157
        %v4160 = vunpack.c.l.s4 1966171168
        %v4161 = vunpack.c.0.s8 %v4160
        %v4162 = vlaneseq
        %v4163 = vshrl.u32 %v4162, 7
        %v4164 = vsub.s32 %v4161, %v4163
        %v4165 = vrot.slane %v4149, %v4164
        %v4167 = vunpack.c.l.s4 1966171168
        %v4168 = vunpack.c.0.s8 %v4167
        %v4169 = vlaneseq
        %v4170 = vshrl.u32 %v4169, 7
        %v4171 = vsub.s32 %v4168, %v4170
        %v4172 = vrot.slane %v4150, %v4171
        %v4174 = vunpack.c.l.s4 1966171168
        %v4175 = vunpack.c.0.s8 %v4174
        %v4176 = vlaneseq
        %v4177 = vshrl.u32 %v4176, 7
        %v4178 = vsub.s32 %v4175, %v4177
        %v4179 = vrot.slane %v4151, %v4178
        %v4180 = vcombine.low %v4158, %v4165
        %v4181 = vcombine.low %v4172, %v4179
        %v4183 = vunpack.c.l.s4 1966171168
        %v4184 = vunpack.c.0.s8 %v4183
        %v4185 = vlaneseq
        %v4186 = vshrl.u32 %v4185, 7
        %v4187 = vsub.s32 %v4184, %v4186
        %v4188 = vrot.slane %v4180, %v4187
        %v4190 = vunpack.c.l.s4 1966171168
        %v4191 = vunpack.c.0.s8 %v4190
        %v4192 = vlaneseq
        %v4193 = vshrl.u32 %v4192, 7
        %v4194 = vsub.s32 %v4191, %v4193
        %v4195 = vrot.slane %v4181, %v4194
        %v4196 = vcombine.low %v4188, %v4195
        %v4197 = vcombine.low %v2103, %v2107
        %v4198 = vcombine.low %v2111, %v2115
        %v4199 = vcombine.low %v2119, %v2123
        %v4200 = vcombine.low %v2127, %v2131
        %v4202 = vunpack.c.l.s4 1966171168
        %v4203 = vunpack.c.0.s8 %v4202
        %v4204 = vlaneseq
        %v4205 = vshrl.u32 %v4204, 7
        %v4206 = vsub.s32 %v4203, %v4205
        %v4207 = vrot.slane %v4197, %v4206
        %v4209 = vunpack.c.l.s4 1966171168
        %v4210 = vunpack.c.0.s8 %v4209
        %v4211 = vlaneseq
        %v4212 = vshrl.u32 %v4211, 7
        %v4213 = vsub.s32 %v4210, %v4212
        %v4214 = vrot.slane %v4198, %v4213
        %v4216 = vunpack.c.l.s4 1966171168
        %v4217 = vunpack.c.0.s8 %v4216
        %v4218 = vlaneseq
        %v4219 = vshrl.u32 %v4218, 7
        %v4220 = vsub.s32 %v4217, %v4219
        %v4221 = vrot.slane %v4199, %v4220
        %v4223 = vunpack.c.l.s4 1966171168
        %v4224 = vunpack.c.0.s8 %v4223
        %v4225 = vlaneseq
        %v4226 = vshrl.u32 %v4225, 7
        %v4227 = vsub.s32 %v4224, %v4226
        %v4228 = vrot.slane %v4200, %v4227
        %v4229 = vcombine.low %v4207, %v4214
        %v4230 = vcombine.low %v4221, %v4228
        %v4232 = vunpack.c.l.s4 1966171168
        %v4233 = vunpack.c.0.s8 %v4232
        %v4234 = vlaneseq
        %v4235 = vshrl.u32 %v4234, 7
        %v4236 = vsub.s32 %v4233, %v4235
        %v4237 = vrot.slane %v4229, %v4236
        %v4239 = vunpack.c.l.s4 1966171168
        %v4240 = vunpack.c.0.s8 %v4239
        %v4241 = vlaneseq
        %v4242 = vshrl.u32 %v4241, 7
        %v4243 = vsub.s32 %v4240, %v4242
        %v4244 = vrot.slane %v4230, %v4243
        %v4245 = vcombine.low %v4237, %v4244
        %v4246 = vcombine.low %v2135, %v2139
        %v4247 = vcombine.low %v2143, %v2147
        %v4248 = vcombine.low %v2151, %v2155
        %v4249 = vcombine.low %v2159, %v2163
        %v4251 = vunpack.c.l.s4 1966171168
        %v4252 = vunpack.c.0.s8 %v4251
        %v4253 = vlaneseq
        %v4254 = vshrl.u32 %v4253, 7
        %v4255 = vsub.s32 %v4252, %v4254
        %v4256 = vrot.slane %v4246, %v4255
        %v4258 = vunpack.c.l.s4 1966171168
        %v4259 = vunpack.c.0.s8 %v4258
        %v4260 = vlaneseq
        %v4261 = vshrl.u32 %v4260, 7
        %v4262 = vsub.s32 %v4259, %v4261
        %v4263 = vrot.slane %v4247, %v4262
        %v4265 = vunpack.c.l.s4 1966171168
        %v4266 = vunpack.c.0.s8 %v4265
        %v4267 = vlaneseq
        %v4268 = vshrl.u32 %v4267, 7
        %v4269 = vsub.s32 %v4266, %v4268
        %v4270 = vrot.slane %v4248, %v4269
        %v4272 = vunpack.c.l.s4 1966171168
        %v4273 = vunpack.c.0.s8 %v4272
        %v4274 = vlaneseq
        %v4275 = vshrl.u32 %v4274, 7
        %v4276 = vsub.s32 %v4273, %v4275
        %v4277 = vrot.slane %v4249, %v4276
        %v4278 = vcombine.low %v4256, %v4263
        %v4279 = vcombine.low %v4270, %v4277
        %v4281 = vunpack.c.l.s4 1966171168
        %v4282 = vunpack.c.0.s8 %v4281
        %v4283 = vlaneseq
        %v4284 = vshrl.u32 %v4283, 7
        %v4285 = vsub.s32 %v4282, %v4284
        %v4286 = vrot.slane %v4278, %v4285
        %v4288 = vunpack.c.l.s4 1966171168
        %v4289 = vunpack.c.0.s8 %v4288
        %v4290 = vlaneseq
        %v4291 = vshrl.u32 %v4290, 7
        %v4292 = vsub.s32 %v4289, %v4291
        %v4293 = vrot.slane %v4279, %v4292
        %v4294 = vcombine.low %v4286, %v4293
        %v4295 = vcombine.low %v2167, %v2171
        %v4296 = vcombine.low %v2175, %v2179
        %v4297 = vcombine.low %v2183, %v2187
        %v4298 = vcombine.low %v2191, %v2195
        %v4300 = vunpack.c.l.s4 1966171168
        %v4301 = vunpack.c.0.s8 %v4300
        %v4302 = vlaneseq
        %v4303 = vshrl.u32 %v4302, 7
        %v4304 = vsub.s32 %v4301, %v4303
        %v4305 = vrot.slane %v4295, %v4304
        %v4307 = vunpack.c.l.s4 1966171168
        %v4308 = vunpack.c.0.s8 %v4307
        %v4309 = vlaneseq
        %v4310 = vshrl.u32 %v4309, 7
        %v4311 = vsub.s32 %v4308, %v4310
        %v4312 = vrot.slane %v4296, %v4311
        %v4314 = vunpack.c.l.s4 1966171168
        %v4315 = vunpack.c.0.s8 %v4314
        %v4316 = vlaneseq
        %v4317 = vshrl.u32 %v4316, 7
        %v4318 = vsub.s32 %v4315, %v4317
        %v4319 = vrot.slane %v4297, %v4318
        %v4321 = vunpack.c.l.s4 1966171168
        %v4322 = vunpack.c.0.s8 %v4321
        %v4323 = vlaneseq
        %v4324 = vshrl.u32 %v4323, 7
        %v4325 = vsub.s32 %v4322, %v4324
        %v4326 = vrot.slane %v4298, %v4325
        %v4327 = vcombine.low %v4305, %v4312
        %v4328 = vcombine.low %v4319, %v4326
        %v4330 = vunpack.c.l.s4 1966171168
        %v4331 = vunpack.c.0.s8 %v4330
        %v4332 = vlaneseq
        %v4333 = vshrl.u32 %v4332, 7
        %v4334 = vsub.s32 %v4331, %v4333
        %v4335 = vrot.slane %v4327, %v4334
        %v4337 = vunpack.c.l.s4 1966171168
        %v4338 = vunpack.c.0.s8 %v4337
        %v4339 = vlaneseq
        %v4340 = vshrl.u32 %v4339, 7
        %v4341 = vsub.s32 %v4338, %v4340
        %v4342 = vrot.slane %v4328, %v4341
        %v4343 = vcombine.low %v4335, %v4342
        %v4344 = vcombine.low %v2199, %v2203
        %v4345 = vcombine.low %v2207, %v2211
        %v4346 = vcombine.low %v2215, %v2219
        %v4347 = vcombine.low %v2223, %v2227
        %v4349 = vunpack.c.l.s4 1966171168
        %v4350 = vunpack.c.0.s8 %v4349
        %v4351 = vlaneseq
        %v4352 = vshrl.u32 %v4351, 7
        %v4353 = vsub.s32 %v4350, %v4352
        %v4354 = vrot.slane %v4344, %v4353
        %v4356 = vunpack.c.l.s4 1966171168
        %v4357 = vunpack.c.0.s8 %v4356
        %v4358 = vlaneseq
        %v4359 = vshrl.u32 %v4358, 7
        %v4360 = vsub.s32 %v4357, %v4359
        %v4361 = vrot.slane %v4345, %v4360
        %v4363 = vunpack.c.l.s4 1966171168
        %v4364 = vunpack.c.0.s8 %v4363
        %v4365 = vlaneseq
        %v4366 = vshrl.u32 %v4365, 7
        %v4367 = vsub.s32 %v4364, %v4366
        %v4368 = vrot.slane %v4346, %v4367
        %v4370 = vunpack.c.l.s4 1966171168
        %v4371 = vunpack.c.0.s8 %v4370
        %v4372 = vlaneseq
        %v4373 = vshrl.u32 %v4372, 7
        %v4374 = vsub.s32 %v4371, %v4373
        %v4375 = vrot.slane %v4347, %v4374
        %v4376 = vcombine.low %v4354, %v4361
        %v4377 = vcombine.low %v4368, %v4375
        %v4379 = vunpack.c.l.s4 1966171168
        %v4380 = vunpack.c.0.s8 %v4379
        %v4381 = vlaneseq
        %v4382 = vshrl.u32 %v4381, 7
        %v4383 = vsub.s32 %v4380, %v4382
        %v4384 = vrot.slane %v4376, %v4383
        %v4386 = vunpack.c.l.s4 1966171168
        %v4387 = vunpack.c.0.s8 %v4386
        %v4388 = vlaneseq
        %v4389 = vshrl.u32 %v4388, 7
        %v4390 = vsub.s32 %v4387, %v4389
        %v4391 = vrot.slane %v4377, %v4390
        %v4392 = vcombine.low %v4384, %v4391
        %v4393 = vcombine.low %v2231, %v2235
        %v4394 = vcombine.low %v2239, %v2243
        %v4395 = vcombine.low %v2247, %v2251
        %v4396 = vcombine.low %v2255, %v2259
        %v4398 = vunpack.c.l.s4 1966171168
        %v4399 = vunpack.c.0.s8 %v4398
        %v4400 = vlaneseq
        %v4401 = vshrl.u32 %v4400, 7
        %v4402 = vsub.s32 %v4399, %v4401
        %v4403 = vrot.slane %v4393, %v4402
        %v4405 = vunpack.c.l.s4 1966171168
        %v4406 = vunpack.c.0.s8 %v4405
        %v4407 = vlaneseq
        %v4408 = vshrl.u32 %v4407, 7
        %v4409 = vsub.s32 %v4406, %v4408
        %v4410 = vrot.slane %v4394, %v4409
        %v4412 = vunpack.c.l.s4 1966171168
        %v4413 = vunpack.c.0.s8 %v4412
        %v4414 = vlaneseq
        %v4415 = vshrl.u32 %v4414, 7
        %v4416 = vsub.s32 %v4413, %v4415
        %v4417 = vrot.slane %v4395, %v4416
        %v4419 = vunpack.c.l.s4 1966171168
        %v4420 = vunpack.c.0.s8 %v4419
        %v4421 = vlaneseq
        %v4422 = vshrl.u32 %v4421, 7
        %v4423 = vsub.s32 %v4420, %v4422
        %v4424 = vrot.slane %v4396, %v4423
        %v4425 = vcombine.low %v4403, %v4410
        %v4426 = vcombine.low %v4417, %v4424
        %v4428 = vunpack.c.l.s4 1966171168
        %v4429 = vunpack.c.0.s8 %v4428
        %v4430 = vlaneseq
        %v4431 = vshrl.u32 %v4430, 7
        %v4432 = vsub.s32 %v4429, %v4431
        %v4433 = vrot.slane %v4425, %v4432
        %v4435 = vunpack.c.l.s4 1966171168
        %v4436 = vunpack.c.0.s8 %v4435
        %v4437 = vlaneseq
        %v4438 = vshrl.u32 %v4437, 7
        %v4439 = vsub.s32 %v4436, %v4438
        %v4440 = vrot.slane %v4426, %v4439
        %v4441 = vcombine.low %v4433, %v4440
        %v4442 = vcombine.low %v2263, %v2267
        %v4443 = vcombine.low %v2271, %v2275
        %v4444 = vcombine.low %v2279, %v2283
        %v4445 = vcombine.low %v2287, %v2291
        %v4447 = vunpack.c.l.s4 1966171168
        %v4448 = vunpack.c.0.s8 %v4447
        %v4449 = vlaneseq
        %v4450 = vshrl.u32 %v4449, 7
        %v4451 = vsub.s32 %v4448, %v4450
        %v4452 = vrot.slane %v4442, %v4451
        %v4454 = vunpack.c.l.s4 1966171168
        %v4455 = vunpack.c.0.s8 %v4454
        %v4456 = vlaneseq
        %v4457 = vshrl.u32 %v4456, 7
        %v4458 = vsub.s32 %v4455, %v4457
        %v4459 = vrot.slane %v4443, %v4458
        %v4461 = vunpack.c.l.s4 1966171168
        %v4462 = vunpack.c.0.s8 %v4461
        %v4463 = vlaneseq
        %v4464 = vshrl.u32 %v4463, 7
        %v4465 = vsub.s32 %v4462, %v4464
        %v4466 = vrot.slane %v4444, %v4465
        %v4468 = vunpack.c.l.s4 1966171168
        %v4469 = vunpack.c.0.s8 %v4468
        %v4470 = vlaneseq
        %v4471 = vshrl.u32 %v4470, 7
        %v4472 = vsub.s32 %v4469, %v4471
        %v4473 = vrot.slane %v4445, %v4472
        %v4474 = vcombine.low %v4452, %v4459
        %v4475 = vcombine.low %v4466, %v4473
        %v4477 = vunpack.c.l.s4 1966171168
        %v4478 = vunpack.c.0.s8 %v4477
        %v4479 = vlaneseq
        %v4480 = vshrl.u32 %v4479, 7
        %v4481 = vsub.s32 %v4478, %v4480
        %v4482 = vrot.slane %v4474, %v4481
        %v4484 = vunpack.c.l.s4 1966171168
        %v4485 = vunpack.c.0.s8 %v4484
        %v4486 = vlaneseq
        %v4487 = vshrl.u32 %v4486, 7
        %v4488 = vsub.s32 %v4485, %v4487
        %v4489 = vrot.slane %v4475, %v4488
        %v4490 = vcombine.low %v4482, %v4489
        %v4491 = vcombine.low %v2295, %v2299
        %v4492 = vcombine.low %v2303, %v2307
        %v4493 = vcombine.low %v2311, %v2315
        %v4494 = vcombine.low %v2319, %v2323
        %v4496 = vunpack.c.l.s4 1966171168
        %v4497 = vunpack.c.0.s8 %v4496
        %v4498 = vlaneseq
        %v4499 = vshrl.u32 %v4498, 7
        %v4500 = vsub.s32 %v4497, %v4499
        %v4501 = vrot.slane %v4491, %v4500
        %v4503 = vunpack.c.l.s4 1966171168
        %v4504 = vunpack.c.0.s8 %v4503
        %v4505 = vlaneseq
        %v4506 = vshrl.u32 %v4505, 7
        %v4507 = vsub.s32 %v4504, %v4506
        %v4508 = vrot.slane %v4492, %v4507
        %v4510 = vunpack.c.l.s4 1966171168
        %v4511 = vunpack.c.0.s8 %v4510
        %v4512 = vlaneseq
        %v4513 = vshrl.u32 %v4512, 7
        %v4514 = vsub.s32 %v4511, %v4513
        %v4515 = vrot.slane %v4493, %v4514
        %v4517 = vunpack.c.l.s4 1966171168
        %v4518 = vunpack.c.0.s8 %v4517
        %v4519 = vlaneseq
        %v4520 = vshrl.u32 %v4519, 7
        %v4521 = vsub.s32 %v4518, %v4520
        %v4522 = vrot.slane %v4494, %v4521
        %v4523 = vcombine.low %v4501, %v4508
        %v4524 = vcombine.low %v4515, %v4522
        %v4526 = vunpack.c.l.s4 1966171168
        %v4527 = vunpack.c.0.s8 %v4526
        %v4528 = vlaneseq
        %v4529 = vshrl.u32 %v4528, 7
        %v4530 = vsub.s32 %v4527, %v4529
        %v4531 = vrot.slane %v4523, %v4530
        %v4533 = vunpack.c.l.s4 1966171168
        %v4534 = vunpack.c.0.s8 %v4533
        %v4535 = vlaneseq
        %v4536 = vshrl.u32 %v4535, 7
        %v4537 = vsub.s32 %v4534, %v4536
        %v4538 = vrot.slane %v4524, %v4537
        %v4539 = vcombine.low %v4531, %v4538
        %v4540 = vcombine.low %v2327, %v2331
        %v4541 = vcombine.low %v2335, %v2339
        %v4542 = vcombine.low %v2343, %v2347
        %v4543 = vcombine.low %v2351, %v2355
        %v4545 = vunpack.c.l.s4 1966171168
        %v4546 = vunpack.c.0.s8 %v4545
        %v4547 = vlaneseq
        %v4548 = vshrl.u32 %v4547, 7
        %v4549 = vsub.s32 %v4546, %v4548
        %v4550 = vrot.slane %v4540, %v4549
        %v4552 = vunpack.c.l.s4 1966171168
        %v4553 = vunpack.c.0.s8 %v4552
        %v4554 = vlaneseq
        %v4555 = vshrl.u32 %v4554, 7
        %v4556 = vsub.s32 %v4553, %v4555
        %v4557 = vrot.slane %v4541, %v4556
        %v4559 = vunpack.c.l.s4 1966171168
        %v4560 = vunpack.c.0.s8 %v4559
        %v4561 = vlaneseq
        %v4562 = vshrl.u32 %v4561, 7
        %v4563 = vsub.s32 %v4560, %v4562
        %v4564 = vrot.slane %v4542, %v4563
        %v4566 = vunpack.c.l.s4 1966171168
        %v4567 = vunpack.c.0.s8 %v4566
        %v4568 = vlaneseq
        %v4569 = vshrl.u32 %v4568, 7
        %v4570 = vsub.s32 %v4567, %v4569
        %v4571 = vrot.slane %v4543, %v4570
        %v4572 = vcombine.low %v4550, %v4557
        %v4573 = vcombine.low %v4564, %v4571
        %v4575 = vunpack.c.l.s4 1966171168
        %v4576 = vunpack.c.0.s8 %v4575
        %v4577 = vlaneseq
        %v4578 = vshrl.u32 %v4577, 7
        %v4579 = vsub.s32 %v4576, %v4578
        %v4580 = vrot.slane %v4572, %v4579
        %v4582 = vunpack.c.l.s4 1966171168
        %v4583 = vunpack.c.0.s8 %v4582
        %v4584 = vlaneseq
        %v4585 = vshrl.u32 %v4584, 7
        %v4586 = vsub.s32 %v4583, %v4585
        %v4587 = vrot.slane %v4573, %v4586
        %v4588 = vcombine.low %v4580, %v4587
        %v4589 = vcombine.low %v2359, %v2363
        %v4590 = vcombine.low %v2367, %v2371
        %v4591 = vcombine.low %v2375, %v2379
        %v4592 = vcombine.low %v2383, %v2387
        %v4594 = vunpack.c.l.s4 1966171168
        %v4595 = vunpack.c.0.s8 %v4594
        %v4596 = vlaneseq
        %v4597 = vshrl.u32 %v4596, 7
        %v4598 = vsub.s32 %v4595, %v4597
        %v4599 = vrot.slane %v4589, %v4598
        %v4601 = vunpack.c.l.s4 1966171168
        %v4602 = vunpack.c.0.s8 %v4601
        %v4603 = vlaneseq
        %v4604 = vshrl.u32 %v4603, 7
        %v4605 = vsub.s32 %v4602, %v4604
        %v4606 = vrot.slane %v4590, %v4605
        %v4608 = vunpack.c.l.s4 1966171168
        %v4609 = vunpack.c.0.s8 %v4608
        %v4610 = vlaneseq
        %v4611 = vshrl.u32 %v4610, 7
        %v4612 = vsub.s32 %v4609, %v4611
        %v4613 = vrot.slane %v4591, %v4612
        %v4615 = vunpack.c.l.s4 1966171168
        %v4616 = vunpack.c.0.s8 %v4615
        %v4617 = vlaneseq
        %v4618 = vshrl.u32 %v4617, 7
        %v4619 = vsub.s32 %v4616, %v4618
        %v4620 = vrot.slane %v4592, %v4619
        %v4621 = vcombine.low %v4599, %v4606
        %v4622 = vcombine.low %v4613, %v4620
        %v4624 = vunpack.c.l.s4 1966171168
        %v4625 = vunpack.c.0.s8 %v4624
        %v4626 = vlaneseq
        %v4627 = vshrl.u32 %v4626, 7
        %v4628 = vsub.s32 %v4625, %v4627
        %v4629 = vrot.slane %v4621, %v4628
        %v4631 = vunpack.c.l.s4 1966171168
        %v4632 = vunpack.c.0.s8 %v4631
        %v4633 = vlaneseq
        %v4634 = vshrl.u32 %v4633, 7
        %v4635 = vsub.s32 %v4632, %v4634
        %v4636 = vrot.slane %v4622, %v4635
        %v4637 = vcombine.low %v4629, %v4636
        %v4638 = vcombine.low %v2391, %v2395
        %v4639 = vcombine.low %v2399, %v2403
        %v4640 = vcombine.low %v2407, %v2411
        %v4641 = vcombine.low %v2415, %v2419
        %v4643 = vunpack.c.l.s4 1966171168
        %v4644 = vunpack.c.0.s8 %v4643
        %v4645 = vlaneseq
        %v4646 = vshrl.u32 %v4645, 7
        %v4647 = vsub.s32 %v4644, %v4646
        %v4648 = vrot.slane %v4638, %v4647
        %v4650 = vunpack.c.l.s4 1966171168
        %v4651 = vunpack.c.0.s8 %v4650
        %v4652 = vlaneseq
        %v4653 = vshrl.u32 %v4652, 7
        %v4654 = vsub.s32 %v4651, %v4653
        %v4655 = vrot.slane %v4639, %v4654
        %v4657 = vunpack.c.l.s4 1966171168
        %v4658 = vunpack.c.0.s8 %v4657
        %v4659 = vlaneseq
        %v4660 = vshrl.u32 %v4659, 7
        %v4661 = vsub.s32 %v4658, %v4660
        %v4662 = vrot.slane %v4640, %v4661
        %v4664 = vunpack.c.l.s4 1966171168
        %v4665 = vunpack.c.0.s8 %v4664
        %v4666 = vlaneseq
        %v4667 = vshrl.u32 %v4666, 7
        %v4668 = vsub.s32 %v4665, %v4667
        %v4669 = vrot.slane %v4641, %v4668
        %v4670 = vcombine.low %v4648, %v4655
        %v4671 = vcombine.low %v4662, %v4669
        %v4673 = vunpack.c.l.s4 1966171168
        %v4674 = vunpack.c.0.s8 %v4673
        %v4675 = vlaneseq
        %v4676 = vshrl.u32 %v4675, 7
        %v4677 = vsub.s32 %v4674, %v4676
        %v4678 = vrot.slane %v4670, %v4677
        %v4680 = vunpack.c.l.s4 1966171168
        %v4681 = vunpack.c.0.s8 %v4680
        %v4682 = vlaneseq
        %v4683 = vshrl.u32 %v4682, 7
        %v4684 = vsub.s32 %v4681, %v4683
        %v4685 = vrot.slane %v4671, %v4684
        %v4686 = vcombine.low %v4678, %v4685
        %v4687 = vcombine.low %v2423, %v2427
        %v4688 = vcombine.low %v2431, %v2435
        %v4689 = vcombine.low %v2439, %v2443
        %v4690 = vcombine.low %v2447, %v2451
        %v4692 = vunpack.c.l.s4 1966171168
        %v4693 = vunpack.c.0.s8 %v4692
        %v4694 = vlaneseq
        %v4695 = vshrl.u32 %v4694, 7
        %v4696 = vsub.s32 %v4693, %v4695
        %v4697 = vrot.slane %v4687, %v4696
        %v4699 = vunpack.c.l.s4 1966171168
        %v4700 = vunpack.c.0.s8 %v4699
        %v4701 = vlaneseq
        %v4702 = vshrl.u32 %v4701, 7
        %v4703 = vsub.s32 %v4700, %v4702
        %v4704 = vrot.slane %v4688, %v4703
        %v4706 = vunpack.c.l.s4 1966171168
        %v4707 = vunpack.c.0.s8 %v4706
        %v4708 = vlaneseq
        %v4709 = vshrl.u32 %v4708, 7
        %v4710 = vsub.s32 %v4707, %v4709
        %v4711 = vrot.slane %v4689, %v4710
        %v4713 = vunpack.c.l.s4 1966171168
        %v4714 = vunpack.c.0.s8 %v4713
        %v4715 = vlaneseq
        %v4716 = vshrl.u32 %v4715, 7
        %v4717 = vsub.s32 %v4714, %v4716
        %v4718 = vrot.slane %v4690, %v4717
        %v4719 = vcombine.low %v4697, %v4704
        %v4720 = vcombine.low %v4711, %v4718
        %v4722 = vunpack.c.l.s4 1966171168
        %v4723 = vunpack.c.0.s8 %v4722
        %v4724 = vlaneseq
        %v4725 = vshrl.u32 %v4724, 7
        %v4726 = vsub.s32 %v4723, %v4725
        %v4727 = vrot.slane %v4719, %v4726
        %v4729 = vunpack.c.l.s4 1966171168
        %v4730 = vunpack.c.0.s8 %v4729
        %v4731 = vlaneseq
        %v4732 = vshrl.u32 %v4731, 7
        %v4733 = vsub.s32 %v4730, %v4732
        %v4734 = vrot.slane %v4720, %v4733
        %v4735 = vcombine.low %v4727, %v4734
        %v4736 = vcombine.low %v2455, %v2459
        %v4737 = vcombine.low %v2463, %v2467
        %v4738 = vcombine.low %v2471, %v2475
        %v4739 = vcombine.low %v2479, %v2483
        %v4741 = vunpack.c.l.s4 1966171168
        %v4742 = vunpack.c.0.s8 %v4741
        %v4743 = vlaneseq
        %v4744 = vshrl.u32 %v4743, 7
        %v4745 = vsub.s32 %v4742, %v4744
        %v4746 = vrot.slane %v4736, %v4745
        %v4748 = vunpack.c.l.s4 1966171168
        %v4749 = vunpack.c.0.s8 %v4748
        %v4750 = vlaneseq
        %v4751 = vshrl.u32 %v4750, 7
        %v4752 = vsub.s32 %v4749, %v4751
        %v4753 = vrot.slane %v4737, %v4752
        %v4755 = vunpack.c.l.s4 1966171168
        %v4756 = vunpack.c.0.s8 %v4755
        %v4757 = vlaneseq
        %v4758 = vshrl.u32 %v4757, 7
        %v4759 = vsub.s32 %v4756, %v4758
        %v4760 = vrot.slane %v4738, %v4759
        %v4762 = vunpack.c.l.s4 1966171168
        %v4763 = vunpack.c.0.s8 %v4762
        %v4764 = vlaneseq
        %v4765 = vshrl.u32 %v4764, 7
        %v4766 = vsub.s32 %v4763, %v4765
        %v4767 = vrot.slane %v4739, %v4766
        %v4768 = vcombine.low %v4746, %v4753
        %v4769 = vcombine.low %v4760, %v4767
        %v4771 = vunpack.c.l.s4 1966171168
        %v4772 = vunpack.c.0.s8 %v4771
        %v4773 = vlaneseq
        %v4774 = vshrl.u32 %v4773, 7
        %v4775 = vsub.s32 %v4772, %v4774
        %v4776 = vrot.slane %v4768, %v4775
        %v4778 = vunpack.c.l.s4 1966171168
        %v4779 = vunpack.c.0.s8 %v4778
        %v4780 = vlaneseq
        %v4781 = vshrl.u32 %v4780, 7
        %v4782 = vsub.s32 %v4779, %v4781
        %v4783 = vrot.slane %v4769, %v4782
        %v4784 = vcombine.low %v4776, %v4783
        %v4785 = vcombine.low %v2487, %v2491
        %v4786 = vcombine.low %v2495, %v2499
        %v4787 = vcombine.low %v2503, %v2507
        %v4788 = vcombine.low %v2511, %v2515
        %v4790 = vunpack.c.l.s4 1966171168
        %v4791 = vunpack.c.0.s8 %v4790
        %v4792 = vlaneseq
        %v4793 = vshrl.u32 %v4792, 7
        %v4794 = vsub.s32 %v4791, %v4793
        %v4795 = vrot.slane %v4785, %v4794
        %v4797 = vunpack.c.l.s4 1966171168
        %v4798 = vunpack.c.0.s8 %v4797
        %v4799 = vlaneseq
        %v4800 = vshrl.u32 %v4799, 7
        %v4801 = vsub.s32 %v4798, %v4800
        %v4802 = vrot.slane %v4786, %v4801
        %v4804 = vunpack.c.l.s4 1966171168
        %v4805 = vunpack.c.0.s8 %v4804
        %v4806 = vlaneseq
        %v4807 = vshrl.u32 %v4806, 7
        %v4808 = vsub.s32 %v4805, %v4807
        %v4809 = vrot.slane %v4787, %v4808
        %v4811 = vunpack.c.l.s4 1966171168
        %v4812 = vunpack.c.0.s8 %v4811
        %v4813 = vlaneseq
        %v4814 = vshrl.u32 %v4813, 7
        %v4815 = vsub.s32 %v4812, %v4814
        %v4816 = vrot.slane %v4788, %v4815
        %v4817 = vcombine.low %v4795, %v4802
        %v4818 = vcombine.low %v4809, %v4816
        %v4820 = vunpack.c.l.s4 1966171168
        %v4821 = vunpack.c.0.s8 %v4820
        %v4822 = vlaneseq
        %v4823 = vshrl.u32 %v4822, 7
        %v4824 = vsub.s32 %v4821, %v4823
        %v4825 = vrot.slane %v4817, %v4824
        %v4827 = vunpack.c.l.s4 1966171168
        %v4828 = vunpack.c.0.s8 %v4827
        %v4829 = vlaneseq
        %v4830 = vshrl.u32 %v4829, 7
        %v4831 = vsub.s32 %v4828, %v4830
        %v4832 = vrot.slane %v4818, %v4831
        %v4833 = vcombine.low %v4825, %v4832
        %v4834 = vcombine.low %v2519, %v2523
        %v4835 = vcombine.low %v2527, %v2531
        %v4836 = vcombine.low %v2535, %v2539
        %v4837 = vcombine.low %v2543, %v2547
        %v4839 = vunpack.c.l.s4 1966171168
        %v4840 = vunpack.c.0.s8 %v4839
        %v4841 = vlaneseq
        %v4842 = vshrl.u32 %v4841, 7
        %v4843 = vsub.s32 %v4840, %v4842
        %v4844 = vrot.slane %v4834, %v4843
        %v4846 = vunpack.c.l.s4 1966171168
        %v4847 = vunpack.c.0.s8 %v4846
        %v4848 = vlaneseq
        %v4849 = vshrl.u32 %v4848, 7
        %v4850 = vsub.s32 %v4847, %v4849
        %v4851 = vrot.slane %v4835, %v4850
        %v4853 = vunpack.c.l.s4 1966171168
        %v4854 = vunpack.c.0.s8 %v4853
        %v4855 = vlaneseq
        %v4856 = vshrl.u32 %v4855, 7
        %v4857 = vsub.s32 %v4854, %v4856
        %v4858 = vrot.slane %v4836, %v4857
        %v4860 = vunpack.c.l.s4 1966171168
        %v4861 = vunpack.c.0.s8 %v4860
        %v4862 = vlaneseq
        %v4863 = vshrl.u32 %v4862, 7
        %v4864 = vsub.s32 %v4861, %v4863
        %v4865 = vrot.slane %v4837, %v4864
        %v4866 = vcombine.low %v4844, %v4851
        %v4867 = vcombine.low %v4858, %v4865
        %v4869 = vunpack.c.l.s4 1966171168
        %v4870 = vunpack.c.0.s8 %v4869
        %v4871 = vlaneseq
        %v4872 = vshrl.u32 %v4871, 7
        %v4873 = vsub.s32 %v4870, %v4872
        %v4874 = vrot.slane %v4866, %v4873
        %v4876 = vunpack.c.l.s4 1966171168
        %v4877 = vunpack.c.0.s8 %v4876
        %v4878 = vlaneseq
        %v4879 = vshrl.u32 %v4878, 7
        %v4880 = vsub.s32 %v4877, %v4879
        %v4881 = vrot.slane %v4867, %v4880
        %v4882 = vcombine.low %v4874, %v4881
        %v4883 = vcombine.low %v2551, %v2555
        %v4884 = vcombine.low %v2559, %v2563
        %v4885 = vcombine.low %v2567, %v2571
        %v4886 = vcombine.low %v2575, %v2579
        %v4888 = vunpack.c.l.s4 1966171168
        %v4889 = vunpack.c.0.s8 %v4888
        %v4890 = vlaneseq
        %v4891 = vshrl.u32 %v4890, 7
        %v4892 = vsub.s32 %v4889, %v4891
        %v4893 = vrot.slane %v4883, %v4892
        %v4895 = vunpack.c.l.s4 1966171168
        %v4896 = vunpack.c.0.s8 %v4895
        %v4897 = vlaneseq
        %v4898 = vshrl.u32 %v4897, 7
        %v4899 = vsub.s32 %v4896, %v4898
        %v4900 = vrot.slane %v4884, %v4899
        %v4902 = vunpack.c.l.s4 1966171168
        %v4903 = vunpack.c.0.s8 %v4902
        %v4904 = vlaneseq
        %v4905 = vshrl.u32 %v4904, 7
        %v4906 = vsub.s32 %v4903, %v4905
        %v4907 = vrot.slane %v4885, %v4906
        %v4909 = vunpack.c.l.s4 1966171168
        %v4910 = vunpack.c.0.s8 %v4909
        %v4911 = vlaneseq
        %v4912 = vshrl.u32 %v4911, 7
        %v4913 = vsub.s32 %v4910, %v4912
        %v4914 = vrot.slane %v4886, %v4913
        %v4915 = vcombine.low %v4893, %v4900
        %v4916 = vcombine.low %v4907, %v4914
        %v4918 = vunpack.c.l.s4 1966171168
        %v4919 = vunpack.c.0.s8 %v4918
        %v4920 = vlaneseq
        %v4921 = vshrl.u32 %v4920, 7
        %v4922 = vsub.s32 %v4919, %v4921
        %v4923 = vrot.slane %v4915, %v4922
        %v4925 = vunpack.c.l.s4 1966171168
        %v4926 = vunpack.c.0.s8 %v4925
        %v4927 = vlaneseq
        %v4928 = vshrl.u32 %v4927, 7
        %v4929 = vsub.s32 %v4926, %v4928
        %v4930 = vrot.slane %v4916, %v4929
        %v4931 = vcombine.low %v4923, %v4930
        %4932 = vset.pattern.permute.xlu0 0
        %4933 = vperm.xlu0 %4932, %v2628
        %v4934 = vpop.permute.xlu0 %4933
        %4935 = vset.pattern.permute.xlu0 0
        %4936 = vperm.xlu0 %4935, %v2677
        %v4937 = vpop.permute.xlu0 %4936
        %4938 = vset.pattern.permute.xlu0 0
        %4939 = vperm.xlu0 %4938, %v2726
        %v4940 = vpop.permute.xlu0 %4939
        %4941 = vset.pattern.permute.xlu0 0
        %4942 = vperm.xlu0 %4941, %v2775
        %v4943 = vpop.permute.xlu0 %4942
        %4944 = vset.pattern.permute.xlu0 0
        %4945 = vperm.xlu0 %4944, %v2824
        %v4946 = vpop.permute.xlu0 %4945
        %4947 = vset.pattern.permute.xlu0 0
        %4948 = vperm.xlu0 %4947, %v2873
        %v4949 = vpop.permute.xlu0 %4948
        %4950 = vset.pattern.permute.xlu0 0
        %4951 = vperm.xlu0 %4950, %v2922
        %v4952 = vpop.permute.xlu0 %4951
        %4953 = vset.pattern.permute.xlu0 0
        %4954 = vperm.xlu0 %4953, %v2971
        %v4955 = vpop.permute.xlu0 %4954
        %4956 = vset.pattern.permute.xlu0 0
        %4957 = vperm.xlu0 %4956, %v3020
        %v4958 = vpop.permute.xlu0 %4957
        %4959 = vset.pattern.permute.xlu0 0
        %4960 = vperm.xlu0 %4959, %v3069
        %v4961 = vpop.permute.xlu0 %4960
        %4962 = vset.pattern.permute.xlu0 0
        %4963 = vperm.xlu0 %4962, %v3118
        %v4964 = vpop.permute.xlu0 %4963
        %4965 = vset.pattern.permute.xlu0 0
        %4966 = vperm.xlu0 %4965, %v3167
        %v4967 = vpop.permute.xlu0 %4966
        %4968 = vset.pattern.permute.xlu0 0
        %4969 = vperm.xlu0 %4968, %v3216
        %v4970 = vpop.permute.xlu0 %4969
        %4971 = vset.pattern.permute.xlu0 0
        %4972 = vperm.xlu0 %4971, %v3265
        %v4973 = vpop.permute.xlu0 %4972
        %4974 = vset.pattern.permute.xlu0 0
        %4975 = vperm.xlu0 %4974, %v3314
        %v4976 = vpop.permute.xlu0 %4975
        %4977 = vset.pattern.permute.xlu0 0
        %4978 = vperm.xlu0 %4977, %v3363
        %v4979 = vpop.permute.xlu0 %4978
        %4980 = vset.pattern.permute.xlu0 0
        %4981 = vperm.xlu0 %4980, %v3412
        %v4982 = vpop.permute.xlu0 %4981
        %4983 = vset.pattern.permute.xlu0 0
        %4984 = vperm.xlu0 %4983, %v3461
        %v4985 = vpop.permute.xlu0 %4984
        %4986 = vset.pattern.permute.xlu0 0
        %4987 = vperm.xlu0 %4986, %v3510
        %v4988 = vpop.permute.xlu0 %4987
        %4989 = vset.pattern.permute.xlu0 0
        %4990 = vperm.xlu0 %4989, %v3559
        %v4991 = vpop.permute.xlu0 %4990
        %4992 = vset.pattern.permute.xlu0 0
        %4993 = vperm.xlu0 %4992, %v3608
        %v4994 = vpop.permute.xlu0 %4993
        %4995 = vset.pattern.permute.xlu0 0
        %4996 = vperm.xlu0 %4995, %v3657
        %v4997 = vpop.permute.xlu0 %4996
        %4998 = vset.pattern.permute.xlu0 0
        %4999 = vperm.xlu0 %4998, %v3706
        %v5000 = vpop.permute.xlu0 %4999
        %5001 = vset.pattern.permute.xlu0 0
        %5002 = vperm.xlu0 %5001, %v3755
        %v5003 = vpop.permute.xlu0 %5002
        %5004 = vset.pattern.permute.xlu0 0
        %5005 = vperm.xlu0 %5004, %v3804
        %v5006 = vpop.permute.xlu0 %5005
        %5007 = vset.pattern.permute.xlu0 0
        %5008 = vperm.xlu0 %5007, %v3853
        %v5009 = vpop.permute.xlu0 %5008
        %5010 = vset.pattern.permute.xlu0 0
        %5011 = vperm.xlu0 %5010, %v3902
        %v5012 = vpop.permute.xlu0 %5011
        %5013 = vset.pattern.permute.xlu0 0
        %5014 = vperm.xlu0 %5013, %v3951
        %v5015 = vpop.permute.xlu0 %5014
        %5016 = vset.pattern.permute.xlu0 0
        %5017 = vperm.xlu0 %5016, %v4000
        %v5018 = vpop.permute.xlu0 %5017
        %5019 = vset.pattern.permute.xlu0 0
        %5020 = vperm.xlu0 %5019, %v4049
        %v5021 = vpop.permute.xlu0 %5020
        %5022 = vset.pattern.permute.xlu0 0
        %5023 = vperm.xlu0 %5022, %v4098
        %v5024 = vpop.permute.xlu0 %5023
        %5025 = vset.pattern.permute.xlu0 0
        %5026 = vperm.xlu0 %5025, %v4147
        %v5027 = vpop.permute.xlu0 %5026
        %5028 = vset.pattern.permute.xlu0 0
        %5029 = vperm.xlu0 %5028, %v4196
        %v5030 = vpop.permute.xlu0 %5029
        %5031 = vset.pattern.permute.xlu0 0
        %5032 = vperm.xlu0 %5031, %v4245
        %v5033 = vpop.permute.xlu0 %5032
        %5034 = vset.pattern.permute.xlu0 0
        %5035 = vperm.xlu0 %5034, %v4294
        %v5036 = vpop.permute.xlu0 %5035
        %5037 = vset.pattern.permute.xlu0 0
        %5038 = vperm.xlu0 %5037, %v4343
        %v5039 = vpop.permute.xlu0 %5038
        %5040 = vset.pattern.permute.xlu0 0
        %5041 = vperm.xlu0 %5040, %v4392
        %v5042 = vpop.permute.xlu0 %5041
        %5043 = vset.pattern.permute.xlu0 0
        %5044 = vperm.xlu0 %5043, %v4441
        %v5045 = vpop.permute.xlu0 %5044
        %5046 = vset.pattern.permute.xlu0 0
        %5047 = vperm.xlu0 %5046, %v4490
        %v5048 = vpop.permute.xlu0 %5047
        %5049 = vset.pattern.permute.xlu0 0
        %5050 = vperm.xlu0 %5049, %v4539
        %v5051 = vpop.permute.xlu0 %5050
        %5052 = vset.pattern.permute.xlu0 0
        %5053 = vperm.xlu0 %5052, %v4588
        %v5054 = vpop.permute.xlu0 %5053
        %5055 = vset.pattern.permute.xlu0 0
        %5056 = vperm.xlu0 %5055, %v4637
        %v5057 = vpop.permute.xlu0 %5056
        %5058 = vset.pattern.permute.xlu0 0
        %5059 = vperm.xlu0 %5058, %v4686
        %v5060 = vpop.permute.xlu0 %5059
        %5061 = vset.pattern.permute.xlu0 0
        %5062 = vperm.xlu0 %5061, %v4735
        %v5063 = vpop.permute.xlu0 %5062
        %5064 = vset.pattern.permute.xlu0 0
        %5065 = vperm.xlu0 %5064, %v4784
        %v5066 = vpop.permute.xlu0 %5065
        %5067 = vset.pattern.permute.xlu0 0
        %5068 = vperm.xlu0 %5067, %v4833
        %v5069 = vpop.permute.xlu0 %5068
        %5070 = vset.pattern.permute.xlu0 0
        %5071 = vperm.xlu0 %5070, %v4882
        %v5072 = vpop.permute.xlu0 %5071
        %5073 = vset.pattern.permute.xlu0 0
        %5074 = vperm.xlu0 %5073, %v4931
        %v5075 = vpop.permute.xlu0 %5074
        %v5076 = vlaneseq
        %v5077 = vand.u32 %v5076, 127
        %v5078 = vlaneseq
        %v5079 = vshrl.u32 %v5078, 7
        %v5080 = vsub.s32 %v5077, %v5079
        %v5081 = vrot.slane %v4934, %v5080
        %v5082 = vadd.s32 %v5077, 4294967288
        %v5083 = vlaneseq
        %v5084 = vshrl.u32 %v5083, 7
        %v5085 = vsub.s32 %v5082, %v5084
        %v5086 = vrot.slane %v4937, %v5085
        %vm5087 = vcmask 130112
        %v5088 = vsel %vm5087, %v5086, %v5081
        %v5089 = vadd.s32 %v5077, 4294967280
        %v5090 = vlaneseq
        %v5091 = vshrl.u32 %v5090, 7
        %v5092 = vsub.s32 %v5089, %v5091
        %v5093 = vrot.slane %v4940, %v5092
        %vm5094 = vcmask 195712
        %v5095 = vsel %vm5094, %v5093, %v5088
        %v5096 = vadd.s32 %v5077, 4294967272
        %v5097 = vlaneseq
        %v5098 = vshrl.u32 %v5097, 7
        %v5099 = vsub.s32 %v5096, %v5098
        %v5100 = vrot.slane %v4943, %v5099
        %vm5101 = vcmask 261312
        %v5102 = vsel %vm5101, %v5100, %v5095
        %v5103 = vadd.s32 %v5077, 4294967264
        %v5104 = vlaneseq
        %v5105 = vshrl.u32 %v5104, 7
        %v5106 = vsub.s32 %v5103, %v5105
        %v5107 = vrot.slane %v4946, %v5106
        %vm5108 = vcmask 326912
        %v5109 = vsel %vm5108, %v5107, %v5102
        %v5110 = vadd.s32 %v5077, 4294967256
        %v5111 = vlaneseq
        %v5112 = vshrl.u32 %v5111, 7
        %v5113 = vsub.s32 %v5110, %v5112
        %v5114 = vrot.slane %v4949, %v5113
        %vm5115 = vcmask 392512
        %v5116 = vsel %vm5115, %v5114, %v5109
        %v5117 = vadd.s32 %v5077, 4294967248
        %v5118 = vlaneseq
        %v5119 = vshrl.u32 %v5118, 7
        %v5120 = vsub.s32 %v5117, %v5119
        %v5121 = vrot.slane %v4952, %v5120
        %vm5122 = vcmask 458112
        %v5123 = vsel %vm5122, %v5121, %v5116
        %v5124 = vadd.s32 %v5077, 4294967240
        %v5125 = vlaneseq
        %v5126 = vshrl.u32 %v5125, 7
        %v5127 = vsub.s32 %v5124, %v5126
        %v5128 = vrot.slane %v4955, %v5127
        %vm5129 = vcmask 523712
        %v5130 = vsel %vm5129, %v5128, %v5123
        %v5131 = vadd.s32 %v5077, 4294967232
        %v5132 = vlaneseq
        %v5133 = vshrl.u32 %v5132, 7
        %v5134 = vsub.s32 %v5131, %v5133
        %v5135 = vrot.slane %v4958, %v5134
        %vm5136 = vcmask 589312
        %v5137 = vsel %vm5136, %v5135, %v5130
        %v5138 = vadd.s32 %v5077, 4294967224
        %v5139 = vlaneseq
        %v5140 = vshrl.u32 %v5139, 7
        %v5141 = vsub.s32 %v5138, %v5140
        %v5142 = vrot.slane %v4961, %v5141
        %vm5143 = vcmask 654912
        %v5144 = vsel %vm5143, %v5142, %v5137
        %v5145 = vadd.s32 %v5077, 4294967216
        %v5146 = vlaneseq
        %v5147 = vshrl.u32 %v5146, 7
        %v5148 = vsub.s32 %v5145, %v5147
        %v5149 = vrot.slane %v4964, %v5148
        %vm5150 = vcmask 720512
        %v5151 = vsel %vm5150, %v5149, %v5144
        %v5152 = vadd.s32 %v5077, 4294967208
        %v5153 = vlaneseq
        %v5154 = vshrl.u32 %v5153, 7
        %v5155 = vsub.s32 %v5152, %v5154
        %v5156 = vrot.slane %v4967, %v5155
        %vm5157 = vcmask 786112
        %v5158 = vsel %vm5157, %v5156, %v5151
        %v5159 = vadd.s32 %v5077, 4294967200
        %v5160 = vlaneseq
        %v5161 = vshrl.u32 %v5160, 7
        %v5162 = vsub.s32 %v5159, %v5161
        %v5163 = vrot.slane %v4970, %v5162
        %vm5164 = vcmask 851712
        %v5165 = vsel %vm5164, %v5163, %v5158
        %v5166 = vadd.s32 %v5077, 4294967192
        %v5167 = vlaneseq
        %v5168 = vshrl.u32 %v5167, 7
        %v5169 = vsub.s32 %v5166, %v5168
        %v5170 = vrot.slane %v4973, %v5169
        %vm5171 = vcmask 917312
        %v5172 = vsel %vm5171, %v5170, %v5165
        %v5173 = vadd.s32 %v5077, 4294967184
        %v5174 = vlaneseq
        %v5175 = vshrl.u32 %v5174, 7
        %v5176 = vsub.s32 %v5173, %v5175
        %v5177 = vrot.slane %v4976, %v5176
        %vm5178 = vcmask 982912
        %v5179 = vsel %vm5178, %v5177, %v5172
        %v5180 = vadd.s32 %v5077, 4294967176
        %v5181 = vlaneseq
        %v5182 = vshrl.u32 %v5181, 7
        %v5183 = vsub.s32 %v5180, %v5182
        %v5184 = vrot.slane %v4979, %v5183
        %vm5185 = vcmask 1048512
        %v5186 = vsel %vm5185, %v5184, %v5179
        %v5187 = vlaneseq
        %v5188 = vshrl.u32 %v5187, 7
        %v5189 = vsub.s32 %v5077, %v5188
        %v5190 = vrot.slane %v4982, %v5189
        %v5191 = vlaneseq
        %v5192 = vshrl.u32 %v5191, 7
        %v5193 = vsub.s32 %v5082, %v5192
        %v5194 = vrot.slane %v4985, %v5193
        %v5195 = vsel %vm5087, %v5194, %v5190
        %v5196 = vlaneseq
        %v5197 = vshrl.u32 %v5196, 7
        %v5198 = vsub.s32 %v5089, %v5197
        %v5199 = vrot.slane %v4988, %v5198
        %v5200 = vsel %vm5094, %v5199, %v5195
        %v5201 = vlaneseq
        %v5202 = vshrl.u32 %v5201, 7
        %v5203 = vsub.s32 %v5096, %v5202
        %v5204 = vrot.slane %v4991, %v5203
        %v5205 = vsel %vm5101, %v5204, %v5200
        %v5206 = vlaneseq
        %v5207 = vshrl.u32 %v5206, 7
        %v5208 = vsub.s32 %v5103, %v5207
        %v5209 = vrot.slane %v4994, %v5208
        %v5210 = vsel %vm5108, %v5209, %v5205
        %v5211 = vlaneseq
        %v5212 = vshrl.u32 %v5211, 7
        %v5213 = vsub.s32 %v5110, %v5212
        %v5214 = vrot.slane %v4997, %v5213
        %v5215 = vsel %vm5115, %v5214, %v5210
        %v5216 = vlaneseq
        %v5217 = vshrl.u32 %v5216, 7
        %v5218 = vsub.s32 %v5117, %v5217
        %v5219 = vrot.slane %v5000, %v5218
        %v5220 = vsel %vm5122, %v5219, %v5215
        %v5221 = vlaneseq
        %v5222 = vshrl.u32 %v5221, 7
        %v5223 = vsub.s32 %v5124, %v5222
        %v5224 = vrot.slane %v5003, %v5223
        %v5225 = vsel %vm5129, %v5224, %v5220
        %v5226 = vlaneseq
        %v5227 = vshrl.u32 %v5226, 7
        %v5228 = vsub.s32 %v5131, %v5227
        %v5229 = vrot.slane %v5006, %v5228
        %v5230 = vsel %vm5136, %v5229, %v5225
        %v5231 = vlaneseq
        %v5232 = vshrl.u32 %v5231, 7
        %v5233 = vsub.s32 %v5138, %v5232
        %v5234 = vrot.slane %v5009, %v5233
        %v5235 = vsel %vm5143, %v5234, %v5230
        %v5236 = vlaneseq
        %v5237 = vshrl.u32 %v5236, 7
        %v5238 = vsub.s32 %v5145, %v5237
        %v5239 = vrot.slane %v5012, %v5238
        %v5240 = vsel %vm5150, %v5239, %v5235
        %v5241 = vlaneseq
        %v5242 = vshrl.u32 %v5241, 7
        %v5243 = vsub.s32 %v5152, %v5242
        %v5244 = vrot.slane %v5015, %v5243
        %v5245 = vsel %vm5157, %v5244, %v5240
        %v5246 = vlaneseq
        %v5247 = vshrl.u32 %v5246, 7
        %v5248 = vsub.s32 %v5159, %v5247
        %v5249 = vrot.slane %v5018, %v5248
        %v5250 = vsel %vm5164, %v5249, %v5245
        %v5251 = vlaneseq
        %v5252 = vshrl.u32 %v5251, 7
        %v5253 = vsub.s32 %v5166, %v5252
        %v5254 = vrot.slane %v5021, %v5253
        %v5255 = vsel %vm5171, %v5254, %v5250
        %v5256 = vlaneseq
        %v5257 = vshrl.u32 %v5256, 7
        %v5258 = vsub.s32 %v5173, %v5257
        %v5259 = vrot.slane %v5024, %v5258
        %v5260 = vsel %vm5178, %v5259, %v5255
        %v5261 = vlaneseq
        %v5262 = vshrl.u32 %v5261, 7
        %v5263 = vsub.s32 %v5180, %v5262
        %v5264 = vrot.slane %v5027, %v5263
        %v5265 = vsel %vm5185, %v5264, %v5260
        %v5266 = vlaneseq
        %v5267 = vshrl.u32 %v5266, 7
        %v5268 = vsub.s32 %v5077, %v5267
        %v5269 = vrot.slane %v5030, %v5268
        %v5270 = vlaneseq
        %v5271 = vshrl.u32 %v5270, 7
        %v5272 = vsub.s32 %v5082, %v5271
        %v5273 = vrot.slane %v5033, %v5272
        %v5274 = vsel %vm5087, %v5273, %v5269
        %v5275 = vlaneseq
        %v5276 = vshrl.u32 %v5275, 7
        %v5277 = vsub.s32 %v5089, %v5276
        %v5278 = vrot.slane %v5036, %v5277
        %v5279 = vsel %vm5094, %v5278, %v5274
        %v5280 = vlaneseq
        %v5281 = vshrl.u32 %v5280, 7
        %v5282 = vsub.s32 %v5096, %v5281
        %v5283 = vrot.slane %v5039, %v5282
        %v5284 = vsel %vm5101, %v5283, %v5279
        %v5285 = vlaneseq
        %v5286 = vshrl.u32 %v5285, 7
        %v5287 = vsub.s32 %v5103, %v5286
        %v5288 = vrot.slane %v5042, %v5287
        %v5289 = vsel %vm5108, %v5288, %v5284
        %v5290 = vlaneseq
        %v5291 = vshrl.u32 %v5290, 7
        %v5292 = vsub.s32 %v5110, %v5291
        %v5293 = vrot.slane %v5045, %v5292
        %v5294 = vsel %vm5115, %v5293, %v5289
        %v5295 = vlaneseq
        %v5296 = vshrl.u32 %v5295, 7
        %v5297 = vsub.s32 %v5117, %v5296
        %v5298 = vrot.slane %v5048, %v5297
        %v5299 = vsel %vm5122, %v5298, %v5294
        %v5300 = vlaneseq
        %v5301 = vshrl.u32 %v5300, 7
        %v5302 = vsub.s32 %v5124, %v5301
        %v5303 = vrot.slane %v5051, %v5302
        %v5304 = vsel %vm5129, %v5303, %v5299
        %v5305 = vlaneseq
        %v5306 = vshrl.u32 %v5305, 7
        %v5307 = vsub.s32 %v5131, %v5306
        %v5308 = vrot.slane %v5054, %v5307
        %v5309 = vsel %vm5136, %v5308, %v5304
        %v5310 = vlaneseq
        %v5311 = vshrl.u32 %v5310, 7
        %v5312 = vsub.s32 %v5138, %v5311
        %v5313 = vrot.slane %v5057, %v5312
        %v5314 = vsel %vm5143, %v5313, %v5309
        %v5315 = vlaneseq
        %v5316 = vshrl.u32 %v5315, 7
        %v5317 = vsub.s32 %v5145, %v5316
        %v5318 = vrot.slane %v5060, %v5317
        %v5319 = vsel %vm5150, %v5318, %v5314
        %v5320 = vlaneseq
        %v5321 = vshrl.u32 %v5320, 7
        %v5322 = vsub.s32 %v5152, %v5321
        %v5323 = vrot.slane %v5063, %v5322
        %v5324 = vsel %vm5157, %v5323, %v5319
        %v5325 = vlaneseq
        %v5326 = vshrl.u32 %v5325, 7
        %v5327 = vsub.s32 %v5159, %v5326
        %v5328 = vrot.slane %v5066, %v5327
        %v5329 = vsel %vm5164, %v5328, %v5324
        %v5330 = vlaneseq
        %v5331 = vshrl.u32 %v5330, 7
        %v5332 = vsub.s32 %v5166, %v5331
        %v5333 = vrot.slane %v5069, %v5332
        %v5334 = vsel %vm5171, %v5333, %v5329
        %v5335 = vlaneseq
        %v5336 = vshrl.u32 %v5335, 7
        %v5337 = vsub.s32 %v5173, %v5336
        %v5338 = vrot.slane %v5072, %v5337
        %v5339 = vsel %vm5178, %v5338, %v5334
        %v5340 = vlaneseq
        %v5341 = vshrl.u32 %v5340, 7
        %v5342 = vsub.s32 %v5180, %v5341
        %v5343 = vrot.slane %v5075, %v5342
        %v5344 = vsel %vm5185, %v5343, %v5339
        %v5345 = vcombine.low %v5186, %v5265
        %v5347 = vunpack.c.l.s4 1966171168
        %v5348 = vunpack.c.0.s8 %v5347
        %v5349 = vlaneseq
        %v5350 = vshrl.u32 %v5349, 7
        %v5351 = vsub.s32 %v5348, %v5350
        %v5352 = vrot.slane %v5345, %v5351
        %v5354 = vunpack.c.l.s4 1966171168
        %v5355 = vunpack.c.0.s8 %v5354
        %v5356 = vlaneseq
        %v5357 = vshrl.u32 %v5356, 7
        %v5358 = vsub.s32 %v5355, %v5357
        %v5359 = vrot.slane %v5344, %v5358
        %v5360 = vcombine.low %v5352, %v5359
        %v5362 = vunpack.c.l.s4 1966171168
        %v5363 = vunpack.c.0.s8 %v5362
        %v5364 = vlaneseq
        %v5365 = vshrl.u32 %v5364, 7
        %v5366 = vsub.s32 %v5363, %v5365
        %v5367 = vrot.slane %v5360, %v5366
        %v5369 = vadd.f32 %v851, %v5367
        %v5370 = vlaneseq
        %vm5371 = vcmp.ge.s32.totalorder %v5370, 0
        %vm5372 = vcmp.lt.s32.totalorder %v5370, 384
        %vm5373 = vmand %vm5371, %vm5372
        %5374 = vst.msk [vmem:[#allocation2] sm:$0x7] %vm5373, %v5369
        %s5375 = scalar_lea.vmem [#allocation2], 3
        %v5376 = vld [vmem:[%s5375] sm:$0x7]
        %v5377 = vld [vmem:[%s803] sm:$0xff]
        %v5378 = vld [vmem:[%s803 + $0x8] sm:$0xff]
        %v5379 = vld [vmem:[%s803 + $0x10] sm:$0xff]
        %v5380 = vld [vmem:[%s803 + $0x18] sm:$0xff]
        %v5381 = vld [vmem:[%s803 + $0x20] sm:$0xff]
        %v5382 = vld [vmem:[%s803 + $0x28] sm:$0xff]
        %v5383 = vld [vmem:[%s803 + $0x30] sm:$0xff]
        %v5384 = vld [vmem:[%s803 + $0x38] sm:$0xff]
        %v5385 = vld [vmem:[%s803 + $0x40] sm:$0xff]
        %v5386 = vld [vmem:[%s803 + $0x48] sm:$0xff]
        %v5387 = vld [vmem:[%s803 + $0x50] sm:$0xff]
        %v5388 = vld [vmem:[%s803 + $0x58] sm:$0xff]
        %v5389 = vld [vmem:[%s803 + $0x60] sm:$0xff]
        %v5390 = vld [vmem:[%s803 + $0x68] sm:$0xff]
        %v5391 = vld [vmem:[%s803 + $0x70] sm:$0xff]
        %v5392 = vld [vmem:[%s803 + $0x78] sm:$0xff]
        %v5393 = vld [vmem:[%s803 + $0x80] sm:$0xff]
        %v5394 = vld [vmem:[%s803 + $0x88] sm:$0xff]
        %v5395 = vld [vmem:[%s803 + $0x90] sm:$0xff]
        %v5396 = vld [vmem:[%s803 + $0x98] sm:$0xff]
        %v5397 = vld [vmem:[%s803 + $0xa0] sm:$0xff]
        %v5398 = vld [vmem:[%s803 + $0xa8] sm:$0xff]
        %v5399 = vld [vmem:[%s803 + $0xb0] sm:$0xff]
        %v5400 = vld [vmem:[%s803 + $0xb8] sm:$0xff]
        %v5401 = vld [vmem:[%s803 + $0xc0] sm:$0xff]
        %v5402 = vld [vmem:[%s803 + $0xc8] sm:$0xff]
        %v5403 = vld [vmem:[%s803 + $0xd0] sm:$0xff]
        %v5404 = vld [vmem:[%s803 + $0xd8] sm:$0xff]
        %v5405 = vld [vmem:[%s803 + $0xe0] sm:$0xff]
        %v5406 = vld [vmem:[%s803 + $0xe8] sm:$0xff]
        %v5407 = vld [vmem:[%s803 + $0xf0] sm:$0xff]
        %v5408 = vld [vmem:[%s803 + $0xf8] sm:$0xff]
        %v5409 = vld [vmem:[%s803 + $0x100] sm:$0xff]
        %v5410 = vld [vmem:[%s803 + $0x108] sm:$0xff]
        %v5411 = vld [vmem:[%s803 + $0x110] sm:$0xff]
        %v5412 = vld [vmem:[%s803 + $0x118] sm:$0xff]
        %v5413 = vld [vmem:[%s803 + $0x120] sm:$0xff]
        %v5414 = vld [vmem:[%s803 + $0x128] sm:$0xff]
        %v5415 = vld [vmem:[%s803 + $0x130] sm:$0xff]
        %v5416 = vld [vmem:[%s803 + $0x138] sm:$0xff]
        %v5417 = vld [vmem:[%s803 + $0x140] sm:$0xff]
        %v5418 = vld [vmem:[%s803 + $0x148] sm:$0xff]
        %v5419 = vld [vmem:[%s803 + $0x150] sm:$0xff]
        %v5420 = vld [vmem:[%s803 + $0x158] sm:$0xff]
        %v5421 = vld [vmem:[%s803 + $0x160] sm:$0xff]
        %v5422 = vld [vmem:[%s803 + $0x168] sm:$0xff]
        %v5423 = vld [vmem:[%s803 + $0x170] sm:$0xff]
        %v5424 = vld [vmem:[%s803 + $0x178] sm:$0xff]
        %5425 = vadd.xlane.f32.xlu0 %v5377
        %v5426 = vpop.xlane.xlu0 %5425
        %5427 = vadd.xlane.f32.xlu0 %v5378
        %v5428 = vpop.xlane.xlu0 %5427
        %5429 = vadd.xlane.f32.xlu0 %v5379
        %v5430 = vpop.xlane.xlu0 %5429
        %5431 = vadd.xlane.f32.xlu0 %v5380
        %v5432 = vpop.xlane.xlu0 %5431
        %5433 = vadd.xlane.f32.xlu0 %v5381
        %v5434 = vpop.xlane.xlu0 %5433
        %5435 = vadd.xlane.f32.xlu0 %v5382
        %v5436 = vpop.xlane.xlu0 %5435
        %5437 = vadd.xlane.f32.xlu0 %v5383
        %v5438 = vpop.xlane.xlu0 %5437
        %5439 = vadd.xlane.f32.xlu0 %v5384
        %v5440 = vpop.xlane.xlu0 %5439
        %5441 = vadd.xlane.f32.xlu0 %v5385
        %v5442 = vpop.xlane.xlu0 %5441
        %5443 = vadd.xlane.f32.xlu0 %v5386
        %v5444 = vpop.xlane.xlu0 %5443
        %5445 = vadd.xlane.f32.xlu0 %v5387
        %v5446 = vpop.xlane.xlu0 %5445
        %5447 = vadd.xlane.f32.xlu0 %v5388
        %v5448 = vpop.xlane.xlu0 %5447
        %5449 = vadd.xlane.f32.xlu0 %v5389
        %v5450 = vpop.xlane.xlu0 %5449
        %5451 = vadd.xlane.f32.xlu0 %v5390
        %v5452 = vpop.xlane.xlu0 %5451
        %5453 = vadd.xlane.f32.xlu0 %v5391
        %v5454 = vpop.xlane.xlu0 %5453
        %5455 = vadd.xlane.f32.xlu0 %v5392
        %v5456 = vpop.xlane.xlu0 %5455
        %5457 = vadd.xlane.f32.xlu0 %v5393
        %v5458 = vpop.xlane.xlu0 %5457
        %5459 = vadd.xlane.f32.xlu0 %v5394
        %v5460 = vpop.xlane.xlu0 %5459
        %5461 = vadd.xlane.f32.xlu0 %v5395
        %v5462 = vpop.xlane.xlu0 %5461
        %5463 = vadd.xlane.f32.xlu0 %v5396
        %v5464 = vpop.xlane.xlu0 %5463
        %5465 = vadd.xlane.f32.xlu0 %v5397
        %v5466 = vpop.xlane.xlu0 %5465
        %5467 = vadd.xlane.f32.xlu0 %v5398
        %v5468 = vpop.xlane.xlu0 %5467
        %5469 = vadd.xlane.f32.xlu0 %v5399
        %v5470 = vpop.xlane.xlu0 %5469
        %5471 = vadd.xlane.f32.xlu0 %v5400
        %v5472 = vpop.xlane.xlu0 %5471
        %5473 = vadd.xlane.f32.xlu0 %v5401
        %v5474 = vpop.xlane.xlu0 %5473
        %5475 = vadd.xlane.f32.xlu0 %v5402
        %v5476 = vpop.xlane.xlu0 %5475
        %5477 = vadd.xlane.f32.xlu0 %v5403
        %v5478 = vpop.xlane.xlu0 %5477
        %5479 = vadd.xlane.f32.xlu0 %v5404
        %v5480 = vpop.xlane.xlu0 %5479
        %5481 = vadd.xlane.f32.xlu0 %v5405
        %v5482 = vpop.xlane.xlu0 %5481
        %5483 = vadd.xlane.f32.xlu0 %v5406
        %v5484 = vpop.xlane.xlu0 %5483
        %5485 = vadd.xlane.f32.xlu0 %v5407
        %v5486 = vpop.xlane.xlu0 %5485
        %5487 = vadd.xlane.f32.xlu0 %v5408
        %v5488 = vpop.xlane.xlu0 %5487
        %5489 = vadd.xlane.f32.xlu0 %v5409
        %v5490 = vpop.xlane.xlu0 %5489
        %5491 = vadd.xlane.f32.xlu0 %v5410
        %v5492 = vpop.xlane.xlu0 %5491
        %5493 = vadd.xlane.f32.xlu0 %v5411
        %v5494 = vpop.xlane.xlu0 %5493
        %5495 = vadd.xlane.f32.xlu0 %v5412
        %v5496 = vpop.xlane.xlu0 %5495
        %5497 = vadd.xlane.f32.xlu0 %v5413
        %v5498 = vpop.xlane.xlu0 %5497
        %5499 = vadd.xlane.f32.xlu0 %v5414
        %v5500 = vpop.xlane.xlu0 %5499
        %5501 = vadd.xlane.f32.xlu0 %v5415
        %v5502 = vpop.xlane.xlu0 %5501
        %5503 = vadd.xlane.f32.xlu0 %v5416
        %v5504 = vpop.xlane.xlu0 %5503
        %5505 = vadd.xlane.f32.xlu0 %v5417
        %v5506 = vpop.xlane.xlu0 %5505
        %5507 = vadd.xlane.f32.xlu0 %v5418
        %v5508 = vpop.xlane.xlu0 %5507
        %5509 = vadd.xlane.f32.xlu0 %v5419
        %v5510 = vpop.xlane.xlu0 %5509
        %5511 = vadd.xlane.f32.xlu0 %v5420
        %v5512 = vpop.xlane.xlu0 %5511
        %5513 = vadd.xlane.f32.xlu0 %v5421
        %v5514 = vpop.xlane.xlu0 %5513
        %5515 = vadd.xlane.f32.xlu0 %v5422
        %v5516 = vpop.xlane.xlu0 %5515
        %5517 = vadd.xlane.f32.xlu0 %v5423
        %v5518 = vpop.xlane.xlu0 %5517
        %5519 = vadd.xlane.f32.xlu0 %v5424
        %v5520 = vpop.xlane.xlu0 %5519
        %v5569 = vlaneseq
        %v5570 = vshrl.u32 %v5569, 7
        %v5571 = vsub.s32 0, %v5570
        %v5572 = vrot.slane %v5426, %v5571
        %v5573 = vlaneseq
        %v5574 = vshrl.u32 %v5573, 7
        %v5575 = vsub.s32 1, %v5574
        %v5576 = vrot.slane %v5426, %v5575
        %v5577 = vlaneseq
        %v5578 = vshrl.u32 %v5577, 7
        %v5579 = vsub.s32 2, %v5578
        %v5580 = vrot.slane %v5426, %v5579
        %v5581 = vlaneseq
        %v5582 = vshrl.u32 %v5581, 7
        %v5583 = vsub.s32 3, %v5582
        %v5584 = vrot.slane %v5426, %v5583
        %v5585 = vlaneseq
        %v5586 = vshrl.u32 %v5585, 7
        %v5587 = vsub.s32 4, %v5586
        %v5588 = vrot.slane %v5426, %v5587
        %v5589 = vlaneseq
        %v5590 = vshrl.u32 %v5589, 7
        %v5591 = vsub.s32 5, %v5590
        %v5592 = vrot.slane %v5426, %v5591
        %v5593 = vlaneseq
        %v5594 = vshrl.u32 %v5593, 7
        %v5595 = vsub.s32 6, %v5594
        %v5596 = vrot.slane %v5426, %v5595
        %v5597 = vlaneseq
        %v5598 = vshrl.u32 %v5597, 7
        %v5599 = vsub.s32 7, %v5598
        %v5600 = vrot.slane %v5426, %v5599
        %v5601 = vlaneseq
        %v5602 = vshrl.u32 %v5601, 7
        %v5603 = vsub.s32 0, %v5602
        %v5604 = vrot.slane %v5428, %v5603
        %v5605 = vlaneseq
        %v5606 = vshrl.u32 %v5605, 7
        %v5607 = vsub.s32 1, %v5606
        %v5608 = vrot.slane %v5428, %v5607
        %v5609 = vlaneseq
        %v5610 = vshrl.u32 %v5609, 7
        %v5611 = vsub.s32 2, %v5610
        %v5612 = vrot.slane %v5428, %v5611
        %v5613 = vlaneseq
        %v5614 = vshrl.u32 %v5613, 7
        %v5615 = vsub.s32 3, %v5614
        %v5616 = vrot.slane %v5428, %v5615
        %v5617 = vlaneseq
        %v5618 = vshrl.u32 %v5617, 7
        %v5619 = vsub.s32 4, %v5618
        %v5620 = vrot.slane %v5428, %v5619
        %v5621 = vlaneseq
        %v5622 = vshrl.u32 %v5621, 7
        %v5623 = vsub.s32 5, %v5622
        %v5624 = vrot.slane %v5428, %v5623
        %v5625 = vlaneseq
        %v5626 = vshrl.u32 %v5625, 7
        %v5627 = vsub.s32 6, %v5626
        %v5628 = vrot.slane %v5428, %v5627
        %v5629 = vlaneseq
        %v5630 = vshrl.u32 %v5629, 7
        %v5631 = vsub.s32 7, %v5630
        %v5632 = vrot.slane %v5428, %v5631
        %v5633 = vlaneseq
        %v5634 = vshrl.u32 %v5633, 7
        %v5635 = vsub.s32 0, %v5634
        %v5636 = vrot.slane %v5430, %v5635
        %v5637 = vlaneseq
        %v5638 = vshrl.u32 %v5637, 7
        %v5639 = vsub.s32 1, %v5638
        %v5640 = vrot.slane %v5430, %v5639
        %v5641 = vlaneseq
        %v5642 = vshrl.u32 %v5641, 7
        %v5643 = vsub.s32 2, %v5642
        %v5644 = vrot.slane %v5430, %v5643
        %v5645 = vlaneseq
        %v5646 = vshrl.u32 %v5645, 7
        %v5647 = vsub.s32 3, %v5646
        %v5648 = vrot.slane %v5430, %v5647
        %v5649 = vlaneseq
        %v5650 = vshrl.u32 %v5649, 7
        %v5651 = vsub.s32 4, %v5650
        %v5652 = vrot.slane %v5430, %v5651
        %v5653 = vlaneseq
        %v5654 = vshrl.u32 %v5653, 7
        %v5655 = vsub.s32 5, %v5654
        %v5656 = vrot.slane %v5430, %v5655
        %v5657 = vlaneseq
        %v5658 = vshrl.u32 %v5657, 7
        %v5659 = vsub.s32 6, %v5658
        %v5660 = vrot.slane %v5430, %v5659
        %v5661 = vlaneseq
        %v5662 = vshrl.u32 %v5661, 7
        %v5663 = vsub.s32 7, %v5662
        %v5664 = vrot.slane %v5430, %v5663
        %v5665 = vlaneseq
        %v5666 = vshrl.u32 %v5665, 7
        %v5667 = vsub.s32 0, %v5666
        %v5668 = vrot.slane %v5432, %v5667
        %v5669 = vlaneseq
        %v5670 = vshrl.u32 %v5669, 7
        %v5671 = vsub.s32 1, %v5670
        %v5672 = vrot.slane %v5432, %v5671
        %v5673 = vlaneseq
        %v5674 = vshrl.u32 %v5673, 7
        %v5675 = vsub.s32 2, %v5674
        %v5676 = vrot.slane %v5432, %v5675
        %v5677 = vlaneseq
        %v5678 = vshrl.u32 %v5677, 7
        %v5679 = vsub.s32 3, %v5678
        %v5680 = vrot.slane %v5432, %v5679
        %v5681 = vlaneseq
        %v5682 = vshrl.u32 %v5681, 7
        %v5683 = vsub.s32 4, %v5682
        %v5684 = vrot.slane %v5432, %v5683
        %v5685 = vlaneseq
        %v5686 = vshrl.u32 %v5685, 7
        %v5687 = vsub.s32 5, %v5686
        %v5688 = vrot.slane %v5432, %v5687
        %v5689 = vlaneseq
        %v5690 = vshrl.u32 %v5689, 7
        %v5691 = vsub.s32 6, %v5690
        %v5692 = vrot.slane %v5432, %v5691
        %v5693 = vlaneseq
        %v5694 = vshrl.u32 %v5693, 7
        %v5695 = vsub.s32 7, %v5694
        %v5696 = vrot.slane %v5432, %v5695
        %v5697 = vlaneseq
        %v5698 = vshrl.u32 %v5697, 7
        %v5699 = vsub.s32 0, %v5698
        %v5700 = vrot.slane %v5434, %v5699
        %v5701 = vlaneseq
        %v5702 = vshrl.u32 %v5701, 7
        %v5703 = vsub.s32 1, %v5702
        %v5704 = vrot.slane %v5434, %v5703
        %v5705 = vlaneseq
        %v5706 = vshrl.u32 %v5705, 7
        %v5707 = vsub.s32 2, %v5706
        %v5708 = vrot.slane %v5434, %v5707
        %v5709 = vlaneseq
        %v5710 = vshrl.u32 %v5709, 7
        %v5711 = vsub.s32 3, %v5710
        %v5712 = vrot.slane %v5434, %v5711
        %v5713 = vlaneseq
        %v5714 = vshrl.u32 %v5713, 7
        %v5715 = vsub.s32 4, %v5714
        %v5716 = vrot.slane %v5434, %v5715
        %v5717 = vlaneseq
        %v5718 = vshrl.u32 %v5717, 7
        %v5719 = vsub.s32 5, %v5718
        %v5720 = vrot.slane %v5434, %v5719
        %v5721 = vlaneseq
        %v5722 = vshrl.u32 %v5721, 7
        %v5723 = vsub.s32 6, %v5722
        %v5724 = vrot.slane %v5434, %v5723
        %v5725 = vlaneseq
        %v5726 = vshrl.u32 %v5725, 7
        %v5727 = vsub.s32 7, %v5726
        %v5728 = vrot.slane %v5434, %v5727
        %v5729 = vlaneseq
        %v5730 = vshrl.u32 %v5729, 7
        %v5731 = vsub.s32 0, %v5730
        %v5732 = vrot.slane %v5436, %v5731
        %v5733 = vlaneseq
        %v5734 = vshrl.u32 %v5733, 7
        %v5735 = vsub.s32 1, %v5734
        %v5736 = vrot.slane %v5436, %v5735
        %v5737 = vlaneseq
        %v5738 = vshrl.u32 %v5737, 7
        %v5739 = vsub.s32 2, %v5738
        %v5740 = vrot.slane %v5436, %v5739
        %v5741 = vlaneseq
        %v5742 = vshrl.u32 %v5741, 7
        %v5743 = vsub.s32 3, %v5742
        %v5744 = vrot.slane %v5436, %v5743
        %v5745 = vlaneseq
        %v5746 = vshrl.u32 %v5745, 7
        %v5747 = vsub.s32 4, %v5746
        %v5748 = vrot.slane %v5436, %v5747
        %v5749 = vlaneseq
        %v5750 = vshrl.u32 %v5749, 7
        %v5751 = vsub.s32 5, %v5750
        %v5752 = vrot.slane %v5436, %v5751
        %v5753 = vlaneseq
        %v5754 = vshrl.u32 %v5753, 7
        %v5755 = vsub.s32 6, %v5754
        %v5756 = vrot.slane %v5436, %v5755
        %v5757 = vlaneseq
        %v5758 = vshrl.u32 %v5757, 7
        %v5759 = vsub.s32 7, %v5758
        %v5760 = vrot.slane %v5436, %v5759
        %v5761 = vlaneseq
        %v5762 = vshrl.u32 %v5761, 7
        %v5763 = vsub.s32 0, %v5762
        %v5764 = vrot.slane %v5438, %v5763
        %v5765 = vlaneseq
        %v5766 = vshrl.u32 %v5765, 7
        %v5767 = vsub.s32 1, %v5766
        %v5768 = vrot.slane %v5438, %v5767
        %v5769 = vlaneseq
        %v5770 = vshrl.u32 %v5769, 7
        %v5771 = vsub.s32 2, %v5770
        %v5772 = vrot.slane %v5438, %v5771
        %v5773 = vlaneseq
        %v5774 = vshrl.u32 %v5773, 7
        %v5775 = vsub.s32 3, %v5774
        %v5776 = vrot.slane %v5438, %v5775
        %v5777 = vlaneseq
        %v5778 = vshrl.u32 %v5777, 7
        %v5779 = vsub.s32 4, %v5778
        %v5780 = vrot.slane %v5438, %v5779
        %v5781 = vlaneseq
        %v5782 = vshrl.u32 %v5781, 7
        %v5783 = vsub.s32 5, %v5782
        %v5784 = vrot.slane %v5438, %v5783
        %v5785 = vlaneseq
        %v5786 = vshrl.u32 %v5785, 7
        %v5787 = vsub.s32 6, %v5786
        %v5788 = vrot.slane %v5438, %v5787
        %v5789 = vlaneseq
        %v5790 = vshrl.u32 %v5789, 7
        %v5791 = vsub.s32 7, %v5790
        %v5792 = vrot.slane %v5438, %v5791
        %v5793 = vlaneseq
        %v5794 = vshrl.u32 %v5793, 7
        %v5795 = vsub.s32 0, %v5794
        %v5796 = vrot.slane %v5440, %v5795
        %v5797 = vlaneseq
        %v5798 = vshrl.u32 %v5797, 7
        %v5799 = vsub.s32 1, %v5798
        %v5800 = vrot.slane %v5440, %v5799
        %v5801 = vlaneseq
        %v5802 = vshrl.u32 %v5801, 7
        %v5803 = vsub.s32 2, %v5802
        %v5804 = vrot.slane %v5440, %v5803
        %v5805 = vlaneseq
        %v5806 = vshrl.u32 %v5805, 7
        %v5807 = vsub.s32 3, %v5806
        %v5808 = vrot.slane %v5440, %v5807
        %v5809 = vlaneseq
        %v5810 = vshrl.u32 %v5809, 7
        %v5811 = vsub.s32 4, %v5810
        %v5812 = vrot.slane %v5440, %v5811
        %v5813 = vlaneseq
        %v5814 = vshrl.u32 %v5813, 7
        %v5815 = vsub.s32 5, %v5814
        %v5816 = vrot.slane %v5440, %v5815
        %v5817 = vlaneseq
        %v5818 = vshrl.u32 %v5817, 7
        %v5819 = vsub.s32 6, %v5818
        %v5820 = vrot.slane %v5440, %v5819
        %v5821 = vlaneseq
        %v5822 = vshrl.u32 %v5821, 7
        %v5823 = vsub.s32 7, %v5822
        %v5824 = vrot.slane %v5440, %v5823
        %v5825 = vlaneseq
        %v5826 = vshrl.u32 %v5825, 7
        %v5827 = vsub.s32 0, %v5826
        %v5828 = vrot.slane %v5442, %v5827
        %v5829 = vlaneseq
        %v5830 = vshrl.u32 %v5829, 7
        %v5831 = vsub.s32 1, %v5830
        %v5832 = vrot.slane %v5442, %v5831
        %v5833 = vlaneseq
        %v5834 = vshrl.u32 %v5833, 7
        %v5835 = vsub.s32 2, %v5834
        %v5836 = vrot.slane %v5442, %v5835
        %v5837 = vlaneseq
        %v5838 = vshrl.u32 %v5837, 7
        %v5839 = vsub.s32 3, %v5838
        %v5840 = vrot.slane %v5442, %v5839
        %v5841 = vlaneseq
        %v5842 = vshrl.u32 %v5841, 7
        %v5843 = vsub.s32 4, %v5842
        %v5844 = vrot.slane %v5442, %v5843
        %v5845 = vlaneseq
        %v5846 = vshrl.u32 %v5845, 7
        %v5847 = vsub.s32 5, %v5846
        %v5848 = vrot.slane %v5442, %v5847
        %v5849 = vlaneseq
        %v5850 = vshrl.u32 %v5849, 7
        %v5851 = vsub.s32 6, %v5850
        %v5852 = vrot.slane %v5442, %v5851
        %v5853 = vlaneseq
        %v5854 = vshrl.u32 %v5853, 7
        %v5855 = vsub.s32 7, %v5854
        %v5856 = vrot.slane %v5442, %v5855
        %v5857 = vlaneseq
        %v5858 = vshrl.u32 %v5857, 7
        %v5859 = vsub.s32 0, %v5858
        %v5860 = vrot.slane %v5444, %v5859
        %v5861 = vlaneseq
        %v5862 = vshrl.u32 %v5861, 7
        %v5863 = vsub.s32 1, %v5862
        %v5864 = vrot.slane %v5444, %v5863
        %v5865 = vlaneseq
        %v5866 = vshrl.u32 %v5865, 7
        %v5867 = vsub.s32 2, %v5866
        %v5868 = vrot.slane %v5444, %v5867
        %v5869 = vlaneseq
        %v5870 = vshrl.u32 %v5869, 7
        %v5871 = vsub.s32 3, %v5870
        %v5872 = vrot.slane %v5444, %v5871
        %v5873 = vlaneseq
        %v5874 = vshrl.u32 %v5873, 7
        %v5875 = vsub.s32 4, %v5874
        %v5876 = vrot.slane %v5444, %v5875
        %v5877 = vlaneseq
        %v5878 = vshrl.u32 %v5877, 7
        %v5879 = vsub.s32 5, %v5878
        %v5880 = vrot.slane %v5444, %v5879
        %v5881 = vlaneseq
        %v5882 = vshrl.u32 %v5881, 7
        %v5883 = vsub.s32 6, %v5882
        %v5884 = vrot.slane %v5444, %v5883
        %v5885 = vlaneseq
        %v5886 = vshrl.u32 %v5885, 7
        %v5887 = vsub.s32 7, %v5886
        %v5888 = vrot.slane %v5444, %v5887
        %v5889 = vlaneseq
        %v5890 = vshrl.u32 %v5889, 7
        %v5891 = vsub.s32 0, %v5890
        %v5892 = vrot.slane %v5446, %v5891
        %v5893 = vlaneseq
        %v5894 = vshrl.u32 %v5893, 7
        %v5895 = vsub.s32 1, %v5894
        %v5896 = vrot.slane %v5446, %v5895
        %v5897 = vlaneseq
        %v5898 = vshrl.u32 %v5897, 7
        %v5899 = vsub.s32 2, %v5898
        %v5900 = vrot.slane %v5446, %v5899
        %v5901 = vlaneseq
        %v5902 = vshrl.u32 %v5901, 7
        %v5903 = vsub.s32 3, %v5902
        %v5904 = vrot.slane %v5446, %v5903
        %v5905 = vlaneseq
        %v5906 = vshrl.u32 %v5905, 7
        %v5907 = vsub.s32 4, %v5906
        %v5908 = vrot.slane %v5446, %v5907
        %v5909 = vlaneseq
        %v5910 = vshrl.u32 %v5909, 7
        %v5911 = vsub.s32 5, %v5910
        %v5912 = vrot.slane %v5446, %v5911
        %v5913 = vlaneseq
        %v5914 = vshrl.u32 %v5913, 7
        %v5915 = vsub.s32 6, %v5914
        %v5916 = vrot.slane %v5446, %v5915
        %v5917 = vlaneseq
        %v5918 = vshrl.u32 %v5917, 7
        %v5919 = vsub.s32 7, %v5918
        %v5920 = vrot.slane %v5446, %v5919
        %v5921 = vlaneseq
        %v5922 = vshrl.u32 %v5921, 7
        %v5923 = vsub.s32 0, %v5922
        %v5924 = vrot.slane %v5448, %v5923
        %v5925 = vlaneseq
        %v5926 = vshrl.u32 %v5925, 7
        %v5927 = vsub.s32 1, %v5926
        %v5928 = vrot.slane %v5448, %v5927
        %v5929 = vlaneseq
        %v5930 = vshrl.u32 %v5929, 7
        %v5931 = vsub.s32 2, %v5930
        %v5932 = vrot.slane %v5448, %v5931
        %v5933 = vlaneseq
        %v5934 = vshrl.u32 %v5933, 7
        %v5935 = vsub.s32 3, %v5934
        %v5936 = vrot.slane %v5448, %v5935
        %v5937 = vlaneseq
        %v5938 = vshrl.u32 %v5937, 7
        %v5939 = vsub.s32 4, %v5938
        %v5940 = vrot.slane %v5448, %v5939
        %v5941 = vlaneseq
        %v5942 = vshrl.u32 %v5941, 7
        %v5943 = vsub.s32 5, %v5942
        %v5944 = vrot.slane %v5448, %v5943
        %v5945 = vlaneseq
        %v5946 = vshrl.u32 %v5945, 7
        %v5947 = vsub.s32 6, %v5946
        %v5948 = vrot.slane %v5448, %v5947
        %v5949 = vlaneseq
        %v5950 = vshrl.u32 %v5949, 7
        %v5951 = vsub.s32 7, %v5950
        %v5952 = vrot.slane %v5448, %v5951
        %v5953 = vlaneseq
        %v5954 = vshrl.u32 %v5953, 7
        %v5955 = vsub.s32 0, %v5954
        %v5956 = vrot.slane %v5450, %v5955
        %v5957 = vlaneseq
        %v5958 = vshrl.u32 %v5957, 7
        %v5959 = vsub.s32 1, %v5958
        %v5960 = vrot.slane %v5450, %v5959
        %v5961 = vlaneseq
        %v5962 = vshrl.u32 %v5961, 7
        %v5963 = vsub.s32 2, %v5962
        %v5964 = vrot.slane %v5450, %v5963
        %v5965 = vlaneseq
        %v5966 = vshrl.u32 %v5965, 7
        %v5967 = vsub.s32 3, %v5966
        %v5968 = vrot.slane %v5450, %v5967
        %v5969 = vlaneseq
        %v5970 = vshrl.u32 %v5969, 7
        %v5971 = vsub.s32 4, %v5970
        %v5972 = vrot.slane %v5450, %v5971
        %v5973 = vlaneseq
        %v5974 = vshrl.u32 %v5973, 7
        %v5975 = vsub.s32 5, %v5974
        %v5976 = vrot.slane %v5450, %v5975
        %v5977 = vlaneseq
        %v5978 = vshrl.u32 %v5977, 7
        %v5979 = vsub.s32 6, %v5978
        %v5980 = vrot.slane %v5450, %v5979
        %v5981 = vlaneseq
        %v5982 = vshrl.u32 %v5981, 7
        %v5983 = vsub.s32 7, %v5982
        %v5984 = vrot.slane %v5450, %v5983
        %v5985 = vlaneseq
        %v5986 = vshrl.u32 %v5985, 7
        %v5987 = vsub.s32 0, %v5986
        %v5988 = vrot.slane %v5452, %v5987
        %v5989 = vlaneseq
        %v5990 = vshrl.u32 %v5989, 7
        %v5991 = vsub.s32 1, %v5990
        %v5992 = vrot.slane %v5452, %v5991
        %v5993 = vlaneseq
        %v5994 = vshrl.u32 %v5993, 7
        %v5995 = vsub.s32 2, %v5994
        %v5996 = vrot.slane %v5452, %v5995
        %v5997 = vlaneseq
        %v5998 = vshrl.u32 %v5997, 7
        %v5999 = vsub.s32 3, %v5998
        %v6000 = vrot.slane %v5452, %v5999
        %v6001 = vlaneseq
        %v6002 = vshrl.u32 %v6001, 7
        %v6003 = vsub.s32 4, %v6002
        %v6004 = vrot.slane %v5452, %v6003
        %v6005 = vlaneseq
        %v6006 = vshrl.u32 %v6005, 7
        %v6007 = vsub.s32 5, %v6006
        %v6008 = vrot.slane %v5452, %v6007
        %v6009 = vlaneseq
        %v6010 = vshrl.u32 %v6009, 7
        %v6011 = vsub.s32 6, %v6010
        %v6012 = vrot.slane %v5452, %v6011
        %v6013 = vlaneseq
        %v6014 = vshrl.u32 %v6013, 7
        %v6015 = vsub.s32 7, %v6014
        %v6016 = vrot.slane %v5452, %v6015
        %v6017 = vlaneseq
        %v6018 = vshrl.u32 %v6017, 7
        %v6019 = vsub.s32 0, %v6018
        %v6020 = vrot.slane %v5454, %v6019
        %v6021 = vlaneseq
        %v6022 = vshrl.u32 %v6021, 7
        %v6023 = vsub.s32 1, %v6022
        %v6024 = vrot.slane %v5454, %v6023
        %v6025 = vlaneseq
        %v6026 = vshrl.u32 %v6025, 7
        %v6027 = vsub.s32 2, %v6026
        %v6028 = vrot.slane %v5454, %v6027
        %v6029 = vlaneseq
        %v6030 = vshrl.u32 %v6029, 7
        %v6031 = vsub.s32 3, %v6030
        %v6032 = vrot.slane %v5454, %v6031
        %v6033 = vlaneseq
        %v6034 = vshrl.u32 %v6033, 7
        %v6035 = vsub.s32 4, %v6034
        %v6036 = vrot.slane %v5454, %v6035
        %v6037 = vlaneseq
        %v6038 = vshrl.u32 %v6037, 7
        %v6039 = vsub.s32 5, %v6038
        %v6040 = vrot.slane %v5454, %v6039
        %v6041 = vlaneseq
        %v6042 = vshrl.u32 %v6041, 7
        %v6043 = vsub.s32 6, %v6042
        %v6044 = vrot.slane %v5454, %v6043
        %v6045 = vlaneseq
        %v6046 = vshrl.u32 %v6045, 7
        %v6047 = vsub.s32 7, %v6046
        %v6048 = vrot.slane %v5454, %v6047
        %v6049 = vlaneseq
        %v6050 = vshrl.u32 %v6049, 7
        %v6051 = vsub.s32 0, %v6050
        %v6052 = vrot.slane %v5456, %v6051
        %v6053 = vlaneseq
        %v6054 = vshrl.u32 %v6053, 7
        %v6055 = vsub.s32 1, %v6054
        %v6056 = vrot.slane %v5456, %v6055
        %v6057 = vlaneseq
        %v6058 = vshrl.u32 %v6057, 7
        %v6059 = vsub.s32 2, %v6058
        %v6060 = vrot.slane %v5456, %v6059
        %v6061 = vlaneseq
        %v6062 = vshrl.u32 %v6061, 7
        %v6063 = vsub.s32 3, %v6062
        %v6064 = vrot.slane %v5456, %v6063
        %v6065 = vlaneseq
        %v6066 = vshrl.u32 %v6065, 7
        %v6067 = vsub.s32 4, %v6066
        %v6068 = vrot.slane %v5456, %v6067
        %v6069 = vlaneseq
        %v6070 = vshrl.u32 %v6069, 7
        %v6071 = vsub.s32 5, %v6070
        %v6072 = vrot.slane %v5456, %v6071
        %v6073 = vlaneseq
        %v6074 = vshrl.u32 %v6073, 7
        %v6075 = vsub.s32 6, %v6074
        %v6076 = vrot.slane %v5456, %v6075
        %v6077 = vlaneseq
        %v6078 = vshrl.u32 %v6077, 7
        %v6079 = vsub.s32 7, %v6078
        %v6080 = vrot.slane %v5456, %v6079
        %v6081 = vlaneseq
        %v6082 = vshrl.u32 %v6081, 7
        %v6083 = vsub.s32 0, %v6082
        %v6084 = vrot.slane %v5458, %v6083
        %v6085 = vlaneseq
        %v6086 = vshrl.u32 %v6085, 7
        %v6087 = vsub.s32 1, %v6086
        %v6088 = vrot.slane %v5458, %v6087
        %v6089 = vlaneseq
        %v6090 = vshrl.u32 %v6089, 7
        %v6091 = vsub.s32 2, %v6090
        %v6092 = vrot.slane %v5458, %v6091
        %v6093 = vlaneseq
        %v6094 = vshrl.u32 %v6093, 7
        %v6095 = vsub.s32 3, %v6094
        %v6096 = vrot.slane %v5458, %v6095
        %v6097 = vlaneseq
        %v6098 = vshrl.u32 %v6097, 7
        %v6099 = vsub.s32 4, %v6098
        %v6100 = vrot.slane %v5458, %v6099
        %v6101 = vlaneseq
        %v6102 = vshrl.u32 %v6101, 7
        %v6103 = vsub.s32 5, %v6102
        %v6104 = vrot.slane %v5458, %v6103
        %v6105 = vlaneseq
        %v6106 = vshrl.u32 %v6105, 7
        %v6107 = vsub.s32 6, %v6106
        %v6108 = vrot.slane %v5458, %v6107
        %v6109 = vlaneseq
        %v6110 = vshrl.u32 %v6109, 7
        %v6111 = vsub.s32 7, %v6110
        %v6112 = vrot.slane %v5458, %v6111
        %v6113 = vlaneseq
        %v6114 = vshrl.u32 %v6113, 7
        %v6115 = vsub.s32 0, %v6114
        %v6116 = vrot.slane %v5460, %v6115
        %v6117 = vlaneseq
        %v6118 = vshrl.u32 %v6117, 7
        %v6119 = vsub.s32 1, %v6118
        %v6120 = vrot.slane %v5460, %v6119
        %v6121 = vlaneseq
        %v6122 = vshrl.u32 %v6121, 7
        %v6123 = vsub.s32 2, %v6122
        %v6124 = vrot.slane %v5460, %v6123
        %v6125 = vlaneseq
        %v6126 = vshrl.u32 %v6125, 7
        %v6127 = vsub.s32 3, %v6126
        %v6128 = vrot.slane %v5460, %v6127
        %v6129 = vlaneseq
        %v6130 = vshrl.u32 %v6129, 7
        %v6131 = vsub.s32 4, %v6130
        %v6132 = vrot.slane %v5460, %v6131
        %v6133 = vlaneseq
        %v6134 = vshrl.u32 %v6133, 7
        %v6135 = vsub.s32 5, %v6134
        %v6136 = vrot.slane %v5460, %v6135
        %v6137 = vlaneseq
        %v6138 = vshrl.u32 %v6137, 7
        %v6139 = vsub.s32 6, %v6138
        %v6140 = vrot.slane %v5460, %v6139
        %v6141 = vlaneseq
        %v6142 = vshrl.u32 %v6141, 7
        %v6143 = vsub.s32 7, %v6142
        %v6144 = vrot.slane %v5460, %v6143
        %v6145 = vlaneseq
        %v6146 = vshrl.u32 %v6145, 7
        %v6147 = vsub.s32 0, %v6146
        %v6148 = vrot.slane %v5462, %v6147
        %v6149 = vlaneseq
        %v6150 = vshrl.u32 %v6149, 7
        %v6151 = vsub.s32 1, %v6150
        %v6152 = vrot.slane %v5462, %v6151
        %v6153 = vlaneseq
        %v6154 = vshrl.u32 %v6153, 7
        %v6155 = vsub.s32 2, %v6154
        %v6156 = vrot.slane %v5462, %v6155
        %v6157 = vlaneseq
        %v6158 = vshrl.u32 %v6157, 7
        %v6159 = vsub.s32 3, %v6158
        %v6160 = vrot.slane %v5462, %v6159
        %v6161 = vlaneseq
        %v6162 = vshrl.u32 %v6161, 7
        %v6163 = vsub.s32 4, %v6162
        %v6164 = vrot.slane %v5462, %v6163
        %v6165 = vlaneseq
        %v6166 = vshrl.u32 %v6165, 7
        %v6167 = vsub.s32 5, %v6166
        %v6168 = vrot.slane %v5462, %v6167
        %v6169 = vlaneseq
        %v6170 = vshrl.u32 %v6169, 7
        %v6171 = vsub.s32 6, %v6170
        %v6172 = vrot.slane %v5462, %v6171
        %v6173 = vlaneseq
        %v6174 = vshrl.u32 %v6173, 7
        %v6175 = vsub.s32 7, %v6174
        %v6176 = vrot.slane %v5462, %v6175
        %v6177 = vlaneseq
        %v6178 = vshrl.u32 %v6177, 7
        %v6179 = vsub.s32 0, %v6178
        %v6180 = vrot.slane %v5464, %v6179
        %v6181 = vlaneseq
        %v6182 = vshrl.u32 %v6181, 7
        %v6183 = vsub.s32 1, %v6182
        %v6184 = vrot.slane %v5464, %v6183
        %v6185 = vlaneseq
        %v6186 = vshrl.u32 %v6185, 7
        %v6187 = vsub.s32 2, %v6186
        %v6188 = vrot.slane %v5464, %v6187
        %v6189 = vlaneseq
        %v6190 = vshrl.u32 %v6189, 7
        %v6191 = vsub.s32 3, %v6190
        %v6192 = vrot.slane %v5464, %v6191
        %v6193 = vlaneseq
        %v6194 = vshrl.u32 %v6193, 7
        %v6195 = vsub.s32 4, %v6194
        %v6196 = vrot.slane %v5464, %v6195
        %v6197 = vlaneseq
        %v6198 = vshrl.u32 %v6197, 7
        %v6199 = vsub.s32 5, %v6198
        %v6200 = vrot.slane %v5464, %v6199
        %v6201 = vlaneseq
        %v6202 = vshrl.u32 %v6201, 7
        %v6203 = vsub.s32 6, %v6202
        %v6204 = vrot.slane %v5464, %v6203
        %v6205 = vlaneseq
        %v6206 = vshrl.u32 %v6205, 7
        %v6207 = vsub.s32 7, %v6206
        %v6208 = vrot.slane %v5464, %v6207
        %v6209 = vlaneseq
        %v6210 = vshrl.u32 %v6209, 7
        %v6211 = vsub.s32 0, %v6210
        %v6212 = vrot.slane %v5466, %v6211
        %v6213 = vlaneseq
        %v6214 = vshrl.u32 %v6213, 7
        %v6215 = vsub.s32 1, %v6214
        %v6216 = vrot.slane %v5466, %v6215
        %v6217 = vlaneseq
        %v6218 = vshrl.u32 %v6217, 7
        %v6219 = vsub.s32 2, %v6218
        %v6220 = vrot.slane %v5466, %v6219
        %v6221 = vlaneseq
        %v6222 = vshrl.u32 %v6221, 7
        %v6223 = vsub.s32 3, %v6222
        %v6224 = vrot.slane %v5466, %v6223
        %v6225 = vlaneseq
        %v6226 = vshrl.u32 %v6225, 7
        %v6227 = vsub.s32 4, %v6226
        %v6228 = vrot.slane %v5466, %v6227
        %v6229 = vlaneseq
        %v6230 = vshrl.u32 %v6229, 7
        %v6231 = vsub.s32 5, %v6230
        %v6232 = vrot.slane %v5466, %v6231
        %v6233 = vlaneseq
        %v6234 = vshrl.u32 %v6233, 7
        %v6235 = vsub.s32 6, %v6234
        %v6236 = vrot.slane %v5466, %v6235
        %v6237 = vlaneseq
        %v6238 = vshrl.u32 %v6237, 7
        %v6239 = vsub.s32 7, %v6238
        %v6240 = vrot.slane %v5466, %v6239
        %v6241 = vlaneseq
        %v6242 = vshrl.u32 %v6241, 7
        %v6243 = vsub.s32 0, %v6242
        %v6244 = vrot.slane %v5468, %v6243
        %v6245 = vlaneseq
        %v6246 = vshrl.u32 %v6245, 7
        %v6247 = vsub.s32 1, %v6246
        %v6248 = vrot.slane %v5468, %v6247
        %v6249 = vlaneseq
        %v6250 = vshrl.u32 %v6249, 7
        %v6251 = vsub.s32 2, %v6250
        %v6252 = vrot.slane %v5468, %v6251
        %v6253 = vlaneseq
        %v6254 = vshrl.u32 %v6253, 7
        %v6255 = vsub.s32 3, %v6254
        %v6256 = vrot.slane %v5468, %v6255
        %v6257 = vlaneseq
        %v6258 = vshrl.u32 %v6257, 7
        %v6259 = vsub.s32 4, %v6258
        %v6260 = vrot.slane %v5468, %v6259
        %v6261 = vlaneseq
        %v6262 = vshrl.u32 %v6261, 7
        %v6263 = vsub.s32 5, %v6262
        %v6264 = vrot.slane %v5468, %v6263
        %v6265 = vlaneseq
        %v6266 = vshrl.u32 %v6265, 7
        %v6267 = vsub.s32 6, %v6266
        %v6268 = vrot.slane %v5468, %v6267
        %v6269 = vlaneseq
        %v6270 = vshrl.u32 %v6269, 7
        %v6271 = vsub.s32 7, %v6270
        %v6272 = vrot.slane %v5468, %v6271
        %v6273 = vlaneseq
        %v6274 = vshrl.u32 %v6273, 7
        %v6275 = vsub.s32 0, %v6274
        %v6276 = vrot.slane %v5470, %v6275
        %v6277 = vlaneseq
        %v6278 = vshrl.u32 %v6277, 7
        %v6279 = vsub.s32 1, %v6278
        %v6280 = vrot.slane %v5470, %v6279
        %v6281 = vlaneseq
        %v6282 = vshrl.u32 %v6281, 7
        %v6283 = vsub.s32 2, %v6282
        %v6284 = vrot.slane %v5470, %v6283
        %v6285 = vlaneseq
        %v6286 = vshrl.u32 %v6285, 7
        %v6287 = vsub.s32 3, %v6286
        %v6288 = vrot.slane %v5470, %v6287
        %v6289 = vlaneseq
        %v6290 = vshrl.u32 %v6289, 7
        %v6291 = vsub.s32 4, %v6290
        %v6292 = vrot.slane %v5470, %v6291
        %v6293 = vlaneseq
        %v6294 = vshrl.u32 %v6293, 7
        %v6295 = vsub.s32 5, %v6294
        %v6296 = vrot.slane %v5470, %v6295
        %v6297 = vlaneseq
        %v6298 = vshrl.u32 %v6297, 7
        %v6299 = vsub.s32 6, %v6298
        %v6300 = vrot.slane %v5470, %v6299
        %v6301 = vlaneseq
        %v6302 = vshrl.u32 %v6301, 7
        %v6303 = vsub.s32 7, %v6302
        %v6304 = vrot.slane %v5470, %v6303
        %v6305 = vlaneseq
        %v6306 = vshrl.u32 %v6305, 7
        %v6307 = vsub.s32 0, %v6306
        %v6308 = vrot.slane %v5472, %v6307
        %v6309 = vlaneseq
        %v6310 = vshrl.u32 %v6309, 7
        %v6311 = vsub.s32 1, %v6310
        %v6312 = vrot.slane %v5472, %v6311
        %v6313 = vlaneseq
        %v6314 = vshrl.u32 %v6313, 7
        %v6315 = vsub.s32 2, %v6314
        %v6316 = vrot.slane %v5472, %v6315
        %v6317 = vlaneseq
        %v6318 = vshrl.u32 %v6317, 7
        %v6319 = vsub.s32 3, %v6318
        %v6320 = vrot.slane %v5472, %v6319
        %v6321 = vlaneseq
        %v6322 = vshrl.u32 %v6321, 7
        %v6323 = vsub.s32 4, %v6322
        %v6324 = vrot.slane %v5472, %v6323
        %v6325 = vlaneseq
        %v6326 = vshrl.u32 %v6325, 7
        %v6327 = vsub.s32 5, %v6326
        %v6328 = vrot.slane %v5472, %v6327
        %v6329 = vlaneseq
        %v6330 = vshrl.u32 %v6329, 7
        %v6331 = vsub.s32 6, %v6330
        %v6332 = vrot.slane %v5472, %v6331
        %v6333 = vlaneseq
        %v6334 = vshrl.u32 %v6333, 7
        %v6335 = vsub.s32 7, %v6334
        %v6336 = vrot.slane %v5472, %v6335
        %v6337 = vlaneseq
        %v6338 = vshrl.u32 %v6337, 7
        %v6339 = vsub.s32 0, %v6338
        %v6340 = vrot.slane %v5474, %v6339
        %v6341 = vlaneseq
        %v6342 = vshrl.u32 %v6341, 7
        %v6343 = vsub.s32 1, %v6342
        %v6344 = vrot.slane %v5474, %v6343
        %v6345 = vlaneseq
        %v6346 = vshrl.u32 %v6345, 7
        %v6347 = vsub.s32 2, %v6346
        %v6348 = vrot.slane %v5474, %v6347
        %v6349 = vlaneseq
        %v6350 = vshrl.u32 %v6349, 7
        %v6351 = vsub.s32 3, %v6350
        %v6352 = vrot.slane %v5474, %v6351
        %v6353 = vlaneseq
        %v6354 = vshrl.u32 %v6353, 7
        %v6355 = vsub.s32 4, %v6354
        %v6356 = vrot.slane %v5474, %v6355
        %v6357 = vlaneseq
        %v6358 = vshrl.u32 %v6357, 7
        %v6359 = vsub.s32 5, %v6358
        %v6360 = vrot.slane %v5474, %v6359
        %v6361 = vlaneseq
        %v6362 = vshrl.u32 %v6361, 7
        %v6363 = vsub.s32 6, %v6362
        %v6364 = vrot.slane %v5474, %v6363
        %v6365 = vlaneseq
        %v6366 = vshrl.u32 %v6365, 7
        %v6367 = vsub.s32 7, %v6366
        %v6368 = vrot.slane %v5474, %v6367
        %v6369 = vlaneseq
        %v6370 = vshrl.u32 %v6369, 7
        %v6371 = vsub.s32 0, %v6370
        %v6372 = vrot.slane %v5476, %v6371
        %v6373 = vlaneseq
        %v6374 = vshrl.u32 %v6373, 7
        %v6375 = vsub.s32 1, %v6374
        %v6376 = vrot.slane %v5476, %v6375
        %v6377 = vlaneseq
        %v6378 = vshrl.u32 %v6377, 7
        %v6379 = vsub.s32 2, %v6378
        %v6380 = vrot.slane %v5476, %v6379
        %v6381 = vlaneseq
        %v6382 = vshrl.u32 %v6381, 7
        %v6383 = vsub.s32 3, %v6382
        %v6384 = vrot.slane %v5476, %v6383
        %v6385 = vlaneseq
        %v6386 = vshrl.u32 %v6385, 7
        %v6387 = vsub.s32 4, %v6386
        %v6388 = vrot.slane %v5476, %v6387
        %v6389 = vlaneseq
        %v6390 = vshrl.u32 %v6389, 7
        %v6391 = vsub.s32 5, %v6390
        %v6392 = vrot.slane %v5476, %v6391
        %v6393 = vlaneseq
        %v6394 = vshrl.u32 %v6393, 7
        %v6395 = vsub.s32 6, %v6394
        %v6396 = vrot.slane %v5476, %v6395
        %v6397 = vlaneseq
        %v6398 = vshrl.u32 %v6397, 7
        %v6399 = vsub.s32 7, %v6398
        %v6400 = vrot.slane %v5476, %v6399
        %v6401 = vlaneseq
        %v6402 = vshrl.u32 %v6401, 7
        %v6403 = vsub.s32 0, %v6402
        %v6404 = vrot.slane %v5478, %v6403
        %v6405 = vlaneseq
        %v6406 = vshrl.u32 %v6405, 7
        %v6407 = vsub.s32 1, %v6406
        %v6408 = vrot.slane %v5478, %v6407
        %v6409 = vlaneseq
        %v6410 = vshrl.u32 %v6409, 7
        %v6411 = vsub.s32 2, %v6410
        %v6412 = vrot.slane %v5478, %v6411
        %v6413 = vlaneseq
        %v6414 = vshrl.u32 %v6413, 7
        %v6415 = vsub.s32 3, %v6414
        %v6416 = vrot.slane %v5478, %v6415
        %v6417 = vlaneseq
        %v6418 = vshrl.u32 %v6417, 7
        %v6419 = vsub.s32 4, %v6418
        %v6420 = vrot.slane %v5478, %v6419
        %v6421 = vlaneseq
        %v6422 = vshrl.u32 %v6421, 7
        %v6423 = vsub.s32 5, %v6422
        %v6424 = vrot.slane %v5478, %v6423
        %v6425 = vlaneseq
        %v6426 = vshrl.u32 %v6425, 7
        %v6427 = vsub.s32 6, %v6426
        %v6428 = vrot.slane %v5478, %v6427
        %v6429 = vlaneseq
        %v6430 = vshrl.u32 %v6429, 7
        %v6431 = vsub.s32 7, %v6430
        %v6432 = vrot.slane %v5478, %v6431
        %v6433 = vlaneseq
        %v6434 = vshrl.u32 %v6433, 7
        %v6435 = vsub.s32 0, %v6434
        %v6436 = vrot.slane %v5480, %v6435
        %v6437 = vlaneseq
        %v6438 = vshrl.u32 %v6437, 7
        %v6439 = vsub.s32 1, %v6438
        %v6440 = vrot.slane %v5480, %v6439
        %v6441 = vlaneseq
        %v6442 = vshrl.u32 %v6441, 7
        %v6443 = vsub.s32 2, %v6442
        %v6444 = vrot.slane %v5480, %v6443
        %v6445 = vlaneseq
        %v6446 = vshrl.u32 %v6445, 7
        %v6447 = vsub.s32 3, %v6446
        %v6448 = vrot.slane %v5480, %v6447
        %v6449 = vlaneseq
        %v6450 = vshrl.u32 %v6449, 7
        %v6451 = vsub.s32 4, %v6450
        %v6452 = vrot.slane %v5480, %v6451
        %v6453 = vlaneseq
        %v6454 = vshrl.u32 %v6453, 7
        %v6455 = vsub.s32 5, %v6454
        %v6456 = vrot.slane %v5480, %v6455
        %v6457 = vlaneseq
        %v6458 = vshrl.u32 %v6457, 7
        %v6459 = vsub.s32 6, %v6458
        %v6460 = vrot.slane %v5480, %v6459
        %v6461 = vlaneseq
        %v6462 = vshrl.u32 %v6461, 7
        %v6463 = vsub.s32 7, %v6462
        %v6464 = vrot.slane %v5480, %v6463
        %v6465 = vlaneseq
        %v6466 = vshrl.u32 %v6465, 7
        %v6467 = vsub.s32 0, %v6466
        %v6468 = vrot.slane %v5482, %v6467
        %v6469 = vlaneseq
        %v6470 = vshrl.u32 %v6469, 7
        %v6471 = vsub.s32 1, %v6470
        %v6472 = vrot.slane %v5482, %v6471
        %v6473 = vlaneseq
        %v6474 = vshrl.u32 %v6473, 7
        %v6475 = vsub.s32 2, %v6474
        %v6476 = vrot.slane %v5482, %v6475
        %v6477 = vlaneseq
        %v6478 = vshrl.u32 %v6477, 7
        %v6479 = vsub.s32 3, %v6478
        %v6480 = vrot.slane %v5482, %v6479
        %v6481 = vlaneseq
        %v6482 = vshrl.u32 %v6481, 7
        %v6483 = vsub.s32 4, %v6482
        %v6484 = vrot.slane %v5482, %v6483
        %v6485 = vlaneseq
        %v6486 = vshrl.u32 %v6485, 7
        %v6487 = vsub.s32 5, %v6486
        %v6488 = vrot.slane %v5482, %v6487
        %v6489 = vlaneseq
        %v6490 = vshrl.u32 %v6489, 7
        %v6491 = vsub.s32 6, %v6490
        %v6492 = vrot.slane %v5482, %v6491
        %v6493 = vlaneseq
        %v6494 = vshrl.u32 %v6493, 7
        %v6495 = vsub.s32 7, %v6494
        %v6496 = vrot.slane %v5482, %v6495
        %v6497 = vlaneseq
        %v6498 = vshrl.u32 %v6497, 7
        %v6499 = vsub.s32 0, %v6498
        %v6500 = vrot.slane %v5484, %v6499
        %v6501 = vlaneseq
        %v6502 = vshrl.u32 %v6501, 7
        %v6503 = vsub.s32 1, %v6502
        %v6504 = vrot.slane %v5484, %v6503
        %v6505 = vlaneseq
        %v6506 = vshrl.u32 %v6505, 7
        %v6507 = vsub.s32 2, %v6506
        %v6508 = vrot.slane %v5484, %v6507
        %v6509 = vlaneseq
        %v6510 = vshrl.u32 %v6509, 7
        %v6511 = vsub.s32 3, %v6510
        %v6512 = vrot.slane %v5484, %v6511
        %v6513 = vlaneseq
        %v6514 = vshrl.u32 %v6513, 7
        %v6515 = vsub.s32 4, %v6514
        %v6516 = vrot.slane %v5484, %v6515
        %v6517 = vlaneseq
        %v6518 = vshrl.u32 %v6517, 7
        %v6519 = vsub.s32 5, %v6518
        %v6520 = vrot.slane %v5484, %v6519
        %v6521 = vlaneseq
        %v6522 = vshrl.u32 %v6521, 7
        %v6523 = vsub.s32 6, %v6522
        %v6524 = vrot.slane %v5484, %v6523
        %v6525 = vlaneseq
        %v6526 = vshrl.u32 %v6525, 7
        %v6527 = vsub.s32 7, %v6526
        %v6528 = vrot.slane %v5484, %v6527
        %v6529 = vlaneseq
        %v6530 = vshrl.u32 %v6529, 7
        %v6531 = vsub.s32 0, %v6530
        %v6532 = vrot.slane %v5486, %v6531
        %v6533 = vlaneseq
        %v6534 = vshrl.u32 %v6533, 7
        %v6535 = vsub.s32 1, %v6534
        %v6536 = vrot.slane %v5486, %v6535
        %v6537 = vlaneseq
        %v6538 = vshrl.u32 %v6537, 7
        %v6539 = vsub.s32 2, %v6538
        %v6540 = vrot.slane %v5486, %v6539
        %v6541 = vlaneseq
        %v6542 = vshrl.u32 %v6541, 7
        %v6543 = vsub.s32 3, %v6542
        %v6544 = vrot.slane %v5486, %v6543
        %v6545 = vlaneseq
        %v6546 = vshrl.u32 %v6545, 7
        %v6547 = vsub.s32 4, %v6546
        %v6548 = vrot.slane %v5486, %v6547
        %v6549 = vlaneseq
        %v6550 = vshrl.u32 %v6549, 7
        %v6551 = vsub.s32 5, %v6550
        %v6552 = vrot.slane %v5486, %v6551
        %v6553 = vlaneseq
        %v6554 = vshrl.u32 %v6553, 7
        %v6555 = vsub.s32 6, %v6554
        %v6556 = vrot.slane %v5486, %v6555
        %v6557 = vlaneseq
        %v6558 = vshrl.u32 %v6557, 7
        %v6559 = vsub.s32 7, %v6558
        %v6560 = vrot.slane %v5486, %v6559
        %v6561 = vlaneseq
        %v6562 = vshrl.u32 %v6561, 7
        %v6563 = vsub.s32 0, %v6562
        %v6564 = vrot.slane %v5488, %v6563
        %v6565 = vlaneseq
        %v6566 = vshrl.u32 %v6565, 7
        %v6567 = vsub.s32 1, %v6566
        %v6568 = vrot.slane %v5488, %v6567
        %v6569 = vlaneseq
        %v6570 = vshrl.u32 %v6569, 7
        %v6571 = vsub.s32 2, %v6570
        %v6572 = vrot.slane %v5488, %v6571
        %v6573 = vlaneseq
        %v6574 = vshrl.u32 %v6573, 7
        %v6575 = vsub.s32 3, %v6574
        %v6576 = vrot.slane %v5488, %v6575
        %v6577 = vlaneseq
        %v6578 = vshrl.u32 %v6577, 7
        %v6579 = vsub.s32 4, %v6578
        %v6580 = vrot.slane %v5488, %v6579
        %v6581 = vlaneseq
        %v6582 = vshrl.u32 %v6581, 7
        %v6583 = vsub.s32 5, %v6582
        %v6584 = vrot.slane %v5488, %v6583
        %v6585 = vlaneseq
        %v6586 = vshrl.u32 %v6585, 7
        %v6587 = vsub.s32 6, %v6586
        %v6588 = vrot.slane %v5488, %v6587
        %v6589 = vlaneseq
        %v6590 = vshrl.u32 %v6589, 7
        %v6591 = vsub.s32 7, %v6590
        %v6592 = vrot.slane %v5488, %v6591
        %v6593 = vlaneseq
        %v6594 = vshrl.u32 %v6593, 7
        %v6595 = vsub.s32 0, %v6594
        %v6596 = vrot.slane %v5490, %v6595
        %v6597 = vlaneseq
        %v6598 = vshrl.u32 %v6597, 7
        %v6599 = vsub.s32 1, %v6598
        %v6600 = vrot.slane %v5490, %v6599
        %v6601 = vlaneseq
        %v6602 = vshrl.u32 %v6601, 7
        %v6603 = vsub.s32 2, %v6602
        %v6604 = vrot.slane %v5490, %v6603
        %v6605 = vlaneseq
        %v6606 = vshrl.u32 %v6605, 7
        %v6607 = vsub.s32 3, %v6606
        %v6608 = vrot.slane %v5490, %v6607
        %v6609 = vlaneseq
        %v6610 = vshrl.u32 %v6609, 7
        %v6611 = vsub.s32 4, %v6610
        %v6612 = vrot.slane %v5490, %v6611
        %v6613 = vlaneseq
        %v6614 = vshrl.u32 %v6613, 7
        %v6615 = vsub.s32 5, %v6614
        %v6616 = vrot.slane %v5490, %v6615
        %v6617 = vlaneseq
        %v6618 = vshrl.u32 %v6617, 7
        %v6619 = vsub.s32 6, %v6618
        %v6620 = vrot.slane %v5490, %v6619
        %v6621 = vlaneseq
        %v6622 = vshrl.u32 %v6621, 7
        %v6623 = vsub.s32 7, %v6622
        %v6624 = vrot.slane %v5490, %v6623
        %v6625 = vlaneseq
        %v6626 = vshrl.u32 %v6625, 7
        %v6627 = vsub.s32 0, %v6626
        %v6628 = vrot.slane %v5492, %v6627
        %v6629 = vlaneseq
        %v6630 = vshrl.u32 %v6629, 7
        %v6631 = vsub.s32 1, %v6630
        %v6632 = vrot.slane %v5492, %v6631
        %v6633 = vlaneseq
        %v6634 = vshrl.u32 %v6633, 7
        %v6635 = vsub.s32 2, %v6634
        %v6636 = vrot.slane %v5492, %v6635
        %v6637 = vlaneseq
        %v6638 = vshrl.u32 %v6637, 7
        %v6639 = vsub.s32 3, %v6638
        %v6640 = vrot.slane %v5492, %v6639
        %v6641 = vlaneseq
        %v6642 = vshrl.u32 %v6641, 7
        %v6643 = vsub.s32 4, %v6642
        %v6644 = vrot.slane %v5492, %v6643
        %v6645 = vlaneseq
        %v6646 = vshrl.u32 %v6645, 7
        %v6647 = vsub.s32 5, %v6646
        %v6648 = vrot.slane %v5492, %v6647
        %v6649 = vlaneseq
        %v6650 = vshrl.u32 %v6649, 7
        %v6651 = vsub.s32 6, %v6650
        %v6652 = vrot.slane %v5492, %v6651
        %v6653 = vlaneseq
        %v6654 = vshrl.u32 %v6653, 7
        %v6655 = vsub.s32 7, %v6654
        %v6656 = vrot.slane %v5492, %v6655
        %v6657 = vlaneseq
        %v6658 = vshrl.u32 %v6657, 7
        %v6659 = vsub.s32 0, %v6658
        %v6660 = vrot.slane %v5494, %v6659
        %v6661 = vlaneseq
        %v6662 = vshrl.u32 %v6661, 7
        %v6663 = vsub.s32 1, %v6662
        %v6664 = vrot.slane %v5494, %v6663
        %v6665 = vlaneseq
        %v6666 = vshrl.u32 %v6665, 7
        %v6667 = vsub.s32 2, %v6666
        %v6668 = vrot.slane %v5494, %v6667
        %v6669 = vlaneseq
        %v6670 = vshrl.u32 %v6669, 7
        %v6671 = vsub.s32 3, %v6670
        %v6672 = vrot.slane %v5494, %v6671
        %v6673 = vlaneseq
        %v6674 = vshrl.u32 %v6673, 7
        %v6675 = vsub.s32 4, %v6674
        %v6676 = vrot.slane %v5494, %v6675
        %v6677 = vlaneseq
        %v6678 = vshrl.u32 %v6677, 7
        %v6679 = vsub.s32 5, %v6678
        %v6680 = vrot.slane %v5494, %v6679
        %v6681 = vlaneseq
        %v6682 = vshrl.u32 %v6681, 7
        %v6683 = vsub.s32 6, %v6682
        %v6684 = vrot.slane %v5494, %v6683
        %v6685 = vlaneseq
        %v6686 = vshrl.u32 %v6685, 7
        %v6687 = vsub.s32 7, %v6686
        %v6688 = vrot.slane %v5494, %v6687
        %v6689 = vlaneseq
        %v6690 = vshrl.u32 %v6689, 7
        %v6691 = vsub.s32 0, %v6690
        %v6692 = vrot.slane %v5496, %v6691
        %v6693 = vlaneseq
        %v6694 = vshrl.u32 %v6693, 7
        %v6695 = vsub.s32 1, %v6694
        %v6696 = vrot.slane %v5496, %v6695
        %v6697 = vlaneseq
        %v6698 = vshrl.u32 %v6697, 7
        %v6699 = vsub.s32 2, %v6698
        %v6700 = vrot.slane %v5496, %v6699
        %v6701 = vlaneseq
        %v6702 = vshrl.u32 %v6701, 7
        %v6703 = vsub.s32 3, %v6702
        %v6704 = vrot.slane %v5496, %v6703
        %v6705 = vlaneseq
        %v6706 = vshrl.u32 %v6705, 7
        %v6707 = vsub.s32 4, %v6706
        %v6708 = vrot.slane %v5496, %v6707
        %v6709 = vlaneseq
        %v6710 = vshrl.u32 %v6709, 7
        %v6711 = vsub.s32 5, %v6710
        %v6712 = vrot.slane %v5496, %v6711
        %v6713 = vlaneseq
        %v6714 = vshrl.u32 %v6713, 7
        %v6715 = vsub.s32 6, %v6714
        %v6716 = vrot.slane %v5496, %v6715
        %v6717 = vlaneseq
        %v6718 = vshrl.u32 %v6717, 7
        %v6719 = vsub.s32 7, %v6718
        %v6720 = vrot.slane %v5496, %v6719
        %v6721 = vlaneseq
        %v6722 = vshrl.u32 %v6721, 7
        %v6723 = vsub.s32 0, %v6722
        %v6724 = vrot.slane %v5498, %v6723
        %v6725 = vlaneseq
        %v6726 = vshrl.u32 %v6725, 7
        %v6727 = vsub.s32 1, %v6726
        %v6728 = vrot.slane %v5498, %v6727
        %v6729 = vlaneseq
        %v6730 = vshrl.u32 %v6729, 7
        %v6731 = vsub.s32 2, %v6730
        %v6732 = vrot.slane %v5498, %v6731
        %v6733 = vlaneseq
        %v6734 = vshrl.u32 %v6733, 7
        %v6735 = vsub.s32 3, %v6734
        %v6736 = vrot.slane %v5498, %v6735
        %v6737 = vlaneseq
        %v6738 = vshrl.u32 %v6737, 7
        %v6739 = vsub.s32 4, %v6738
        %v6740 = vrot.slane %v5498, %v6739
        %v6741 = vlaneseq
        %v6742 = vshrl.u32 %v6741, 7
        %v6743 = vsub.s32 5, %v6742
        %v6744 = vrot.slane %v5498, %v6743
        %v6745 = vlaneseq
        %v6746 = vshrl.u32 %v6745, 7
        %v6747 = vsub.s32 6, %v6746
        %v6748 = vrot.slane %v5498, %v6747
        %v6749 = vlaneseq
        %v6750 = vshrl.u32 %v6749, 7
        %v6751 = vsub.s32 7, %v6750
        %v6752 = vrot.slane %v5498, %v6751
        %v6753 = vlaneseq
        %v6754 = vshrl.u32 %v6753, 7
        %v6755 = vsub.s32 0, %v6754
        %v6756 = vrot.slane %v5500, %v6755
        %v6757 = vlaneseq
        %v6758 = vshrl.u32 %v6757, 7
        %v6759 = vsub.s32 1, %v6758
        %v6760 = vrot.slane %v5500, %v6759
        %v6761 = vlaneseq
        %v6762 = vshrl.u32 %v6761, 7
        %v6763 = vsub.s32 2, %v6762
        %v6764 = vrot.slane %v5500, %v6763
        %v6765 = vlaneseq
        %v6766 = vshrl.u32 %v6765, 7
        %v6767 = vsub.s32 3, %v6766
        %v6768 = vrot.slane %v5500, %v6767
        %v6769 = vlaneseq
        %v6770 = vshrl.u32 %v6769, 7
        %v6771 = vsub.s32 4, %v6770
        %v6772 = vrot.slane %v5500, %v6771
        %v6773 = vlaneseq
        %v6774 = vshrl.u32 %v6773, 7
        %v6775 = vsub.s32 5, %v6774
        %v6776 = vrot.slane %v5500, %v6775
        %v6777 = vlaneseq
        %v6778 = vshrl.u32 %v6777, 7
        %v6779 = vsub.s32 6, %v6778
        %v6780 = vrot.slane %v5500, %v6779
        %v6781 = vlaneseq
        %v6782 = vshrl.u32 %v6781, 7
        %v6783 = vsub.s32 7, %v6782
        %v6784 = vrot.slane %v5500, %v6783
        %v6785 = vlaneseq
        %v6786 = vshrl.u32 %v6785, 7
        %v6787 = vsub.s32 0, %v6786
        %v6788 = vrot.slane %v5502, %v6787
        %v6789 = vlaneseq
        %v6790 = vshrl.u32 %v6789, 7
        %v6791 = vsub.s32 1, %v6790
        %v6792 = vrot.slane %v5502, %v6791
        %v6793 = vlaneseq
        %v6794 = vshrl.u32 %v6793, 7
        %v6795 = vsub.s32 2, %v6794
        %v6796 = vrot.slane %v5502, %v6795
        %v6797 = vlaneseq
        %v6798 = vshrl.u32 %v6797, 7
        %v6799 = vsub.s32 3, %v6798
        %v6800 = vrot.slane %v5502, %v6799
        %v6801 = vlaneseq
        %v6802 = vshrl.u32 %v6801, 7
        %v6803 = vsub.s32 4, %v6802
        %v6804 = vrot.slane %v5502, %v6803
        %v6805 = vlaneseq
        %v6806 = vshrl.u32 %v6805, 7
        %v6807 = vsub.s32 5, %v6806
        %v6808 = vrot.slane %v5502, %v6807
        %v6809 = vlaneseq
        %v6810 = vshrl.u32 %v6809, 7
        %v6811 = vsub.s32 6, %v6810
        %v6812 = vrot.slane %v5502, %v6811
        %v6813 = vlaneseq
        %v6814 = vshrl.u32 %v6813, 7
        %v6815 = vsub.s32 7, %v6814
        %v6816 = vrot.slane %v5502, %v6815
        %v6817 = vlaneseq
        %v6818 = vshrl.u32 %v6817, 7
        %v6819 = vsub.s32 0, %v6818
        %v6820 = vrot.slane %v5504, %v6819
        %v6821 = vlaneseq
        %v6822 = vshrl.u32 %v6821, 7
        %v6823 = vsub.s32 1, %v6822
        %v6824 = vrot.slane %v5504, %v6823
        %v6825 = vlaneseq
        %v6826 = vshrl.u32 %v6825, 7
        %v6827 = vsub.s32 2, %v6826
        %v6828 = vrot.slane %v5504, %v6827
        %v6829 = vlaneseq
        %v6830 = vshrl.u32 %v6829, 7
        %v6831 = vsub.s32 3, %v6830
        %v6832 = vrot.slane %v5504, %v6831
        %v6833 = vlaneseq
        %v6834 = vshrl.u32 %v6833, 7
        %v6835 = vsub.s32 4, %v6834
        %v6836 = vrot.slane %v5504, %v6835
        %v6837 = vlaneseq
        %v6838 = vshrl.u32 %v6837, 7
        %v6839 = vsub.s32 5, %v6838
        %v6840 = vrot.slane %v5504, %v6839
        %v6841 = vlaneseq
        %v6842 = vshrl.u32 %v6841, 7
        %v6843 = vsub.s32 6, %v6842
        %v6844 = vrot.slane %v5504, %v6843
        %v6845 = vlaneseq
        %v6846 = vshrl.u32 %v6845, 7
        %v6847 = vsub.s32 7, %v6846
        %v6848 = vrot.slane %v5504, %v6847
        %v6849 = vlaneseq
        %v6850 = vshrl.u32 %v6849, 7
        %v6851 = vsub.s32 0, %v6850
        %v6852 = vrot.slane %v5506, %v6851
        %v6853 = vlaneseq
        %v6854 = vshrl.u32 %v6853, 7
        %v6855 = vsub.s32 1, %v6854
        %v6856 = vrot.slane %v5506, %v6855
        %v6857 = vlaneseq
        %v6858 = vshrl.u32 %v6857, 7
        %v6859 = vsub.s32 2, %v6858
        %v6860 = vrot.slane %v5506, %v6859
        %v6861 = vlaneseq
        %v6862 = vshrl.u32 %v6861, 7
        %v6863 = vsub.s32 3, %v6862
        %v6864 = vrot.slane %v5506, %v6863
        %v6865 = vlaneseq
        %v6866 = vshrl.u32 %v6865, 7
        %v6867 = vsub.s32 4, %v6866
        %v6868 = vrot.slane %v5506, %v6867
        %v6869 = vlaneseq
        %v6870 = vshrl.u32 %v6869, 7
        %v6871 = vsub.s32 5, %v6870
        %v6872 = vrot.slane %v5506, %v6871
        %v6873 = vlaneseq
        %v6874 = vshrl.u32 %v6873, 7
        %v6875 = vsub.s32 6, %v6874
        %v6876 = vrot.slane %v5506, %v6875
        %v6877 = vlaneseq
        %v6878 = vshrl.u32 %v6877, 7
        %v6879 = vsub.s32 7, %v6878
        %v6880 = vrot.slane %v5506, %v6879
        %v6881 = vlaneseq
        %v6882 = vshrl.u32 %v6881, 7
        %v6883 = vsub.s32 0, %v6882
        %v6884 = vrot.slane %v5508, %v6883
        %v6885 = vlaneseq
        %v6886 = vshrl.u32 %v6885, 7
        %v6887 = vsub.s32 1, %v6886
        %v6888 = vrot.slane %v5508, %v6887
        %v6889 = vlaneseq
        %v6890 = vshrl.u32 %v6889, 7
        %v6891 = vsub.s32 2, %v6890
        %v6892 = vrot.slane %v5508, %v6891
        %v6893 = vlaneseq
        %v6894 = vshrl.u32 %v6893, 7
        %v6895 = vsub.s32 3, %v6894
        %v6896 = vrot.slane %v5508, %v6895
        %v6897 = vlaneseq
        %v6898 = vshrl.u32 %v6897, 7
        %v6899 = vsub.s32 4, %v6898
        %v6900 = vrot.slane %v5508, %v6899
        %v6901 = vlaneseq
        %v6902 = vshrl.u32 %v6901, 7
        %v6903 = vsub.s32 5, %v6902
        %v6904 = vrot.slane %v5508, %v6903
        %v6905 = vlaneseq
        %v6906 = vshrl.u32 %v6905, 7
        %v6907 = vsub.s32 6, %v6906
        %v6908 = vrot.slane %v5508, %v6907
        %v6909 = vlaneseq
        %v6910 = vshrl.u32 %v6909, 7
        %v6911 = vsub.s32 7, %v6910
        %v6912 = vrot.slane %v5508, %v6911
        %v6913 = vlaneseq
        %v6914 = vshrl.u32 %v6913, 7
        %v6915 = vsub.s32 0, %v6914
        %v6916 = vrot.slane %v5510, %v6915
        %v6917 = vlaneseq
        %v6918 = vshrl.u32 %v6917, 7
        %v6919 = vsub.s32 1, %v6918
        %v6920 = vrot.slane %v5510, %v6919
        %v6921 = vlaneseq
        %v6922 = vshrl.u32 %v6921, 7
        %v6923 = vsub.s32 2, %v6922
        %v6924 = vrot.slane %v5510, %v6923
        %v6925 = vlaneseq
        %v6926 = vshrl.u32 %v6925, 7
        %v6927 = vsub.s32 3, %v6926
        %v6928 = vrot.slane %v5510, %v6927
        %v6929 = vlaneseq
        %v6930 = vshrl.u32 %v6929, 7
        %v6931 = vsub.s32 4, %v6930
        %v6932 = vrot.slane %v5510, %v6931
        %v6933 = vlaneseq
        %v6934 = vshrl.u32 %v6933, 7
        %v6935 = vsub.s32 5, %v6934
        %v6936 = vrot.slane %v5510, %v6935
        %v6937 = vlaneseq
        %v6938 = vshrl.u32 %v6937, 7
        %v6939 = vsub.s32 6, %v6938
        %v6940 = vrot.slane %v5510, %v6939
        %v6941 = vlaneseq
        %v6942 = vshrl.u32 %v6941, 7
        %v6943 = vsub.s32 7, %v6942
        %v6944 = vrot.slane %v5510, %v6943
        %v6945 = vlaneseq
        %v6946 = vshrl.u32 %v6945, 7
        %v6947 = vsub.s32 0, %v6946
        %v6948 = vrot.slane %v5512, %v6947
        %v6949 = vlaneseq
        %v6950 = vshrl.u32 %v6949, 7
        %v6951 = vsub.s32 1, %v6950
        %v6952 = vrot.slane %v5512, %v6951
        %v6953 = vlaneseq
        %v6954 = vshrl.u32 %v6953, 7
        %v6955 = vsub.s32 2, %v6954
        %v6956 = vrot.slane %v5512, %v6955
        %v6957 = vlaneseq
        %v6958 = vshrl.u32 %v6957, 7
        %v6959 = vsub.s32 3, %v6958
        %v6960 = vrot.slane %v5512, %v6959
        %v6961 = vlaneseq
        %v6962 = vshrl.u32 %v6961, 7
        %v6963 = vsub.s32 4, %v6962
        %v6964 = vrot.slane %v5512, %v6963
        %v6965 = vlaneseq
        %v6966 = vshrl.u32 %v6965, 7
        %v6967 = vsub.s32 5, %v6966
        %v6968 = vrot.slane %v5512, %v6967
        %v6969 = vlaneseq
        %v6970 = vshrl.u32 %v6969, 7
        %v6971 = vsub.s32 6, %v6970
        %v6972 = vrot.slane %v5512, %v6971
        %v6973 = vlaneseq
        %v6974 = vshrl.u32 %v6973, 7
        %v6975 = vsub.s32 7, %v6974
        %v6976 = vrot.slane %v5512, %v6975
        %v6977 = vlaneseq
        %v6978 = vshrl.u32 %v6977, 7
        %v6979 = vsub.s32 0, %v6978
        %v6980 = vrot.slane %v5514, %v6979
        %v6981 = vlaneseq
        %v6982 = vshrl.u32 %v6981, 7
        %v6983 = vsub.s32 1, %v6982
        %v6984 = vrot.slane %v5514, %v6983
        %v6985 = vlaneseq
        %v6986 = vshrl.u32 %v6985, 7
        %v6987 = vsub.s32 2, %v6986
        %v6988 = vrot.slane %v5514, %v6987
        %v6989 = vlaneseq
        %v6990 = vshrl.u32 %v6989, 7
        %v6991 = vsub.s32 3, %v6990
        %v6992 = vrot.slane %v5514, %v6991
        %v6993 = vlaneseq
        %v6994 = vshrl.u32 %v6993, 7
        %v6995 = vsub.s32 4, %v6994
        %v6996 = vrot.slane %v5514, %v6995
        %v6997 = vlaneseq
        %v6998 = vshrl.u32 %v6997, 7
        %v6999 = vsub.s32 5, %v6998
        %v7000 = vrot.slane %v5514, %v6999
        %v7001 = vlaneseq
        %v7002 = vshrl.u32 %v7001, 7
        %v7003 = vsub.s32 6, %v7002
        %v7004 = vrot.slane %v5514, %v7003
        %v7005 = vlaneseq
        %v7006 = vshrl.u32 %v7005, 7
        %v7007 = vsub.s32 7, %v7006
        %v7008 = vrot.slane %v5514, %v7007
        %v7009 = vlaneseq
        %v7010 = vshrl.u32 %v7009, 7
        %v7011 = vsub.s32 0, %v7010
        %v7012 = vrot.slane %v5516, %v7011
        %v7013 = vlaneseq
        %v7014 = vshrl.u32 %v7013, 7
        %v7015 = vsub.s32 1, %v7014
        %v7016 = vrot.slane %v5516, %v7015
        %v7017 = vlaneseq
        %v7018 = vshrl.u32 %v7017, 7
        %v7019 = vsub.s32 2, %v7018
        %v7020 = vrot.slane %v5516, %v7019
        %v7021 = vlaneseq
        %v7022 = vshrl.u32 %v7021, 7
        %v7023 = vsub.s32 3, %v7022
        %v7024 = vrot.slane %v5516, %v7023
        %v7025 = vlaneseq
        %v7026 = vshrl.u32 %v7025, 7
        %v7027 = vsub.s32 4, %v7026
        %v7028 = vrot.slane %v5516, %v7027
        %v7029 = vlaneseq
        %v7030 = vshrl.u32 %v7029, 7
        %v7031 = vsub.s32 5, %v7030
        %v7032 = vrot.slane %v5516, %v7031
        %v7033 = vlaneseq
        %v7034 = vshrl.u32 %v7033, 7
        %v7035 = vsub.s32 6, %v7034
        %v7036 = vrot.slane %v5516, %v7035
        %v7037 = vlaneseq
        %v7038 = vshrl.u32 %v7037, 7
        %v7039 = vsub.s32 7, %v7038
        %v7040 = vrot.slane %v5516, %v7039
        %v7041 = vlaneseq
        %v7042 = vshrl.u32 %v7041, 7
        %v7043 = vsub.s32 0, %v7042
        %v7044 = vrot.slane %v5518, %v7043
        %v7045 = vlaneseq
        %v7046 = vshrl.u32 %v7045, 7
        %v7047 = vsub.s32 1, %v7046
        %v7048 = vrot.slane %v5518, %v7047
        %v7049 = vlaneseq
        %v7050 = vshrl.u32 %v7049, 7
        %v7051 = vsub.s32 2, %v7050
        %v7052 = vrot.slane %v5518, %v7051
        %v7053 = vlaneseq
        %v7054 = vshrl.u32 %v7053, 7
        %v7055 = vsub.s32 3, %v7054
        %v7056 = vrot.slane %v5518, %v7055
        %v7057 = vlaneseq
        %v7058 = vshrl.u32 %v7057, 7
        %v7059 = vsub.s32 4, %v7058
        %v7060 = vrot.slane %v5518, %v7059
        %v7061 = vlaneseq
        %v7062 = vshrl.u32 %v7061, 7
        %v7063 = vsub.s32 5, %v7062
        %v7064 = vrot.slane %v5518, %v7063
        %v7065 = vlaneseq
        %v7066 = vshrl.u32 %v7065, 7
        %v7067 = vsub.s32 6, %v7066
        %v7068 = vrot.slane %v5518, %v7067
        %v7069 = vlaneseq
        %v7070 = vshrl.u32 %v7069, 7
        %v7071 = vsub.s32 7, %v7070
        %v7072 = vrot.slane %v5518, %v7071
        %v7073 = vlaneseq
        %v7074 = vshrl.u32 %v7073, 7
        %v7075 = vsub.s32 0, %v7074
        %v7076 = vrot.slane %v5520, %v7075
        %v7077 = vlaneseq
        %v7078 = vshrl.u32 %v7077, 7
        %v7079 = vsub.s32 1, %v7078
        %v7080 = vrot.slane %v5520, %v7079
        %v7081 = vlaneseq
        %v7082 = vshrl.u32 %v7081, 7
        %v7083 = vsub.s32 2, %v7082
        %v7084 = vrot.slane %v5520, %v7083
        %v7085 = vlaneseq
        %v7086 = vshrl.u32 %v7085, 7
        %v7087 = vsub.s32 3, %v7086
        %v7088 = vrot.slane %v5520, %v7087
        %v7089 = vlaneseq
        %v7090 = vshrl.u32 %v7089, 7
        %v7091 = vsub.s32 4, %v7090
        %v7092 = vrot.slane %v5520, %v7091
        %v7093 = vlaneseq
        %v7094 = vshrl.u32 %v7093, 7
        %v7095 = vsub.s32 5, %v7094
        %v7096 = vrot.slane %v5520, %v7095
        %v7097 = vlaneseq
        %v7098 = vshrl.u32 %v7097, 7
        %v7099 = vsub.s32 6, %v7098
        %v7100 = vrot.slane %v5520, %v7099
        %v7101 = vlaneseq
        %v7102 = vshrl.u32 %v7101, 7
        %v7103 = vsub.s32 7, %v7102
        %v7104 = vrot.slane %v5520, %v7103
        %v7105 = vcombine.low %v5572, %v5576
        %v7106 = vcombine.low %v5580, %v5584
        %v7107 = vcombine.low %v5588, %v5592
        %v7108 = vcombine.low %v5596, %v5600
        %v7110 = vunpack.c.l.s4 1966171168
        %v7111 = vunpack.c.0.s8 %v7110
        %v7112 = vlaneseq
        %v7113 = vshrl.u32 %v7112, 7
        %v7114 = vsub.s32 %v7111, %v7113
        %v7115 = vrot.slane %v7105, %v7114
        %v7117 = vunpack.c.l.s4 1966171168
        %v7118 = vunpack.c.0.s8 %v7117
        %v7119 = vlaneseq
        %v7120 = vshrl.u32 %v7119, 7
        %v7121 = vsub.s32 %v7118, %v7120
        %v7122 = vrot.slane %v7106, %v7121
        %v7124 = vunpack.c.l.s4 1966171168
        %v7125 = vunpack.c.0.s8 %v7124
        %v7126 = vlaneseq
        %v7127 = vshrl.u32 %v7126, 7
        %v7128 = vsub.s32 %v7125, %v7127
        %v7129 = vrot.slane %v7107, %v7128
        %v7131 = vunpack.c.l.s4 1966171168
        %v7132 = vunpack.c.0.s8 %v7131
        %v7133 = vlaneseq
        %v7134 = vshrl.u32 %v7133, 7
        %v7135 = vsub.s32 %v7132, %v7134
        %v7136 = vrot.slane %v7108, %v7135
        %v7137 = vcombine.low %v7115, %v7122
        %v7138 = vcombine.low %v7129, %v7136
        %v7140 = vunpack.c.l.s4 1966171168
        %v7141 = vunpack.c.0.s8 %v7140
        %v7142 = vlaneseq
        %v7143 = vshrl.u32 %v7142, 7
        %v7144 = vsub.s32 %v7141, %v7143
        %v7145 = vrot.slane %v7137, %v7144
        %v7147 = vunpack.c.l.s4 1966171168
        %v7148 = vunpack.c.0.s8 %v7147
        %v7149 = vlaneseq
        %v7150 = vshrl.u32 %v7149, 7
        %v7151 = vsub.s32 %v7148, %v7150
        %v7152 = vrot.slane %v7138, %v7151
        %v7153 = vcombine.low %v7145, %v7152
        %v7154 = vcombine.low %v5604, %v5608
        %v7155 = vcombine.low %v5612, %v5616
        %v7156 = vcombine.low %v5620, %v5624
        %v7157 = vcombine.low %v5628, %v5632
        %v7159 = vunpack.c.l.s4 1966171168
        %v7160 = vunpack.c.0.s8 %v7159
        %v7161 = vlaneseq
        %v7162 = vshrl.u32 %v7161, 7
        %v7163 = vsub.s32 %v7160, %v7162
        %v7164 = vrot.slane %v7154, %v7163
        %v7166 = vunpack.c.l.s4 1966171168
        %v7167 = vunpack.c.0.s8 %v7166
        %v7168 = vlaneseq
        %v7169 = vshrl.u32 %v7168, 7
        %v7170 = vsub.s32 %v7167, %v7169
        %v7171 = vrot.slane %v7155, %v7170
        %v7173 = vunpack.c.l.s4 1966171168
        %v7174 = vunpack.c.0.s8 %v7173
        %v7175 = vlaneseq
        %v7176 = vshrl.u32 %v7175, 7
        %v7177 = vsub.s32 %v7174, %v7176
        %v7178 = vrot.slane %v7156, %v7177
        %v7180 = vunpack.c.l.s4 1966171168
        %v7181 = vunpack.c.0.s8 %v7180
        %v7182 = vlaneseq
        %v7183 = vshrl.u32 %v7182, 7
        %v7184 = vsub.s32 %v7181, %v7183
        %v7185 = vrot.slane %v7157, %v7184
        %v7186 = vcombine.low %v7164, %v7171
        %v7187 = vcombine.low %v7178, %v7185
        %v7189 = vunpack.c.l.s4 1966171168
        %v7190 = vunpack.c.0.s8 %v7189
        %v7191 = vlaneseq
        %v7192 = vshrl.u32 %v7191, 7
        %v7193 = vsub.s32 %v7190, %v7192
        %v7194 = vrot.slane %v7186, %v7193
        %v7196 = vunpack.c.l.s4 1966171168
        %v7197 = vunpack.c.0.s8 %v7196
        %v7198 = vlaneseq
        %v7199 = vshrl.u32 %v7198, 7
        %v7200 = vsub.s32 %v7197, %v7199
        %v7201 = vrot.slane %v7187, %v7200
        %v7202 = vcombine.low %v7194, %v7201
        %v7203 = vcombine.low %v5636, %v5640
        %v7204 = vcombine.low %v5644, %v5648
        %v7205 = vcombine.low %v5652, %v5656
        %v7206 = vcombine.low %v5660, %v5664
        %v7208 = vunpack.c.l.s4 1966171168
        %v7209 = vunpack.c.0.s8 %v7208
        %v7210 = vlaneseq
        %v7211 = vshrl.u32 %v7210, 7
        %v7212 = vsub.s32 %v7209, %v7211
        %v7213 = vrot.slane %v7203, %v7212
        %v7215 = vunpack.c.l.s4 1966171168
        %v7216 = vunpack.c.0.s8 %v7215
        %v7217 = vlaneseq
        %v7218 = vshrl.u32 %v7217, 7
        %v7219 = vsub.s32 %v7216, %v7218
        %v7220 = vrot.slane %v7204, %v7219
        %v7222 = vunpack.c.l.s4 1966171168
        %v7223 = vunpack.c.0.s8 %v7222
        %v7224 = vlaneseq
        %v7225 = vshrl.u32 %v7224, 7
        %v7226 = vsub.s32 %v7223, %v7225
        %v7227 = vrot.slane %v7205, %v7226
        %v7229 = vunpack.c.l.s4 1966171168
        %v7230 = vunpack.c.0.s8 %v7229
        %v7231 = vlaneseq
        %v7232 = vshrl.u32 %v7231, 7
        %v7233 = vsub.s32 %v7230, %v7232
        %v7234 = vrot.slane %v7206, %v7233
        %v7235 = vcombine.low %v7213, %v7220
        %v7236 = vcombine.low %v7227, %v7234
        %v7238 = vunpack.c.l.s4 1966171168
        %v7239 = vunpack.c.0.s8 %v7238
        %v7240 = vlaneseq
        %v7241 = vshrl.u32 %v7240, 7
        %v7242 = vsub.s32 %v7239, %v7241
        %v7243 = vrot.slane %v7235, %v7242
        %v7245 = vunpack.c.l.s4 1966171168
        %v7246 = vunpack.c.0.s8 %v7245
        %v7247 = vlaneseq
        %v7248 = vshrl.u32 %v7247, 7
        %v7249 = vsub.s32 %v7246, %v7248
        %v7250 = vrot.slane %v7236, %v7249
        %v7251 = vcombine.low %v7243, %v7250
        %v7252 = vcombine.low %v5668, %v5672
        %v7253 = vcombine.low %v5676, %v5680
        %v7254 = vcombine.low %v5684, %v5688
        %v7255 = vcombine.low %v5692, %v5696
        %v7257 = vunpack.c.l.s4 1966171168
        %v7258 = vunpack.c.0.s8 %v7257
        %v7259 = vlaneseq
        %v7260 = vshrl.u32 %v7259, 7
        %v7261 = vsub.s32 %v7258, %v7260
        %v7262 = vrot.slane %v7252, %v7261
        %v7264 = vunpack.c.l.s4 1966171168
        %v7265 = vunpack.c.0.s8 %v7264
        %v7266 = vlaneseq
        %v7267 = vshrl.u32 %v7266, 7
        %v7268 = vsub.s32 %v7265, %v7267
        %v7269 = vrot.slane %v7253, %v7268
        %v7271 = vunpack.c.l.s4 1966171168
        %v7272 = vunpack.c.0.s8 %v7271
        %v7273 = vlaneseq
        %v7274 = vshrl.u32 %v7273, 7
        %v7275 = vsub.s32 %v7272, %v7274
        %v7276 = vrot.slane %v7254, %v7275
        %v7278 = vunpack.c.l.s4 1966171168
        %v7279 = vunpack.c.0.s8 %v7278
        %v7280 = vlaneseq
        %v7281 = vshrl.u32 %v7280, 7
        %v7282 = vsub.s32 %v7279, %v7281
        %v7283 = vrot.slane %v7255, %v7282
        %v7284 = vcombine.low %v7262, %v7269
        %v7285 = vcombine.low %v7276, %v7283
        %v7287 = vunpack.c.l.s4 1966171168
        %v7288 = vunpack.c.0.s8 %v7287
        %v7289 = vlaneseq
        %v7290 = vshrl.u32 %v7289, 7
        %v7291 = vsub.s32 %v7288, %v7290
        %v7292 = vrot.slane %v7284, %v7291
        %v7294 = vunpack.c.l.s4 1966171168
        %v7295 = vunpack.c.0.s8 %v7294
        %v7296 = vlaneseq
        %v7297 = vshrl.u32 %v7296, 7
        %v7298 = vsub.s32 %v7295, %v7297
        %v7299 = vrot.slane %v7285, %v7298
        %v7300 = vcombine.low %v7292, %v7299
        %v7301 = vcombine.low %v5700, %v5704
        %v7302 = vcombine.low %v5708, %v5712
        %v7303 = vcombine.low %v5716, %v5720
        %v7304 = vcombine.low %v5724, %v5728
        %v7306 = vunpack.c.l.s4 1966171168
        %v7307 = vunpack.c.0.s8 %v7306
        %v7308 = vlaneseq
        %v7309 = vshrl.u32 %v7308, 7
        %v7310 = vsub.s32 %v7307, %v7309
        %v7311 = vrot.slane %v7301, %v7310
        %v7313 = vunpack.c.l.s4 1966171168
        %v7314 = vunpack.c.0.s8 %v7313
        %v7315 = vlaneseq
        %v7316 = vshrl.u32 %v7315, 7
        %v7317 = vsub.s32 %v7314, %v7316
        %v7318 = vrot.slane %v7302, %v7317
        %v7320 = vunpack.c.l.s4 1966171168
        %v7321 = vunpack.c.0.s8 %v7320
        %v7322 = vlaneseq
        %v7323 = vshrl.u32 %v7322, 7
        %v7324 = vsub.s32 %v7321, %v7323
        %v7325 = vrot.slane %v7303, %v7324
        %v7327 = vunpack.c.l.s4 1966171168
        %v7328 = vunpack.c.0.s8 %v7327
        %v7329 = vlaneseq
        %v7330 = vshrl.u32 %v7329, 7
        %v7331 = vsub.s32 %v7328, %v7330
        %v7332 = vrot.slane %v7304, %v7331
        %v7333 = vcombine.low %v7311, %v7318
        %v7334 = vcombine.low %v7325, %v7332
        %v7336 = vunpack.c.l.s4 1966171168
        %v7337 = vunpack.c.0.s8 %v7336
        %v7338 = vlaneseq
        %v7339 = vshrl.u32 %v7338, 7
        %v7340 = vsub.s32 %v7337, %v7339
        %v7341 = vrot.slane %v7333, %v7340
        %v7343 = vunpack.c.l.s4 1966171168
        %v7344 = vunpack.c.0.s8 %v7343
        %v7345 = vlaneseq
        %v7346 = vshrl.u32 %v7345, 7
        %v7347 = vsub.s32 %v7344, %v7346
        %v7348 = vrot.slane %v7334, %v7347
        %v7349 = vcombine.low %v7341, %v7348
        %v7350 = vcombine.low %v5732, %v5736
        %v7351 = vcombine.low %v5740, %v5744
        %v7352 = vcombine.low %v5748, %v5752
        %v7353 = vcombine.low %v5756, %v5760
        %v7355 = vunpack.c.l.s4 1966171168
        %v7356 = vunpack.c.0.s8 %v7355
        %v7357 = vlaneseq
        %v7358 = vshrl.u32 %v7357, 7
        %v7359 = vsub.s32 %v7356, %v7358
        %v7360 = vrot.slane %v7350, %v7359
        %v7362 = vunpack.c.l.s4 1966171168
        %v7363 = vunpack.c.0.s8 %v7362
        %v7364 = vlaneseq
        %v7365 = vshrl.u32 %v7364, 7
        %v7366 = vsub.s32 %v7363, %v7365
        %v7367 = vrot.slane %v7351, %v7366
        %v7369 = vunpack.c.l.s4 1966171168
        %v7370 = vunpack.c.0.s8 %v7369
        %v7371 = vlaneseq
        %v7372 = vshrl.u32 %v7371, 7
        %v7373 = vsub.s32 %v7370, %v7372
        %v7374 = vrot.slane %v7352, %v7373
        %v7376 = vunpack.c.l.s4 1966171168
        %v7377 = vunpack.c.0.s8 %v7376
        %v7378 = vlaneseq
        %v7379 = vshrl.u32 %v7378, 7
        %v7380 = vsub.s32 %v7377, %v7379
        %v7381 = vrot.slane %v7353, %v7380
        %v7382 = vcombine.low %v7360, %v7367
        %v7383 = vcombine.low %v7374, %v7381
        %v7385 = vunpack.c.l.s4 1966171168
        %v7386 = vunpack.c.0.s8 %v7385
        %v7387 = vlaneseq
        %v7388 = vshrl.u32 %v7387, 7
        %v7389 = vsub.s32 %v7386, %v7388
        %v7390 = vrot.slane %v7382, %v7389
        %v7392 = vunpack.c.l.s4 1966171168
        %v7393 = vunpack.c.0.s8 %v7392
        %v7394 = vlaneseq
        %v7395 = vshrl.u32 %v7394, 7
        %v7396 = vsub.s32 %v7393, %v7395
        %v7397 = vrot.slane %v7383, %v7396
        %v7398 = vcombine.low %v7390, %v7397
        %v7399 = vcombine.low %v5764, %v5768
        %v7400 = vcombine.low %v5772, %v5776
        %v7401 = vcombine.low %v5780, %v5784
        %v7402 = vcombine.low %v5788, %v5792
        %v7404 = vunpack.c.l.s4 1966171168
        %v7405 = vunpack.c.0.s8 %v7404
        %v7406 = vlaneseq
        %v7407 = vshrl.u32 %v7406, 7
        %v7408 = vsub.s32 %v7405, %v7407
        %v7409 = vrot.slane %v7399, %v7408
        %v7411 = vunpack.c.l.s4 1966171168
        %v7412 = vunpack.c.0.s8 %v7411
        %v7413 = vlaneseq
        %v7414 = vshrl.u32 %v7413, 7
        %v7415 = vsub.s32 %v7412, %v7414
        %v7416 = vrot.slane %v7400, %v7415
        %v7418 = vunpack.c.l.s4 1966171168
        %v7419 = vunpack.c.0.s8 %v7418
        %v7420 = vlaneseq
        %v7421 = vshrl.u32 %v7420, 7
        %v7422 = vsub.s32 %v7419, %v7421
        %v7423 = vrot.slane %v7401, %v7422
        %v7425 = vunpack.c.l.s4 1966171168
        %v7426 = vunpack.c.0.s8 %v7425
        %v7427 = vlaneseq
        %v7428 = vshrl.u32 %v7427, 7
        %v7429 = vsub.s32 %v7426, %v7428
        %v7430 = vrot.slane %v7402, %v7429
        %v7431 = vcombine.low %v7409, %v7416
        %v7432 = vcombine.low %v7423, %v7430
        %v7434 = vunpack.c.l.s4 1966171168
        %v7435 = vunpack.c.0.s8 %v7434
        %v7436 = vlaneseq
        %v7437 = vshrl.u32 %v7436, 7
        %v7438 = vsub.s32 %v7435, %v7437
        %v7439 = vrot.slane %v7431, %v7438
        %v7441 = vunpack.c.l.s4 1966171168
        %v7442 = vunpack.c.0.s8 %v7441
        %v7443 = vlaneseq
        %v7444 = vshrl.u32 %v7443, 7
        %v7445 = vsub.s32 %v7442, %v7444
        %v7446 = vrot.slane %v7432, %v7445
        %v7447 = vcombine.low %v7439, %v7446
        %v7448 = vcombine.low %v5796, %v5800
        %v7449 = vcombine.low %v5804, %v5808
        %v7450 = vcombine.low %v5812, %v5816
        %v7451 = vcombine.low %v5820, %v5824
        %v7453 = vunpack.c.l.s4 1966171168
        %v7454 = vunpack.c.0.s8 %v7453
        %v7455 = vlaneseq
        %v7456 = vshrl.u32 %v7455, 7
        %v7457 = vsub.s32 %v7454, %v7456
        %v7458 = vrot.slane %v7448, %v7457
        %v7460 = vunpack.c.l.s4 1966171168
        %v7461 = vunpack.c.0.s8 %v7460
        %v7462 = vlaneseq
        %v7463 = vshrl.u32 %v7462, 7
        %v7464 = vsub.s32 %v7461, %v7463
        %v7465 = vrot.slane %v7449, %v7464
        %v7467 = vunpack.c.l.s4 1966171168
        %v7468 = vunpack.c.0.s8 %v7467
        %v7469 = vlaneseq
        %v7470 = vshrl.u32 %v7469, 7
        %v7471 = vsub.s32 %v7468, %v7470
        %v7472 = vrot.slane %v7450, %v7471
        %v7474 = vunpack.c.l.s4 1966171168
        %v7475 = vunpack.c.0.s8 %v7474
        %v7476 = vlaneseq
        %v7477 = vshrl.u32 %v7476, 7
        %v7478 = vsub.s32 %v7475, %v7477
        %v7479 = vrot.slane %v7451, %v7478
        %v7480 = vcombine.low %v7458, %v7465
        %v7481 = vcombine.low %v7472, %v7479
        %v7483 = vunpack.c.l.s4 1966171168
        %v7484 = vunpack.c.0.s8 %v7483
        %v7485 = vlaneseq
        %v7486 = vshrl.u32 %v7485, 7
        %v7487 = vsub.s32 %v7484, %v7486
        %v7488 = vrot.slane %v7480, %v7487
        %v7490 = vunpack.c.l.s4 1966171168
        %v7491 = vunpack.c.0.s8 %v7490
        %v7492 = vlaneseq
        %v7493 = vshrl.u32 %v7492, 7
        %v7494 = vsub.s32 %v7491, %v7493
        %v7495 = vrot.slane %v7481, %v7494
        %v7496 = vcombine.low %v7488, %v7495
        %v7497 = vcombine.low %v5828, %v5832
        %v7498 = vcombine.low %v5836, %v5840
        %v7499 = vcombine.low %v5844, %v5848
        %v7500 = vcombine.low %v5852, %v5856
        %v7502 = vunpack.c.l.s4 1966171168
        %v7503 = vunpack.c.0.s8 %v7502
        %v7504 = vlaneseq
        %v7505 = vshrl.u32 %v7504, 7
        %v7506 = vsub.s32 %v7503, %v7505
        %v7507 = vrot.slane %v7497, %v7506
        %v7509 = vunpack.c.l.s4 1966171168
        %v7510 = vunpack.c.0.s8 %v7509
        %v7511 = vlaneseq
        %v7512 = vshrl.u32 %v7511, 7
        %v7513 = vsub.s32 %v7510, %v7512
        %v7514 = vrot.slane %v7498, %v7513
        %v7516 = vunpack.c.l.s4 1966171168
        %v7517 = vunpack.c.0.s8 %v7516
        %v7518 = vlaneseq
        %v7519 = vshrl.u32 %v7518, 7
        %v7520 = vsub.s32 %v7517, %v7519
        %v7521 = vrot.slane %v7499, %v7520
        %v7523 = vunpack.c.l.s4 1966171168
        %v7524 = vunpack.c.0.s8 %v7523
        %v7525 = vlaneseq
        %v7526 = vshrl.u32 %v7525, 7
        %v7527 = vsub.s32 %v7524, %v7526
        %v7528 = vrot.slane %v7500, %v7527
        %v7529 = vcombine.low %v7507, %v7514
        %v7530 = vcombine.low %v7521, %v7528
        %v7532 = vunpack.c.l.s4 1966171168
        %v7533 = vunpack.c.0.s8 %v7532
        %v7534 = vlaneseq
        %v7535 = vshrl.u32 %v7534, 7
        %v7536 = vsub.s32 %v7533, %v7535
        %v7537 = vrot.slane %v7529, %v7536
        %v7539 = vunpack.c.l.s4 1966171168
        %v7540 = vunpack.c.0.s8 %v7539
        %v7541 = vlaneseq
        %v7542 = vshrl.u32 %v7541, 7
        %v7543 = vsub.s32 %v7540, %v7542
        %v7544 = vrot.slane %v7530, %v7543
        %v7545 = vcombine.low %v7537, %v7544
        %v7546 = vcombine.low %v5860, %v5864
        %v7547 = vcombine.low %v5868, %v5872
        %v7548 = vcombine.low %v5876, %v5880
        %v7549 = vcombine.low %v5884, %v5888
        %v7551 = vunpack.c.l.s4 1966171168
        %v7552 = vunpack.c.0.s8 %v7551
        %v7553 = vlaneseq
        %v7554 = vshrl.u32 %v7553, 7
        %v7555 = vsub.s32 %v7552, %v7554
        %v7556 = vrot.slane %v7546, %v7555
        %v7558 = vunpack.c.l.s4 1966171168
        %v7559 = vunpack.c.0.s8 %v7558
        %v7560 = vlaneseq
        %v7561 = vshrl.u32 %v7560, 7
        %v7562 = vsub.s32 %v7559, %v7561
        %v7563 = vrot.slane %v7547, %v7562
        %v7565 = vunpack.c.l.s4 1966171168
        %v7566 = vunpack.c.0.s8 %v7565
        %v7567 = vlaneseq
        %v7568 = vshrl.u32 %v7567, 7
        %v7569 = vsub.s32 %v7566, %v7568
        %v7570 = vrot.slane %v7548, %v7569
        %v7572 = vunpack.c.l.s4 1966171168
        %v7573 = vunpack.c.0.s8 %v7572
        %v7574 = vlaneseq
        %v7575 = vshrl.u32 %v7574, 7
        %v7576 = vsub.s32 %v7573, %v7575
        %v7577 = vrot.slane %v7549, %v7576
        %v7578 = vcombine.low %v7556, %v7563
        %v7579 = vcombine.low %v7570, %v7577
        %v7581 = vunpack.c.l.s4 1966171168
        %v7582 = vunpack.c.0.s8 %v7581
        %v7583 = vlaneseq
        %v7584 = vshrl.u32 %v7583, 7
        %v7585 = vsub.s32 %v7582, %v7584
        %v7586 = vrot.slane %v7578, %v7585
        %v7588 = vunpack.c.l.s4 1966171168
        %v7589 = vunpack.c.0.s8 %v7588
        %v7590 = vlaneseq
        %v7591 = vshrl.u32 %v7590, 7
        %v7592 = vsub.s32 %v7589, %v7591
        %v7593 = vrot.slane %v7579, %v7592
        %v7594 = vcombine.low %v7586, %v7593
        %v7595 = vcombine.low %v5892, %v5896
        %v7596 = vcombine.low %v5900, %v5904
        %v7597 = vcombine.low %v5908, %v5912
        %v7598 = vcombine.low %v5916, %v5920
        %v7600 = vunpack.c.l.s4 1966171168
        %v7601 = vunpack.c.0.s8 %v7600
        %v7602 = vlaneseq
        %v7603 = vshrl.u32 %v7602, 7
        %v7604 = vsub.s32 %v7601, %v7603
        %v7605 = vrot.slane %v7595, %v7604
        %v7607 = vunpack.c.l.s4 1966171168
        %v7608 = vunpack.c.0.s8 %v7607
        %v7609 = vlaneseq
        %v7610 = vshrl.u32 %v7609, 7
        %v7611 = vsub.s32 %v7608, %v7610
        %v7612 = vrot.slane %v7596, %v7611
        %v7614 = vunpack.c.l.s4 1966171168
        %v7615 = vunpack.c.0.s8 %v7614
        %v7616 = vlaneseq
        %v7617 = vshrl.u32 %v7616, 7
        %v7618 = vsub.s32 %v7615, %v7617
        %v7619 = vrot.slane %v7597, %v7618
        %v7621 = vunpack.c.l.s4 1966171168
        %v7622 = vunpack.c.0.s8 %v7621
        %v7623 = vlaneseq
        %v7624 = vshrl.u32 %v7623, 7
        %v7625 = vsub.s32 %v7622, %v7624
        %v7626 = vrot.slane %v7598, %v7625
        %v7627 = vcombine.low %v7605, %v7612
        %v7628 = vcombine.low %v7619, %v7626
        %v7630 = vunpack.c.l.s4 1966171168
        %v7631 = vunpack.c.0.s8 %v7630
        %v7632 = vlaneseq
        %v7633 = vshrl.u32 %v7632, 7
        %v7634 = vsub.s32 %v7631, %v7633
        %v7635 = vrot.slane %v7627, %v7634
        %v7637 = vunpack.c.l.s4 1966171168
        %v7638 = vunpack.c.0.s8 %v7637
        %v7639 = vlaneseq
        %v7640 = vshrl.u32 %v7639, 7
        %v7641 = vsub.s32 %v7638, %v7640
        %v7642 = vrot.slane %v7628, %v7641
        %v7643 = vcombine.low %v7635, %v7642
        %v7644 = vcombine.low %v5924, %v5928
        %v7645 = vcombine.low %v5932, %v5936
        %v7646 = vcombine.low %v5940, %v5944
        %v7647 = vcombine.low %v5948, %v5952
        %v7649 = vunpack.c.l.s4 1966171168
        %v7650 = vunpack.c.0.s8 %v7649
        %v7651 = vlaneseq
        %v7652 = vshrl.u32 %v7651, 7
        %v7653 = vsub.s32 %v7650, %v7652
        %v7654 = vrot.slane %v7644, %v7653
        %v7656 = vunpack.c.l.s4 1966171168
        %v7657 = vunpack.c.0.s8 %v7656
        %v7658 = vlaneseq
        %v7659 = vshrl.u32 %v7658, 7
        %v7660 = vsub.s32 %v7657, %v7659
        %v7661 = vrot.slane %v7645, %v7660
        %v7663 = vunpack.c.l.s4 1966171168
        %v7664 = vunpack.c.0.s8 %v7663
        %v7665 = vlaneseq
        %v7666 = vshrl.u32 %v7665, 7
        %v7667 = vsub.s32 %v7664, %v7666
        %v7668 = vrot.slane %v7646, %v7667
        %v7670 = vunpack.c.l.s4 1966171168
        %v7671 = vunpack.c.0.s8 %v7670
        %v7672 = vlaneseq
        %v7673 = vshrl.u32 %v7672, 7
        %v7674 = vsub.s32 %v7671, %v7673
        %v7675 = vrot.slane %v7647, %v7674
        %v7676 = vcombine.low %v7654, %v7661
        %v7677 = vcombine.low %v7668, %v7675
        %v7679 = vunpack.c.l.s4 1966171168
        %v7680 = vunpack.c.0.s8 %v7679
        %v7681 = vlaneseq
        %v7682 = vshrl.u32 %v7681, 7
        %v7683 = vsub.s32 %v7680, %v7682
        %v7684 = vrot.slane %v7676, %v7683
        %v7686 = vunpack.c.l.s4 1966171168
        %v7687 = vunpack.c.0.s8 %v7686
        %v7688 = vlaneseq
        %v7689 = vshrl.u32 %v7688, 7
        %v7690 = vsub.s32 %v7687, %v7689
        %v7691 = vrot.slane %v7677, %v7690
        %v7692 = vcombine.low %v7684, %v7691
        %v7693 = vcombine.low %v5956, %v5960
        %v7694 = vcombine.low %v5964, %v5968
        %v7695 = vcombine.low %v5972, %v5976
        %v7696 = vcombine.low %v5980, %v5984
        %v7698 = vunpack.c.l.s4 1966171168
        %v7699 = vunpack.c.0.s8 %v7698
        %v7700 = vlaneseq
        %v7701 = vshrl.u32 %v7700, 7
        %v7702 = vsub.s32 %v7699, %v7701
        %v7703 = vrot.slane %v7693, %v7702
        %v7705 = vunpack.c.l.s4 1966171168
        %v7706 = vunpack.c.0.s8 %v7705
        %v7707 = vlaneseq
        %v7708 = vshrl.u32 %v7707, 7
        %v7709 = vsub.s32 %v7706, %v7708
        %v7710 = vrot.slane %v7694, %v7709
        %v7712 = vunpack.c.l.s4 1966171168
        %v7713 = vunpack.c.0.s8 %v7712
        %v7714 = vlaneseq
        %v7715 = vshrl.u32 %v7714, 7
        %v7716 = vsub.s32 %v7713, %v7715
        %v7717 = vrot.slane %v7695, %v7716
        %v7719 = vunpack.c.l.s4 1966171168
        %v7720 = vunpack.c.0.s8 %v7719
        %v7721 = vlaneseq
        %v7722 = vshrl.u32 %v7721, 7
        %v7723 = vsub.s32 %v7720, %v7722
        %v7724 = vrot.slane %v7696, %v7723
        %v7725 = vcombine.low %v7703, %v7710
        %v7726 = vcombine.low %v7717, %v7724
        %v7728 = vunpack.c.l.s4 1966171168
        %v7729 = vunpack.c.0.s8 %v7728
        %v7730 = vlaneseq
        %v7731 = vshrl.u32 %v7730, 7
        %v7732 = vsub.s32 %v7729, %v7731
        %v7733 = vrot.slane %v7725, %v7732
        %v7735 = vunpack.c.l.s4 1966171168
        %v7736 = vunpack.c.0.s8 %v7735
        %v7737 = vlaneseq
        %v7738 = vshrl.u32 %v7737, 7
        %v7739 = vsub.s32 %v7736, %v7738
        %v7740 = vrot.slane %v7726, %v7739
        %v7741 = vcombine.low %v7733, %v7740
        %v7742 = vcombine.low %v5988, %v5992
        %v7743 = vcombine.low %v5996, %v6000
        %v7744 = vcombine.low %v6004, %v6008
        %v7745 = vcombine.low %v6012, %v6016
        %v7747 = vunpack.c.l.s4 1966171168
        %v7748 = vunpack.c.0.s8 %v7747
        %v7749 = vlaneseq
        %v7750 = vshrl.u32 %v7749, 7
        %v7751 = vsub.s32 %v7748, %v7750
        %v7752 = vrot.slane %v7742, %v7751
        %v7754 = vunpack.c.l.s4 1966171168
        %v7755 = vunpack.c.0.s8 %v7754
        %v7756 = vlaneseq
        %v7757 = vshrl.u32 %v7756, 7
        %v7758 = vsub.s32 %v7755, %v7757
        %v7759 = vrot.slane %v7743, %v7758
        %v7761 = vunpack.c.l.s4 1966171168
        %v7762 = vunpack.c.0.s8 %v7761
        %v7763 = vlaneseq
        %v7764 = vshrl.u32 %v7763, 7
        %v7765 = vsub.s32 %v7762, %v7764
        %v7766 = vrot.slane %v7744, %v7765
        %v7768 = vunpack.c.l.s4 1966171168
        %v7769 = vunpack.c.0.s8 %v7768
        %v7770 = vlaneseq
        %v7771 = vshrl.u32 %v7770, 7
        %v7772 = vsub.s32 %v7769, %v7771
        %v7773 = vrot.slane %v7745, %v7772
        %v7774 = vcombine.low %v7752, %v7759
        %v7775 = vcombine.low %v7766, %v7773
        %v7777 = vunpack.c.l.s4 1966171168
        %v7778 = vunpack.c.0.s8 %v7777
        %v7779 = vlaneseq
        %v7780 = vshrl.u32 %v7779, 7
        %v7781 = vsub.s32 %v7778, %v7780
        %v7782 = vrot.slane %v7774, %v7781
        %v7784 = vunpack.c.l.s4 1966171168
        %v7785 = vunpack.c.0.s8 %v7784
        %v7786 = vlaneseq
        %v7787 = vshrl.u32 %v7786, 7
        %v7788 = vsub.s32 %v7785, %v7787
        %v7789 = vrot.slane %v7775, %v7788
        %v7790 = vcombine.low %v7782, %v7789
        %v7791 = vcombine.low %v6020, %v6024
        %v7792 = vcombine.low %v6028, %v6032
        %v7793 = vcombine.low %v6036, %v6040
        %v7794 = vcombine.low %v6044, %v6048
        %v7796 = vunpack.c.l.s4 1966171168
        %v7797 = vunpack.c.0.s8 %v7796
        %v7798 = vlaneseq
        %v7799 = vshrl.u32 %v7798, 7
        %v7800 = vsub.s32 %v7797, %v7799
        %v7801 = vrot.slane %v7791, %v7800
        %v7803 = vunpack.c.l.s4 1966171168
        %v7804 = vunpack.c.0.s8 %v7803
        %v7805 = vlaneseq
        %v7806 = vshrl.u32 %v7805, 7
        %v7807 = vsub.s32 %v7804, %v7806
        %v7808 = vrot.slane %v7792, %v7807
        %v7810 = vunpack.c.l.s4 1966171168
        %v7811 = vunpack.c.0.s8 %v7810
        %v7812 = vlaneseq
        %v7813 = vshrl.u32 %v7812, 7
        %v7814 = vsub.s32 %v7811, %v7813
        %v7815 = vrot.slane %v7793, %v7814
        %v7817 = vunpack.c.l.s4 1966171168
        %v7818 = vunpack.c.0.s8 %v7817
        %v7819 = vlaneseq
        %v7820 = vshrl.u32 %v7819, 7
        %v7821 = vsub.s32 %v7818, %v7820
        %v7822 = vrot.slane %v7794, %v7821
        %v7823 = vcombine.low %v7801, %v7808
        %v7824 = vcombine.low %v7815, %v7822
        %v7826 = vunpack.c.l.s4 1966171168
        %v7827 = vunpack.c.0.s8 %v7826
        %v7828 = vlaneseq
        %v7829 = vshrl.u32 %v7828, 7
        %v7830 = vsub.s32 %v7827, %v7829
        %v7831 = vrot.slane %v7823, %v7830
        %v7833 = vunpack.c.l.s4 1966171168
        %v7834 = vunpack.c.0.s8 %v7833
        %v7835 = vlaneseq
        %v7836 = vshrl.u32 %v7835, 7
        %v7837 = vsub.s32 %v7834, %v7836
        %v7838 = vrot.slane %v7824, %v7837
        %v7839 = vcombine.low %v7831, %v7838
        %v7840 = vcombine.low %v6052, %v6056
        %v7841 = vcombine.low %v6060, %v6064
        %v7842 = vcombine.low %v6068, %v6072
        %v7843 = vcombine.low %v6076, %v6080
        %v7845 = vunpack.c.l.s4 1966171168
        %v7846 = vunpack.c.0.s8 %v7845
        %v7847 = vlaneseq
        %v7848 = vshrl.u32 %v7847, 7
        %v7849 = vsub.s32 %v7846, %v7848
        %v7850 = vrot.slane %v7840, %v7849
        %v7852 = vunpack.c.l.s4 1966171168
        %v7853 = vunpack.c.0.s8 %v7852
        %v7854 = vlaneseq
        %v7855 = vshrl.u32 %v7854, 7
        %v7856 = vsub.s32 %v7853, %v7855
        %v7857 = vrot.slane %v7841, %v7856
        %v7859 = vunpack.c.l.s4 1966171168
        %v7860 = vunpack.c.0.s8 %v7859
        %v7861 = vlaneseq
        %v7862 = vshrl.u32 %v7861, 7
        %v7863 = vsub.s32 %v7860, %v7862
        %v7864 = vrot.slane %v7842, %v7863
        %v7866 = vunpack.c.l.s4 1966171168
        %v7867 = vunpack.c.0.s8 %v7866
        %v7868 = vlaneseq
        %v7869 = vshrl.u32 %v7868, 7
        %v7870 = vsub.s32 %v7867, %v7869
        %v7871 = vrot.slane %v7843, %v7870
        %v7872 = vcombine.low %v7850, %v7857
        %v7873 = vcombine.low %v7864, %v7871
        %v7875 = vunpack.c.l.s4 1966171168
        %v7876 = vunpack.c.0.s8 %v7875
        %v7877 = vlaneseq
        %v7878 = vshrl.u32 %v7877, 7
        %v7879 = vsub.s32 %v7876, %v7878
        %v7880 = vrot.slane %v7872, %v7879
        %v7882 = vunpack.c.l.s4 1966171168
        %v7883 = vunpack.c.0.s8 %v7882
        %v7884 = vlaneseq
        %v7885 = vshrl.u32 %v7884, 7
        %v7886 = vsub.s32 %v7883, %v7885
        %v7887 = vrot.slane %v7873, %v7886
        %v7888 = vcombine.low %v7880, %v7887
        %v7889 = vcombine.low %v6084, %v6088
        %v7890 = vcombine.low %v6092, %v6096
        %v7891 = vcombine.low %v6100, %v6104
        %v7892 = vcombine.low %v6108, %v6112
        %v7894 = vunpack.c.l.s4 1966171168
        %v7895 = vunpack.c.0.s8 %v7894
        %v7896 = vlaneseq
        %v7897 = vshrl.u32 %v7896, 7
        %v7898 = vsub.s32 %v7895, %v7897
        %v7899 = vrot.slane %v7889, %v7898
        %v7901 = vunpack.c.l.s4 1966171168
        %v7902 = vunpack.c.0.s8 %v7901
        %v7903 = vlaneseq
        %v7904 = vshrl.u32 %v7903, 7
        %v7905 = vsub.s32 %v7902, %v7904
        %v7906 = vrot.slane %v7890, %v7905
        %v7908 = vunpack.c.l.s4 1966171168
        %v7909 = vunpack.c.0.s8 %v7908
        %v7910 = vlaneseq
        %v7911 = vshrl.u32 %v7910, 7
        %v7912 = vsub.s32 %v7909, %v7911
        %v7913 = vrot.slane %v7891, %v7912
        %v7915 = vunpack.c.l.s4 1966171168
        %v7916 = vunpack.c.0.s8 %v7915
        %v7917 = vlaneseq
        %v7918 = vshrl.u32 %v7917, 7
        %v7919 = vsub.s32 %v7916, %v7918
        %v7920 = vrot.slane %v7892, %v7919
        %v7921 = vcombine.low %v7899, %v7906
        %v7922 = vcombine.low %v7913, %v7920
        %v7924 = vunpack.c.l.s4 1966171168
        %v7925 = vunpack.c.0.s8 %v7924
        %v7926 = vlaneseq
        %v7927 = vshrl.u32 %v7926, 7
        %v7928 = vsub.s32 %v7925, %v7927
        %v7929 = vrot.slane %v7921, %v7928
        %v7931 = vunpack.c.l.s4 1966171168
        %v7932 = vunpack.c.0.s8 %v7931
        %v7933 = vlaneseq
        %v7934 = vshrl.u32 %v7933, 7
        %v7935 = vsub.s32 %v7932, %v7934
        %v7936 = vrot.slane %v7922, %v7935
        %v7937 = vcombine.low %v7929, %v7936
        %v7938 = vcombine.low %v6116, %v6120
        %v7939 = vcombine.low %v6124, %v6128
        %v7940 = vcombine.low %v6132, %v6136
        %v7941 = vcombine.low %v6140, %v6144
        %v7943 = vunpack.c.l.s4 1966171168
        %v7944 = vunpack.c.0.s8 %v7943
        %v7945 = vlaneseq
        %v7946 = vshrl.u32 %v7945, 7
        %v7947 = vsub.s32 %v7944, %v7946
        %v7948 = vrot.slane %v7938, %v7947
        %v7950 = vunpack.c.l.s4 1966171168
        %v7951 = vunpack.c.0.s8 %v7950
        %v7952 = vlaneseq
        %v7953 = vshrl.u32 %v7952, 7
        %v7954 = vsub.s32 %v7951, %v7953
        %v7955 = vrot.slane %v7939, %v7954
        %v7957 = vunpack.c.l.s4 1966171168
        %v7958 = vunpack.c.0.s8 %v7957
        %v7959 = vlaneseq
        %v7960 = vshrl.u32 %v7959, 7
        %v7961 = vsub.s32 %v7958, %v7960
        %v7962 = vrot.slane %v7940, %v7961
        %v7964 = vunpack.c.l.s4 1966171168
        %v7965 = vunpack.c.0.s8 %v7964
        %v7966 = vlaneseq
        %v7967 = vshrl.u32 %v7966, 7
        %v7968 = vsub.s32 %v7965, %v7967
        %v7969 = vrot.slane %v7941, %v7968
        %v7970 = vcombine.low %v7948, %v7955
        %v7971 = vcombine.low %v7962, %v7969
        %v7973 = vunpack.c.l.s4 1966171168
        %v7974 = vunpack.c.0.s8 %v7973
        %v7975 = vlaneseq
        %v7976 = vshrl.u32 %v7975, 7
        %v7977 = vsub.s32 %v7974, %v7976
        %v7978 = vrot.slane %v7970, %v7977
        %v7980 = vunpack.c.l.s4 1966171168
        %v7981 = vunpack.c.0.s8 %v7980
        %v7982 = vlaneseq
        %v7983 = vshrl.u32 %v7982, 7
        %v7984 = vsub.s32 %v7981, %v7983
        %v7985 = vrot.slane %v7971, %v7984
        %v7986 = vcombine.low %v7978, %v7985
        %v7987 = vcombine.low %v6148, %v6152
        %v7988 = vcombine.low %v6156, %v6160
        %v7989 = vcombine.low %v6164, %v6168
        %v7990 = vcombine.low %v6172, %v6176
        %v7992 = vunpack.c.l.s4 1966171168
        %v7993 = vunpack.c.0.s8 %v7992
        %v7994 = vlaneseq
        %v7995 = vshrl.u32 %v7994, 7
        %v7996 = vsub.s32 %v7993, %v7995
        %v7997 = vrot.slane %v7987, %v7996
        %v7999 = vunpack.c.l.s4 1966171168
        %v8000 = vunpack.c.0.s8 %v7999
        %v8001 = vlaneseq
        %v8002 = vshrl.u32 %v8001, 7
        %v8003 = vsub.s32 %v8000, %v8002
        %v8004 = vrot.slane %v7988, %v8003
        %v8006 = vunpack.c.l.s4 1966171168
        %v8007 = vunpack.c.0.s8 %v8006
        %v8008 = vlaneseq
        %v8009 = vshrl.u32 %v8008, 7
        %v8010 = vsub.s32 %v8007, %v8009
        %v8011 = vrot.slane %v7989, %v8010
        %v8013 = vunpack.c.l.s4 1966171168
        %v8014 = vunpack.c.0.s8 %v8013
        %v8015 = vlaneseq
        %v8016 = vshrl.u32 %v8015, 7
        %v8017 = vsub.s32 %v8014, %v8016
        %v8018 = vrot.slane %v7990, %v8017
        %v8019 = vcombine.low %v7997, %v8004
        %v8020 = vcombine.low %v8011, %v8018
        %v8022 = vunpack.c.l.s4 1966171168
        %v8023 = vunpack.c.0.s8 %v8022
        %v8024 = vlaneseq
        %v8025 = vshrl.u32 %v8024, 7
        %v8026 = vsub.s32 %v8023, %v8025
        %v8027 = vrot.slane %v8019, %v8026
        %v8029 = vunpack.c.l.s4 1966171168
        %v8030 = vunpack.c.0.s8 %v8029
        %v8031 = vlaneseq
        %v8032 = vshrl.u32 %v8031, 7
        %v8033 = vsub.s32 %v8030, %v8032
        %v8034 = vrot.slane %v8020, %v8033
        %v8035 = vcombine.low %v8027, %v8034
        %v8036 = vcombine.low %v6180, %v6184
        %v8037 = vcombine.low %v6188, %v6192
        %v8038 = vcombine.low %v6196, %v6200
        %v8039 = vcombine.low %v6204, %v6208
        %v8041 = vunpack.c.l.s4 1966171168
        %v8042 = vunpack.c.0.s8 %v8041
        %v8043 = vlaneseq
        %v8044 = vshrl.u32 %v8043, 7
        %v8045 = vsub.s32 %v8042, %v8044
        %v8046 = vrot.slane %v8036, %v8045
        %v8048 = vunpack.c.l.s4 1966171168
        %v8049 = vunpack.c.0.s8 %v8048
        %v8050 = vlaneseq
        %v8051 = vshrl.u32 %v8050, 7
        %v8052 = vsub.s32 %v8049, %v8051
        %v8053 = vrot.slane %v8037, %v8052
        %v8055 = vunpack.c.l.s4 1966171168
        %v8056 = vunpack.c.0.s8 %v8055
        %v8057 = vlaneseq
        %v8058 = vshrl.u32 %v8057, 7
        %v8059 = vsub.s32 %v8056, %v8058
        %v8060 = vrot.slane %v8038, %v8059
        %v8062 = vunpack.c.l.s4 1966171168
        %v8063 = vunpack.c.0.s8 %v8062
        %v8064 = vlaneseq
        %v8065 = vshrl.u32 %v8064, 7
        %v8066 = vsub.s32 %v8063, %v8065
        %v8067 = vrot.slane %v8039, %v8066
        %v8068 = vcombine.low %v8046, %v8053
        %v8069 = vcombine.low %v8060, %v8067
        %v8071 = vunpack.c.l.s4 1966171168
        %v8072 = vunpack.c.0.s8 %v8071
        %v8073 = vlaneseq
        %v8074 = vshrl.u32 %v8073, 7
        %v8075 = vsub.s32 %v8072, %v8074
        %v8076 = vrot.slane %v8068, %v8075
        %v8078 = vunpack.c.l.s4 1966171168
        %v8079 = vunpack.c.0.s8 %v8078
        %v8080 = vlaneseq
        %v8081 = vshrl.u32 %v8080, 7
        %v8082 = vsub.s32 %v8079, %v8081
        %v8083 = vrot.slane %v8069, %v8082
        %v8084 = vcombine.low %v8076, %v8083
        %v8085 = vcombine.low %v6212, %v6216
        %v8086 = vcombine.low %v6220, %v6224
        %v8087 = vcombine.low %v6228, %v6232
        %v8088 = vcombine.low %v6236, %v6240
        %v8090 = vunpack.c.l.s4 1966171168
        %v8091 = vunpack.c.0.s8 %v8090
        %v8092 = vlaneseq
        %v8093 = vshrl.u32 %v8092, 7
        %v8094 = vsub.s32 %v8091, %v8093
        %v8095 = vrot.slane %v8085, %v8094
        %v8097 = vunpack.c.l.s4 1966171168
        %v8098 = vunpack.c.0.s8 %v8097
        %v8099 = vlaneseq
        %v8100 = vshrl.u32 %v8099, 7
        %v8101 = vsub.s32 %v8098, %v8100
        %v8102 = vrot.slane %v8086, %v8101
        %v8104 = vunpack.c.l.s4 1966171168
        %v8105 = vunpack.c.0.s8 %v8104
        %v8106 = vlaneseq
        %v8107 = vshrl.u32 %v8106, 7
        %v8108 = vsub.s32 %v8105, %v8107
        %v8109 = vrot.slane %v8087, %v8108
        %v8111 = vunpack.c.l.s4 1966171168
        %v8112 = vunpack.c.0.s8 %v8111
        %v8113 = vlaneseq
        %v8114 = vshrl.u32 %v8113, 7
        %v8115 = vsub.s32 %v8112, %v8114
        %v8116 = vrot.slane %v8088, %v8115
        %v8117 = vcombine.low %v8095, %v8102
        %v8118 = vcombine.low %v8109, %v8116
        %v8120 = vunpack.c.l.s4 1966171168
        %v8121 = vunpack.c.0.s8 %v8120
        %v8122 = vlaneseq
        %v8123 = vshrl.u32 %v8122, 7
        %v8124 = vsub.s32 %v8121, %v8123
        %v8125 = vrot.slane %v8117, %v8124
        %v8127 = vunpack.c.l.s4 1966171168
        %v8128 = vunpack.c.0.s8 %v8127
        %v8129 = vlaneseq
        %v8130 = vshrl.u32 %v8129, 7
        %v8131 = vsub.s32 %v8128, %v8130
        %v8132 = vrot.slane %v8118, %v8131
        %v8133 = vcombine.low %v8125, %v8132
        %v8134 = vcombine.low %v6244, %v6248
        %v8135 = vcombine.low %v6252, %v6256
        %v8136 = vcombine.low %v6260, %v6264
        %v8137 = vcombine.low %v6268, %v6272
        %v8139 = vunpack.c.l.s4 1966171168
        %v8140 = vunpack.c.0.s8 %v8139
        %v8141 = vlaneseq
        %v8142 = vshrl.u32 %v8141, 7
        %v8143 = vsub.s32 %v8140, %v8142
        %v8144 = vrot.slane %v8134, %v8143
        %v8146 = vunpack.c.l.s4 1966171168
        %v8147 = vunpack.c.0.s8 %v8146
        %v8148 = vlaneseq
        %v8149 = vshrl.u32 %v8148, 7
        %v8150 = vsub.s32 %v8147, %v8149
        %v8151 = vrot.slane %v8135, %v8150
        %v8153 = vunpack.c.l.s4 1966171168
        %v8154 = vunpack.c.0.s8 %v8153
        %v8155 = vlaneseq
        %v8156 = vshrl.u32 %v8155, 7
        %v8157 = vsub.s32 %v8154, %v8156
        %v8158 = vrot.slane %v8136, %v8157
        %v8160 = vunpack.c.l.s4 1966171168
        %v8161 = vunpack.c.0.s8 %v8160
        %v8162 = vlaneseq
        %v8163 = vshrl.u32 %v8162, 7
        %v8164 = vsub.s32 %v8161, %v8163
        %v8165 = vrot.slane %v8137, %v8164
        %v8166 = vcombine.low %v8144, %v8151
        %v8167 = vcombine.low %v8158, %v8165
        %v8169 = vunpack.c.l.s4 1966171168
        %v8170 = vunpack.c.0.s8 %v8169
        %v8171 = vlaneseq
        %v8172 = vshrl.u32 %v8171, 7
        %v8173 = vsub.s32 %v8170, %v8172
        %v8174 = vrot.slane %v8166, %v8173
        %v8176 = vunpack.c.l.s4 1966171168
        %v8177 = vunpack.c.0.s8 %v8176
        %v8178 = vlaneseq
        %v8179 = vshrl.u32 %v8178, 7
        %v8180 = vsub.s32 %v8177, %v8179
        %v8181 = vrot.slane %v8167, %v8180
        %v8182 = vcombine.low %v8174, %v8181
        %v8183 = vcombine.low %v6276, %v6280
        %v8184 = vcombine.low %v6284, %v6288
        %v8185 = vcombine.low %v6292, %v6296
        %v8186 = vcombine.low %v6300, %v6304
        %v8188 = vunpack.c.l.s4 1966171168
        %v8189 = vunpack.c.0.s8 %v8188
        %v8190 = vlaneseq
        %v8191 = vshrl.u32 %v8190, 7
        %v8192 = vsub.s32 %v8189, %v8191
        %v8193 = vrot.slane %v8183, %v8192
        %v8195 = vunpack.c.l.s4 1966171168
        %v8196 = vunpack.c.0.s8 %v8195
        %v8197 = vlaneseq
        %v8198 = vshrl.u32 %v8197, 7
        %v8199 = vsub.s32 %v8196, %v8198
        %v8200 = vrot.slane %v8184, %v8199
        %v8202 = vunpack.c.l.s4 1966171168
        %v8203 = vunpack.c.0.s8 %v8202
        %v8204 = vlaneseq
        %v8205 = vshrl.u32 %v8204, 7
        %v8206 = vsub.s32 %v8203, %v8205
        %v8207 = vrot.slane %v8185, %v8206
        %v8209 = vunpack.c.l.s4 1966171168
        %v8210 = vunpack.c.0.s8 %v8209
        %v8211 = vlaneseq
        %v8212 = vshrl.u32 %v8211, 7
        %v8213 = vsub.s32 %v8210, %v8212
        %v8214 = vrot.slane %v8186, %v8213
        %v8215 = vcombine.low %v8193, %v8200
        %v8216 = vcombine.low %v8207, %v8214
        %v8218 = vunpack.c.l.s4 1966171168
        %v8219 = vunpack.c.0.s8 %v8218
        %v8220 = vlaneseq
        %v8221 = vshrl.u32 %v8220, 7
        %v8222 = vsub.s32 %v8219, %v8221
        %v8223 = vrot.slane %v8215, %v8222
        %v8225 = vunpack.c.l.s4 1966171168
        %v8226 = vunpack.c.0.s8 %v8225
        %v8227 = vlaneseq
        %v8228 = vshrl.u32 %v8227, 7
        %v8229 = vsub.s32 %v8226, %v8228
        %v8230 = vrot.slane %v8216, %v8229
        %v8231 = vcombine.low %v8223, %v8230
        %v8232 = vcombine.low %v6308, %v6312
        %v8233 = vcombine.low %v6316, %v6320
        %v8234 = vcombine.low %v6324, %v6328
        %v8235 = vcombine.low %v6332, %v6336
        %v8237 = vunpack.c.l.s4 1966171168
        %v8238 = vunpack.c.0.s8 %v8237
        %v8239 = vlaneseq
        %v8240 = vshrl.u32 %v8239, 7
        %v8241 = vsub.s32 %v8238, %v8240
        %v8242 = vrot.slane %v8232, %v8241
        %v8244 = vunpack.c.l.s4 1966171168
        %v8245 = vunpack.c.0.s8 %v8244
        %v8246 = vlaneseq
        %v8247 = vshrl.u32 %v8246, 7
        %v8248 = vsub.s32 %v8245, %v8247
        %v8249 = vrot.slane %v8233, %v8248
        %v8251 = vunpack.c.l.s4 1966171168
        %v8252 = vunpack.c.0.s8 %v8251
        %v8253 = vlaneseq
        %v8254 = vshrl.u32 %v8253, 7
        %v8255 = vsub.s32 %v8252, %v8254
        %v8256 = vrot.slane %v8234, %v8255
        %v8258 = vunpack.c.l.s4 1966171168
        %v8259 = vunpack.c.0.s8 %v8258
        %v8260 = vlaneseq
        %v8261 = vshrl.u32 %v8260, 7
        %v8262 = vsub.s32 %v8259, %v8261
        %v8263 = vrot.slane %v8235, %v8262
        %v8264 = vcombine.low %v8242, %v8249
        %v8265 = vcombine.low %v8256, %v8263
        %v8267 = vunpack.c.l.s4 1966171168
        %v8268 = vunpack.c.0.s8 %v8267
        %v8269 = vlaneseq
        %v8270 = vshrl.u32 %v8269, 7
        %v8271 = vsub.s32 %v8268, %v8270
        %v8272 = vrot.slane %v8264, %v8271
        %v8274 = vunpack.c.l.s4 1966171168
        %v8275 = vunpack.c.0.s8 %v8274
        %v8276 = vlaneseq
        %v8277 = vshrl.u32 %v8276, 7
        %v8278 = vsub.s32 %v8275, %v8277
        %v8279 = vrot.slane %v8265, %v8278
        %v8280 = vcombine.low %v8272, %v8279
        %v8281 = vcombine.low %v6340, %v6344
        %v8282 = vcombine.low %v6348, %v6352
        %v8283 = vcombine.low %v6356, %v6360
        %v8284 = vcombine.low %v6364, %v6368
        %v8286 = vunpack.c.l.s4 1966171168
        %v8287 = vunpack.c.0.s8 %v8286
        %v8288 = vlaneseq
        %v8289 = vshrl.u32 %v8288, 7
        %v8290 = vsub.s32 %v8287, %v8289
        %v8291 = vrot.slane %v8281, %v8290
        %v8293 = vunpack.c.l.s4 1966171168
        %v8294 = vunpack.c.0.s8 %v8293
        %v8295 = vlaneseq
        %v8296 = vshrl.u32 %v8295, 7
        %v8297 = vsub.s32 %v8294, %v8296
        %v8298 = vrot.slane %v8282, %v8297
        %v8300 = vunpack.c.l.s4 1966171168
        %v8301 = vunpack.c.0.s8 %v8300
        %v8302 = vlaneseq
        %v8303 = vshrl.u32 %v8302, 7
        %v8304 = vsub.s32 %v8301, %v8303
        %v8305 = vrot.slane %v8283, %v8304
        %v8307 = vunpack.c.l.s4 1966171168
        %v8308 = vunpack.c.0.s8 %v8307
        %v8309 = vlaneseq
        %v8310 = vshrl.u32 %v8309, 7
        %v8311 = vsub.s32 %v8308, %v8310
        %v8312 = vrot.slane %v8284, %v8311
        %v8313 = vcombine.low %v8291, %v8298
        %v8314 = vcombine.low %v8305, %v8312
        %v8316 = vunpack.c.l.s4 1966171168
        %v8317 = vunpack.c.0.s8 %v8316
        %v8318 = vlaneseq
        %v8319 = vshrl.u32 %v8318, 7
        %v8320 = vsub.s32 %v8317, %v8319
        %v8321 = vrot.slane %v8313, %v8320
        %v8323 = vunpack.c.l.s4 1966171168
        %v8324 = vunpack.c.0.s8 %v8323
        %v8325 = vlaneseq
        %v8326 = vshrl.u32 %v8325, 7
        %v8327 = vsub.s32 %v8324, %v8326
        %v8328 = vrot.slane %v8314, %v8327
        %v8329 = vcombine.low %v8321, %v8328
        %v8330 = vcombine.low %v6372, %v6376
        %v8331 = vcombine.low %v6380, %v6384
        %v8332 = vcombine.low %v6388, %v6392
        %v8333 = vcombine.low %v6396, %v6400
        %v8335 = vunpack.c.l.s4 1966171168
        %v8336 = vunpack.c.0.s8 %v8335
        %v8337 = vlaneseq
        %v8338 = vshrl.u32 %v8337, 7
        %v8339 = vsub.s32 %v8336, %v8338
        %v8340 = vrot.slane %v8330, %v8339
        %v8342 = vunpack.c.l.s4 1966171168
        %v8343 = vunpack.c.0.s8 %v8342
        %v8344 = vlaneseq
        %v8345 = vshrl.u32 %v8344, 7
        %v8346 = vsub.s32 %v8343, %v8345
        %v8347 = vrot.slane %v8331, %v8346
        %v8349 = vunpack.c.l.s4 1966171168
        %v8350 = vunpack.c.0.s8 %v8349
        %v8351 = vlaneseq
        %v8352 = vshrl.u32 %v8351, 7
        %v8353 = vsub.s32 %v8350, %v8352
        %v8354 = vrot.slane %v8332, %v8353
        %v8356 = vunpack.c.l.s4 1966171168
        %v8357 = vunpack.c.0.s8 %v8356
        %v8358 = vlaneseq
        %v8359 = vshrl.u32 %v8358, 7
        %v8360 = vsub.s32 %v8357, %v8359
        %v8361 = vrot.slane %v8333, %v8360
        %v8362 = vcombine.low %v8340, %v8347
        %v8363 = vcombine.low %v8354, %v8361
        %v8365 = vunpack.c.l.s4 1966171168
        %v8366 = vunpack.c.0.s8 %v8365
        %v8367 = vlaneseq
        %v8368 = vshrl.u32 %v8367, 7
        %v8369 = vsub.s32 %v8366, %v8368
        %v8370 = vrot.slane %v8362, %v8369
        %v8372 = vunpack.c.l.s4 1966171168
        %v8373 = vunpack.c.0.s8 %v8372
        %v8374 = vlaneseq
        %v8375 = vshrl.u32 %v8374, 7
        %v8376 = vsub.s32 %v8373, %v8375
        %v8377 = vrot.slane %v8363, %v8376
        %v8378 = vcombine.low %v8370, %v8377
        %v8379 = vcombine.low %v6404, %v6408
        %v8380 = vcombine.low %v6412, %v6416
        %v8381 = vcombine.low %v6420, %v6424
        %v8382 = vcombine.low %v6428, %v6432
        %v8384 = vunpack.c.l.s4 1966171168
        %v8385 = vunpack.c.0.s8 %v8384
        %v8386 = vlaneseq
        %v8387 = vshrl.u32 %v8386, 7
        %v8388 = vsub.s32 %v8385, %v8387
        %v8389 = vrot.slane %v8379, %v8388
        %v8391 = vunpack.c.l.s4 1966171168
        %v8392 = vunpack.c.0.s8 %v8391
        %v8393 = vlaneseq
        %v8394 = vshrl.u32 %v8393, 7
        %v8395 = vsub.s32 %v8392, %v8394
        %v8396 = vrot.slane %v8380, %v8395
        %v8398 = vunpack.c.l.s4 1966171168
        %v8399 = vunpack.c.0.s8 %v8398
        %v8400 = vlaneseq
        %v8401 = vshrl.u32 %v8400, 7
        %v8402 = vsub.s32 %v8399, %v8401
        %v8403 = vrot.slane %v8381, %v8402
        %v8405 = vunpack.c.l.s4 1966171168
        %v8406 = vunpack.c.0.s8 %v8405
        %v8407 = vlaneseq
        %v8408 = vshrl.u32 %v8407, 7
        %v8409 = vsub.s32 %v8406, %v8408
        %v8410 = vrot.slane %v8382, %v8409
        %v8411 = vcombine.low %v8389, %v8396
        %v8412 = vcombine.low %v8403, %v8410
        %v8414 = vunpack.c.l.s4 1966171168
        %v8415 = vunpack.c.0.s8 %v8414
        %v8416 = vlaneseq
        %v8417 = vshrl.u32 %v8416, 7
        %v8418 = vsub.s32 %v8415, %v8417
        %v8419 = vrot.slane %v8411, %v8418
        %v8421 = vunpack.c.l.s4 1966171168
        %v8422 = vunpack.c.0.s8 %v8421
        %v8423 = vlaneseq
        %v8424 = vshrl.u32 %v8423, 7
        %v8425 = vsub.s32 %v8422, %v8424
        %v8426 = vrot.slane %v8412, %v8425
        %v8427 = vcombine.low %v8419, %v8426
        %v8428 = vcombine.low %v6436, %v6440
        %v8429 = vcombine.low %v6444, %v6448
        %v8430 = vcombine.low %v6452, %v6456
        %v8431 = vcombine.low %v6460, %v6464
        %v8433 = vunpack.c.l.s4 1966171168
        %v8434 = vunpack.c.0.s8 %v8433
        %v8435 = vlaneseq
        %v8436 = vshrl.u32 %v8435, 7
        %v8437 = vsub.s32 %v8434, %v8436
        %v8438 = vrot.slane %v8428, %v8437
        %v8440 = vunpack.c.l.s4 1966171168
        %v8441 = vunpack.c.0.s8 %v8440
        %v8442 = vlaneseq
        %v8443 = vshrl.u32 %v8442, 7
        %v8444 = vsub.s32 %v8441, %v8443
        %v8445 = vrot.slane %v8429, %v8444
        %v8447 = vunpack.c.l.s4 1966171168
        %v8448 = vunpack.c.0.s8 %v8447
        %v8449 = vlaneseq
        %v8450 = vshrl.u32 %v8449, 7
        %v8451 = vsub.s32 %v8448, %v8450
        %v8452 = vrot.slane %v8430, %v8451
        %v8454 = vunpack.c.l.s4 1966171168
        %v8455 = vunpack.c.0.s8 %v8454
        %v8456 = vlaneseq
        %v8457 = vshrl.u32 %v8456, 7
        %v8458 = vsub.s32 %v8455, %v8457
        %v8459 = vrot.slane %v8431, %v8458
        %v8460 = vcombine.low %v8438, %v8445
        %v8461 = vcombine.low %v8452, %v8459
        %v8463 = vunpack.c.l.s4 1966171168
        %v8464 = vunpack.c.0.s8 %v8463
        %v8465 = vlaneseq
        %v8466 = vshrl.u32 %v8465, 7
        %v8467 = vsub.s32 %v8464, %v8466
        %v8468 = vrot.slane %v8460, %v8467
        %v8470 = vunpack.c.l.s4 1966171168
        %v8471 = vunpack.c.0.s8 %v8470
        %v8472 = vlaneseq
        %v8473 = vshrl.u32 %v8472, 7
        %v8474 = vsub.s32 %v8471, %v8473
        %v8475 = vrot.slane %v8461, %v8474
        %v8476 = vcombine.low %v8468, %v8475
        %v8477 = vcombine.low %v6468, %v6472
        %v8478 = vcombine.low %v6476, %v6480
        %v8479 = vcombine.low %v6484, %v6488
        %v8480 = vcombine.low %v6492, %v6496
        %v8482 = vunpack.c.l.s4 1966171168
        %v8483 = vunpack.c.0.s8 %v8482
        %v8484 = vlaneseq
        %v8485 = vshrl.u32 %v8484, 7
        %v8486 = vsub.s32 %v8483, %v8485
        %v8487 = vrot.slane %v8477, %v8486
        %v8489 = vunpack.c.l.s4 1966171168
        %v8490 = vunpack.c.0.s8 %v8489
        %v8491 = vlaneseq
        %v8492 = vshrl.u32 %v8491, 7
        %v8493 = vsub.s32 %v8490, %v8492
        %v8494 = vrot.slane %v8478, %v8493
        %v8496 = vunpack.c.l.s4 1966171168
        %v8497 = vunpack.c.0.s8 %v8496
        %v8498 = vlaneseq
        %v8499 = vshrl.u32 %v8498, 7
        %v8500 = vsub.s32 %v8497, %v8499
        %v8501 = vrot.slane %v8479, %v8500
        %v8503 = vunpack.c.l.s4 1966171168
        %v8504 = vunpack.c.0.s8 %v8503
        %v8505 = vlaneseq
        %v8506 = vshrl.u32 %v8505, 7
        %v8507 = vsub.s32 %v8504, %v8506
        %v8508 = vrot.slane %v8480, %v8507
        %v8509 = vcombine.low %v8487, %v8494
        %v8510 = vcombine.low %v8501, %v8508
        %v8512 = vunpack.c.l.s4 1966171168
        %v8513 = vunpack.c.0.s8 %v8512
        %v8514 = vlaneseq
        %v8515 = vshrl.u32 %v8514, 7
        %v8516 = vsub.s32 %v8513, %v8515
        %v8517 = vrot.slane %v8509, %v8516
        %v8519 = vunpack.c.l.s4 1966171168
        %v8520 = vunpack.c.0.s8 %v8519
        %v8521 = vlaneseq
        %v8522 = vshrl.u32 %v8521, 7
        %v8523 = vsub.s32 %v8520, %v8522
        %v8524 = vrot.slane %v8510, %v8523
        %v8525 = vcombine.low %v8517, %v8524
        %v8526 = vcombine.low %v6500, %v6504
        %v8527 = vcombine.low %v6508, %v6512
        %v8528 = vcombine.low %v6516, %v6520
        %v8529 = vcombine.low %v6524, %v6528
        %v8531 = vunpack.c.l.s4 1966171168
        %v8532 = vunpack.c.0.s8 %v8531
        %v8533 = vlaneseq
        %v8534 = vshrl.u32 %v8533, 7
        %v8535 = vsub.s32 %v8532, %v8534
        %v8536 = vrot.slane %v8526, %v8535
        %v8538 = vunpack.c.l.s4 1966171168
        %v8539 = vunpack.c.0.s8 %v8538
        %v8540 = vlaneseq
        %v8541 = vshrl.u32 %v8540, 7
        %v8542 = vsub.s32 %v8539, %v8541
        %v8543 = vrot.slane %v8527, %v8542
        %v8545 = vunpack.c.l.s4 1966171168
        %v8546 = vunpack.c.0.s8 %v8545
        %v8547 = vlaneseq
        %v8548 = vshrl.u32 %v8547, 7
        %v8549 = vsub.s32 %v8546, %v8548
        %v8550 = vrot.slane %v8528, %v8549
        %v8552 = vunpack.c.l.s4 1966171168
        %v8553 = vunpack.c.0.s8 %v8552
        %v8554 = vlaneseq
        %v8555 = vshrl.u32 %v8554, 7
        %v8556 = vsub.s32 %v8553, %v8555
        %v8557 = vrot.slane %v8529, %v8556
        %v8558 = vcombine.low %v8536, %v8543
        %v8559 = vcombine.low %v8550, %v8557
        %v8561 = vunpack.c.l.s4 1966171168
        %v8562 = vunpack.c.0.s8 %v8561
        %v8563 = vlaneseq
        %v8564 = vshrl.u32 %v8563, 7
        %v8565 = vsub.s32 %v8562, %v8564
        %v8566 = vrot.slane %v8558, %v8565
        %v8568 = vunpack.c.l.s4 1966171168
        %v8569 = vunpack.c.0.s8 %v8568
        %v8570 = vlaneseq
        %v8571 = vshrl.u32 %v8570, 7
        %v8572 = vsub.s32 %v8569, %v8571
        %v8573 = vrot.slane %v8559, %v8572
        %v8574 = vcombine.low %v8566, %v8573
        %v8575 = vcombine.low %v6532, %v6536
        %v8576 = vcombine.low %v6540, %v6544
        %v8577 = vcombine.low %v6548, %v6552
        %v8578 = vcombine.low %v6556, %v6560
        %v8580 = vunpack.c.l.s4 1966171168
        %v8581 = vunpack.c.0.s8 %v8580
        %v8582 = vlaneseq
        %v8583 = vshrl.u32 %v8582, 7
        %v8584 = vsub.s32 %v8581, %v8583
        %v8585 = vrot.slane %v8575, %v8584
        %v8587 = vunpack.c.l.s4 1966171168
        %v8588 = vunpack.c.0.s8 %v8587
        %v8589 = vlaneseq
        %v8590 = vshrl.u32 %v8589, 7
        %v8591 = vsub.s32 %v8588, %v8590
        %v8592 = vrot.slane %v8576, %v8591
        %v8594 = vunpack.c.l.s4 1966171168
        %v8595 = vunpack.c.0.s8 %v8594
        %v8596 = vlaneseq
        %v8597 = vshrl.u32 %v8596, 7
        %v8598 = vsub.s32 %v8595, %v8597
        %v8599 = vrot.slane %v8577, %v8598
        %v8601 = vunpack.c.l.s4 1966171168
        %v8602 = vunpack.c.0.s8 %v8601
        %v8603 = vlaneseq
        %v8604 = vshrl.u32 %v8603, 7
        %v8605 = vsub.s32 %v8602, %v8604
        %v8606 = vrot.slane %v8578, %v8605
        %v8607 = vcombine.low %v8585, %v8592
        %v8608 = vcombine.low %v8599, %v8606
        %v8610 = vunpack.c.l.s4 1966171168
        %v8611 = vunpack.c.0.s8 %v8610
        %v8612 = vlaneseq
        %v8613 = vshrl.u32 %v8612, 7
        %v8614 = vsub.s32 %v8611, %v8613
        %v8615 = vrot.slane %v8607, %v8614
        %v8617 = vunpack.c.l.s4 1966171168
        %v8618 = vunpack.c.0.s8 %v8617
        %v8619 = vlaneseq
        %v8620 = vshrl.u32 %v8619, 7
        %v8621 = vsub.s32 %v8618, %v8620
        %v8622 = vrot.slane %v8608, %v8621
        %v8623 = vcombine.low %v8615, %v8622
        %v8624 = vcombine.low %v6564, %v6568
        %v8625 = vcombine.low %v6572, %v6576
        %v8626 = vcombine.low %v6580, %v6584
        %v8627 = vcombine.low %v6588, %v6592
        %v8629 = vunpack.c.l.s4 1966171168
        %v8630 = vunpack.c.0.s8 %v8629
        %v8631 = vlaneseq
        %v8632 = vshrl.u32 %v8631, 7
        %v8633 = vsub.s32 %v8630, %v8632
        %v8634 = vrot.slane %v8624, %v8633
        %v8636 = vunpack.c.l.s4 1966171168
        %v8637 = vunpack.c.0.s8 %v8636
        %v8638 = vlaneseq
        %v8639 = vshrl.u32 %v8638, 7
        %v8640 = vsub.s32 %v8637, %v8639
        %v8641 = vrot.slane %v8625, %v8640
        %v8643 = vunpack.c.l.s4 1966171168
        %v8644 = vunpack.c.0.s8 %v8643
        %v8645 = vlaneseq
        %v8646 = vshrl.u32 %v8645, 7
        %v8647 = vsub.s32 %v8644, %v8646
        %v8648 = vrot.slane %v8626, %v8647
        %v8650 = vunpack.c.l.s4 1966171168
        %v8651 = vunpack.c.0.s8 %v8650
        %v8652 = vlaneseq
        %v8653 = vshrl.u32 %v8652, 7
        %v8654 = vsub.s32 %v8651, %v8653
        %v8655 = vrot.slane %v8627, %v8654
        %v8656 = vcombine.low %v8634, %v8641
        %v8657 = vcombine.low %v8648, %v8655
        %v8659 = vunpack.c.l.s4 1966171168
        %v8660 = vunpack.c.0.s8 %v8659
        %v8661 = vlaneseq
        %v8662 = vshrl.u32 %v8661, 7
        %v8663 = vsub.s32 %v8660, %v8662
        %v8664 = vrot.slane %v8656, %v8663
        %v8666 = vunpack.c.l.s4 1966171168
        %v8667 = vunpack.c.0.s8 %v8666
        %v8668 = vlaneseq
        %v8669 = vshrl.u32 %v8668, 7
        %v8670 = vsub.s32 %v8667, %v8669
        %v8671 = vrot.slane %v8657, %v8670
        %v8672 = vcombine.low %v8664, %v8671
        %v8673 = vcombine.low %v6596, %v6600
        %v8674 = vcombine.low %v6604, %v6608
        %v8675 = vcombine.low %v6612, %v6616
        %v8676 = vcombine.low %v6620, %v6624
        %v8678 = vunpack.c.l.s4 1966171168
        %v8679 = vunpack.c.0.s8 %v8678
        %v8680 = vlaneseq
        %v8681 = vshrl.u32 %v8680, 7
        %v8682 = vsub.s32 %v8679, %v8681
        %v8683 = vrot.slane %v8673, %v8682
        %v8685 = vunpack.c.l.s4 1966171168
        %v8686 = vunpack.c.0.s8 %v8685
        %v8687 = vlaneseq
        %v8688 = vshrl.u32 %v8687, 7
        %v8689 = vsub.s32 %v8686, %v8688
        %v8690 = vrot.slane %v8674, %v8689
        %v8692 = vunpack.c.l.s4 1966171168
        %v8693 = vunpack.c.0.s8 %v8692
        %v8694 = vlaneseq
        %v8695 = vshrl.u32 %v8694, 7
        %v8696 = vsub.s32 %v8693, %v8695
        %v8697 = vrot.slane %v8675, %v8696
        %v8699 = vunpack.c.l.s4 1966171168
        %v8700 = vunpack.c.0.s8 %v8699
        %v8701 = vlaneseq
        %v8702 = vshrl.u32 %v8701, 7
        %v8703 = vsub.s32 %v8700, %v8702
        %v8704 = vrot.slane %v8676, %v8703
        %v8705 = vcombine.low %v8683, %v8690
        %v8706 = vcombine.low %v8697, %v8704
        %v8708 = vunpack.c.l.s4 1966171168
        %v8709 = vunpack.c.0.s8 %v8708
        %v8710 = vlaneseq
        %v8711 = vshrl.u32 %v8710, 7
        %v8712 = vsub.s32 %v8709, %v8711
        %v8713 = vrot.slane %v8705, %v8712
        %v8715 = vunpack.c.l.s4 1966171168
        %v8716 = vunpack.c.0.s8 %v8715
        %v8717 = vlaneseq
        %v8718 = vshrl.u32 %v8717, 7
        %v8719 = vsub.s32 %v8716, %v8718
        %v8720 = vrot.slane %v8706, %v8719
        %v8721 = vcombine.low %v8713, %v8720
        %v8722 = vcombine.low %v6628, %v6632
        %v8723 = vcombine.low %v6636, %v6640
        %v8724 = vcombine.low %v6644, %v6648
        %v8725 = vcombine.low %v6652, %v6656
        %v8727 = vunpack.c.l.s4 1966171168
        %v8728 = vunpack.c.0.s8 %v8727
        %v8729 = vlaneseq
        %v8730 = vshrl.u32 %v8729, 7
        %v8731 = vsub.s32 %v8728, %v8730
        %v8732 = vrot.slane %v8722, %v8731
        %v8734 = vunpack.c.l.s4 1966171168
        %v8735 = vunpack.c.0.s8 %v8734
        %v8736 = vlaneseq
        %v8737 = vshrl.u32 %v8736, 7
        %v8738 = vsub.s32 %v8735, %v8737
        %v8739 = vrot.slane %v8723, %v8738
        %v8741 = vunpack.c.l.s4 1966171168
        %v8742 = vunpack.c.0.s8 %v8741
        %v8743 = vlaneseq
        %v8744 = vshrl.u32 %v8743, 7
        %v8745 = vsub.s32 %v8742, %v8744
        %v8746 = vrot.slane %v8724, %v8745
        %v8748 = vunpack.c.l.s4 1966171168
        %v8749 = vunpack.c.0.s8 %v8748
        %v8750 = vlaneseq
        %v8751 = vshrl.u32 %v8750, 7
        %v8752 = vsub.s32 %v8749, %v8751
        %v8753 = vrot.slane %v8725, %v8752
        %v8754 = vcombine.low %v8732, %v8739
        %v8755 = vcombine.low %v8746, %v8753
        %v8757 = vunpack.c.l.s4 1966171168
        %v8758 = vunpack.c.0.s8 %v8757
        %v8759 = vlaneseq
        %v8760 = vshrl.u32 %v8759, 7
        %v8761 = vsub.s32 %v8758, %v8760
        %v8762 = vrot.slane %v8754, %v8761
        %v8764 = vunpack.c.l.s4 1966171168
        %v8765 = vunpack.c.0.s8 %v8764
        %v8766 = vlaneseq
        %v8767 = vshrl.u32 %v8766, 7
        %v8768 = vsub.s32 %v8765, %v8767
        %v8769 = vrot.slane %v8755, %v8768
        %v8770 = vcombine.low %v8762, %v8769
        %v8771 = vcombine.low %v6660, %v6664
        %v8772 = vcombine.low %v6668, %v6672
        %v8773 = vcombine.low %v6676, %v6680
        %v8774 = vcombine.low %v6684, %v6688
        %v8776 = vunpack.c.l.s4 1966171168
        %v8777 = vunpack.c.0.s8 %v8776
        %v8778 = vlaneseq
        %v8779 = vshrl.u32 %v8778, 7
        %v8780 = vsub.s32 %v8777, %v8779
        %v8781 = vrot.slane %v8771, %v8780
        %v8783 = vunpack.c.l.s4 1966171168
        %v8784 = vunpack.c.0.s8 %v8783
        %v8785 = vlaneseq
        %v8786 = vshrl.u32 %v8785, 7
        %v8787 = vsub.s32 %v8784, %v8786
        %v8788 = vrot.slane %v8772, %v8787
        %v8790 = vunpack.c.l.s4 1966171168
        %v8791 = vunpack.c.0.s8 %v8790
        %v8792 = vlaneseq
        %v8793 = vshrl.u32 %v8792, 7
        %v8794 = vsub.s32 %v8791, %v8793
        %v8795 = vrot.slane %v8773, %v8794
        %v8797 = vunpack.c.l.s4 1966171168
        %v8798 = vunpack.c.0.s8 %v8797
        %v8799 = vlaneseq
        %v8800 = vshrl.u32 %v8799, 7
        %v8801 = vsub.s32 %v8798, %v8800
        %v8802 = vrot.slane %v8774, %v8801
        %v8803 = vcombine.low %v8781, %v8788
        %v8804 = vcombine.low %v8795, %v8802
        %v8806 = vunpack.c.l.s4 1966171168
        %v8807 = vunpack.c.0.s8 %v8806
        %v8808 = vlaneseq
        %v8809 = vshrl.u32 %v8808, 7
        %v8810 = vsub.s32 %v8807, %v8809
        %v8811 = vrot.slane %v8803, %v8810
        %v8813 = vunpack.c.l.s4 1966171168
        %v8814 = vunpack.c.0.s8 %v8813
        %v8815 = vlaneseq
        %v8816 = vshrl.u32 %v8815, 7
        %v8817 = vsub.s32 %v8814, %v8816
        %v8818 = vrot.slane %v8804, %v8817
        %v8819 = vcombine.low %v8811, %v8818
        %v8820 = vcombine.low %v6692, %v6696
        %v8821 = vcombine.low %v6700, %v6704
        %v8822 = vcombine.low %v6708, %v6712
        %v8823 = vcombine.low %v6716, %v6720
        %v8825 = vunpack.c.l.s4 1966171168
        %v8826 = vunpack.c.0.s8 %v8825
        %v8827 = vlaneseq
        %v8828 = vshrl.u32 %v8827, 7
        %v8829 = vsub.s32 %v8826, %v8828
        %v8830 = vrot.slane %v8820, %v8829
        %v8832 = vunpack.c.l.s4 1966171168
        %v8833 = vunpack.c.0.s8 %v8832
        %v8834 = vlaneseq
        %v8835 = vshrl.u32 %v8834, 7
        %v8836 = vsub.s32 %v8833, %v8835
        %v8837 = vrot.slane %v8821, %v8836
        %v8839 = vunpack.c.l.s4 1966171168
        %v8840 = vunpack.c.0.s8 %v8839
        %v8841 = vlaneseq
        %v8842 = vshrl.u32 %v8841, 7
        %v8843 = vsub.s32 %v8840, %v8842
        %v8844 = vrot.slane %v8822, %v8843
        %v8846 = vunpack.c.l.s4 1966171168
        %v8847 = vunpack.c.0.s8 %v8846
        %v8848 = vlaneseq
        %v8849 = vshrl.u32 %v8848, 7
        %v8850 = vsub.s32 %v8847, %v8849
        %v8851 = vrot.slane %v8823, %v8850
        %v8852 = vcombine.low %v8830, %v8837
        %v8853 = vcombine.low %v8844, %v8851
        %v8855 = vunpack.c.l.s4 1966171168
        %v8856 = vunpack.c.0.s8 %v8855
        %v8857 = vlaneseq
        %v8858 = vshrl.u32 %v8857, 7
        %v8859 = vsub.s32 %v8856, %v8858
        %v8860 = vrot.slane %v8852, %v8859
        %v8862 = vunpack.c.l.s4 1966171168
        %v8863 = vunpack.c.0.s8 %v8862
        %v8864 = vlaneseq
        %v8865 = vshrl.u32 %v8864, 7
        %v8866 = vsub.s32 %v8863, %v8865
        %v8867 = vrot.slane %v8853, %v8866
        %v8868 = vcombine.low %v8860, %v8867
        %v8869 = vcombine.low %v6724, %v6728
        %v8870 = vcombine.low %v6732, %v6736
        %v8871 = vcombine.low %v6740, %v6744
        %v8872 = vcombine.low %v6748, %v6752
        %v8874 = vunpack.c.l.s4 1966171168
        %v8875 = vunpack.c.0.s8 %v8874
        %v8876 = vlaneseq
        %v8877 = vshrl.u32 %v8876, 7
        %v8878 = vsub.s32 %v8875, %v8877
        %v8879 = vrot.slane %v8869, %v8878
        %v8881 = vunpack.c.l.s4 1966171168
        %v8882 = vunpack.c.0.s8 %v8881
        %v8883 = vlaneseq
        %v8884 = vshrl.u32 %v8883, 7
        %v8885 = vsub.s32 %v8882, %v8884
        %v8886 = vrot.slane %v8870, %v8885
        %v8888 = vunpack.c.l.s4 1966171168
        %v8889 = vunpack.c.0.s8 %v8888
        %v8890 = vlaneseq
        %v8891 = vshrl.u32 %v8890, 7
        %v8892 = vsub.s32 %v8889, %v8891
        %v8893 = vrot.slane %v8871, %v8892
        %v8895 = vunpack.c.l.s4 1966171168
        %v8896 = vunpack.c.0.s8 %v8895
        %v8897 = vlaneseq
        %v8898 = vshrl.u32 %v8897, 7
        %v8899 = vsub.s32 %v8896, %v8898
        %v8900 = vrot.slane %v8872, %v8899
        %v8901 = vcombine.low %v8879, %v8886
        %v8902 = vcombine.low %v8893, %v8900
        %v8904 = vunpack.c.l.s4 1966171168
        %v8905 = vunpack.c.0.s8 %v8904
        %v8906 = vlaneseq
        %v8907 = vshrl.u32 %v8906, 7
        %v8908 = vsub.s32 %v8905, %v8907
        %v8909 = vrot.slane %v8901, %v8908
        %v8911 = vunpack.c.l.s4 1966171168
        %v8912 = vunpack.c.0.s8 %v8911
        %v8913 = vlaneseq
        %v8914 = vshrl.u32 %v8913, 7
        %v8915 = vsub.s32 %v8912, %v8914
        %v8916 = vrot.slane %v8902, %v8915
        %v8917 = vcombine.low %v8909, %v8916
        %v8918 = vcombine.low %v6756, %v6760
        %v8919 = vcombine.low %v6764, %v6768
        %v8920 = vcombine.low %v6772, %v6776
        %v8921 = vcombine.low %v6780, %v6784
        %v8923 = vunpack.c.l.s4 1966171168
        %v8924 = vunpack.c.0.s8 %v8923
        %v8925 = vlaneseq
        %v8926 = vshrl.u32 %v8925, 7
        %v8927 = vsub.s32 %v8924, %v8926
        %v8928 = vrot.slane %v8918, %v8927
        %v8930 = vunpack.c.l.s4 1966171168
        %v8931 = vunpack.c.0.s8 %v8930
        %v8932 = vlaneseq
        %v8933 = vshrl.u32 %v8932, 7
        %v8934 = vsub.s32 %v8931, %v8933
        %v8935 = vrot.slane %v8919, %v8934
        %v8937 = vunpack.c.l.s4 1966171168
        %v8938 = vunpack.c.0.s8 %v8937
        %v8939 = vlaneseq
        %v8940 = vshrl.u32 %v8939, 7
        %v8941 = vsub.s32 %v8938, %v8940
        %v8942 = vrot.slane %v8920, %v8941
        %v8944 = vunpack.c.l.s4 1966171168
        %v8945 = vunpack.c.0.s8 %v8944
        %v8946 = vlaneseq
        %v8947 = vshrl.u32 %v8946, 7
        %v8948 = vsub.s32 %v8945, %v8947
        %v8949 = vrot.slane %v8921, %v8948
        %v8950 = vcombine.low %v8928, %v8935
        %v8951 = vcombine.low %v8942, %v8949
        %v8953 = vunpack.c.l.s4 1966171168
        %v8954 = vunpack.c.0.s8 %v8953
        %v8955 = vlaneseq
        %v8956 = vshrl.u32 %v8955, 7
        %v8957 = vsub.s32 %v8954, %v8956
        %v8958 = vrot.slane %v8950, %v8957
        %v8960 = vunpack.c.l.s4 1966171168
        %v8961 = vunpack.c.0.s8 %v8960
        %v8962 = vlaneseq
        %v8963 = vshrl.u32 %v8962, 7
        %v8964 = vsub.s32 %v8961, %v8963
        %v8965 = vrot.slane %v8951, %v8964
        %v8966 = vcombine.low %v8958, %v8965
        %v8967 = vcombine.low %v6788, %v6792
        %v8968 = vcombine.low %v6796, %v6800
        %v8969 = vcombine.low %v6804, %v6808
        %v8970 = vcombine.low %v6812, %v6816
        %v8972 = vunpack.c.l.s4 1966171168
        %v8973 = vunpack.c.0.s8 %v8972
        %v8974 = vlaneseq
        %v8975 = vshrl.u32 %v8974, 7
        %v8976 = vsub.s32 %v8973, %v8975
        %v8977 = vrot.slane %v8967, %v8976
        %v8979 = vunpack.c.l.s4 1966171168
        %v8980 = vunpack.c.0.s8 %v8979
        %v8981 = vlaneseq
        %v8982 = vshrl.u32 %v8981, 7
        %v8983 = vsub.s32 %v8980, %v8982
        %v8984 = vrot.slane %v8968, %v8983
        %v8986 = vunpack.c.l.s4 1966171168
        %v8987 = vunpack.c.0.s8 %v8986
        %v8988 = vlaneseq
        %v8989 = vshrl.u32 %v8988, 7
        %v8990 = vsub.s32 %v8987, %v8989
        %v8991 = vrot.slane %v8969, %v8990
        %v8993 = vunpack.c.l.s4 1966171168
        %v8994 = vunpack.c.0.s8 %v8993
        %v8995 = vlaneseq
        %v8996 = vshrl.u32 %v8995, 7
        %v8997 = vsub.s32 %v8994, %v8996
        %v8998 = vrot.slane %v8970, %v8997
        %v8999 = vcombine.low %v8977, %v8984
        %v9000 = vcombine.low %v8991, %v8998
        %v9002 = vunpack.c.l.s4 1966171168
        %v9003 = vunpack.c.0.s8 %v9002
        %v9004 = vlaneseq
        %v9005 = vshrl.u32 %v9004, 7
        %v9006 = vsub.s32 %v9003, %v9005
        %v9007 = vrot.slane %v8999, %v9006
        %v9009 = vunpack.c.l.s4 1966171168
        %v9010 = vunpack.c.0.s8 %v9009
        %v9011 = vlaneseq
        %v9012 = vshrl.u32 %v9011, 7
        %v9013 = vsub.s32 %v9010, %v9012
        %v9014 = vrot.slane %v9000, %v9013
        %v9015 = vcombine.low %v9007, %v9014
        %v9016 = vcombine.low %v6820, %v6824
        %v9017 = vcombine.low %v6828, %v6832
        %v9018 = vcombine.low %v6836, %v6840
        %v9019 = vcombine.low %v6844, %v6848
        %v9021 = vunpack.c.l.s4 1966171168
        %v9022 = vunpack.c.0.s8 %v9021
        %v9023 = vlaneseq
        %v9024 = vshrl.u32 %v9023, 7
        %v9025 = vsub.s32 %v9022, %v9024
        %v9026 = vrot.slane %v9016, %v9025
        %v9028 = vunpack.c.l.s4 1966171168
        %v9029 = vunpack.c.0.s8 %v9028
        %v9030 = vlaneseq
        %v9031 = vshrl.u32 %v9030, 7
        %v9032 = vsub.s32 %v9029, %v9031
        %v9033 = vrot.slane %v9017, %v9032
        %v9035 = vunpack.c.l.s4 1966171168
        %v9036 = vunpack.c.0.s8 %v9035
        %v9037 = vlaneseq
        %v9038 = vshrl.u32 %v9037, 7
        %v9039 = vsub.s32 %v9036, %v9038
        %v9040 = vrot.slane %v9018, %v9039
        %v9042 = vunpack.c.l.s4 1966171168
        %v9043 = vunpack.c.0.s8 %v9042
        %v9044 = vlaneseq
        %v9045 = vshrl.u32 %v9044, 7
        %v9046 = vsub.s32 %v9043, %v9045
        %v9047 = vrot.slane %v9019, %v9046
        %v9048 = vcombine.low %v9026, %v9033
        %v9049 = vcombine.low %v9040, %v9047
        %v9051 = vunpack.c.l.s4 1966171168
        %v9052 = vunpack.c.0.s8 %v9051
        %v9053 = vlaneseq
        %v9054 = vshrl.u32 %v9053, 7
        %v9055 = vsub.s32 %v9052, %v9054
        %v9056 = vrot.slane %v9048, %v9055
        %v9058 = vunpack.c.l.s4 1966171168
        %v9059 = vunpack.c.0.s8 %v9058
        %v9060 = vlaneseq
        %v9061 = vshrl.u32 %v9060, 7
        %v9062 = vsub.s32 %v9059, %v9061
        %v9063 = vrot.slane %v9049, %v9062
        %v9064 = vcombine.low %v9056, %v9063
        %v9065 = vcombine.low %v6852, %v6856
        %v9066 = vcombine.low %v6860, %v6864
        %v9067 = vcombine.low %v6868, %v6872
        %v9068 = vcombine.low %v6876, %v6880
        %v9070 = vunpack.c.l.s4 1966171168
        %v9071 = vunpack.c.0.s8 %v9070
        %v9072 = vlaneseq
        %v9073 = vshrl.u32 %v9072, 7
        %v9074 = vsub.s32 %v9071, %v9073
        %v9075 = vrot.slane %v9065, %v9074
        %v9077 = vunpack.c.l.s4 1966171168
        %v9078 = vunpack.c.0.s8 %v9077
        %v9079 = vlaneseq
        %v9080 = vshrl.u32 %v9079, 7
        %v9081 = vsub.s32 %v9078, %v9080
        %v9082 = vrot.slane %v9066, %v9081
        %v9084 = vunpack.c.l.s4 1966171168
        %v9085 = vunpack.c.0.s8 %v9084
        %v9086 = vlaneseq
        %v9087 = vshrl.u32 %v9086, 7
        %v9088 = vsub.s32 %v9085, %v9087
        %v9089 = vrot.slane %v9067, %v9088
        %v9091 = vunpack.c.l.s4 1966171168
        %v9092 = vunpack.c.0.s8 %v9091
        %v9093 = vlaneseq
        %v9094 = vshrl.u32 %v9093, 7
        %v9095 = vsub.s32 %v9092, %v9094
        %v9096 = vrot.slane %v9068, %v9095
        %v9097 = vcombine.low %v9075, %v9082
        %v9098 = vcombine.low %v9089, %v9096
        %v9100 = vunpack.c.l.s4 1966171168
        %v9101 = vunpack.c.0.s8 %v9100
        %v9102 = vlaneseq
        %v9103 = vshrl.u32 %v9102, 7
        %v9104 = vsub.s32 %v9101, %v9103
        %v9105 = vrot.slane %v9097, %v9104
        %v9107 = vunpack.c.l.s4 1966171168
        %v9108 = vunpack.c.0.s8 %v9107
        %v9109 = vlaneseq
        %v9110 = vshrl.u32 %v9109, 7
        %v9111 = vsub.s32 %v9108, %v9110
        %v9112 = vrot.slane %v9098, %v9111
        %v9113 = vcombine.low %v9105, %v9112
        %v9114 = vcombine.low %v6884, %v6888
        %v9115 = vcombine.low %v6892, %v6896
        %v9116 = vcombine.low %v6900, %v6904
        %v9117 = vcombine.low %v6908, %v6912
        %v9119 = vunpack.c.l.s4 1966171168
        %v9120 = vunpack.c.0.s8 %v9119
        %v9121 = vlaneseq
        %v9122 = vshrl.u32 %v9121, 7
        %v9123 = vsub.s32 %v9120, %v9122
        %v9124 = vrot.slane %v9114, %v9123
        %v9126 = vunpack.c.l.s4 1966171168
        %v9127 = vunpack.c.0.s8 %v9126
        %v9128 = vlaneseq
        %v9129 = vshrl.u32 %v9128, 7
        %v9130 = vsub.s32 %v9127, %v9129
        %v9131 = vrot.slane %v9115, %v9130
        %v9133 = vunpack.c.l.s4 1966171168
        %v9134 = vunpack.c.0.s8 %v9133
        %v9135 = vlaneseq
        %v9136 = vshrl.u32 %v9135, 7
        %v9137 = vsub.s32 %v9134, %v9136
        %v9138 = vrot.slane %v9116, %v9137
        %v9140 = vunpack.c.l.s4 1966171168
        %v9141 = vunpack.c.0.s8 %v9140
        %v9142 = vlaneseq
        %v9143 = vshrl.u32 %v9142, 7
        %v9144 = vsub.s32 %v9141, %v9143
        %v9145 = vrot.slane %v9117, %v9144
        %v9146 = vcombine.low %v9124, %v9131
        %v9147 = vcombine.low %v9138, %v9145
        %v9149 = vunpack.c.l.s4 1966171168
        %v9150 = vunpack.c.0.s8 %v9149
        %v9151 = vlaneseq
        %v9152 = vshrl.u32 %v9151, 7
        %v9153 = vsub.s32 %v9150, %v9152
        %v9154 = vrot.slane %v9146, %v9153
        %v9156 = vunpack.c.l.s4 1966171168
        %v9157 = vunpack.c.0.s8 %v9156
        %v9158 = vlaneseq
        %v9159 = vshrl.u32 %v9158, 7
        %v9160 = vsub.s32 %v9157, %v9159
        %v9161 = vrot.slane %v9147, %v9160
        %v9162 = vcombine.low %v9154, %v9161
        %v9163 = vcombine.low %v6916, %v6920
        %v9164 = vcombine.low %v6924, %v6928
        %v9165 = vcombine.low %v6932, %v6936
        %v9166 = vcombine.low %v6940, %v6944
        %v9168 = vunpack.c.l.s4 1966171168
        %v9169 = vunpack.c.0.s8 %v9168
        %v9170 = vlaneseq
        %v9171 = vshrl.u32 %v9170, 7
        %v9172 = vsub.s32 %v9169, %v9171
        %v9173 = vrot.slane %v9163, %v9172
        %v9175 = vunpack.c.l.s4 1966171168
        %v9176 = vunpack.c.0.s8 %v9175
        %v9177 = vlaneseq
        %v9178 = vshrl.u32 %v9177, 7
        %v9179 = vsub.s32 %v9176, %v9178
        %v9180 = vrot.slane %v9164, %v9179
        %v9182 = vunpack.c.l.s4 1966171168
        %v9183 = vunpack.c.0.s8 %v9182
        %v9184 = vlaneseq
        %v9185 = vshrl.u32 %v9184, 7
        %v9186 = vsub.s32 %v9183, %v9185
        %v9187 = vrot.slane %v9165, %v9186
        %v9189 = vunpack.c.l.s4 1966171168
        %v9190 = vunpack.c.0.s8 %v9189
        %v9191 = vlaneseq
        %v9192 = vshrl.u32 %v9191, 7
        %v9193 = vsub.s32 %v9190, %v9192
        %v9194 = vrot.slane %v9166, %v9193
        %v9195 = vcombine.low %v9173, %v9180
        %v9196 = vcombine.low %v9187, %v9194
        %v9198 = vunpack.c.l.s4 1966171168
        %v9199 = vunpack.c.0.s8 %v9198
        %v9200 = vlaneseq
        %v9201 = vshrl.u32 %v9200, 7
        %v9202 = vsub.s32 %v9199, %v9201
        %v9203 = vrot.slane %v9195, %v9202
        %v9205 = vunpack.c.l.s4 1966171168
        %v9206 = vunpack.c.0.s8 %v9205
        %v9207 = vlaneseq
        %v9208 = vshrl.u32 %v9207, 7
        %v9209 = vsub.s32 %v9206, %v9208
        %v9210 = vrot.slane %v9196, %v9209
        %v9211 = vcombine.low %v9203, %v9210
        %v9212 = vcombine.low %v6948, %v6952
        %v9213 = vcombine.low %v6956, %v6960
        %v9214 = vcombine.low %v6964, %v6968
        %v9215 = vcombine.low %v6972, %v6976
        %v9217 = vunpack.c.l.s4 1966171168
        %v9218 = vunpack.c.0.s8 %v9217
        %v9219 = vlaneseq
        %v9220 = vshrl.u32 %v9219, 7
        %v9221 = vsub.s32 %v9218, %v9220
        %v9222 = vrot.slane %v9212, %v9221
        %v9224 = vunpack.c.l.s4 1966171168
        %v9225 = vunpack.c.0.s8 %v9224
        %v9226 = vlaneseq
        %v9227 = vshrl.u32 %v9226, 7
        %v9228 = vsub.s32 %v9225, %v9227
        %v9229 = vrot.slane %v9213, %v9228
        %v9231 = vunpack.c.l.s4 1966171168
        %v9232 = vunpack.c.0.s8 %v9231
        %v9233 = vlaneseq
        %v9234 = vshrl.u32 %v9233, 7
        %v9235 = vsub.s32 %v9232, %v9234
        %v9236 = vrot.slane %v9214, %v9235
        %v9238 = vunpack.c.l.s4 1966171168
        %v9239 = vunpack.c.0.s8 %v9238
        %v9240 = vlaneseq
        %v9241 = vshrl.u32 %v9240, 7
        %v9242 = vsub.s32 %v9239, %v9241
        %v9243 = vrot.slane %v9215, %v9242
        %v9244 = vcombine.low %v9222, %v9229
        %v9245 = vcombine.low %v9236, %v9243
        %v9247 = vunpack.c.l.s4 1966171168
        %v9248 = vunpack.c.0.s8 %v9247
        %v9249 = vlaneseq
        %v9250 = vshrl.u32 %v9249, 7
        %v9251 = vsub.s32 %v9248, %v9250
        %v9252 = vrot.slane %v9244, %v9251
        %v9254 = vunpack.c.l.s4 1966171168
        %v9255 = vunpack.c.0.s8 %v9254
        %v9256 = vlaneseq
        %v9257 = vshrl.u32 %v9256, 7
        %v9258 = vsub.s32 %v9255, %v9257
        %v9259 = vrot.slane %v9245, %v9258
        %v9260 = vcombine.low %v9252, %v9259
        %v9261 = vcombine.low %v6980, %v6984
        %v9262 = vcombine.low %v6988, %v6992
        %v9263 = vcombine.low %v6996, %v7000
        %v9264 = vcombine.low %v7004, %v7008
        %v9266 = vunpack.c.l.s4 1966171168
        %v9267 = vunpack.c.0.s8 %v9266
        %v9268 = vlaneseq
        %v9269 = vshrl.u32 %v9268, 7
        %v9270 = vsub.s32 %v9267, %v9269
        %v9271 = vrot.slane %v9261, %v9270
        %v9273 = vunpack.c.l.s4 1966171168
        %v9274 = vunpack.c.0.s8 %v9273
        %v9275 = vlaneseq
        %v9276 = vshrl.u32 %v9275, 7
        %v9277 = vsub.s32 %v9274, %v9276
        %v9278 = vrot.slane %v9262, %v9277
        %v9280 = vunpack.c.l.s4 1966171168
        %v9281 = vunpack.c.0.s8 %v9280
        %v9282 = vlaneseq
        %v9283 = vshrl.u32 %v9282, 7
        %v9284 = vsub.s32 %v9281, %v9283
        %v9285 = vrot.slane %v9263, %v9284
        %v9287 = vunpack.c.l.s4 1966171168
        %v9288 = vunpack.c.0.s8 %v9287
        %v9289 = vlaneseq
        %v9290 = vshrl.u32 %v9289, 7
        %v9291 = vsub.s32 %v9288, %v9290
        %v9292 = vrot.slane %v9264, %v9291
        %v9293 = vcombine.low %v9271, %v9278
        %v9294 = vcombine.low %v9285, %v9292
        %v9296 = vunpack.c.l.s4 1966171168
        %v9297 = vunpack.c.0.s8 %v9296
        %v9298 = vlaneseq
        %v9299 = vshrl.u32 %v9298, 7
        %v9300 = vsub.s32 %v9297, %v9299
        %v9301 = vrot.slane %v9293, %v9300
        %v9303 = vunpack.c.l.s4 1966171168
        %v9304 = vunpack.c.0.s8 %v9303
        %v9305 = vlaneseq
        %v9306 = vshrl.u32 %v9305, 7
        %v9307 = vsub.s32 %v9304, %v9306
        %v9308 = vrot.slane %v9294, %v9307
        %v9309 = vcombine.low %v9301, %v9308
        %v9310 = vcombine.low %v7012, %v7016
        %v9311 = vcombine.low %v7020, %v7024
        %v9312 = vcombine.low %v7028, %v7032
        %v9313 = vcombine.low %v7036, %v7040
        %v9315 = vunpack.c.l.s4 1966171168
        %v9316 = vunpack.c.0.s8 %v9315
        %v9317 = vlaneseq
        %v9318 = vshrl.u32 %v9317, 7
        %v9319 = vsub.s32 %v9316, %v9318
        %v9320 = vrot.slane %v9310, %v9319
        %v9322 = vunpack.c.l.s4 1966171168
        %v9323 = vunpack.c.0.s8 %v9322
        %v9324 = vlaneseq
        %v9325 = vshrl.u32 %v9324, 7
        %v9326 = vsub.s32 %v9323, %v9325
        %v9327 = vrot.slane %v9311, %v9326
        %v9329 = vunpack.c.l.s4 1966171168
        %v9330 = vunpack.c.0.s8 %v9329
        %v9331 = vlaneseq
        %v9332 = vshrl.u32 %v9331, 7
        %v9333 = vsub.s32 %v9330, %v9332
        %v9334 = vrot.slane %v9312, %v9333
        %v9336 = vunpack.c.l.s4 1966171168
        %v9337 = vunpack.c.0.s8 %v9336
        %v9338 = vlaneseq
        %v9339 = vshrl.u32 %v9338, 7
        %v9340 = vsub.s32 %v9337, %v9339
        %v9341 = vrot.slane %v9313, %v9340
        %v9342 = vcombine.low %v9320, %v9327
        %v9343 = vcombine.low %v9334, %v9341
        %v9345 = vunpack.c.l.s4 1966171168
        %v9346 = vunpack.c.0.s8 %v9345
        %v9347 = vlaneseq
        %v9348 = vshrl.u32 %v9347, 7
        %v9349 = vsub.s32 %v9346, %v9348
        %v9350 = vrot.slane %v9342, %v9349
        %v9352 = vunpack.c.l.s4 1966171168
        %v9353 = vunpack.c.0.s8 %v9352
        %v9354 = vlaneseq
        %v9355 = vshrl.u32 %v9354, 7
        %v9356 = vsub.s32 %v9353, %v9355
        %v9357 = vrot.slane %v9343, %v9356
        %v9358 = vcombine.low %v9350, %v9357
        %v9359 = vcombine.low %v7044, %v7048
        %v9360 = vcombine.low %v7052, %v7056
        %v9361 = vcombine.low %v7060, %v7064
        %v9362 = vcombine.low %v7068, %v7072
        %v9364 = vunpack.c.l.s4 1966171168
        %v9365 = vunpack.c.0.s8 %v9364
        %v9366 = vlaneseq
        %v9367 = vshrl.u32 %v9366, 7
        %v9368 = vsub.s32 %v9365, %v9367
        %v9369 = vrot.slane %v9359, %v9368
        %v9371 = vunpack.c.l.s4 1966171168
        %v9372 = vunpack.c.0.s8 %v9371
        %v9373 = vlaneseq
        %v9374 = vshrl.u32 %v9373, 7
        %v9375 = vsub.s32 %v9372, %v9374
        %v9376 = vrot.slane %v9360, %v9375
        %v9378 = vunpack.c.l.s4 1966171168
        %v9379 = vunpack.c.0.s8 %v9378
        %v9380 = vlaneseq
        %v9381 = vshrl.u32 %v9380, 7
        %v9382 = vsub.s32 %v9379, %v9381
        %v9383 = vrot.slane %v9361, %v9382
        %v9385 = vunpack.c.l.s4 1966171168
        %v9386 = vunpack.c.0.s8 %v9385
        %v9387 = vlaneseq
        %v9388 = vshrl.u32 %v9387, 7
        %v9389 = vsub.s32 %v9386, %v9388
        %v9390 = vrot.slane %v9362, %v9389
        %v9391 = vcombine.low %v9369, %v9376
        %v9392 = vcombine.low %v9383, %v9390
        %v9394 = vunpack.c.l.s4 1966171168
        %v9395 = vunpack.c.0.s8 %v9394
        %v9396 = vlaneseq
        %v9397 = vshrl.u32 %v9396, 7
        %v9398 = vsub.s32 %v9395, %v9397
        %v9399 = vrot.slane %v9391, %v9398
        %v9401 = vunpack.c.l.s4 1966171168
        %v9402 = vunpack.c.0.s8 %v9401
        %v9403 = vlaneseq
        %v9404 = vshrl.u32 %v9403, 7
        %v9405 = vsub.s32 %v9402, %v9404
        %v9406 = vrot.slane %v9392, %v9405
        %v9407 = vcombine.low %v9399, %v9406
        %v9408 = vcombine.low %v7076, %v7080
        %v9409 = vcombine.low %v7084, %v7088
        %v9410 = vcombine.low %v7092, %v7096
        %v9411 = vcombine.low %v7100, %v7104
        %v9413 = vunpack.c.l.s4 1966171168
        %v9414 = vunpack.c.0.s8 %v9413
        %v9415 = vlaneseq
        %v9416 = vshrl.u32 %v9415, 7
        %v9417 = vsub.s32 %v9414, %v9416
        %v9418 = vrot.slane %v9408, %v9417
        %v9420 = vunpack.c.l.s4 1966171168
        %v9421 = vunpack.c.0.s8 %v9420
        %v9422 = vlaneseq
        %v9423 = vshrl.u32 %v9422, 7
        %v9424 = vsub.s32 %v9421, %v9423
        %v9425 = vrot.slane %v9409, %v9424
        %v9427 = vunpack.c.l.s4 1966171168
        %v9428 = vunpack.c.0.s8 %v9427
        %v9429 = vlaneseq
        %v9430 = vshrl.u32 %v9429, 7
        %v9431 = vsub.s32 %v9428, %v9430
        %v9432 = vrot.slane %v9410, %v9431
        %v9434 = vunpack.c.l.s4 1966171168
        %v9435 = vunpack.c.0.s8 %v9434
        %v9436 = vlaneseq
        %v9437 = vshrl.u32 %v9436, 7
        %v9438 = vsub.s32 %v9435, %v9437
        %v9439 = vrot.slane %v9411, %v9438
        %v9440 = vcombine.low %v9418, %v9425
        %v9441 = vcombine.low %v9432, %v9439
        %v9443 = vunpack.c.l.s4 1966171168
        %v9444 = vunpack.c.0.s8 %v9443
        %v9445 = vlaneseq
        %v9446 = vshrl.u32 %v9445, 7
        %v9447 = vsub.s32 %v9444, %v9446
        %v9448 = vrot.slane %v9440, %v9447
        %v9450 = vunpack.c.l.s4 1966171168
        %v9451 = vunpack.c.0.s8 %v9450
        %v9452 = vlaneseq
        %v9453 = vshrl.u32 %v9452, 7
        %v9454 = vsub.s32 %v9451, %v9453
        %v9455 = vrot.slane %v9441, %v9454
        %v9456 = vcombine.low %v9448, %v9455
        %9457 = vset.pattern.permute.xlu0 0
        %9458 = vperm.xlu0 %9457, %v7153
        %v9459 = vpop.permute.xlu0 %9458
        %9460 = vset.pattern.permute.xlu0 0
        %9461 = vperm.xlu0 %9460, %v7202
        %v9462 = vpop.permute.xlu0 %9461
        %9463 = vset.pattern.permute.xlu0 0
        %9464 = vperm.xlu0 %9463, %v7251
        %v9465 = vpop.permute.xlu0 %9464
        %9466 = vset.pattern.permute.xlu0 0
        %9467 = vperm.xlu0 %9466, %v7300
        %v9468 = vpop.permute.xlu0 %9467
        %9469 = vset.pattern.permute.xlu0 0
        %9470 = vperm.xlu0 %9469, %v7349
        %v9471 = vpop.permute.xlu0 %9470
        %9472 = vset.pattern.permute.xlu0 0
        %9473 = vperm.xlu0 %9472, %v7398
        %v9474 = vpop.permute.xlu0 %9473
        %9475 = vset.pattern.permute.xlu0 0
        %9476 = vperm.xlu0 %9475, %v7447
        %v9477 = vpop.permute.xlu0 %9476
        %9478 = vset.pattern.permute.xlu0 0
        %9479 = vperm.xlu0 %9478, %v7496
        %v9480 = vpop.permute.xlu0 %9479
        %9481 = vset.pattern.permute.xlu0 0
        %9482 = vperm.xlu0 %9481, %v7545
        %v9483 = vpop.permute.xlu0 %9482
        %9484 = vset.pattern.permute.xlu0 0
        %9485 = vperm.xlu0 %9484, %v7594
        %v9486 = vpop.permute.xlu0 %9485
        %9487 = vset.pattern.permute.xlu0 0
        %9488 = vperm.xlu0 %9487, %v7643
        %v9489 = vpop.permute.xlu0 %9488
        %9490 = vset.pattern.permute.xlu0 0
        %9491 = vperm.xlu0 %9490, %v7692
        %v9492 = vpop.permute.xlu0 %9491
        %9493 = vset.pattern.permute.xlu0 0
        %9494 = vperm.xlu0 %9493, %v7741
        %v9495 = vpop.permute.xlu0 %9494
        %9496 = vset.pattern.permute.xlu0 0
        %9497 = vperm.xlu0 %9496, %v7790
        %v9498 = vpop.permute.xlu0 %9497
        %9499 = vset.pattern.permute.xlu0 0
        %9500 = vperm.xlu0 %9499, %v7839
        %v9501 = vpop.permute.xlu0 %9500
        %9502 = vset.pattern.permute.xlu0 0
        %9503 = vperm.xlu0 %9502, %v7888
        %v9504 = vpop.permute.xlu0 %9503
        %9505 = vset.pattern.permute.xlu0 0
        %9506 = vperm.xlu0 %9505, %v7937
        %v9507 = vpop.permute.xlu0 %9506
        %9508 = vset.pattern.permute.xlu0 0
        %9509 = vperm.xlu0 %9508, %v7986
        %v9510 = vpop.permute.xlu0 %9509
        %9511 = vset.pattern.permute.xlu0 0
        %9512 = vperm.xlu0 %9511, %v8035
        %v9513 = vpop.permute.xlu0 %9512
        %9514 = vset.pattern.permute.xlu0 0
        %9515 = vperm.xlu0 %9514, %v8084
        %v9516 = vpop.permute.xlu0 %9515
        %9517 = vset.pattern.permute.xlu0 0
        %9518 = vperm.xlu0 %9517, %v8133
        %v9519 = vpop.permute.xlu0 %9518
        %9520 = vset.pattern.permute.xlu0 0
        %9521 = vperm.xlu0 %9520, %v8182
        %v9522 = vpop.permute.xlu0 %9521
        %9523 = vset.pattern.permute.xlu0 0
        %9524 = vperm.xlu0 %9523, %v8231
        %v9525 = vpop.permute.xlu0 %9524
        %9526 = vset.pattern.permute.xlu0 0
        %9527 = vperm.xlu0 %9526, %v8280
        %v9528 = vpop.permute.xlu0 %9527
        %9529 = vset.pattern.permute.xlu0 0
        %9530 = vperm.xlu0 %9529, %v8329
        %v9531 = vpop.permute.xlu0 %9530
        %9532 = vset.pattern.permute.xlu0 0
        %9533 = vperm.xlu0 %9532, %v8378
        %v9534 = vpop.permute.xlu0 %9533
        %9535 = vset.pattern.permute.xlu0 0
        %9536 = vperm.xlu0 %9535, %v8427
        %v9537 = vpop.permute.xlu0 %9536
        %9538 = vset.pattern.permute.xlu0 0
        %9539 = vperm.xlu0 %9538, %v8476
        %v9540 = vpop.permute.xlu0 %9539
        %9541 = vset.pattern.permute.xlu0 0
        %9542 = vperm.xlu0 %9541, %v8525
        %v9543 = vpop.permute.xlu0 %9542
        %9544 = vset.pattern.permute.xlu0 0
        %9545 = vperm.xlu0 %9544, %v8574
        %v9546 = vpop.permute.xlu0 %9545
        %9547 = vset.pattern.permute.xlu0 0
        %9548 = vperm.xlu0 %9547, %v8623
        %v9549 = vpop.permute.xlu0 %9548
        %9550 = vset.pattern.permute.xlu0 0
        %9551 = vperm.xlu0 %9550, %v8672
        %v9552 = vpop.permute.xlu0 %9551
        %9553 = vset.pattern.permute.xlu0 0
        %9554 = vperm.xlu0 %9553, %v8721
        %v9555 = vpop.permute.xlu0 %9554
        %9556 = vset.pattern.permute.xlu0 0
        %9557 = vperm.xlu0 %9556, %v8770
        %v9558 = vpop.permute.xlu0 %9557
        %9559 = vset.pattern.permute.xlu0 0
        %9560 = vperm.xlu0 %9559, %v8819
        %v9561 = vpop.permute.xlu0 %9560
        %9562 = vset.pattern.permute.xlu0 0
        %9563 = vperm.xlu0 %9562, %v8868
        %v9564 = vpop.permute.xlu0 %9563
        %9565 = vset.pattern.permute.xlu0 0
        %9566 = vperm.xlu0 %9565, %v8917
        %v9567 = vpop.permute.xlu0 %9566
        %9568 = vset.pattern.permute.xlu0 0
        %9569 = vperm.xlu0 %9568, %v8966
        %v9570 = vpop.permute.xlu0 %9569
        %9571 = vset.pattern.permute.xlu0 0
        %9572 = vperm.xlu0 %9571, %v9015
        %v9573 = vpop.permute.xlu0 %9572
        %9574 = vset.pattern.permute.xlu0 0
        %9575 = vperm.xlu0 %9574, %v9064
        %v9576 = vpop.permute.xlu0 %9575
        %9577 = vset.pattern.permute.xlu0 0
        %9578 = vperm.xlu0 %9577, %v9113
        %v9579 = vpop.permute.xlu0 %9578
        %9580 = vset.pattern.permute.xlu0 0
        %9581 = vperm.xlu0 %9580, %v9162
        %v9582 = vpop.permute.xlu0 %9581
        %9583 = vset.pattern.permute.xlu0 0
        %9584 = vperm.xlu0 %9583, %v9211
        %v9585 = vpop.permute.xlu0 %9584
        %9586 = vset.pattern.permute.xlu0 0
        %9587 = vperm.xlu0 %9586, %v9260
        %v9588 = vpop.permute.xlu0 %9587
        %9589 = vset.pattern.permute.xlu0 0
        %9590 = vperm.xlu0 %9589, %v9309
        %v9591 = vpop.permute.xlu0 %9590
        %9592 = vset.pattern.permute.xlu0 0
        %9593 = vperm.xlu0 %9592, %v9358
        %v9594 = vpop.permute.xlu0 %9593
        %9595 = vset.pattern.permute.xlu0 0
        %9596 = vperm.xlu0 %9595, %v9407
        %v9597 = vpop.permute.xlu0 %9596
        %9598 = vset.pattern.permute.xlu0 0
        %9599 = vperm.xlu0 %9598, %v9456
        %v9600 = vpop.permute.xlu0 %9599
        %v9601 = vlaneseq
        %v9602 = vshrl.u32 %v9601, 7
        %v9603 = vsub.s32 %v5077, %v9602
        %v9604 = vrot.slane %v9459, %v9603
        %v9605 = vlaneseq
        %v9606 = vshrl.u32 %v9605, 7
        %v9607 = vsub.s32 %v5082, %v9606
        %v9608 = vrot.slane %v9462, %v9607
        %v9609 = vsel %vm5087, %v9608, %v9604
        %v9610 = vlaneseq
        %v9611 = vshrl.u32 %v9610, 7
        %v9612 = vsub.s32 %v5089, %v9611
        %v9613 = vrot.slane %v9465, %v9612
        %v9614 = vsel %vm5094, %v9613, %v9609
        %v9615 = vlaneseq
        %v9616 = vshrl.u32 %v9615, 7
        %v9617 = vsub.s32 %v5096, %v9616
        %v9618 = vrot.slane %v9468, %v9617
        %v9619 = vsel %vm5101, %v9618, %v9614
        %v9620 = vlaneseq
        %v9621 = vshrl.u32 %v9620, 7
        %v9622 = vsub.s32 %v5103, %v9621
        %v9623 = vrot.slane %v9471, %v9622
        %v9624 = vsel %vm5108, %v9623, %v9619
        %v9625 = vlaneseq
        %v9626 = vshrl.u32 %v9625, 7
        %v9627 = vsub.s32 %v5110, %v9626
        %v9628 = vrot.slane %v9474, %v9627
        %v9629 = vsel %vm5115, %v9628, %v9624
        %v9630 = vlaneseq
        %v9631 = vshrl.u32 %v9630, 7
        %v9632 = vsub.s32 %v5117, %v9631
        %v9633 = vrot.slane %v9477, %v9632
        %v9634 = vsel %vm5122, %v9633, %v9629
        %v9635 = vlaneseq
        %v9636 = vshrl.u32 %v9635, 7
        %v9637 = vsub.s32 %v5124, %v9636
        %v9638 = vrot.slane %v9480, %v9637
        %v9639 = vsel %vm5129, %v9638, %v9634
        %v9640 = vlaneseq
        %v9641 = vshrl.u32 %v9640, 7
        %v9642 = vsub.s32 %v5131, %v9641
        %v9643 = vrot.slane %v9483, %v9642
        %v9644 = vsel %vm5136, %v9643, %v9639
        %v9645 = vlaneseq
        %v9646 = vshrl.u32 %v9645, 7
        %v9647 = vsub.s32 %v5138, %v9646
        %v9648 = vrot.slane %v9486, %v9647
        %v9649 = vsel %vm5143, %v9648, %v9644
        %v9650 = vlaneseq
        %v9651 = vshrl.u32 %v9650, 7
        %v9652 = vsub.s32 %v5145, %v9651
        %v9653 = vrot.slane %v9489, %v9652
        %v9654 = vsel %vm5150, %v9653, %v9649
        %v9655 = vlaneseq
        %v9656 = vshrl.u32 %v9655, 7
        %v9657 = vsub.s32 %v5152, %v9656
        %v9658 = vrot.slane %v9492, %v9657
        %v9659 = vsel %vm5157, %v9658, %v9654
        %v9660 = vlaneseq
        %v9661 = vshrl.u32 %v9660, 7
        %v9662 = vsub.s32 %v5159, %v9661
        %v9663 = vrot.slane %v9495, %v9662
        %v9664 = vsel %vm5164, %v9663, %v9659
        %v9665 = vlaneseq
        %v9666 = vshrl.u32 %v9665, 7
        %v9667 = vsub.s32 %v5166, %v9666
        %v9668 = vrot.slane %v9498, %v9667
        %v9669 = vsel %vm5171, %v9668, %v9664
        %v9670 = vlaneseq
        %v9671 = vshrl.u32 %v9670, 7
        %v9672 = vsub.s32 %v5173, %v9671
        %v9673 = vrot.slane %v9501, %v9672
        %v9674 = vsel %vm5178, %v9673, %v9669
        %v9675 = vlaneseq
        %v9676 = vshrl.u32 %v9675, 7
        %v9677 = vsub.s32 %v5180, %v9676
        %v9678 = vrot.slane %v9504, %v9677
        %v9679 = vsel %vm5185, %v9678, %v9674
        %v9680 = vlaneseq
        %v9681 = vshrl.u32 %v9680, 7
        %v9682 = vsub.s32 %v5077, %v9681
        %v9683 = vrot.slane %v9507, %v9682
        %v9684 = vlaneseq
        %v9685 = vshrl.u32 %v9684, 7
        %v9686 = vsub.s32 %v5082, %v9685
        %v9687 = vrot.slane %v9510, %v9686
        %v9688 = vsel %vm5087, %v9687, %v9683
        %v9689 = vlaneseq
        %v9690 = vshrl.u32 %v9689, 7
        %v9691 = vsub.s32 %v5089, %v9690
        %v9692 = vrot.slane %v9513, %v9691
        %v9693 = vsel %vm5094, %v9692, %v9688
        %v9694 = vlaneseq
        %v9695 = vshrl.u32 %v9694, 7
        %v9696 = vsub.s32 %v5096, %v9695
        %v9697 = vrot.slane %v9516, %v9696
        %v9698 = vsel %vm5101, %v9697, %v9693
        %v9699 = vlaneseq
        %v9700 = vshrl.u32 %v9699, 7
        %v9701 = vsub.s32 %v5103, %v9700
        %v9702 = vrot.slane %v9519, %v9701
        %v9703 = vsel %vm5108, %v9702, %v9698
        %v9704 = vlaneseq
        %v9705 = vshrl.u32 %v9704, 7
        %v9706 = vsub.s32 %v5110, %v9705
        %v9707 = vrot.slane %v9522, %v9706
        %v9708 = vsel %vm5115, %v9707, %v9703
        %v9709 = vlaneseq
        %v9710 = vshrl.u32 %v9709, 7
        %v9711 = vsub.s32 %v5117, %v9710
        %v9712 = vrot.slane %v9525, %v9711
        %v9713 = vsel %vm5122, %v9712, %v9708
        %v9714 = vlaneseq
        %v9715 = vshrl.u32 %v9714, 7
        %v9716 = vsub.s32 %v5124, %v9715
        %v9717 = vrot.slane %v9528, %v9716
        %v9718 = vsel %vm5129, %v9717, %v9713
        %v9719 = vlaneseq
        %v9720 = vshrl.u32 %v9719, 7
        %v9721 = vsub.s32 %v5131, %v9720
        %v9722 = vrot.slane %v9531, %v9721
        %v9723 = vsel %vm5136, %v9722, %v9718
        %v9724 = vlaneseq
        %v9725 = vshrl.u32 %v9724, 7
        %v9726 = vsub.s32 %v5138, %v9725
        %v9727 = vrot.slane %v9534, %v9726
        %v9728 = vsel %vm5143, %v9727, %v9723
        %v9729 = vlaneseq
        %v9730 = vshrl.u32 %v9729, 7
        %v9731 = vsub.s32 %v5145, %v9730
        %v9732 = vrot.slane %v9537, %v9731
        %v9733 = vsel %vm5150, %v9732, %v9728
        %v9734 = vlaneseq
        %v9735 = vshrl.u32 %v9734, 7
        %v9736 = vsub.s32 %v5152, %v9735
        %v9737 = vrot.slane %v9540, %v9736
        %v9738 = vsel %vm5157, %v9737, %v9733
        %v9739 = vlaneseq
        %v9740 = vshrl.u32 %v9739, 7
        %v9741 = vsub.s32 %v5159, %v9740
        %v9742 = vrot.slane %v9543, %v9741
        %v9743 = vsel %vm5164, %v9742, %v9738
        %v9744 = vlaneseq
        %v9745 = vshrl.u32 %v9744, 7
        %v9746 = vsub.s32 %v5166, %v9745
        %v9747 = vrot.slane %v9546, %v9746
        %v9748 = vsel %vm5171, %v9747, %v9743
        %v9749 = vlaneseq
        %v9750 = vshrl.u32 %v9749, 7
        %v9751 = vsub.s32 %v5173, %v9750
        %v9752 = vrot.slane %v9549, %v9751
        %v9753 = vsel %vm5178, %v9752, %v9748
        %v9754 = vlaneseq
        %v9755 = vshrl.u32 %v9754, 7
        %v9756 = vsub.s32 %v5180, %v9755
        %v9757 = vrot.slane %v9552, %v9756
        %v9758 = vsel %vm5185, %v9757, %v9753
        %v9759 = vlaneseq
        %v9760 = vshrl.u32 %v9759, 7
        %v9761 = vsub.s32 %v5077, %v9760
        %v9762 = vrot.slane %v9555, %v9761
        %v9763 = vlaneseq
        %v9764 = vshrl.u32 %v9763, 7
        %v9765 = vsub.s32 %v5082, %v9764
        %v9766 = vrot.slane %v9558, %v9765
        %v9767 = vsel %vm5087, %v9766, %v9762
        %v9768 = vlaneseq
        %v9769 = vshrl.u32 %v9768, 7
        %v9770 = vsub.s32 %v5089, %v9769
        %v9771 = vrot.slane %v9561, %v9770
        %v9772 = vsel %vm5094, %v9771, %v9767
        %v9773 = vlaneseq
        %v9774 = vshrl.u32 %v9773, 7
        %v9775 = vsub.s32 %v5096, %v9774
        %v9776 = vrot.slane %v9564, %v9775
        %v9777 = vsel %vm5101, %v9776, %v9772
        %v9778 = vlaneseq
        %v9779 = vshrl.u32 %v9778, 7
        %v9780 = vsub.s32 %v5103, %v9779
        %v9781 = vrot.slane %v9567, %v9780
        %v9782 = vsel %vm5108, %v9781, %v9777
        %v9783 = vlaneseq
        %v9784 = vshrl.u32 %v9783, 7
        %v9785 = vsub.s32 %v5110, %v9784
        %v9786 = vrot.slane %v9570, %v9785
        %v9787 = vsel %vm5115, %v9786, %v9782
        %v9788 = vlaneseq
        %v9789 = vshrl.u32 %v9788, 7
        %v9790 = vsub.s32 %v5117, %v9789
        %v9791 = vrot.slane %v9573, %v9790
        %v9792 = vsel %vm5122, %v9791, %v9787
        %v9793 = vlaneseq
        %v9794 = vshrl.u32 %v9793, 7
        %v9795 = vsub.s32 %v5124, %v9794
        %v9796 = vrot.slane %v9576, %v9795
        %v9797 = vsel %vm5129, %v9796, %v9792
        %v9798 = vlaneseq
        %v9799 = vshrl.u32 %v9798, 7
        %v9800 = vsub.s32 %v5131, %v9799
        %v9801 = vrot.slane %v9579, %v9800
        %v9802 = vsel %vm5136, %v9801, %v9797
        %v9803 = vlaneseq
        %v9804 = vshrl.u32 %v9803, 7
        %v9805 = vsub.s32 %v5138, %v9804
        %v9806 = vrot.slane %v9582, %v9805
        %v9807 = vsel %vm5143, %v9806, %v9802
        %v9808 = vlaneseq
        %v9809 = vshrl.u32 %v9808, 7
        %v9810 = vsub.s32 %v5145, %v9809
        %v9811 = vrot.slane %v9585, %v9810
        %v9812 = vsel %vm5150, %v9811, %v9807
        %v9813 = vlaneseq
        %v9814 = vshrl.u32 %v9813, 7
        %v9815 = vsub.s32 %v5152, %v9814
        %v9816 = vrot.slane %v9588, %v9815
        %v9817 = vsel %vm5157, %v9816, %v9812
        %v9818 = vlaneseq
        %v9819 = vshrl.u32 %v9818, 7
        %v9820 = vsub.s32 %v5159, %v9819
        %v9821 = vrot.slane %v9591, %v9820
        %v9822 = vsel %vm5164, %v9821, %v9817
        %v9823 = vlaneseq
        %v9824 = vshrl.u32 %v9823, 7
        %v9825 = vsub.s32 %v5166, %v9824
        %v9826 = vrot.slane %v9594, %v9825
        %v9827 = vsel %vm5171, %v9826, %v9822
        %v9828 = vlaneseq
        %v9829 = vshrl.u32 %v9828, 7
        %v9830 = vsub.s32 %v5173, %v9829
        %v9831 = vrot.slane %v9597, %v9830
        %v9832 = vsel %vm5178, %v9831, %v9827
        %v9833 = vlaneseq
        %v9834 = vshrl.u32 %v9833, 7
        %v9835 = vsub.s32 %v5180, %v9834
        %v9836 = vrot.slane %v9600, %v9835
        %v9837 = vsel %vm5185, %v9836, %v9832
        %v9838 = vcombine.low %v9679, %v9758
        %v9840 = vunpack.c.l.s4 1966171168
        %v9841 = vunpack.c.0.s8 %v9840
        %v9842 = vlaneseq
        %v9843 = vshrl.u32 %v9842, 7
        %v9844 = vsub.s32 %v9841, %v9843
        %v9845 = vrot.slane %v9838, %v9844
        %v9847 = vunpack.c.l.s4 1966171168
        %v9848 = vunpack.c.0.s8 %v9847
        %v9849 = vlaneseq
        %v9850 = vshrl.u32 %v9849, 7
        %v9851 = vsub.s32 %v9848, %v9850
        %v9852 = vrot.slane %v9837, %v9851
        %v9853 = vcombine.low %v9845, %v9852
        %v9855 = vunpack.c.l.s4 1966171168
        %v9856 = vunpack.c.0.s8 %v9855
        %v9857 = vlaneseq
        %v9858 = vshrl.u32 %v9857, 7
        %v9859 = vsub.s32 %v9856, %v9858
        %v9860 = vrot.slane %v9853, %v9859
        %v9862 = vadd.f32 %v5376, %v9860
        %9863 = vst.msk [vmem:[%s5375] sm:$0x7] %vm5373, %v9862
        %p9864 = scmp.eq.s32.totalorder %s29, 1
        // Predicated region
        $region141: #{swin_identification_head.1} parent=127 // pred_check
          %p9865 = pneg %p9864
        $region142: #{swin_identification_head.1} parent=127 // pred_check_branch
          %9867 = sbr.rel (%p9865) target = $region144
        $region143: #{swin_identification_head.1} parent=127 // pred_region
          %v9868 = vld [vmem:[#allocation2] sm:$0x7]
          %v9869 = vld [vmem:[%s5375] sm:$0x7]
          %v9871 = vlaneseq
          %v9872 = vshrl.u32 %v9871, 7
          %v9873 = vsub.s32 0, %v9872
          %v9874 = vrot.slane %v9868, %v9873
          %v9875 = vlaneseq
          %v9876 = vshrl.u32 %v9875, 7
          %v9877 = vsub.s32 1, %v9876
          %v9878 = vrot.slane %v9868, %v9877
          %v9879 = vlaneseq
          %v9880 = vshrl.u32 %v9879, 7
          %v9881 = vsub.s32 2, %v9880
          %v9882 = vrot.slane %v9868, %v9881
          %v9887 = vlaneseq
          %v9888 = vshrl.u32 %v9887, 7
          %v9889 = vsub.s32 0, %v9888
          %v9890 = vrot.slane %v9869, %v9889
          %v9891 = vlaneseq
          %v9892 = vshrl.u32 %v9891, 7
          %v9893 = vsub.s32 1, %v9892
          %v9894 = vrot.slane %v9869, %v9893
          %v9895 = vlaneseq
          %v9896 = vshrl.u32 %v9895, 7
          %v9897 = vsub.s32 2, %v9896
          %v9898 = vrot.slane %v9869, %v9897
          %vm9902 = vcmask 1040384
          %v9903 = vsel %vm9902, %v9874, %v9890
          %v9904 = vsel %vm9902, %v9878, %v9894
          %v9905 = vsel %vm9902, %v9882, %v9898
          %v9906 = vmul.f32 %v9903, 0.00390625
          %v9907 = vmul.f32 %v9904, 0.00390625
          %v9908 = vmul.f32 %v9905, 0.00390625
          %v9909 = vld [vmem:[%s2] sm:$0xff]
          %v9910 = vld [vmem:[%s2 + $0x8] sm:$0xff]
          %v9911 = vld [vmem:[%s2 + $0x10] sm:$0xff]
          %v9912 = vld [vmem:[%s2 + $0x18] sm:$0xff]
          %v9913 = vld [vmem:[%s2 + $0x20] sm:$0xff]
          %v9914 = vld [vmem:[%s2 + $0x28] sm:$0xff]
          %v9915 = vld [vmem:[%s2 + $0x30] sm:$0xff]
          %v9916 = vld [vmem:[%s2 + $0x38] sm:$0xff]
          %v9917 = vld [vmem:[%s2 + $0x40] sm:$0xff]
          %v9918 = vld [vmem:[%s2 + $0x48] sm:$0xff]
          %v9919 = vld [vmem:[%s2 + $0x50] sm:$0xff]
          %v9920 = vld [vmem:[%s2 + $0x58] sm:$0xff]
          %v9921 = vld [vmem:[%s2 + $0x60] sm:$0xff]
          %v9922 = vld [vmem:[%s2 + $0x68] sm:$0xff]
          %v9923 = vld [vmem:[%s2 + $0x70] sm:$0xff]
          %v9924 = vld [vmem:[%s2 + $0x78] sm:$0xff]
          %v9925 = vld [vmem:[%s2 + $0x80] sm:$0xff]
          %v9926 = vld [vmem:[%s2 + $0x88] sm:$0xff]
          %v9927 = vld [vmem:[%s2 + $0x90] sm:$0xff]
          %v9928 = vld [vmem:[%s2 + $0x98] sm:$0xff]
          %v9929 = vld [vmem:[%s2 + $0xa0] sm:$0xff]
          %v9930 = vld [vmem:[%s2 + $0xa8] sm:$0xff]
          %v9931 = vld [vmem:[%s2 + $0xb0] sm:$0xff]
          %v9932 = vld [vmem:[%s2 + $0xb8] sm:$0xff]
          %v9933 = vld [vmem:[%s2 + $0xc0] sm:$0xff]
          %v9934 = vld [vmem:[%s2 + $0xc8] sm:$0xff]
          %v9935 = vld [vmem:[%s2 + $0xd0] sm:$0xff]
          %v9936 = vld [vmem:[%s2 + $0xd8] sm:$0xff]
          %v9937 = vld [vmem:[%s2 + $0xe0] sm:$0xff]
          %v9938 = vld [vmem:[%s2 + $0xe8] sm:$0xff]
          %v9939 = vld [vmem:[%s2 + $0xf0] sm:$0xff]
          %v9940 = vld [vmem:[%s2 + $0xf8] sm:$0xff]
          %v9941 = vld [vmem:[%s2 + $0x100] sm:$0xff]
          %v9942 = vld [vmem:[%s2 + $0x108] sm:$0xff]
          %v9943 = vld [vmem:[%s2 + $0x110] sm:$0xff]
          %v9944 = vld [vmem:[%s2 + $0x118] sm:$0xff]
          %v9945 = vld [vmem:[%s2 + $0x120] sm:$0xff]
          %v9946 = vld [vmem:[%s2 + $0x128] sm:$0xff]
          %v9947 = vld [vmem:[%s2 + $0x130] sm:$0xff]
          %v9948 = vld [vmem:[%s2 + $0x138] sm:$0xff]
          %v9949 = vld [vmem:[%s2 + $0x140] sm:$0xff]
          %v9950 = vld [vmem:[%s2 + $0x148] sm:$0xff]
          %v9951 = vld [vmem:[%s2 + $0x150] sm:$0xff]
          %v9952 = vld [vmem:[%s2 + $0x158] sm:$0xff]
          %v9953 = vld [vmem:[%s2 + $0x160] sm:$0xff]
          %v9954 = vld [vmem:[%s2 + $0x168] sm:$0xff]
          %v9955 = vld [vmem:[%s2 + $0x170] sm:$0xff]
          %v9956 = vld [vmem:[%s2 + $0x178] sm:$0xff]
          %v9957 = vld [vmem:[%s3] sm:$0x1]
          %v9959 = vlaneseq
          %v9960 = vshrl.u32 %v9959, 7
          %v9961 = vsub.s32 0, %v9960
          %v9962 = vrot.slane %v9957, %v9961
          %9964 = vmatprep.subr.mxu0 0.0
          %9965 = vmatpush1.msra.mxu0 %v9909
          %9966 = vmatprep.subr.mxu0 0.0
          %9967 = vmatpush1.msra.mxu0 %v9910
          %9968 = vmatprep.subr.mxu0 0.0
          %9969 = vmatpush1.msra.mxu0 %v9911
          %9970 = vmatprep.subr.mxu0 0.0
          %9971 = vmatpush1.msra.mxu0 %v9912
          %9972 = vmatprep.subr.mxu0 0.0
          %9973 = vmatpush1.msra.mxu0 %v9913
          %9974 = vmatprep.subr.mxu0 0.0
          %9975 = vmatpush1.msra.mxu0 %v9914
          %9976 = vmatprep.subr.mxu0 0.0
          %9977 = vmatpush1.msra.mxu0 %v9915
          %9978 = vmatprep.subr.mxu0 0.0
          %9979 = vmatpush1.msra.mxu0 %v9916
          %9980 = vmatprep.subr.mxu0 0.0
          %9981 = vmatpush1.msra.mxu0 %v9917
          %9982 = vmatprep.subr.mxu0 0.0
          %9983 = vmatpush1.msra.mxu0 %v9918
          %9984 = vmatprep.subr.mxu0 0.0
          %9985 = vmatpush1.msra.mxu0 %v9919
          %9986 = vmatprep.subr.mxu0 0.0
          %9987 = vmatpush1.msra.mxu0 %v9920
          %9988 = vmatprep.subr.mxu0 0.0
          %9989 = vmatpush1.msra.mxu0 %v9921
          %9990 = vmatprep.subr.mxu0 0.0
          %9991 = vmatpush1.msra.mxu0 %v9922
          %9992 = vmatprep.subr.mxu0 0.0
          %9993 = vmatpush1.msra.mxu0 %v9923
          %9994 = vmatprep.subr.mxu0 0.0
          %9995 = vmatpush1.msra.mxu0 %v9924
          %9996 = vmatprep.subr.mxu0 0.0
          %9997 = vmatpush1.msra.mxu0 %v9925
          %9998 = vmatprep.subr.mxu0 0.0
          %9999 = vmatpush1.msra.mxu0 %v9926
          %10000 = vmatprep.subr.mxu0 0.0
          %10001 = vmatpush1.msra.mxu0 %v9927
          %10002 = vmatprep.subr.mxu0 0.0
          %10003 = vmatpush1.msra.mxu0 %v9928
          %10004 = vmatprep.subr.mxu0 0.0
          %10005 = vmatpush1.msra.mxu0 %v9929
          %10006 = vmatprep.subr.mxu0 0.0
          %10007 = vmatpush1.msra.mxu0 %v9930
          %10008 = vmatprep.subr.mxu0 0.0
          %10009 = vmatpush1.msra.mxu0 %v9931
          %10010 = vmatprep.subr.mxu0 0.0
          %10011 = vmatpush1.msra.mxu0 %v9932
          %10012 = vmatprep.subr.mxu0 0.0
          %10013 = vmatpush1.msra.mxu0 %v9933
          %10014 = vmatprep.subr.mxu0 0.0
          %10015 = vmatpush1.msra.mxu0 %v9934
          %10016 = vmatprep.subr.mxu0 0.0
          %10017 = vmatpush1.msra.mxu0 %v9935
          %10018 = vmatprep.subr.mxu0 0.0
          %10019 = vmatpush1.msra.mxu0 %v9936
          %10020 = vmatprep.subr.mxu0 0.0
          %10021 = vmatpush1.msra.mxu0 %v9937
          %10022 = vmatprep.subr.mxu0 0.0
          %10023 = vmatpush1.msra.mxu0 %v9938
          %10024 = vmatprep.subr.mxu0 0.0
          %10025 = vmatpush1.msra.mxu0 %v9939
          %10026 = vmatprep.subr.mxu0 0.0
          %10027 = vmatpush1.msra.mxu0 %v9940
          %10028 = vmatprep.mubr.f32.mxu0 %v9907
          %10029 = vmatmul.mubr.f32.gmra.mrb[0].mxu0 %v9906
          %v10030 = vpop.f32.mrb[0].mxu0
          %v10031 = vadd.f32 %v9962, %v10030
          %v10032 = vpop.f32.mrb[0].mxu0
          %10033 = vdwg.mxu0
          %10034 = vmatprep.subr.mxu0 0.0
          %10035 = vmatpush1.msra.mxu0 %v9941
          %10036 = vmatprep.subr.mxu0 0.0
          %10037 = vmatpush1.msra.mxu0 %v9942
          %10038 = vmatprep.subr.mxu0 0.0
          %10039 = vmatpush1.msra.mxu0 %v9943
          %10040 = vmatprep.subr.mxu0 0.0
          %10041 = vmatpush1.msra.mxu0 %v9944
          %10042 = vmatprep.subr.mxu0 0.0
          %10043 = vmatpush1.msra.mxu0 %v9945
          %10044 = vmatprep.subr.mxu0 0.0
          %10045 = vmatpush1.msra.mxu0 %v9946
          %10046 = vmatprep.subr.mxu0 0.0
          %10047 = vmatpush1.msra.mxu0 %v9947
          %10048 = vmatprep.subr.mxu0 0.0
          %10049 = vmatpush1.msra.mxu0 %v9948
          %10050 = vmatprep.subr.mxu0 0.0
          %10051 = vmatpush1.msra.mxu0 %v9949
          %10052 = vmatprep.subr.mxu0 0.0
          %10053 = vmatpush1.msra.mxu0 %v9950
          %10054 = vmatprep.subr.mxu0 0.0
          %10055 = vmatpush1.msra.mxu0 %v9951
          %10056 = vmatprep.subr.mxu0 0.0
          %10057 = vmatpush1.msra.mxu0 %v9952
          %10058 = vmatprep.subr.mxu0 0.0
          %10059 = vmatpush1.msra.mxu0 %v9953
          %10060 = vmatprep.subr.mxu0 0.0
          %10061 = vmatpush1.msra.mxu0 %v9954
          %10062 = vmatprep.subr.mxu0 0.0
          %10063 = vmatpush1.msra.mxu0 %v9955
          %10064 = vmatprep.subr.mxu0 0.0
          %10065 = vmatpush1.msra.mxu0 %v9956
          %10066 = vmatprep.subr.mxu0 0.0
          %10067 = vmatpush1.msra.mxu0 0.0
          %10068 = vmatprep.subr.mxu0 0.0
          %10069 = vmatpush1.msra.mxu0 0.0
          %10070 = vmatprep.subr.mxu0 0.0
          %10071 = vmatpush1.msra.mxu0 0.0
          %10072 = vmatprep.subr.mxu0 0.0
          %10073 = vmatpush1.msra.mxu0 0.0
          %10074 = vmatprep.subr.mxu0 0.0
          %10075 = vmatpush1.msra.mxu0 0.0
          %10076 = vmatprep.subr.mxu0 0.0
          %10077 = vmatpush1.msra.mxu0 0.0
          %10078 = vmatprep.subr.mxu0 0.0
          %10079 = vmatpush1.msra.mxu0 0.0
          %10080 = vmatprep.subr.mxu0 0.0
          %10081 = vmatpush1.msra.mxu0 0.0
          %10082 = vmatprep.subr.mxu0 0.0
          %10083 = vmatpush1.msra.mxu0 0.0
          %10084 = vmatprep.subr.mxu0 0.0
          %10085 = vmatpush1.msra.mxu0 0.0
          %10086 = vmatprep.subr.mxu0 0.0
          %10087 = vmatpush1.msra.mxu0 0.0
          %10088 = vmatprep.subr.mxu0 0.0
          %10089 = vmatpush1.msra.mxu0 0.0
          %10090 = vmatprep.subr.mxu0 0.0
          %10091 = vmatpush1.msra.mxu0 0.0
          %10092 = vmatprep.subr.mxu0 0.0
          %10093 = vmatpush1.msra.mxu0 0.0
          %10094 = vmatprep.subr.mxu0 0.0
          %10095 = vmatpush1.msra.mxu0 0.0
          %10096 = vmatprep.subr.mxu0 0.0
          %10097 = vmatpush1.msra.mxu0 0.0
          %10098 = vmatprep.mubr.f32.mxu0 0.0
          %10099 = vmatmul.mubr.f32.gmra.mrb[0].mxu0 %v9908
          %v10100 = vpop.f32.mrb[0].mxu0
          %v10101 = vadd.f32 %v10031, %v10100
          %v10102 = vpop.f32.mrb[0].mxu0
          %10103 = vdwg.mxu0
          %v10104 = vmul.f32 %v10101, %v10101
          %v10106 = vrot.slane %v10104, 1
          %v10108 = vsub.f32 %v10104, %v10106
          %v10110 = vrot.slane %v10101, 1
          %v10112 = vsub.f32 %v10101, %v10110
          %v10113 = vmul.f32 %v10112, %v10112
          %v10114 = vmul.f32 %v10101, %v10110
          %v10115 = vld [vmem:[%s4] sm:$0xff]
          %v10116 = vld [vmem:[%s4 + $0x8] sm:$0xff]
          %v10117 = vld [vmem:[%s4 + $0x10] sm:$0xff]
          %v10118 = vld [vmem:[%s4 + $0x18] sm:$0xff]
          %v10119 = vld [vmem:[%s4 + $0x20] sm:$0xff]
          %v10120 = vld [vmem:[%s4 + $0x28] sm:$0xff]
          %v10121 = vld [vmem:[%s4 + $0x30] sm:$0xff]
          %v10122 = vld [vmem:[%s4 + $0x38] sm:$0xff]
          %v10123 = vld [vmem:[%s4 + $0x40] sm:$0xff]
          %v10124 = vld [vmem:[%s4 + $0x48] sm:$0xff]
          %v10125 = vld [vmem:[%s4 + $0x50] sm:$0xff]
          %v10126 = vld [vmem:[%s4 + $0x58] sm:$0xff]
          %v10127 = vld [vmem:[%s4 + $0x60] sm:$0xff]
          %v10128 = vld [vmem:[%s4 + $0x68] sm:$0xff]
          %v10129 = vld [vmem:[%s4 + $0x70] sm:$0xff]
          %v10130 = vld [vmem:[%s4 + $0x78] sm:$0xff]
          %v10131 = vld [vmem:[%s5] sm:$0xff]
          %v10132 = vld [vmem:[%s5 + $0x8] sm:$0xff]
          %v10133 = vld [vmem:[%s5 + $0x10] sm:$0xff]
          %v10134 = vld [vmem:[%s5 + $0x18] sm:$0xff]
          %v10135 = vld [vmem:[%s5 + $0x20] sm:$0xff]
          %v10136 = vld [vmem:[%s5 + $0x28] sm:$0xff]
          %v10137 = vld [vmem:[%s5 + $0x30] sm:$0xff]
          %v10138 = vld [vmem:[%s5 + $0x38] sm:$0xff]
          %v10139 = vld [vmem:[%s5 + $0x40] sm:$0xff]
          %v10140 = vld [vmem:[%s5 + $0x48] sm:$0xff]
          %v10141 = vld [vmem:[%s5 + $0x50] sm:$0xff]
          %v10142 = vld [vmem:[%s5 + $0x58] sm:$0xff]
          %v10143 = vld [vmem:[%s5 + $0x60] sm:$0xff]
          %v10144 = vld [vmem:[%s5 + $0x68] sm:$0xff]
          %v10145 = vld [vmem:[%s5 + $0x70] sm:$0xff]
          %v10146 = vld [vmem:[%s5 + $0x78] sm:$0xff]
          %10147 = vmatprep.subr.mxu0 0.0
          %10148 = vmatpush1.msra.mxu0 %v10131
          %10149 = vmatprep.subr.mxu0 0.0
          %10150 = vmatpush1.msra.mxu0 %v10132
          %10151 = vmatprep.subr.mxu0 0.0
          %10152 = vmatpush1.msra.mxu0 %v10133
          %10153 = vmatprep.subr.mxu0 0.0
          %10154 = vmatpush1.msra.mxu0 %v10134
          %10155 = vmatprep.subr.mxu0 0.0
          %10156 = vmatpush1.msra.mxu0 %v10135
          %10157 = vmatprep.subr.mxu0 0.0
          %10158 = vmatpush1.msra.mxu0 %v10136
          %10159 = vmatprep.subr.mxu0 0.0
          %10160 = vmatpush1.msra.mxu0 %v10137
          %10161 = vmatprep.subr.mxu0 0.0
          %10162 = vmatpush1.msra.mxu0 %v10138
          %10163 = vmatprep.subr.mxu0 0.0
          %10164 = vmatpush1.msra.mxu0 %v10139
          %10165 = vmatprep.subr.mxu0 0.0
          %10166 = vmatpush1.msra.mxu0 %v10140
          %10167 = vmatprep.subr.mxu0 0.0
          %10168 = vmatpush1.msra.mxu0 %v10141
          %10169 = vmatprep.subr.mxu0 0.0
          %10170 = vmatpush1.msra.mxu0 %v10142
          %10171 = vmatprep.subr.mxu0 0.0
          %10172 = vmatpush1.msra.mxu0 %v10143
          %10173 = vmatprep.subr.mxu0 0.0
          %10174 = vmatpush1.msra.mxu0 %v10144
          %10175 = vmatprep.subr.mxu0 0.0
          %10176 = vmatpush1.msra.mxu0 %v10145
          %10177 = vmatprep.subr.mxu0 0.0
          %10178 = vmatpush1.msra.mxu0 %v10146
          %10179 = vmatprep.subr.mxu0 0.0
          %10180 = vmatpush1.msra.mxu0 0.0
          %10181 = vmatprep.subr.mxu0 0.0
          %10182 = vmatpush1.msra.mxu0 0.0
          %10183 = vmatprep.subr.mxu0 0.0
          %10184 = vmatpush1.msra.mxu0 0.0
          %10185 = vmatprep.subr.mxu0 0.0
          %10186 = vmatpush1.msra.mxu0 0.0
          %10187 = vmatprep.subr.mxu0 0.0
          %10188 = vmatpush1.msra.mxu0 0.0
          %10189 = vmatprep.subr.mxu0 0.0
          %10190 = vmatpush1.msra.mxu0 0.0
          %10191 = vmatprep.subr.mxu0 0.0
          %10192 = vmatpush1.msra.mxu0 0.0
          %10193 = vmatprep.subr.mxu0 0.0
          %10194 = vmatpush1.msra.mxu0 0.0
          %10195 = vmatprep.subr.mxu0 0.0
          %10196 = vmatpush1.msra.mxu0 0.0
          %10197 = vmatprep.subr.mxu0 0.0
          %10198 = vmatpush1.msra.mxu0 0.0
          %10199 = vmatprep.subr.mxu0 0.0
          %10200 = vmatpush1.msra.mxu0 0.0
          %10201 = vmatprep.subr.mxu0 0.0
          %10202 = vmatpush1.msra.mxu0 0.0
          %10203 = vmatprep.subr.mxu0 0.0
          %10204 = vmatpush1.msra.mxu0 0.0
          %10205 = vmatprep.subr.mxu0 0.0
          %10206 = vmatpush1.msra.mxu0 0.0
          %10207 = vmatprep.subr.mxu0 0.0
          %10208 = vmatpush1.msra.mxu0 0.0
          %10209 = vmatprep.subr.mxu0 0.0
          %10210 = vmatpush1.msra.mxu0 0.0
          %10211 = vmatprep.mubr.f32.mxu0 0.0
          %10212 = vmatmul.mubr.f32.gmra.mrb[0].mxu0 %v10113
          %v10213 = vpop.f32.mrb[0].mxu0
          %v10214 = vadd.f32 0.0, %v10213
          %v10215 = vpop.f32.mrb[0].mxu0
          %10216 = vdwg.mxu0
          %10217 = vmatprep.subr.mxu0 0.0
          %10218 = vmatpush1.msra.mxu0 %v10115
          %10219 = vmatprep.subr.mxu0 0.0
          %10220 = vmatpush1.msra.mxu0 %v10116
          %10221 = vmatprep.subr.mxu0 0.0
          %10222 = vmatpush1.msra.mxu0 %v10117
          %10223 = vmatprep.subr.mxu0 0.0
          %10224 = vmatpush1.msra.mxu0 %v10118
          %10225 = vmatprep.subr.mxu0 0.0
          %10226 = vmatpush1.msra.mxu0 %v10119
          %10227 = vmatprep.subr.mxu0 0.0
          %10228 = vmatpush1.msra.mxu0 %v10120
          %10229 = vmatprep.subr.mxu0 0.0
          %10230 = vmatpush1.msra.mxu0 %v10121
          %10231 = vmatprep.subr.mxu0 0.0
          %10232 = vmatpush1.msra.mxu0 %v10122
          %10233 = vmatprep.subr.mxu0 0.0
          %10234 = vmatpush1.msra.mxu0 %v10123
          %10235 = vmatprep.subr.mxu0 0.0
          %10236 = vmatpush1.msra.mxu0 %v10124
          %10237 = vmatprep.subr.mxu0 0.0
          %10238 = vmatpush1.msra.mxu0 %v10125
          %10239 = vmatprep.subr.mxu0 0.0
          %10240 = vmatpush1.msra.mxu0 %v10126
          %10241 = vmatprep.subr.mxu0 0.0
          %10242 = vmatpush1.msra.mxu0 %v10127
          %10243 = vmatprep.subr.mxu0 0.0
          %10244 = vmatpush1.msra.mxu0 %v10128
          %10245 = vmatprep.subr.mxu0 0.0
          %10246 = vmatpush1.msra.mxu0 %v10129
          %10247 = vmatprep.subr.mxu0 0.0
          %10248 = vmatpush1.msra.mxu0 %v10130
          %10249 = vmatprep.subr.mxu0 0.0
          %10250 = vmatpush1.msra.mxu0 0.0
          %10251 = vmatprep.subr.mxu0 0.0
          %10252 = vmatpush1.msra.mxu0 0.0
          %10253 = vmatprep.subr.mxu0 0.0
          %10254 = vmatpush1.msra.mxu0 0.0
          %10255 = vmatprep.subr.mxu0 0.0
          %10256 = vmatpush1.msra.mxu0 0.0
          %10257 = vmatprep.subr.mxu0 0.0
          %10258 = vmatpush1.msra.mxu0 0.0
          %10259 = vmatprep.subr.mxu0 0.0
          %10260 = vmatpush1.msra.mxu0 0.0
          %10261 = vmatprep.subr.mxu0 0.0
          %10262 = vmatpush1.msra.mxu0 0.0
          %10263 = vmatprep.subr.mxu0 0.0
          %10264 = vmatpush1.msra.mxu0 0.0
          %10265 = vmatprep.subr.mxu0 0.0
          %10266 = vmatpush1.msra.mxu0 0.0
          %10267 = vmatprep.subr.mxu0 0.0
          %10268 = vmatpush1.msra.mxu0 0.0
          %10269 = vmatprep.subr.mxu0 0.0
          %10270 = vmatpush1.msra.mxu0 0.0
          %10271 = vmatprep.subr.mxu0 0.0
          %10272 = vmatpush1.msra.mxu0 0.0
          %10273 = vmatprep.subr.mxu0 0.0
          %10274 = vmatpush1.msra.mxu0 0.0
          %10275 = vmatprep.subr.mxu0 0.0
          %10276 = vmatpush1.msra.mxu0 0.0
          %10277 = vmatprep.subr.mxu0 0.0
          %10278 = vmatpush1.msra.mxu0 0.0
          %10279 = vmatprep.subr.mxu0 0.0
          %10280 = vmatpush1.msra.mxu0 0.0
          %10281 = vmatprep.mubr.f32.mxu0 0.0
          %10282 = vmatmul.mubr.f32.gmra.mrb[0].mxu0 %v10108
          %v10283 = vpop.f32.mrb[0].mxu0
          %v10284 = vadd.f32 %v10214, %v10283
          %v10285 = vpop.f32.mrb[0].mxu0
          %10286 = vdwg.mxu0
          %v10287 = vld [vmem:[%s6] sm:$0xff]
          %v10288 = vld [vmem:[%s6 + $0x8] sm:$0xff]
          %v10289 = vld [vmem:[%s6 + $0x10] sm:$0xff]
          %v10290 = vld [vmem:[%s6 + $0x18] sm:$0xff]
          %v10291 = vld [vmem:[%s6 + $0x20] sm:$0xff]
          %v10292 = vld [vmem:[%s6 + $0x28] sm:$0xff]
          %v10293 = vld [vmem:[%s6 + $0x30] sm:$0xff]
          %v10294 = vld [vmem:[%s6 + $0x38] sm:$0xff]
          %v10295 = vld [vmem:[%s6 + $0x40] sm:$0xff]
          %v10296 = vld [vmem:[%s6 + $0x48] sm:$0xff]
          %v10297 = vld [vmem:[%s6 + $0x50] sm:$0xff]
          %v10298 = vld [vmem:[%s6 + $0x58] sm:$0xff]
          %v10299 = vld [vmem:[%s6 + $0x60] sm:$0xff]
          %v10300 = vld [vmem:[%s6 + $0x68] sm:$0xff]
          %v10301 = vld [vmem:[%s6 + $0x70] sm:$0xff]
          %v10302 = vld [vmem:[%s6 + $0x78] sm:$0xff]
          %10303 = vmatprep.subr.mxu0 0.0
          %10304 = vmatpush1.msra.mxu0 %v10287
          %10305 = vmatprep.subr.mxu0 0.0
          %10306 = vmatpush1.msra.mxu0 %v10288
          %10307 = vmatprep.subr.mxu0 0.0
          %10308 = vmatpush1.msra.mxu0 %v10289
          %10309 = vmatprep.subr.mxu0 0.0
          %10310 = vmatpush1.msra.mxu0 %v10290
          %10311 = vmatprep.subr.mxu0 0.0
          %10312 = vmatpush1.msra.mxu0 %v10291
          %10313 = vmatprep.subr.mxu0 0.0
          %10314 = vmatpush1.msra.mxu0 %v10292
          %10315 = vmatprep.subr.mxu0 0.0
          %10316 = vmatpush1.msra.mxu0 %v10293
          %10317 = vmatprep.subr.mxu0 0.0
          %10318 = vmatpush1.msra.mxu0 %v10294
          %10319 = vmatprep.subr.mxu0 0.0
          %10320 = vmatpush1.msra.mxu0 %v10295
          %10321 = vmatprep.subr.mxu0 0.0
          %10322 = vmatpush1.msra.mxu0 %v10296
          %10323 = vmatprep.subr.mxu0 0.0
          %10324 = vmatpush1.msra.mxu0 %v10297
          %10325 = vmatprep.subr.mxu0 0.0
          %10326 = vmatpush1.msra.mxu0 %v10298
          %10327 = vmatprep.subr.mxu0 0.0
          %10328 = vmatpush1.msra.mxu0 %v10299
          %10329 = vmatprep.subr.mxu0 0.0
          %10330 = vmatpush1.msra.mxu0 %v10300
          %10331 = vmatprep.subr.mxu0 0.0
          %10332 = vmatpush1.msra.mxu0 %v10301
          %10333 = vmatprep.subr.mxu0 0.0
          %10334 = vmatpush1.msra.mxu0 %v10302
          %10335 = vmatprep.subr.mxu0 0.0
          %10336 = vmatpush1.msra.mxu0 0.0
          %10337 = vmatprep.subr.mxu0 0.0
          %10338 = vmatpush1.msra.mxu0 0.0
          %10339 = vmatprep.subr.mxu0 0.0
          %10340 = vmatpush1.msra.mxu0 0.0
          %10341 = vmatprep.subr.mxu0 0.0
          %10342 = vmatpush1.msra.mxu0 0.0
          %10343 = vmatprep.subr.mxu0 0.0
          %10344 = vmatpush1.msra.mxu0 0.0
          %10345 = vmatprep.subr.mxu0 0.0
          %10346 = vmatpush1.msra.mxu0 0.0
          %10347 = vmatprep.subr.mxu0 0.0
          %10348 = vmatpush1.msra.mxu0 0.0
          %10349 = vmatprep.subr.mxu0 0.0
          %10350 = vmatpush1.msra.mxu0 0.0
          %10351 = vmatprep.subr.mxu0 0.0
          %10352 = vmatpush1.msra.mxu0 0.0
          %10353 = vmatprep.subr.mxu0 0.0
          %10354 = vmatpush1.msra.mxu0 0.0
          %10355 = vmatprep.subr.mxu0 0.0
          %10356 = vmatpush1.msra.mxu0 0.0
          %10357 = vmatprep.subr.mxu0 0.0
          %10358 = vmatpush1.msra.mxu0 0.0
          %10359 = vmatprep.subr.mxu0 0.0
          %10360 = vmatpush1.msra.mxu0 0.0
          %10361 = vmatprep.subr.mxu0 0.0
          %10362 = vmatpush1.msra.mxu0 0.0
          %10363 = vmatprep.subr.mxu0 0.0
          %10364 = vmatpush1.msra.mxu0 0.0
          %10365 = vmatprep.subr.mxu0 0.0
          %10366 = vmatpush1.msra.mxu0 0.0
          %10367 = vmatprep.mubr.f32.mxu0 0.0
          %10368 = vmatmul.mubr.f32.gmra.mrb[0].mxu0 %v10114
          %v10369 = vpop.f32.mrb[0].mxu0
          %v10370 = vadd.f32 0.0, %v10369
          %v10371 = vpop.f32.mrb[0].mxu0
          %10372 = vdwg.mxu0
          %v10373 = vadd.f32 %v10284, %v10370
          %v10374 = vld [vmem:[%s7] sm:$0x1]
          %v10375 = vadd.f32 %v10373, %v10374
          %v10376 = vmax.f32 %v10375, 0.0
          %v10377 = vld [vmem:[%s8] sm:$0xff]
          %v10378 = vld [vmem:[%s8 + $0x8] sm:$0xff]
          %v10379 = vld [vmem:[%s8 + $0x10] sm:$0xff]
          %v10380 = vld [vmem:[%s8 + $0x18] sm:$0xff]
          %v10381 = vld [vmem:[%s8 + $0x20] sm:$0xff]
          %v10382 = vld [vmem:[%s8 + $0x28] sm:$0xff]
          %v10383 = vld [vmem:[%s8 + $0x30] sm:$0xff]
          %v10384 = vld [vmem:[%s8 + $0x38] sm:$0xff]
          %v10385 = vld [vmem:[%s8 + $0x40] sm:$0xff]
          %v10386 = vld [vmem:[%s8 + $0x48] sm:$0xff]
          %v10387 = vld [vmem:[%s8 + $0x50] sm:$0xff]
          %v10388 = vld [vmem:[%s8 + $0x58] sm:$0xff]
          %v10389 = vld [vmem:[%s8 + $0x60] sm:$0xff]
          %v10390 = vld [vmem:[%s8 + $0x68] sm:$0xff]
          %v10391 = vld [vmem:[%s8 + $0x70] sm:$0xff]
          %v10392 = vld [vmem:[%s8 + $0x78] sm:$0xff]
          %v10393 = vld [vmem:[%s9] sm:$0x1]
          %10394 = vmatprep.subr.mxu0 0.0
          %10395 = vmatpush1.msra.mxu0 %v10377
          %10396 = vmatprep.subr.mxu0 0.0
          %10397 = vmatpush1.msra.mxu0 %v10378
          %10398 = vmatprep.subr.mxu0 0.0
          %10399 = vmatpush1.msra.mxu0 %v10379
          %10400 = vmatprep.subr.mxu0 0.0
          %10401 = vmatpush1.msra.mxu0 %v10380
          %10402 = vmatprep.subr.mxu0 0.0
          %10403 = vmatpush1.msra.mxu0 %v10381
          %10404 = vmatprep.subr.mxu0 0.0
          %10405 = vmatpush1.msra.mxu0 %v10382
          %10406 = vmatprep.subr.mxu0 0.0
          %10407 = vmatpush1.msra.mxu0 %v10383
          %10408 = vmatprep.subr.mxu0 0.0
          %10409 = vmatpush1.msra.mxu0 %v10384
          %10410 = vmatprep.subr.mxu0 0.0
          %10411 = vmatpush1.msra.mxu0 %v10385
          %10412 = vmatprep.subr.mxu0 0.0
          %10413 = vmatpush1.msra.mxu0 %v10386
          %10414 = vmatprep.subr.mxu0 0.0
          %10415 = vmatpush1.msra.mxu0 %v10387
          %10416 = vmatprep.subr.mxu0 0.0
          %10417 = vmatpush1.msra.mxu0 %v10388
          %10418 = vmatprep.subr.mxu0 0.0
          %10419 = vmatpush1.msra.mxu0 %v10389
          %10420 = vmatprep.subr.mxu0 0.0
          %10421 = vmatpush1.msra.mxu0 %v10390
          %10422 = vmatprep.subr.mxu0 0.0
          %10423 = vmatpush1.msra.mxu0 %v10391
          %10424 = vmatprep.subr.mxu0 0.0
          %10425 = vmatpush1.msra.mxu0 %v10392
          %10426 = vmatprep.subr.mxu0 0.0
          %10427 = vmatpush1.msra.mxu0 0.0
          %10428 = vmatprep.subr.mxu0 0.0
          %10429 = vmatpush1.msra.mxu0 0.0
          %10430 = vmatprep.subr.mxu0 0.0
          %10431 = vmatpush1.msra.mxu0 0.0
          %10432 = vmatprep.subr.mxu0 0.0
          %10433 = vmatpush1.msra.mxu0 0.0
          %10434 = vmatprep.subr.mxu0 0.0
          %10435 = vmatpush1.msra.mxu0 0.0
          %10436 = vmatprep.subr.mxu0 0.0
          %10437 = vmatpush1.msra.mxu0 0.0
          %10438 = vmatprep.subr.mxu0 0.0
          %10439 = vmatpush1.msra.mxu0 0.0
          %10440 = vmatprep.subr.mxu0 0.0
          %10441 = vmatpush1.msra.mxu0 0.0
          %10442 = vmatprep.subr.mxu0 0.0
          %10443 = vmatpush1.msra.mxu0 0.0
          %10444 = vmatprep.subr.mxu0 0.0
          %10445 = vmatpush1.msra.mxu0 0.0
          %10446 = vmatprep.subr.mxu0 0.0
          %10447 = vmatpush1.msra.mxu0 0.0
          %10448 = vmatprep.subr.mxu0 0.0
          %10449 = vmatpush1.msra.mxu0 0.0
          %10450 = vmatprep.subr.mxu0 0.0
          %10451 = vmatpush1.msra.mxu0 0.0
          %10452 = vmatprep.subr.mxu0 0.0
          %10453 = vmatpush1.msra.mxu0 0.0
          %10454 = vmatprep.subr.mxu0 0.0
          %10455 = vmatpush1.msra.mxu0 0.0
          %10456 = vmatprep.subr.mxu0 0.0
          %10457 = vmatpush1.msra.mxu0 0.0
          %10458 = vmatprep.mubr.f32.mxu0 0.0
          %10459 = vmatmul.mubr.f32.gmra.mrb[0].mxu0 %v10376
          %v10460 = vpop.f32.mrb[0].mxu0
          %v10461 = vadd.f32 %v10393, %v10460
          %v10462 = vpop.f32.mrb[0].mxu0
          %10463 = vdwg.mxu0
          %10464 = vst [vmem:[%s840] sm:$0x1] %v10461
        $region144: #{swin_identification_head.1} parent=127 // pred_fallthru
          _
        %s10465 = sand.u32 %s268, 1
        %s10466 = scalar_lea.sflag [#allocation6], %s10465
        %s10467 = sand.u32 %s268, 1
        %s10468 = scalar_lea.vmem [#allocation5], %s10467
        // Predicated region
        $region145: #{swin_identification_head.1} parent=127 // pred_check
          %p10469 = pneg %p278
        $region146: #{swin_identification_head.1} parent=127 // pred_check_branch
          %10471 = sbr.rel (%p10469) target = $region148
        $region147: #{swin_identification_head.1} parent=127 // pred_region
          %s10473 = ssub.s32 16, 16
          %10474 = vsyncadd %s10466, %s10473
          %s10475 = smul.addr %s28, 16
          %s10476 = scalar_lea.hbm %s10, %s10475
          %s10478 = sshll.u32 %s10468, 4
          %s10479 = int_to_ptr.vmem [resolvable:$true] %s10478
          %10481 = dma.vmem_to_hbm [thread:$0]  %s10479, 16, %s10476, %s10466
        $region148: #{swin_identification_head.1} parent=127 // pred_fallthru
          _
      $region128: #{swin_identification_head.1} parent=5 // pred_fallthru
        _
      %p10482 = scmp.le.s32.totalorder 2, %s19
      // Predicated region
      $region149: #{swin_identification_head.1} parent=5 // pred_check
        %p10483 = pneg %p10482
      $region150: #{swin_identification_head.1} parent=5 // pred_check_branch
        %10485 = sbr.rel (%p10483) target = $region152
      $region151: #{swin_identification_head.1} parent=5 // pred_region
        %s10486 = ssub.s32 %s19, 2
        // Predicated region
        $region153: #{swin_identification_head.1} parent=151 // pred_check
          %p10487 = pneg %p284
        $region154: #{swin_identification_head.1} parent=151 // pred_check_branch
          %10489 = sbr.rel (%p10487) target = $region156
        $region155: #{swin_identification_head.1} parent=151 // pred_region
          %s10490 = sand.u32 %s269, 1
          %s10491 = scalar_lea.sflag [#allocation6], %s10490
          %s10492 = sand.u32 %s269, 1
          %s10493 = scalar_lea.vmem [#allocation5], %s10492
          %10494 = dma.done %s10491, 16
        $region156: #{swin_identification_head.1} parent=151 // pred_fallthru
          _
      $region152: #{swin_identification_head.1} parent=5 // pred_fallthru
        _
    $region6: #{swin_identification_head.1} parent=1 // loop_footer
      %s23 = sadd.s32 1, %s19
    $region7: #{swin_identification_head.1} parent=1 // loop_footer_branch
      %18 = sbr.rel target = $region3
    $region8: #{swin_identification_head.1} parent=1 // loop_exit
      _
    %10495 = vsyncpa [#allocation6], 1
    %s10496 = scalar_lea.sflag [#allocation6], 1
    %10497 = vsyncpa %s10496, 1

</llo_original>
